<compile_context>
chip_gen: v5e
topology: v5e:2x2
jax: 0.10.0
libtpu: 0.0.40
codegen_flags: <defaults>
</compile_context>

<pallas_src>
import functools

import jax
import jax.numpy as jnp
from jax.experimental import pallas as pl
from jax.experimental.pallas import tpu as pltpu


_VMEM_LIMIT = 32 * 1024 * 1024   # generous for these tiles; < v7x's 64 MiB physical VMEM


# --------------------------- small helpers ----------------------------------

def _round_up(x, m):
    return (x + m - 1) // m * m


def _pick_tile(m, target, mult):
    """Largest t <= target with t % mult == 0 and m % t == 0 (caller ensures m % mult == 0)."""
    best = mult
    t = mult
    limit = min(target, m)
    while t <= limit:
        if m % t == 0:
            best = t
        t += mult
    return best


def _k_extra_groups(k, c):
    """Zero channel-groups (size c) to append so K becomes a multiple of 128 (0 if not cheap)."""
    for e in range(9):
        if (k + e * c) % 128 == 0:
            return e
    return 0


# --------------------------- Pallas kernels ---------------------------------

def _matmul_bias_act_kernel(x_ref, w_ref, b_ref, o_ref, *, relu):
    acc = jnp.dot(x_ref[...], w_ref[...], preferred_element_type=jnp.float32)
    acc = acc + b_ref[...]
    if relu:
        acc = jnp.maximum(acc, 0.0)
    o_ref[...] = acc.astype(o_ref.dtype)


def matmul_bias_act(x, w, b_row, *, relu, out_dtype, tm_target=1024):
    """y = act(x @ w + b).  x:[M,K] bf16 (M % 16 == 0), w:[K,N] bf16, b:[1,N] f32."""
    m, k = x.shape
    k2, n = w.shape
    assert k == k2 and b_row.shape == (1, n)
    mult = 16 if x.dtype == jnp.bfloat16 else 8
    assert m % mult == 0, (m, mult)
    tm = _pick_tile(m, tm_target, mult)
    kernel = functools.partial(_matmul_bias_act_kernel, relu=relu)
    return pl.pallas_call(
        kernel,
        out_shape=jax.ShapeDtypeStruct((m, n), out_dtype),
        grid=(m // tm,),
        in_specs=[
            pl.BlockSpec((tm, k), lambda i: (i, 0)),   # X tile (streams over M)
            pl.BlockSpec((k, n), lambda i: (0, 0)),    # full weight, VMEM-resident
            pl.BlockSpec((1, n), lambda i: (0, 0)),    # bias row
        ],
        out_specs=pl.BlockSpec((tm, n), lambda i: (i, 0)),
        compiler_params=pltpu.CompilerParams(
            dimension_semantics=("parallel",),
            vmem_limit_bytes=_VMEM_LIMIT),
    )(x, w, b_row)


def _half_lane_max_kernel(x_ref, o_ref):
    v = x_ref[...]
    half = v.shape[1] // 2
    o_ref[...] = jnp.maximum(v[:, :half], v[:, half:])


def maxpool_2x2(x_nhwc):
    """MaxPool2d(kernel_size=2, stride=2), NHWC, even H and W.

    Two single-block Pallas passes over free reshaped views:
      pass A pools along W (rows = N*H*WO, lanes = [dw, C]),
      pass B pools along H (rows = N*HO,   lanes = [dh, WO*C]) -> lane-dense output.
    """
    n, h, w, c = x_nhwc.shape
    ho, wo = h // 2, w // 2
    xa = x_nhwc.reshape(n * h * wo, 2 * c)
    ya = pl.pallas_call(
        _half_lane_max_kernel,
        out_shape=jax.ShapeDtypeStruct((n * h * wo, c), x_nhwc.dtype),
    )(xa)
    xb = ya.reshape(n * ho, 2 * wo * c)
    yb = pl.pallas_call(
        _half_lane_max_kernel,
        out_shape=jax.ShapeDtypeStruct((n * ho, wo * c), x_nhwc.dtype),
    )(xb)
    return yb.reshape(n, ho, wo, c)


def _fc_stack_kernel(other_ref, img_ref, w1, b1, w2, b2, w3, b3, w4i, w4o, b4,
                     o_ref, *, n_other_rows):
    f32 = jnp.float32
    bf16 = jnp.bfloat16
    h = jnp.dot(other_ref[...], w1[...], preferred_element_type=f32) + b1[...]
    h = jnp.maximum(h, 0.0).astype(bf16)
    h = jnp.dot(h, w2[...], preferred_element_type=f32) + b2[...]
    h = jnp.maximum(h, 0.0).astype(bf16)
    h = jnp.dot(h, w3[...], preferred_element_type=f32) + b3[...]
    h = jnp.maximum(h, 0.0).astype(bf16)        # [8, 128]; rows >= n_other_rows unused
    # fc4 applied to concat(flat_image, flat_other) == image part + per-row fc3 part
    q = jnp.dot(img_ref[...], w4i[...], preferred_element_type=f32) + b4[...]
    for r in range(n_other_rows):               # static, tiny loop (batch_other rows)
        q = q + jnp.dot(h[r:r + 1, :], w4o[r * 128:(r + 1) * 128, :],
                        preferred_element_type=f32)
    o_ref[...] = q[0:1, :]


def fc_stack(other, img_flat, prep):
    """Fused fc1->fc2->fc3->fc4; all weights resident in VMEM; returns q [out_dim]."""
    bo, din = other.shape
    limg = img_flat.shape[1]
    out_dim = prep["b4"].shape[1]
    assert bo <= 8 and prep["w4_oth"].shape[0] == bo * 128
    # pad the 1-row activations to 8 sublanes only (not 128)
    other_p = jnp.zeros((8, din), jnp.bfloat16).at[:bo, :].set(other.astype(jnp.bfloat16))
    img_p = jnp.zeros((8, limg), jnp.bfloat16).at[0, :].set(img_flat[0].astype(jnp.bfloat16))
    kernel = functools.partial(_fc_stack_kernel, n_other_rows=bo)
    q = pl.pallas_call(
        kernel,
        out_shape=jax.ShapeDtypeStruct((1, out_dim), jnp.float32),
        compiler_params=pltpu.CompilerParams(vmem_limit_bytes=_VMEM_LIMIT),
    )(other_p, img_p, prep["w1"], prep["b1"], prep["w2"], prep["b2"],
      prep["w3"], prep["b3"], prep["w4_img"], prep["w4_oth"], prep["b4"])
    return q[0]


# --------------------------- conv via im2col + Pallas matmul -----------------

def conv2d_relu(x_nhwc, w_mat, b_row, *, kh, kw, stride):
    """Valid-padding conv + ReLU.  w_mat/b_row are pre-prepared (see _prep_conv)."""
    n, h, w, c = x_nhwc.shape
    oh = (h - kh) // stride + 1
    ow = (w - kw) // stride + 1
    # im2col (glue, indexing only): gather kh x kw patches in (kh, kw, c) order.
    cols = []
    for i in range(kh):
        for j in range(kw):
            cols.append(
                x_nhwc[:, i: i + stride * (oh - 1) + 1: stride,
                          j: j + stride * (ow - 1) + 1: stride, :])
    extra = _k_extra_groups(kh * kw * c, c)
    for _ in range(extra):                      # pad K to a multiple of 128 (zero groups)
        cols.append(jnp.zeros_like(cols[0]))
    k_pad = (kh * kw + extra) * c
    assert w_mat.shape[0] == k_pad
    patches = jnp.stack(cols, axis=3).reshape(n * oh * ow, k_pad)
    m = n * oh * ow
    m_pad = _round_up(m, 16)                    # sublane minimum only (bf16 -> 16)
    if m_pad != m:
        patches = jnp.pad(patches, ((0, m_pad - m), (0, 0)))
    y = matmul_bias_act(patches, w_mat, b_row, relu=True, out_dtype=jnp.bfloat16)
    if m_pad != m:
        y = y[:m]
    return y.reshape(n, oh, ow, w_mat.shape[1])


# --------------------------- parameters --------------------------------------

def init_dqn_params(key, image_channels, input_dim, output_dim, fc4_in):
    def dense(k, fan_in, fan_out):
        kw_, kb = jax.random.split(k)
        s = 1.0 / (fan_in ** 0.5)
        return (jax.random.uniform(kw_, (fan_in, fan_out), jnp.float32, -s, s),
                jax.random.uniform(kb, (fan_out,), jnp.float32, -s, s))

    def conv(k, oc, ic, ksz):
        kw_, kb = jax.random.split(k)
        s = 1.0 / ((ic * ksz * ksz) ** 0.5)
        return (jax.random.uniform(kw_, (oc, ic, ksz, ksz), jnp.float32, -s, s),
                jax.random.uniform(kb, (oc,), jnp.float32, -s, s))

    ks = jax.random.split(key, 8)
    return {
        "conv1": conv(ks[0], 32, image_channels, 8),
        "conv2": conv(ks[1], 64, 32, 4),
        "conv3": conv(ks[2], 128, 64, 3),
        "conv4": conv(ks[3], 256, 128, 3),
        "fc1": dense(ks[4], input_dim, 512),
        "fc2": dense(ks[5], 512, 256),
        "fc3": dense(ks[6], 256, 128),
        "fc4": dense(ks[7], fc4_in, output_dim),
    }


def _prep_conv(w_oihw, b):
    """OIHW -> [KH*KW*IC (+zero pad to mult of 128), OC] bf16, bias -> [1, OC] f32."""
    oc, ic, kh, kw = w_oihw.shape
    k = kh * kw * ic
    extra = _k_extra_groups(k, ic)
    wm = jnp.transpose(w_oihw, (2, 3, 1, 0)).reshape(k, oc)
    if extra:
        wm = jnp.concatenate([wm, jnp.zeros((extra * ic, oc), wm.dtype)], axis=0)
    return wm.astype(jnp.bfloat16), b.astype(jnp.float32).reshape(1, oc)


def prepare_params(params, image_feat_len):
    """One-time weight transpose / pad / bf16 cast (kept out of the jitted forward)."""
    prep = {}
    for name in ("conv1", "conv2", "conv3", "conv4"):
        w, b = params[name]
        prep[name + "_w"], prep[name + "_b"] = _prep_conv(w, b)
    for i, name in ((1, "fc1"), (2, "fc2"), (3, "fc3")):
        w, b = params[name]
        prep[f"w{i}"] = w.astype(jnp.bfloat16)
        prep[f"b{i}"] = b.astype(jnp.float32).reshape(1, -1)
    w4, b4 = params["fc4"]
    prep["w4_img"] = w4[:image_feat_len].astype(jnp.bfloat16)   # rows for flat_image
    prep["w4_oth"] = w4[image_feat_len:].astype(jnp.bfloat16)   # rows for flat fc3 output
    prep["b4"] = b4.astype(jnp.float32).reshape(1, -1)
    return prep


# --------------------------- forward ------------------------------------------

def dqn_forward(prep, image_nchw, other):
    # image: NCHW at the boundary (PyTorch) -> NHWC (channels on the lane dim), bf16
    x = jnp.transpose(image_nchw, (0, 2, 3, 1)).astype(jnp.bfloat16)
    x = conv2d_relu(x, prep["conv1_w"], prep["conv1_b"], kh=8, kw=8, stride=4)
    x = maxpool_2x2(x)
    x = conv2d_relu(x, prep["conv2_w"], prep["conv2_b"], kh=4, kw=4, stride=2)
    x = maxpool_2x2(x)
    x = conv2d_relu(x, prep["conv3_w"], prep["conv3_b"], kh=3, kw=3, stride=1)
    x = maxpool_2x2(x)
    x = conv2d_relu(x, prep["conv4_w"], prep["conv4_b"], kh=3, kw=3, stride=1)
    x = maxpool_2x2(x)
    # x_image.view(B, -1).flatten() == full flatten in NCHW order
    flat_image = jnp.transpose(x, (0, 3, 1, 2)).reshape(1, -1)
    # fused fc1..fc4 (fc4 applied to concat(flat_image, flat_other) via split weights)
    return fc_stack(other, flat_image, prep)


if __name__ == "__main__":
    image_channels = 4
    input_dim = 32
    output_dim = 8
    # 340x340 is the smallest spatial size for which the conv/pool stack stays valid.
    H = W = 340
    batch_img = 1
    batch_other = 1

    # TODO(synk): the reference hard-codes fc4 in_features=5632 (implied by its
    # screenshot resolution); here it is derived from the chosen small shapes.
    conv_flat = batch_img * 256 * 1 * 1
    fc4_in = conv_flat + batch_other * 128

    key = jax.random.PRNGKey(0)
    k_img, k_other, k_par = jax.random.split(key, 3)
    image = jax.random.normal(k_img, (batch_img, image_channels, H, W), jnp.float32)
    other = jax.random.normal(k_other, (batch_other, input_dim), jnp.float32)
    params = init_dqn_params(k_par, image_channels, input_dim, output_dim, fc4_in)
    prep = prepare_params(params, conv_flat)   # one-time: transpose/pad/cast weights

    q_values = jax.jit(dqn_forward)(prep, image, other)
    q_values = jax.block_until_ready(q_values)
    assert q_values.shape == (output_dim,)
    assert bool(jnp.all(jnp.isfinite(q_values)))
    print("KERNEL_OK")
</pallas_src>

<mosaic_0001>
module attributes {stable_mosaic.version = 11 : i64} {
  func.func @_matmul_bias_act_kernel(%arg0: i32, %arg1: memref<1008x256xbf16, #tpu.memory_space<vmem>>, %arg2: memref<256x32xbf16, #tpu.memory_space<vmem>>, %arg3: memref<1x32xf32, #tpu.memory_space<vmem>>, %arg4: memref<1008x32xbf16, #tpu.memory_space<vmem>>) attributes {dimension_semantics = [#tpu.dimension_semantics<parallel>], iteration_bounds = array<i64: 7>, scalar_prefetch = 0 : i64, scratch_operands = 0 : i64, tpu.core_type = #tpu.core_type<tc>, window_params = [{transform_indices = @transform_0, window_bounds = array<i64: 1008, 256>}, {pipeline_mode = #tpu.pipeline_mode<synchronous>, transform_indices = @transform_1, window_bounds = array<i64: 256, 32>}, {pipeline_mode = #tpu.pipeline_mode<synchronous>, transform_indices = @transform_2, window_bounds = array<i64: 1, 32>}, {transform_indices = @transform_3, window_bounds = array<i64: 1008, 32>}]} {
    %c0 = arith.constant 0 : index
    %c0_0 = arith.constant 0 : index
    %0 = vector.load %arg1[%c0, %c0_0] : memref<1008x256xbf16, #tpu.memory_space<vmem>>, vector<1008x256xbf16>
    %c0_1 = arith.constant 0 : index
    %c0_2 = arith.constant 0 : index
    %1 = vector.load %arg2[%c0_1, %c0_2] : memref<256x32xbf16, #tpu.memory_space<vmem>>, vector<256x32xbf16>
    %cst = arith.constant dense<0.000000e+00> : vector<1008x32xf32>
    %2 = tpu.matmul %0, %1, %cst {dimension_numbers = #tpu.dot_dimension_numbers<[1], [0], [0], [1], [0, 0, 1, 1], [], []>} : vector<1008x256xbf16>, vector<256x32xbf16>, vector<1008x32xf32> -> vector<1008x32xf32>
    %c0_3 = arith.constant 0 : index
    %c0_4 = arith.constant 0 : index
    %3 = vector.load %arg3[%c0_3, %c0_4] : memref<1x32xf32, #tpu.memory_space<vmem>>, vector<1x32xf32>
    %4 = vector.broadcast %3 : vector<1x32xf32> to vector<1008x32xf32>
    %5 = arith.addf %2, %4 : vector<1008x32xf32>
    %cst_5 = arith.constant 0.000000e+00 : f32
    %6 = vector.broadcast %cst_5 : f32 to vector<1008x32xf32>
    %7 = arith.maximumf %5, %6 : vector<1008x32xf32>
    %8 = arith.truncf %7 : vector<1008x32xf32> to vector<1008x32xbf16>
    %c0_6 = arith.constant 0 : index
    %c0_7 = arith.constant 0 : index
    %9 = vector.load %arg4[%c0_6, %c0_7] : memref<1008x32xbf16, #tpu.memory_space<vmem>>, vector<1008x32xbf16>
    tpu.vector_store %arg4[%c0_6, %c0_7], %8 {strides = array<i32>} : memref<1008x32xbf16, #tpu.memory_space<vmem>>, vector<1008x32xbf16>,
    return
  }
  func.func @transform_0(%arg0: i32) -> (i32, i32) {
    %c0_i32 = arith.constant 0 : i32
    %c0_i32_0 = arith.constant 0 : i32
    return %arg0, %c0_i32 : i32, i32
  }
  func.func @transform_1(%arg0: i32) -> (i32, i32) {
    %c0_i32 = arith.constant 0 : i32
    %c0_i32_0 = arith.constant 0 : i32
    %c0_i32_1 = arith.constant 0 : i32
    return %c0_i32, %c0_i32_0 : i32, i32
  }
  func.func @transform_2(%arg0: i32) -> (i32, i32) {
    %c0_i32 = arith.constant 0 : i32
    %c0_i32_0 = arith.constant 0 : i32
    %c0_i32_1 = arith.constant 0 : i32
    return %c0_i32, %c0_i32_0 : i32, i32
  }
  func.func @transform_3(%arg0: i32) -> (i32, i32) {
    %c0_i32 = arith.constant 0 : i32
    %c0_i32_0 = arith.constant 0 : i32
    return %arg0, %c0_i32 : i32, i32
  }
}

module attributes {stable_mosaic.version = 11 : i64} {
  func.func @_half_lane_max_kernel(%arg0: memref<3528x64xbf16, #tpu.memory_space<vmem>>, %arg1: memref<3528x32xbf16, #tpu.memory_space<vmem>>) attributes {dimension_semantics = [], scalar_prefetch = 0 : i64, scratch_operands = 0 : i64, tpu.core_type = #tpu.core_type<tc>} {
    %c0 = arith.constant 0 : index
    %c0_0 = arith.constant 0 : index
    %0 = vector.load %arg0[%c0, %c0_0] : memref<3528x64xbf16, #tpu.memory_space<vmem>>, vector<3528x64xbf16>
    %1 = vector.extract_strided_slice %0 {offsets = [0, 0], sizes = [3528, 32], strides = [1, 1]} : vector<3528x64xbf16> to vector<3528x32xbf16>
    %2 = vector.extract_strided_slice %0 {offsets = [0, 32], sizes = [3528, 32], strides = [1, 1]} : vector<3528x64xbf16> to vector<3528x32xbf16>
    %3 = arith.maximumf %1, %2 : vector<3528x32xbf16>
    %c0_1 = arith.constant 0 : index
    %c0_2 = arith.constant 0 : index
    %4 = vector.load %arg1[%c0_1, %c0_2] : memref<3528x32xbf16, #tpu.memory_space<vmem>>, vector<3528x32xbf16>
    tpu.vector_store %arg1[%c0_1, %c0_2], %3 {strides = array<i32>} : memref<3528x32xbf16, #tpu.memory_space<vmem>>, vector<3528x32xbf16>,
    return
  }
}

module attributes {stable_mosaic.version = 11 : i64} {
  func.func @_half_lane_max_kernel(%arg0: memref<42x2688xbf16, #tpu.memory_space<vmem>>, %arg1: memref<42x1344xbf16, #tpu.memory_space<vmem>>) attributes {dimension_semantics = [], scalar_prefetch = 0 : i64, scratch_operands = 0 : i64, tpu.core_type = #tpu.core_type<tc>} {
    %c0 = arith.constant 0 : index
    %c0_0 = arith.constant 0 : index
    %0 = vector.load %arg0[%c0, %c0_0] : memref<42x2688xbf16, #tpu.memory_space<vmem>>, vector<42x2688xbf16>
    %1 = vector.extract_strided_slice %0 {offsets = [0, 0], sizes = [42, 1344], strides = [1, 1]} : vector<42x2688xbf16> to vector<42x1344xbf16>
    %2 = vector.extract_strided_slice %0 {offsets = [0, 1344], sizes = [42, 1344], strides = [1, 1]} : vector<42x2688xbf16> to vector<42x1344xbf16>
    %3 = arith.maximumf %1, %2 : vector<42x1344xbf16>
    %c0_1 = arith.constant 0 : index
    %c0_2 = arith.constant 0 : index
    %4 = vector.load %arg1[%c0_1, %c0_2] : memref<42x1344xbf16, #tpu.memory_space<vmem>>, vector<42x1344xbf16>
    tpu.vector_store %arg1[%c0_1, %c0_2], %3 {strides = array<i32>} : memref<42x1344xbf16, #tpu.memory_space<vmem>>, vector<42x1344xbf16>,
    return
  }
}

module attributes {stable_mosaic.version = 11 : i64} {
  func.func @_matmul_bias_act_kernel(%arg0: i32, %arg1: memref<400x512xbf16, #tpu.memory_space<vmem>>, %arg2: memref<512x64xbf16, #tpu.memory_space<vmem>>, %arg3: memref<1x64xf32, #tpu.memory_space<vmem>>, %arg4: memref<400x64xbf16, #tpu.memory_space<vmem>>) attributes {dimension_semantics = [#tpu.dimension_semantics<parallel>], iteration_bounds = array<i64: 1>, scalar_prefetch = 0 : i64, scratch_operands = 0 : i64, tpu.core_type = #tpu.core_type<tc>, window_params = [{transform_indices = @transform_0, window_bounds = array<i64: 400, 512>}, {pipeline_mode = #tpu.pipeline_mode<synchronous>, transform_indices = @transform_1, window_bounds = array<i64: 512, 64>}, {pipeline_mode = #tpu.pipeline_mode<synchronous>, transform_indices = @transform_2, window_bounds = array<i64: 1, 64>}, {transform_indices = @transform_3, window_bounds = array<i64: 400, 64>}]} {
    %c0 = arith.constant 0 : index
    %c0_0 = arith.constant 0 : index
    %0 = vector.load %arg1[%c0, %c0_0] : memref<400x512xbf16, #tpu.memory_space<vmem>>, vector<400x512xbf16>
    %c0_1 = arith.constant 0 : index
    %c0_2 = arith.constant 0 : index
    %1 = vector.load %arg2[%c0_1, %c0_2] : memref<512x64xbf16, #tpu.memory_space<vmem>>, vector<512x64xbf16>
    %cst = arith.constant dense<0.000000e+00> : vector<400x64xf32>
    %2 = tpu.matmul %0, %1, %cst {dimension_numbers = #tpu.dot_dimension_numbers<[1], [0], [0], [1], [0, 0, 1, 1], [], []>} : vector<400x512xbf16>, vector<512x64xbf16>, vector<400x64xf32> -> vector<400x64xf32>
    %c0_3 = arith.constant 0 : index
    %c0_4 = arith.constant 0 : index
    %3 = vector.load %arg3[%c0_3, %c0_4] : memref<1x64xf32, #tpu.memory_space<vmem>>, vector<1x64xf32>
    %4 = vector.broadcast %3 : vector<1x64xf32> to vector<400x64xf32>
    %5 = arith.addf %2, %4 : vector<400x64xf32>
    %cst_5 = arith.constant 0.000000e+00 : f32
    %6 = vector.broadcast %cst_5 : f32 to vector<400x64xf32>
    %7 = arith.maximumf %5, %6 : vector<400x64xf32>
    %8 = arith.truncf %7 : vector<400x64xf32> to vector<400x64xbf16>
    %c0_6 = arith.constant 0 : index
    %c0_7 = arith.constant 0 : index
    %9 = vector.load %arg4[%c0_6, %c0_7] : memref<400x64xbf16, #tpu.memory_space<vmem>>, vector<400x64xbf16>
    tpu.vector_store %arg4[%c0_6, %c0_7], %8 {strides = array<i32>} : memref<400x64xbf16, #tpu.memory_space<vmem>>, vector<400x64xbf16>,
    return
  }
  func.func @transform_0(%arg0: i32) -> (i32, i32) {
    %c0_i32 = arith.constant 0 : i32
    %c0_i32_0 = arith.constant 0 : i32
    return %arg0, %c0_i32 : i32, i32
  }
  func.func @transform_1(%arg0: i32) -> (i32, i32) {
    %c0_i32 = arith.constant 0 : i32
    %c0_i32_0 = arith.constant 0 : i32
    %c0_i32_1 = arith.constant 0 : i32
    return %c0_i32, %c0_i32_0 : i32, i32
  }
  func.func @transform_2(%arg0: i32) -> (i32, i32) {
    %c0_i32 = arith.constant 0 : i32
    %c0_i32_0 = arith.constant 0 : i32
    %c0_i32_1 = arith.constant 0 : i32
    return %c0_i32, %c0_i32_0 : i32, i32
  }
  func.func @transform_3(%arg0: i32) -> (i32, i32) {
    %c0_i32 = arith.constant 0 : i32
    %c0_i32_0 = arith.constant 0 : i32
    return %arg0, %c0_i32 : i32, i32
  }
}

module attributes {stable_mosaic.version = 11 : i64} {
  func.func @_half_lane_max_kernel(%arg0: memref<200x128xbf16, #tpu.memory_space<vmem>>, %arg1: memref<200x64xbf16, #tpu.memory_space<vmem>>) attributes {dimension_semantics = [], scalar_prefetch = 0 : i64, scratch_operands = 0 : i64, tpu.core_type = #tpu.core_type<tc>} {
    %c0 = arith.constant 0 : index
    %c0_0 = arith.constant 0 : index
    %0 = vector.load %arg0[%c0, %c0_0] : memref<200x128xbf16, #tpu.memory_space<vmem>>, vector<200x128xbf16>
    %1 = vector.extract_strided_slice %0 {offsets = [0, 0], sizes = [200, 64], strides = [1, 1]} : vector<200x128xbf16> to vector<200x64xbf16>
    %2 = vector.extract_strided_slice %0 {offsets = [0, 64], sizes = [200, 64], strides = [1, 1]} : vector<200x128xbf16> to vector<200x64xbf16>
    %3 = arith.maximumf %1, %2 : vector<200x64xbf16>
    %c0_1 = arith.constant 0 : index
    %c0_2 = arith.constant 0 : index
    %4 = vector.load %arg1[%c0_1, %c0_2] : memref<200x64xbf16, #tpu.memory_space<vmem>>, vector<200x64xbf16>
    tpu.vector_store %arg1[%c0_1, %c0_2], %3 {strides = array<i32>} : memref<200x64xbf16, #tpu.memory_space<vmem>>, vector<200x64xbf16>,
    return
  }
}

module attributes {stable_mosaic.version = 11 : i64} {
  func.func @_half_lane_max_kernel(%arg0: memref<10x1280xbf16, #tpu.memory_space<vmem>>, %arg1: memref<10x640xbf16, #tpu.memory_space<vmem>>) attributes {dimension_semantics = [], scalar_prefetch = 0 : i64, scratch_operands = 0 : i64, tpu.core_type = #tpu.core_type<tc>} {
    %c0 = arith.constant 0 : index
    %c0_0 = arith.constant 0 : index
    %0 = vector.load %arg0[%c0, %c0_0] : memref<10x1280xbf16, #tpu.memory_space<vmem>>, vector<10x1280xbf16>
    %1 = vector.extract_strided_slice %0 {offsets = [0, 0], sizes = [10, 640], strides = [1, 1]} : vector<10x1280xbf16> to vector<10x640xbf16>
    %2 = vector.extract_strided_slice %0 {offsets = [0, 640], sizes = [10, 640], strides = [1, 1]} : vector<10x1280xbf16> to vector<10x640xbf16>
    %3 = arith.maximumf %1, %2 : vector<10x640xbf16>
    %c0_1 = arith.constant 0 : index
    %c0_2 = arith.constant 0 : index
    %4 = vector.load %arg1[%c0_1, %c0_2] : memref<10x640xbf16, #tpu.memory_space<vmem>>, vector<10x640xbf16>
    tpu.vector_store %arg1[%c0_1, %c0_2], %3 {strides = array<i32>} : memref<10x640xbf16, #tpu.memory_space<vmem>>, vector<10x640xbf16>,
    return
  }
}

module attributes {stable_mosaic.version = 11 : i64} {
  func.func @_matmul_bias_act_kernel(%arg0: i32, %arg1: memref<64x640xbf16, #tpu.memory_space<vmem>>, %arg2: memref<640x128xbf16, #tpu.memory_space<vmem>>, %arg3: memref<1x128xf32, #tpu.memory_space<vmem>>, %arg4: memref<64x128xbf16, #tpu.memory_space<vmem>>) attributes {dimension_semantics = [#tpu.dimension_semantics<parallel>], iteration_bounds = array<i64: 1>, scalar_prefetch = 0 : i64, scratch_operands = 0 : i64, tpu.core_type = #tpu.core_type<tc>, window_params = [{transform_indices = @transform_0, window_bounds = array<i64: 64, 640>}, {pipeline_mode = #tpu.pipeline_mode<synchronous>, transform_indices = @transform_1, window_bounds = array<i64: 640, 128>}, {pipeline_mode = #tpu.pipeline_mode<synchronous>, transform_indices = @transform_2, window_bounds = array<i64: 1, 128>}, {transform_indices = @transform_3, window_bounds = array<i64: 64, 128>}]} {
    %c0 = arith.constant 0 : index
    %c0_0 = arith.constant 0 : index
    %0 = vector.load %arg1[%c0, %c0_0] : memref<64x640xbf16, #tpu.memory_space<vmem>>, vector<64x640xbf16>
    %c0_1 = arith.constant 0 : index
    %c0_2 = arith.constant 0 : index
    %1 = vector.load %arg2[%c0_1, %c0_2] : memref<640x128xbf16, #tpu.memory_space<vmem>>, vector<640x128xbf16>
    %cst = arith.constant dense<0.000000e+00> : vector<64x128xf32>
    %2 = tpu.matmul %0, %1, %cst {dimension_numbers = #tpu.dot_dimension_numbers<[1], [0], [0], [1], [0, 0, 1, 1], [], []>} : vector<64x640xbf16>, vector<640x128xbf16>, vector<64x128xf32> -> vector<64x128xf32>
    %c0_3 = arith.constant 0 : index
    %c0_4 = arith.constant 0 : index
    %3 = vector.load %arg3[%c0_3, %c0_4] : memref<1x128xf32, #tpu.memory_space<vmem>>, vector<1x128xf32>
    %4 = vector.broadcast %3 : vector<1x128xf32> to vector<64x128xf32>
    %5 = arith.addf %2, %4 : vector<64x128xf32>
    %cst_5 = arith.constant 0.000000e+00 : f32
    %6 = vector.broadcast %cst_5 : f32 to vector<64x128xf32>
    %7 = arith.maximumf %5, %6 : vector<64x128xf32>
    %8 = arith.truncf %7 : vector<64x128xf32> to vector<64x128xbf16>
    %c0_6 = arith.constant 0 : index
    %c0_7 = arith.constant 0 : index
    %9 = vector.load %arg4[%c0_6, %c0_7] : memref<64x128xbf16, #tpu.memory_space<vmem>>, vector<64x128xbf16>
    tpu.vector_store %arg4[%c0_6, %c0_7], %8 {strides = array<i32>} : memref<64x128xbf16, #tpu.memory_space<vmem>>, vector<64x128xbf16>,
    return
  }
  func.func @transform_0(%arg0: i32) -> (i32, i32) {
    %c0_i32 = arith.constant 0 : i32
    %c0_i32_0 = arith.constant 0 : i32
    return %arg0, %c0_i32 : i32, i32
  }
  func.func @transform_1(%arg0: i32) -> (i32, i32) {
    %c0_i32 = arith.constant 0 : i32
    %c0_i32_0 = arith.constant 0 : i32
    %c0_i32_1 = arith.constant 0 : i32
    return %c0_i32, %c0_i32_0 : i32, i32
  }
  func.func @transform_2(%arg0: i32) -> (i32, i32) {
    %c0_i32 = arith.constant 0 : i32
    %c0_i32_0 = arith.constant 0 : i32
    %c0_i32_1 = arith.constant 0 : i32
    return %c0_i32, %c0_i32_0 : i32, i32
  }
  func.func @transform_3(%arg0: i32) -> (i32, i32) {
    %c0_i32 = arith.constant 0 : i32
    %c0_i32_0 = arith.constant 0 : i32
    return %arg0, %c0_i32 : i32, i32
  }
}

module attributes {stable_mosaic.version = 11 : i64} {
  func.func @_half_lane_max_kernel(%arg0: memref<32x256xbf16, #tpu.memory_space<vmem>>, %arg1: memref<32x128xbf16, #tpu.memory_space<vmem>>) attributes {dimension_semantics = [], scalar_prefetch = 0 : i64, scratch_operands = 0 : i64, tpu.core_type = #tpu.core_type<tc>} {
    %c0 = arith.constant 0 : index
    %c0_0 = arith.constant 0 : index
    %0 = vector.load %arg0[%c0, %c0_0] : memref<32x256xbf16, #tpu.memory_space<vmem>>, vector<32x256xbf16>
    %1 = vector.extract_strided_slice %0 {offsets = [0, 0], sizes = [32, 128], strides = [1, 1]} : vector<32x256xbf16> to vector<32x128xbf16>
    %2 = vector.extract_strided_slice %0 {offsets = [0, 128], sizes = [32, 128], strides = [1, 1]} : vector<32x256xbf16> to vector<32x128xbf16>
    %3 = arith.maximumf %1, %2 : vector<32x128xbf16>
    %c0_1 = arith.constant 0 : index
    %c0_2 = arith.constant 0 : index
    %4 = vector.load %arg1[%c0_1, %c0_2] : memref<32x128xbf16, #tpu.memory_space<vmem>>, vector<32x128xbf16>
    tpu.vector_store %arg1[%c0_1, %c0_2], %3 {strides = array<i32>} : memref<32x128xbf16, #tpu.memory_space<vmem>>, vector<32x128xbf16>,
    return
  }
}

module attributes {stable_mosaic.version = 11 : i64} {
  func.func @_half_lane_max_kernel(%arg0: memref<4x1024xbf16, #tpu.memory_space<vmem>>, %arg1: memref<4x512xbf16, #tpu.memory_space<vmem>>) attributes {dimension_semantics = [], scalar_prefetch = 0 : i64, scratch_operands = 0 : i64, tpu.core_type = #tpu.core_type<tc>} {
    %c0 = arith.constant 0 : index
    %c0_0 = arith.constant 0 : index
    %0 = vector.load %arg0[%c0, %c0_0] : memref<4x1024xbf16, #tpu.memory_space<vmem>>, vector<4x1024xbf16>
    %1 = vector.extract_strided_slice %0 {offsets = [0, 0], sizes = [4, 512], strides = [1, 1]} : vector<4x1024xbf16> to vector<4x512xbf16>
    %2 = vector.extract_strided_slice %0 {offsets = [0, 512], sizes = [4, 512], strides = [1, 1]} : vector<4x1024xbf16> to vector<4x512xbf16>
    %3 = arith.maximumf %1, %2 : vector<4x512xbf16>
    %c0_1 = arith.constant 0 : index
    %c0_2 = arith.constant 0 : index
    %4 = vector.load %arg1[%c0_1, %c0_2] : memref<4x512xbf16, #tpu.memory_space<vmem>>, vector<4x512xbf16>
    tpu.vector_store %arg1[%c0_1, %c0_2], %3 {strides = array<i32>} : memref<4x512xbf16, #tpu.memory_space<vmem>>, vector<4x512xbf16>,
    return
  }
}

module attributes {stable_mosaic.version = 11 : i64} {
  func.func @_half_lane_max_kernel(%arg0: memref<2x512xbf16, #tpu.memory_space<vmem>>, %arg1: memref<2x256xbf16, #tpu.memory_space<vmem>>) attributes {dimension_semantics = [], scalar_prefetch = 0 : i64, scratch_operands = 0 : i64, tpu.core_type = #tpu.core_type<tc>} {
    %c0 = arith.constant 0 : index
    %c0_0 = arith.constant 0 : index
    %0 = vector.load %arg0[%c0, %c0_0] : memref<2x512xbf16, #tpu.memory_space<vmem>>, vector<2x512xbf16>
    %1 = vector.extract_strided_slice %0 {offsets = [0, 0], sizes = [2, 256], strides = [1, 1]} : vector<2x512xbf16> to vector<2x256xbf16>
    %2 = vector.extract_strided_slice %0 {offsets = [0, 256], sizes = [2, 256], strides = [1, 1]} : vector<2x512xbf16> to vector<2x256xbf16>
    %3 = arith.maximumf %1, %2 : vector<2x256xbf16>
    %c0_1 = arith.constant 0 : index
    %c0_2 = arith.constant 0 : index
    %4 = vector.load %arg1[%c0_1, %c0_2] : memref<2x256xbf16, #tpu.memory_space<vmem>>, vector<2x256xbf16>
    tpu.vector_store %arg1[%c0_1, %c0_2], %3 {strides = array<i32>} : memref<2x256xbf16, #tpu.memory_space<vmem>>, vector<2x256xbf16>,
    return
  }
}

module attributes {stable_mosaic.version = 11 : i64} {
  func.func @_matmul_bias_act_kernel(%arg0: i32, %arg1: memref<16x1152xbf16, #tpu.memory_space<vmem>>, %arg2: memref<1152x256xbf16, #tpu.memory_space<vmem>>, %arg3: memref<1x256xf32, #tpu.memory_space<vmem>>, %arg4: memref<16x256xbf16, #tpu.memory_space<vmem>>) attributes {dimension_semantics = [#tpu.dimension_semantics<parallel>], iteration_bounds = array<i64: 1>, scalar_prefetch = 0 : i64, scratch_operands = 0 : i64, tpu.core_type = #tpu.core_type<tc>, window_params = [{transform_indices = @transform_0, window_bounds = array<i64: 16, 1152>}, {pipeline_mode = #tpu.pipeline_mode<synchronous>, transform_indices = @transform_1, window_bounds = array<i64: 1152, 256>}, {pipeline_mode = #tpu.pipeline_mode<synchronous>, transform_indices = @transform_2, window_bounds = array<i64: 1, 256>}, {transform_indices = @transform_3, window_bounds = array<i64: 16, 256>}]} {
    %c0 = arith.constant 0 : index
    %c0_0 = arith.constant 0 : index
    %0 = vector.load %arg1[%c0, %c0_0] : memref<16x1152xbf16, #tpu.memory_space<vmem>>, vector<16x1152xbf16>
    %c0_1 = arith.constant 0 : index
    %c0_2 = arith.constant 0 : index
    %1 = vector.load %arg2[%c0_1, %c0_2] : memref<1152x256xbf16, #tpu.memory_space<vmem>>, vector<1152x256xbf16>
    %cst = arith.constant dense<0.000000e+00> : vector<16x256xf32>
    %2 = tpu.matmul %0, %1, %cst {dimension_numbers = #tpu.dot_dimension_numbers<[1], [0], [0], [1], [0, 0, 1, 1], [], []>} : vector<16x1152xbf16>, vector<1152x256xbf16>, vector<16x256xf32> -> vector<16x256xf32>
    %c0_3 = arith.constant 0 : index
    %c0_4 = arith.constant 0 : index
    %3 = vector.load %arg3[%c0_3, %c0_4] : memref<1x256xf32, #tpu.memory_space<vmem>>, vector<1x256xf32>
    %4 = vector.broadcast %3 : vector<1x256xf32> to vector<16x256xf32>
    %5 = arith.addf %2, %4 : vector<16x256xf32>
    %cst_5 = arith.constant 0.000000e+00 : f32
    %6 = vector.broadcast %cst_5 : f32 to vector<16x256xf32>
    %7 = arith.maximumf %5, %6 : vector<16x256xf32>
    %8 = arith.truncf %7 : vector<16x256xf32> to vector<16x256xbf16>
    %c0_6 = arith.constant 0 : index
    %c0_7 = arith.constant 0 : index
    %9 = vector.load %arg4[%c0_6, %c0_7] : memref<16x256xbf16, #tpu.memory_space<vmem>>, vector<16x256xbf16>
    tpu.vector_store %arg4[%c0_6, %c0_7], %8 {strides = array<i32>} : memref<16x256xbf16, #tpu.memory_space<vmem>>, vector<16x256xbf16>,
    return
  }
  func.func @transform_0(%arg0: i32) -> (i32, i32) {
    %c0_i32 = arith.constant 0 : i32
    %c0_i32_0 = arith.constant 0 : i32
    return %arg0, %c0_i32 : i32, i32
  }
  func.func @transform_1(%arg0: i32) -> (i32, i32) {
    %c0_i32 = arith.constant 0 : i32
    %c0_i32_0 = arith.constant 0 : i32
    %c0_i32_1 = arith.constant 0 : i32
    return %c0_i32, %c0_i32_0 : i32, i32
  }
  func.func @transform_2(%arg0: i32) -> (i32, i32) {
    %c0_i32 = arith.constant 0 : i32
    %c0_i32_0 = arith.constant 0 : i32
    %c0_i32_1 = arith.constant 0 : i32
    return %c0_i32, %c0_i32_0 : i32, i32
  }
  func.func @transform_3(%arg0: i32) -> (i32, i32) {
    %c0_i32 = arith.constant 0 : i32
    %c0_i32_0 = arith.constant 0 : i32
    return %arg0, %c0_i32 : i32, i32
  }
}

module attributes {stable_mosaic.version = 11 : i64} {
  func.func @_half_lane_max_kernel(%arg0: memref<1x512xbf16, #tpu.memory_space<vmem>>, %arg1: memref<1x256xbf16, #tpu.memory_space<vmem>>) attributes {dimension_semantics = [], scalar_prefetch = 0 : i64, scratch_operands = 0 : i64, tpu.core_type = #tpu.core_type<tc>} {
    %c0 = arith.constant 0 : index
    %c0_0 = arith.constant 0 : index
    %0 = vector.load %arg0[%c0, %c0_0] : memref<1x512xbf16, #tpu.memory_space<vmem>>, vector<1x512xbf16>
    %1 = vector.extract_strided_slice %0 {offsets = [0, 0], sizes = [1, 256], strides = [1, 1]} : vector<1x512xbf16> to vector<1x256xbf16>
    %2 = vector.extract_strided_slice %0 {offsets = [0, 256], sizes = [1, 256], strides = [1, 1]} : vector<1x512xbf16> to vector<1x256xbf16>
    %3 = arith.maximumf %1, %2 : vector<1x256xbf16>
    %c0_1 = arith.constant 0 : index
    %c0_2 = arith.constant 0 : index
    %4 = vector.load %arg1[%c0_1, %c0_2] : memref<1x256xbf16, #tpu.memory_space<vmem>>, vector<1x256xbf16>
    tpu.vector_store %arg1[%c0_1, %c0_2], %3 {strides = array<i32>} : memref<1x256xbf16, #tpu.memory_space<vmem>>, vector<1x256xbf16>,
    return
  }
}

module attributes {stable_mosaic.version = 11 : i64} {
  func.func @_fc_stack_kernel(%arg0: memref<8x32xbf16, #tpu.memory_space<vmem>>, %arg1: memref<8x256xbf16, #tpu.memory_space<vmem>>, %arg2: memref<32x512xbf16, #tpu.memory_space<vmem>>, %arg3: memref<1x512xf32, #tpu.memory_space<vmem>>, %arg4: memref<512x256xbf16, #tpu.memory_space<vmem>>, %arg5: memref<1x256xf32, #tpu.memory_space<vmem>>, %arg6: memref<256x128xbf16, #tpu.memory_space<vmem>>, %arg7: memref<1x128xf32, #tpu.memory_space<vmem>>, %arg8: memref<256x8xbf16, #tpu.memory_space<vmem>>, %arg9: memref<128x8xbf16, #tpu.memory_space<vmem>>, %arg10: memref<1x8xf32, #tpu.memory_space<vmem>>, %arg11: memref<1x8xf32, #tpu.memory_space<vmem>>) attributes {dimension_semantics = [], scalar_prefetch = 0 : i64, scratch_operands = 0 : i64, tpu.core_type = #tpu.core_type<tc>} {
    %c0 = arith.constant 0 : index
    %c0_0 = arith.constant 0 : index
    %0 = vector.load %arg0[%c0, %c0_0] : memref<8x32xbf16, #tpu.memory_space<vmem>>, vector<8x32xbf16>
    %c0_1 = arith.constant 0 : index
    %c0_2 = arith.constant 0 : index
    %1 = vector.load %arg2[%c0_1, %c0_2] : memref<32x512xbf16, #tpu.memory_space<vmem>>, vector<32x512xbf16>
    %cst = arith.constant dense<0.000000e+00> : vector<8x512xf32>
    %2 = tpu.matmul %0, %1, %cst {dimension_numbers = #tpu.dot_dimension_numbers<[1], [0], [0], [1], [0, 0, 1, 1], [], []>} : vector<8x32xbf16>, vector<32x512xbf16>, vector<8x512xf32> -> vector<8x512xf32>
    %c0_3 = arith.constant 0 : index
    %c0_4 = arith.constant 0 : index
    %3 = vector.load %arg3[%c0_3, %c0_4] : memref<1x512xf32, #tpu.memory_space<vmem>>, vector<1x512xf32>
    %4 = vector.broadcast %3 : vector<1x512xf32> to vector<8x512xf32>
    %5 = arith.addf %2, %4 : vector<8x512xf32>
    %cst_5 = arith.constant 0.000000e+00 : f32
    %6 = vector.broadcast %cst_5 : f32 to vector<8x512xf32>
    %7 = arith.maximumf %5, %6 : vector<8x512xf32>
    %8 = arith.truncf %7 : vector<8x512xf32> to vector<8x512xbf16>
    %c0_6 = arith.constant 0 : index
    %c0_7 = arith.constant 0 : index
    %9 = vector.load %arg4[%c0_6, %c0_7] : memref<512x256xbf16, #tpu.memory_space<vmem>>, vector<512x256xbf16>
    %cst_8 = arith.constant dense<0.000000e+00> : vector<8x256xf32>
    %10 = tpu.matmul %8, %9, %cst_8 {dimension_numbers = #tpu.dot_dimension_numbers<[1], [0], [0], [1], [0, 0, 1, 1], [], []>} : vector<8x512xbf16>, vector<512x256xbf16>, vector<8x256xf32> -> vector<8x256xf32>
    %c0_9 = arith.constant 0 : index
    %c0_10 = arith.constant 0 : index
    %11 = vector.load %arg5[%c0_9, %c0_10] : memref<1x256xf32, #tpu.memory_space<vmem>>, vector<1x256xf32>
    %12 = vector.broadcast %11 : vector<1x256xf32> to vector<8x256xf32>
    %13 = arith.addf %10, %12 : vector<8x256xf32>
    %cst_11 = arith.constant 0.000000e+00 : f32
    %14 = vector.broadcast %cst_11 : f32 to vector<8x256xf32>
    %15 = arith.maximumf %13, %14 : vector<8x256xf32>
    %16 = arith.truncf %15 : vector<8x256xf32> to vector<8x256xbf16>
    %c0_12 = arith.constant 0 : index
    %c0_13 = arith.constant 0 : index
    %17 = vector.load %arg6[%c0_12, %c0_13] : memref<256x128xbf16, #tpu.memory_space<vmem>>, vector<256x128xbf16>
    %cst_14 = arith.constant dense<0.000000e+00> : vector<8x128xf32>
    %18 = tpu.matmul %16, %17, %cst_14 {dimension_numbers = #tpu.dot_dimension_numbers<[1], [0], [0], [1], [0, 0, 1, 1], [], []>} : vector<8x256xbf16>, vector<256x128xbf16>, vector<8x128xf32> -> vector<8x128xf32>
    %c0_15 = arith.constant 0 : index
    %c0_16 = arith.constant 0 : index
    %19 = vector.load %arg7[%c0_15, %c0_16] : memref<1x128xf32, #tpu.memory_space<vmem>>, vector<1x128xf32>
    %20 = vector.broadcast %19 : vector<1x128xf32> to vector<8x128xf32>
    %21 = arith.addf %18, %20 : vector<8x128xf32>
    %cst_17 = arith.constant 0.000000e+00 : f32
    %22 = vector.broadcast %cst_17 : f32 to vector<8x128xf32>
    %23 = arith.maximumf %21, %22 : vector<8x128xf32>
    %24 = arith.truncf %23 : vector<8x128xf32> to vector<8x128xbf16>
    %c0_18 = arith.constant 0 : index
    %c0_19 = arith.constant 0 : index
    %25 = vector.load %arg1[%c0_18, %c0_19] : memref<8x256xbf16, #tpu.memory_space<vmem>>, vector<8x256xbf16>
    %c0_20 = arith.constant 0 : index
    %c0_21 = arith.constant 0 : index
    %26 = vector.load %arg8[%c0_20, %c0_21] : memref<256x8xbf16, #tpu.memory_space<vmem>>, vector<256x8xbf16>
    %cst_22 = arith.constant dense<0.000000e+00> : vector<8x8xf32>
    %27 = tpu.matmul %25, %26, %cst_22 {dimension_numbers = #tpu.dot_dimension_numbers<[1], [0], [0], [1], [0, 0, 1, 1], [], []>} : vector<8x256xbf16>, vector<256x8xbf16>, vector<8x8xf32> -> vector<8x8xf32>
    %c0_23 = arith.constant 0 : index
    %c0_24 = arith.constant 0 : index
    %28 = vector.load %arg10[%c0_23, %c0_24] : memref<1x8xf32, #tpu.memory_space<vmem>>, vector<1x8xf32>
    %29 = vector.broadcast %28 : vector<1x8xf32> to vector<8x8xf32>
    %30 = arith.addf %27, %29 : vector<8x8xf32>
    %31 = vector.extract_strided_slice %24 {offsets = [0, 0], sizes = [1, 128], strides = [1, 1]} : vector<8x128xbf16> to vector<1x128xbf16>
    %c0_25 = arith.constant 0 : index
    %c0_26 = arith.constant 0 : index
    %32 = vector.load %arg9[%c0_25, %c0_26] : memref<128x8xbf16, #tpu.memory_space<vmem>>, vector<128x8xbf16>
    %cst_27 = arith.constant dense<0.000000e+00> : vector<1x8xf32>
    %33 = tpu.matmul %31, %32, %cst_27 {dimension_numbers = #tpu.dot_dimension_numbers<[1], [0], [0], [1], [0, 0, 1, 1], [], []>} : vector<1x128xbf16>, vector<128x8xbf16>, vector<1x8xf32> -> vector<1x8xf32>
    %34 = vector.broadcast %33 : vector<1x8xf32> to vector<8x8xf32>
    %35 = arith.addf %30, %34 : vector<8x8xf32>
    %36 = vector.extract_strided_slice %35 {offsets = [0, 0], sizes = [1, 8], strides = [1, 1]} : vector<8x8xf32> to vector<1x8xf32>
    %c0_28 = arith.constant 0 : index
    %c0_29 = arith.constant 0 : index
    %37 = vector.load %arg11[%c0_28, %c0_29] : memref<1x8xf32, #tpu.memory_space<vmem>>, vector<1x8xf32>
    tpu.vector_store %arg11[%c0_28, %c0_29], %36 {strides = array<i32>} : memref<1x8xf32, #tpu.memory_space<vmem>>, vector<1x8xf32>,
    return
  }
}

</mosaic_0001>

<llo_original>
// kernel: dqn_forward.13
$region0: #{dqn_forward.13}
  #allocation0 [shape = 'u32[]', space=smem, size = 0x4, offset = 0x4, fixed_abs, tag = 'smem constant byte address 0x4 - core index']
  #allocation1 [shape = 'u32[72,128]{1,0:T(1,128)}', space=vmem, size = 0x9000, scoped, tag = 'internal scratch']
  %s0 = inlined_call_operand.vmem [shape: bf16[7056,256], index: 0, kind: input, shape index: {}]
  %s1 = inlined_call_operand.vmem [shape: bf16[256,32], index: 1, kind: input, shape index: {}]
  %s2 = inlined_call_operand.vmem [shape: f32[1,32], index: 2, kind: input, shape index: {}]
  %s3 = inlined_call_operand.vmem [shape: bf16[7056,32], index: 3, kind: output, shape index: {}]
  %s4 = sld [smem:[#allocation0]]
  $region45: #{dqn_forward.13} parent=0
    _
  %s6 = ssub.s32 1, %s4
  %s7 = scalar_select 0, %s6, %s4
  loop: start=0, step=1, limit=9
  $region2: #{dqn_forward.13} parent=0 // loop_pre_header
    _
  $region3: #{dqn_forward.13} parent=0 // loop_header
    %s9 = sphi 0, %s13
    %p10 = scmp.ge.s32.totalorder %s9, 9
    %s19 = sphi 0, %s21
    %s22 = sphi 0, %s19
    %s23 = sphi 0, %s22
    %s39 = sphi 0, %s23
    %s43 = sphi 0, %s43
    %s45 = sphi 0, %s43
    %s46 = sphi 0, %s45
    %s60 = sphi 0, %s46
    %s64 = sphi 0, %s64
    %s66 = sphi 0, %s64
    %s67 = sphi 0, %s66
    %s81 = sphi 0, %s67
    %s87 = sphi 0, %s89
    %s90 = sphi 0, %s87
    %s91 = sphi 0, %s90
    %s107 = sphi 0, %s91
  $region4: #{dqn_forward.13} parent=0 // loop_header_branch
    %12 = sbr.rel (%p10) target = $region8
  $region5: #{dqn_forward.13} parent=0 // loop_body
    %s14 = ssub.s32 %s9, 1
    %s15 = ssub.s32 %s9, 2
    %s16 = sadd.s32 %s9, 1
    %s17 = ssub.s32 %s9, %s16
    %p18 = scmp.eq.s32.totalorder %s17, 0
    %s20 = sadd.s32 %s19, 1
    %s21 = scalar_select %p18, %s19, %s20
    %p24 = pneg %p18
    %p25 = scmp.eq.s32.totalorder %s9, 6
    %p26 = por %p24, %p25
    %p27 = scmp.ne.s32.totalorder %s19, %s22
    %p28 = scmp.eq.s32.totalorder %s9, 0
    %p29 = por %p27, %p28
    %p30 = scmp.ne.s32.totalorder %s19, %s22
    %p31 = scmp.eq.s32.totalorder %s14, 6
    %p32 = por %p30, %p31
    %p33 = scmp.ne.s32.totalorder %s22, %s23
    %p34 = scmp.eq.s32.totalorder %s14, 0
    %p35 = por %p33, %p34
    %p36 = scmp.ne.s32.totalorder %s22, %s23
    %p37 = scmp.eq.s32.totalorder %s15, 6
    %p38 = por %p36, %p37
    %p40 = scmp.ne.s32.totalorder %s23, %s39
    %p41 = scmp.eq.s32.totalorder %s15, 0
    %p42 = por %p40, %p41
    %s44 = sadd.s32 %s43, 1
    %p47 = scmp.eq.s32.totalorder %s9, 6
    %p48 = scmp.ne.s32.totalorder %s43, %s45
    %p49 = scmp.eq.s32.totalorder %s9, 0
    %p50 = por %p48, %p49
    %p51 = scmp.ne.s32.totalorder %s43, %s45
    %p52 = scmp.eq.s32.totalorder %s14, 6
    %p53 = por %p51, %p52
    %p54 = scmp.ne.s32.totalorder %s45, %s46
    %p55 = scmp.eq.s32.totalorder %s14, 0
    %p56 = por %p54, %p55
    %p57 = scmp.ne.s32.totalorder %s45, %s46
    %p58 = scmp.eq.s32.totalorder %s15, 6
    %p59 = por %p57, %p58
    %p61 = scmp.ne.s32.totalorder %s46, %s60
    %p62 = scmp.eq.s32.totalorder %s15, 0
    %p63 = por %p61, %p62
    %s65 = sadd.s32 %s64, 1
    %p68 = scmp.eq.s32.totalorder %s9, 6
    %p69 = scmp.ne.s32.totalorder %s64, %s66
    %p70 = scmp.eq.s32.totalorder %s9, 0
    %p71 = por %p69, %p70
    %p72 = scmp.ne.s32.totalorder %s64, %s66
    %p73 = scmp.eq.s32.totalorder %s14, 6
    %p74 = por %p72, %p73
    %p75 = scmp.ne.s32.totalorder %s66, %s67
    %p76 = scmp.eq.s32.totalorder %s14, 0
    %p77 = por %p75, %p76
    %p78 = scmp.ne.s32.totalorder %s66, %s67
    %p79 = scmp.eq.s32.totalorder %s15, 6
    %p80 = por %p78, %p79
    %p82 = scmp.ne.s32.totalorder %s67, %s81
    %p83 = scmp.eq.s32.totalorder %s15, 0
    %p84 = por %p82, %p83
    %s85 = ssub.s32 %s9, %s16
    %p86 = scmp.eq.s32.totalorder %s85, 0
    %s88 = sadd.s32 %s87, 1
    %s89 = scalar_select %p86, %s87, %s88
    %p92 = pneg %p86
    %p93 = scmp.eq.s32.totalorder %s9, 6
    %p94 = por %p92, %p93
    %p95 = scmp.ne.s32.totalorder %s87, %s90
    %p96 = scmp.eq.s32.totalorder %s9, 0
    %p97 = por %p95, %p96
    %p98 = scmp.ne.s32.totalorder %s87, %s90
    %p99 = scmp.eq.s32.totalorder %s14, 6
    %p100 = por %p98, %p99
    %p101 = scmp.ne.s32.totalorder %s90, %s91
    %p102 = scmp.eq.s32.totalorder %s14, 0
    %p103 = por %p101, %p102
    %p104 = scmp.ne.s32.totalorder %s90, %s91
    %p105 = scmp.eq.s32.totalorder %s15, 6
    %p106 = por %p104, %p105
    %p108 = scmp.ne.s32.totalorder %s91, %s107
    %p109 = scmp.eq.s32.totalorder %s15, 0
    %p110 = por %p108, %p109
    %p111 = scmp.le.s32.totalorder 1, %s9
    %p112 = scmp.lt.s32.totalorder %s9, 8
    %p113 = pnand %p111, %p112
    %p114 = pneg %p113
    // Predicated region
    $region9: #{dqn_forward.13} parent=5 // pred_check
      _
    $region10: #{dqn_forward.13} parent=5 // pred_check_branch
      %116 = sbr.rel (%p113) target = $region12
    $region11: #{dqn_forward.13} parent=5 // pred_region
      %s117 = ssub.s32 %s9, 1
      // Predicated region
      $region13: #{dqn_forward.13} parent=11 // pred_check
        %p118 = pneg %p56
      $region14: #{dqn_forward.13} parent=11 // pred_check_branch
        %120 = sbr.rel (%p118) target = $region16
      $region15: #{dqn_forward.13} parent=11 // pred_region
        _
      $region16: #{dqn_forward.13} parent=11 // pred_fallthru
        _
      // Predicated region
      $region17: #{dqn_forward.13} parent=11 // pred_check
        %p121 = pneg %p77
      $region18: #{dqn_forward.13} parent=11 // pred_check_branch
        %123 = sbr.rel (%p121) target = $region20
      $region19: #{dqn_forward.13} parent=11 // pred_region
        _
      $region20: #{dqn_forward.13} parent=11 // pred_fallthru
        _
    $region12: #{dqn_forward.13} parent=5 // pred_fallthru
      _
    %p124 = scmp.lt.s32.totalorder %s9, 7
    // Predicated region
    $region21: #{dqn_forward.13} parent=5 // pred_check
      %p125 = pneg %p124
    $region22: #{dqn_forward.13} parent=5 // pred_check_branch
      %127 = sbr.rel (%p125) target = $region24
    $region23: #{dqn_forward.13} parent=5 // pred_region
      // Predicated region
      $region25: #{dqn_forward.13} parent=23 // pred_check
        %p128 = pneg %p29
      $region26: #{dqn_forward.13} parent=23 // pred_check_branch
        %130 = sbr.rel (%p128) target = $region28
      $region27: #{dqn_forward.13} parent=23 // pred_region
        %s131 = smul.u32 126, %s9
        %p132 = scmp.lt.s32.totalorder %s131, 881
        %s133 = scalar_select %p132, %s131, 881
        %s134 = smul.addr %s133, 2
        %s135 = smul.addr %s134, 4
        %s136 = scalar_lea.vmem %s0, %s135
        %s137 = smul.u32 126, %s9
      $region28: #{dqn_forward.13} parent=23 // pred_fallthru
        _
    $region24: #{dqn_forward.13} parent=5 // pred_fallthru
      _
    %p138 = scmp.le.s32.totalorder 1, %s9
    %p139 = scmp.lt.s32.totalorder %s9, 8
    %p140 = pnand %p138, %p139
    %p141 = pneg %p140
    // Predicated region
    $region29: #{dqn_forward.13} parent=5 // pred_check
      _
    $region30: #{dqn_forward.13} parent=5 // pred_check_branch
      %143 = sbr.rel (%p140) target = $region32
    $region31: #{dqn_forward.13} parent=5 // pred_region
      %s144 = ssub.s32 %s9, 1
      %s145 = smul.u32 126, %s14
      %p146 = scmp.lt.s32.totalorder %s145, 881
      %s147 = scalar_select %p146, %s145, 881
      %s148 = smul.addr %s147, 2
      %s149 = smul.addr %s148, 4
      %s150 = scalar_lea.vmem %s0, %s149
      %p151 = pneg %p35
      %p152 = pneg %p32
      %p153 = pneg %p56
      %p154 = pneg %p53
      %p155 = pneg %p77
      %p156 = pneg %p74
      %p157 = pneg %p103
      %p158 = pneg %p100
      %s159 = smul.u32 126, %s14
      %p160 = scmp.lt.s32.totalorder %s159, 881
      %s161 = scalar_select %p160, %s159, 881
      %s162 = smul.addr %s161, 4
      %s163 = scalar_lea.vmem %s3, %s162
      %s164 = smul.u32 126, %s14
      %p165 = scmp.lt.s32.totalorder %s164, 881
      %s166 = scalar_select %p165, %s164, 881
      %s167 = smul.addr %s166, 2
      %s168 = smul.addr %s167, 4
      %s169 = scalar_lea.vmem %s0, %s168
      %s170 = smul.u32 126, %s14
      %s171 = smul.u32 126, %s14
      %p172 = scmp.lt.s32.totalorder %s171, 881
      %s173 = scalar_select %p172, %s171, 881
      %s174 = smul.addr %s173, 4
      %s175 = scalar_lea.vmem %s3, %s174
      %s176 = smul.u32 126, %s14
      %v177 = vld [vmem:[%s169] sm:$0xff]
      %v178 = vld [vmem:[%s169 + $0x8] sm:$0xff]
      %v179 = vld [vmem:[%s169 + $0x10] sm:$0xff]
      %v180 = vld [vmem:[%s169 + $0x18] sm:$0xff]
      %v181 = vld [vmem:[%s169 + $0x20] sm:$0xff]
      %v182 = vld [vmem:[%s169 + $0x28] sm:$0xff]
      %v183 = vld [vmem:[%s169 + $0x30] sm:$0xff]
      %v184 = vld [vmem:[%s169 + $0x38] sm:$0xff]
      %v185 = vld [vmem:[%s169 + $0x40] sm:$0xff]
      %v186 = vld [vmem:[%s169 + $0x48] sm:$0xff]
      %v187 = vld [vmem:[%s169 + $0x50] sm:$0xff]
      %v188 = vld [vmem:[%s169 + $0x58] sm:$0xff]
      %v189 = vld [vmem:[%s169 + $0x60] sm:$0xff]
      %v190 = vld [vmem:[%s169 + $0x68] sm:$0xff]
      %v191 = vld [vmem:[%s169 + $0x70] sm:$0xff]
      %v192 = vld [vmem:[%s169 + $0x78] sm:$0xff]
      %v193 = vld [vmem:[%s169 + $0x80] sm:$0xff]
      %v194 = vld [vmem:[%s169 + $0x88] sm:$0xff]
      %v195 = vld [vmem:[%s169 + $0x90] sm:$0xff]
      %v196 = vld [vmem:[%s169 + $0x98] sm:$0xff]
      %v197 = vld [vmem:[%s169 + $0xa0] sm:$0xff]
      %v198 = vld [vmem:[%s169 + $0xa8] sm:$0xff]
      %v199 = vld [vmem:[%s169 + $0xb0] sm:$0xff]
      %v200 = vld [vmem:[%s169 + $0xb8] sm:$0xff]
      %v201 = vld [vmem:[%s169 + $0xc0] sm:$0xff]
      %v202 = vld [vmem:[%s169 + $0xc8] sm:$0xff]
      %v203 = vld [vmem:[%s169 + $0xd0] sm:$0xff]
      %v204 = vld [vmem:[%s169 + $0xd8] sm:$0xff]
      %v205 = vld [vmem:[%s169 + $0xe0] sm:$0xff]
      %v206 = vld [vmem:[%s169 + $0xe8] sm:$0xff]
      %v207 = vld [vmem:[%s169 + $0xf0] sm:$0xff]
      %v208 = vld [vmem:[%s169 + $0xf8] sm:$0xff]
      %v209 = vld [vmem:[%s169 + $0x100] sm:$0xff]
      %v210 = vld [vmem:[%s169 + $0x108] sm:$0xff]
      %v211 = vld [vmem:[%s169 + $0x110] sm:$0xff]
      %v212 = vld [vmem:[%s169 + $0x118] sm:$0xff]
      %v213 = vld [vmem:[%s169 + $0x120] sm:$0xff]
      %v214 = vld [vmem:[%s169 + $0x128] sm:$0xff]
      %v215 = vld [vmem:[%s169 + $0x130] sm:$0xff]
      %v216 = vld [vmem:[%s169 + $0x138] sm:$0xff]
      %v217 = vld [vmem:[%s169 + $0x140] sm:$0xff]
      %v218 = vld [vmem:[%s169 + $0x148] sm:$0xff]
      %v219 = vld [vmem:[%s169 + $0x150] sm:$0xff]
      %v220 = vld [vmem:[%s169 + $0x158] sm:$0xff]
      %v221 = vld [vmem:[%s169 + $0x160] sm:$0xff]
      %v222 = vld [vmem:[%s169 + $0x168] sm:$0xff]
      %v223 = vld [vmem:[%s169 + $0x170] sm:$0xff]
      %v224 = vld [vmem:[%s169 + $0x178] sm:$0xff]
      %v225 = vld [vmem:[%s169 + $0x180] sm:$0xff]
      %v226 = vld [vmem:[%s169 + $0x188] sm:$0xff]
      %v227 = vld [vmem:[%s169 + $0x190] sm:$0xff]
      %v228 = vld [vmem:[%s169 + $0x198] sm:$0xff]
      %v229 = vld [vmem:[%s169 + $0x1a0] sm:$0xff]
      %v230 = vld [vmem:[%s169 + $0x1a8] sm:$0xff]
      %v231 = vld [vmem:[%s169 + $0x1b0] sm:$0xff]
      %v232 = vld [vmem:[%s169 + $0x1b8] sm:$0xff]
      %v233 = vld [vmem:[%s169 + $0x1c0] sm:$0xff]
      %v234 = vld [vmem:[%s169 + $0x1c8] sm:$0xff]
      %v235 = vld [vmem:[%s169 + $0x1d0] sm:$0xff]
      %v236 = vld [vmem:[%s169 + $0x1d8] sm:$0xff]
      %v237 = vld [vmem:[%s169 + $0x1e0] sm:$0xff]
      %v238 = vld [vmem:[%s169 + $0x1e8] sm:$0xff]
      %v239 = vld [vmem:[%s169 + $0x1f0] sm:$0xff]
      %v240 = vld [vmem:[%s169 + $0x1f8] sm:$0xff]
      %v241 = vld [vmem:[%s169 + $0x200] sm:$0xff]
      %v242 = vld [vmem:[%s169 + $0x208] sm:$0xff]
      %v243 = vld [vmem:[%s169 + $0x210] sm:$0xff]
      %v244 = vld [vmem:[%s169 + $0x218] sm:$0xff]
      %v245 = vld [vmem:[%s169 + $0x220] sm:$0xff]
      %v246 = vld [vmem:[%s169 + $0x228] sm:$0xff]
      %v247 = vld [vmem:[%s169 + $0x230] sm:$0xff]
      %v248 = vld [vmem:[%s169 + $0x238] sm:$0xff]
      %v249 = vld [vmem:[%s169 + $0x240] sm:$0xff]
      %v250 = vld [vmem:[%s169 + $0x248] sm:$0xff]
      %v251 = vld [vmem:[%s169 + $0x250] sm:$0xff]
      %v252 = vld [vmem:[%s169 + $0x258] sm:$0xff]
      %v253 = vld [vmem:[%s169 + $0x260] sm:$0xff]
      %v254 = vld [vmem:[%s169 + $0x268] sm:$0xff]
      %v255 = vld [vmem:[%s169 + $0x270] sm:$0xff]
      %v256 = vld [vmem:[%s169 + $0x278] sm:$0xff]
      %v257 = vld [vmem:[%s169 + $0x280] sm:$0xff]
      %v258 = vld [vmem:[%s169 + $0x288] sm:$0xff]
      %v259 = vld [vmem:[%s169 + $0x290] sm:$0xff]
      %v260 = vld [vmem:[%s169 + $0x298] sm:$0xff]
      %v261 = vld [vmem:[%s169 + $0x2a0] sm:$0xff]
      %v262 = vld [vmem:[%s169 + $0x2a8] sm:$0xff]
      %v263 = vld [vmem:[%s169 + $0x2b0] sm:$0xff]
      %v264 = vld [vmem:[%s169 + $0x2b8] sm:$0xff]
      %v265 = vld [vmem:[%s169 + $0x2c0] sm:$0xff]
      %v266 = vld [vmem:[%s169 + $0x2c8] sm:$0xff]
      %v267 = vld [vmem:[%s169 + $0x2d0] sm:$0xff]
      %v268 = vld [vmem:[%s169 + $0x2d8] sm:$0xff]
      %v269 = vld [vmem:[%s169 + $0x2e0] sm:$0xff]
      %v270 = vld [vmem:[%s169 + $0x2e8] sm:$0xff]
      %v271 = vld [vmem:[%s169 + $0x2f0] sm:$0xff]
      %v272 = vld [vmem:[%s169 + $0x2f8] sm:$0xff]
      %v273 = vld [vmem:[%s169 + $0x300] sm:$0xff]
      %v274 = vld [vmem:[%s169 + $0x308] sm:$0xff]
      %v275 = vld [vmem:[%s169 + $0x310] sm:$0xff]
      %v276 = vld [vmem:[%s169 + $0x318] sm:$0xff]
      %v277 = vld [vmem:[%s169 + $0x320] sm:$0xff]
      %v278 = vld [vmem:[%s169 + $0x328] sm:$0xff]
      %v279 = vld [vmem:[%s169 + $0x330] sm:$0xff]
      %v280 = vld [vmem:[%s169 + $0x338] sm:$0xff]
      %v281 = vld [vmem:[%s169 + $0x340] sm:$0xff]
      %v282 = vld [vmem:[%s169 + $0x348] sm:$0xff]
      %v283 = vld [vmem:[%s169 + $0x350] sm:$0xff]
      %v284 = vld [vmem:[%s169 + $0x358] sm:$0xff]
      %v285 = vld [vmem:[%s169 + $0x360] sm:$0xff]
      %v286 = vld [vmem:[%s169 + $0x368] sm:$0xff]
      %v287 = vld [vmem:[%s169 + $0x370] sm:$0xff]
      %v288 = vld [vmem:[%s169 + $0x378] sm:$0xff]
      %v289 = vld [vmem:[%s169 + $0x380] sm:$0xff]
      %v290 = vld [vmem:[%s169 + $0x388] sm:$0xff]
      %v291 = vld [vmem:[%s169 + $0x390] sm:$0xff]
      %v292 = vld [vmem:[%s169 + $0x398] sm:$0xff]
      %v293 = vld [vmem:[%s169 + $0x3a0] sm:$0xff]
      %v294 = vld [vmem:[%s169 + $0x3a8] sm:$0xff]
      %v295 = vld [vmem:[%s169 + $0x3b0] sm:$0xff]
      %v296 = vld [vmem:[%s169 + $0x3b8] sm:$0xff]
      %v297 = vld [vmem:[%s169 + $0x3c0] sm:$0xff]
      %v298 = vld [vmem:[%s169 + $0x3c8] sm:$0xff]
      %v299 = vld [vmem:[%s169 + $0x3d0] sm:$0xff]
      %v300 = vld [vmem:[%s169 + $0x3d8] sm:$0xff]
      %v301 = vld [vmem:[%s169 + $0x3e0] sm:$0xff]
      %v302 = vld [vmem:[%s169 + $0x3e8] sm:$0xff]
      %v303 = vld [vmem:[%s1] sm:$0xf]
      %v304 = vld [vmem:[%s1 + $0x4] sm:$0xf]
      %v305 = vld [vmem:[%s1 + $0x8] sm:$0xf]
      %v306 = vld [vmem:[%s1 + $0xc] sm:$0xf]
      %v307 = vld [vmem:[%s1 + $0x10] sm:$0xf]
      %v308 = vld [vmem:[%s1 + $0x14] sm:$0xf]
      %v309 = vld [vmem:[%s1 + $0x18] sm:$0xf]
      %v310 = vld [vmem:[%s1 + $0x1c] sm:$0xf]
      %v311 = vld [vmem:[%s1 + $0x20] sm:$0xf]
      %v312 = vld [vmem:[%s1 + $0x24] sm:$0xf]
      %v313 = vld [vmem:[%s1 + $0x28] sm:$0xf]
      %v314 = vld [vmem:[%s1 + $0x2c] sm:$0xf]
      %v315 = vld [vmem:[%s1 + $0x30] sm:$0xf]
      %v316 = vld [vmem:[%s1 + $0x34] sm:$0xf]
      %v317 = vld [vmem:[%s1 + $0x38] sm:$0xf]
      %v318 = vld [vmem:[%s1 + $0x3c] sm:$0xf]
      %v319 = vld [vmem:[%s1 + $0x40] sm:$0xf]
      %v320 = vld [vmem:[%s1 + $0x44] sm:$0xf]
      %v321 = vld [vmem:[%s1 + $0x48] sm:$0xf]
      %v322 = vld [vmem:[%s1 + $0x4c] sm:$0xf]
      %v323 = vld [vmem:[%s1 + $0x50] sm:$0xf]
      %v324 = vld [vmem:[%s1 + $0x54] sm:$0xf]
      %v325 = vld [vmem:[%s1 + $0x58] sm:$0xf]
      %v326 = vld [vmem:[%s1 + $0x5c] sm:$0xf]
      %v327 = vld [vmem:[%s1 + $0x60] sm:$0xf]
      %v328 = vld [vmem:[%s1 + $0x64] sm:$0xf]
      %v329 = vld [vmem:[%s1 + $0x68] sm:$0xf]
      %v330 = vld [vmem:[%s1 + $0x6c] sm:$0xf]
      %v331 = vld [vmem:[%s1 + $0x70] sm:$0xf]
      %v332 = vld [vmem:[%s1 + $0x74] sm:$0xf]
      %v333 = vld [vmem:[%s1 + $0x78] sm:$0xf]
      %v334 = vld [vmem:[%s1 + $0x7c] sm:$0xf]
      %v335 = vld [vmem:[%s2] sm:$0x1]
      %v337 = vperm.slane %v335, 0
      %v465 = vunpack.c.l.b16 %v177
      %v466 = vunpack.c.h.b16 %v177
      %v467 = vunpack.c.l.b16 %v178
      %v468 = vunpack.c.h.b16 %v178
      %v469 = vunpack.c.l.b16 %v179
      %v470 = vunpack.c.h.b16 %v179
      %v471 = vunpack.c.l.b16 %v180
      %v472 = vunpack.c.h.b16 %v180
      %v473 = vunpack.c.l.b16 %v181
      %v474 = vunpack.c.h.b16 %v181
      %v475 = vunpack.c.l.b16 %v182
      %v476 = vunpack.c.h.b16 %v182
      %v477 = vunpack.c.l.b16 %v183
      %v478 = vunpack.c.h.b16 %v183
      %v479 = vunpack.c.l.b16 %v184
      %v480 = vunpack.c.h.b16 %v184
      %v481 = vunpack.c.l.b16 %v185
      %v482 = vunpack.c.h.b16 %v185
      %v483 = vunpack.c.l.b16 %v186
      %v484 = vunpack.c.h.b16 %v186
      %v485 = vunpack.c.l.b16 %v187
      %v486 = vunpack.c.h.b16 %v187
      %v487 = vunpack.c.l.b16 %v188
      %v488 = vunpack.c.h.b16 %v188
      %v489 = vunpack.c.l.b16 %v189
      %v490 = vunpack.c.h.b16 %v189
      %v491 = vunpack.c.l.b16 %v190
      %v492 = vunpack.c.h.b16 %v190
      %v493 = vunpack.c.l.b16 %v191
      %v494 = vunpack.c.h.b16 %v191
      %v495 = vunpack.c.l.b16 %v192
      %v496 = vunpack.c.h.b16 %v192
      %v497 = vunpack.c.l.b16 %v193
      %v498 = vunpack.c.h.b16 %v193
      %v499 = vunpack.c.l.b16 %v194
      %v500 = vunpack.c.h.b16 %v194
      %v501 = vunpack.c.l.b16 %v195
      %v502 = vunpack.c.h.b16 %v195
      %v503 = vunpack.c.l.b16 %v196
      %v504 = vunpack.c.h.b16 %v196
      %v505 = vunpack.c.l.b16 %v197
      %v506 = vunpack.c.h.b16 %v197
      %v507 = vunpack.c.l.b16 %v198
      %v508 = vunpack.c.h.b16 %v198
      %v509 = vunpack.c.l.b16 %v199
      %v510 = vunpack.c.h.b16 %v199
      %v511 = vunpack.c.l.b16 %v200
      %v512 = vunpack.c.h.b16 %v200
      %v513 = vunpack.c.l.b16 %v201
      %v514 = vunpack.c.h.b16 %v201
      %v515 = vunpack.c.l.b16 %v202
      %v516 = vunpack.c.h.b16 %v202
      %v517 = vunpack.c.l.b16 %v203
      %v518 = vunpack.c.h.b16 %v203
      %v519 = vunpack.c.l.b16 %v204
      %v520 = vunpack.c.h.b16 %v204
      %v521 = vunpack.c.l.b16 %v205
      %v522 = vunpack.c.h.b16 %v205
      %v523 = vunpack.c.l.b16 %v206
      %v524 = vunpack.c.h.b16 %v206
      %v525 = vunpack.c.l.b16 %v207
      %v526 = vunpack.c.h.b16 %v207
      %v527 = vunpack.c.l.b16 %v208
      %v528 = vunpack.c.h.b16 %v208
      %v529 = vunpack.c.l.b16 %v209
      %v530 = vunpack.c.h.b16 %v209
      %v531 = vunpack.c.l.b16 %v210
      %v532 = vunpack.c.h.b16 %v210
      %v533 = vunpack.c.l.b16 %v211
      %v534 = vunpack.c.h.b16 %v211
      %v535 = vunpack.c.l.b16 %v212
      %v536 = vunpack.c.h.b16 %v212
      %v537 = vunpack.c.l.b16 %v213
      %v538 = vunpack.c.h.b16 %v213
      %v539 = vunpack.c.l.b16 %v214
      %v540 = vunpack.c.h.b16 %v214
      %v541 = vunpack.c.l.b16 %v215
      %v542 = vunpack.c.h.b16 %v215
      %v543 = vunpack.c.l.b16 %v216
      %v544 = vunpack.c.h.b16 %v216
      %v545 = vunpack.c.l.b16 %v217
      %v546 = vunpack.c.h.b16 %v217
      %v547 = vunpack.c.l.b16 %v218
      %v548 = vunpack.c.h.b16 %v218
      %v549 = vunpack.c.l.b16 %v219
      %v550 = vunpack.c.h.b16 %v219
      %v551 = vunpack.c.l.b16 %v220
      %v552 = vunpack.c.h.b16 %v220
      %v553 = vunpack.c.l.b16 %v221
      %v554 = vunpack.c.h.b16 %v221
      %v555 = vunpack.c.l.b16 %v222
      %v556 = vunpack.c.h.b16 %v222
      %v557 = vunpack.c.l.b16 %v223
      %v558 = vunpack.c.h.b16 %v223
      %v559 = vunpack.c.l.b16 %v224
      %v560 = vunpack.c.h.b16 %v224
      %v561 = vunpack.c.l.b16 %v225
      %v562 = vunpack.c.h.b16 %v225
      %v563 = vunpack.c.l.b16 %v226
      %v564 = vunpack.c.h.b16 %v226
      %v565 = vunpack.c.l.b16 %v227
      %v566 = vunpack.c.h.b16 %v227
      %v567 = vunpack.c.l.b16 %v228
      %v568 = vunpack.c.h.b16 %v228
      %v569 = vunpack.c.l.b16 %v229
      %v570 = vunpack.c.h.b16 %v229
      %v571 = vunpack.c.l.b16 %v230
      %v572 = vunpack.c.h.b16 %v230
      %v573 = vunpack.c.l.b16 %v231
      %v574 = vunpack.c.h.b16 %v231
      %v575 = vunpack.c.l.b16 %v232
      %v576 = vunpack.c.h.b16 %v232
      %v577 = vunpack.c.l.b16 %v233
      %v578 = vunpack.c.h.b16 %v233
      %v579 = vunpack.c.l.b16 %v234
      %v580 = vunpack.c.h.b16 %v234
      %v581 = vunpack.c.l.b16 %v235
      %v582 = vunpack.c.h.b16 %v235
      %v583 = vunpack.c.l.b16 %v236
      %v584 = vunpack.c.h.b16 %v236
      %v585 = vunpack.c.l.b16 %v237
      %v586 = vunpack.c.h.b16 %v237
      %v587 = vunpack.c.l.b16 %v238
      %v588 = vunpack.c.h.b16 %v238
      %v589 = vunpack.c.l.b16 %v239
      %v590 = vunpack.c.h.b16 %v239
      %v591 = vunpack.c.l.b16 %v240
      %v592 = vunpack.c.h.b16 %v240
      %v593 = vunpack.c.l.b16 %v241
      %v594 = vunpack.c.h.b16 %v241
      %v595 = vunpack.c.l.b16 %v242
      %v596 = vunpack.c.h.b16 %v242
      %v597 = vunpack.c.l.b16 %v243
      %v598 = vunpack.c.h.b16 %v243
      %v599 = vunpack.c.l.b16 %v244
      %v600 = vunpack.c.h.b16 %v244
      %v601 = vunpack.c.l.b16 %v245
      %v602 = vunpack.c.h.b16 %v245
      %v603 = vunpack.c.l.b16 %v246
      %v604 = vunpack.c.h.b16 %v246
      %v605 = vunpack.c.l.b16 %v247
      %v606 = vunpack.c.h.b16 %v247
      %v607 = vunpack.c.l.b16 %v248
      %v608 = vunpack.c.h.b16 %v248
      %v609 = vunpack.c.l.b16 %v249
      %v610 = vunpack.c.h.b16 %v249
      %v611 = vunpack.c.l.b16 %v250
      %v612 = vunpack.c.h.b16 %v250
      %v613 = vunpack.c.l.b16 %v251
      %v614 = vunpack.c.h.b16 %v251
      %v615 = vunpack.c.l.b16 %v252
      %v616 = vunpack.c.h.b16 %v252
      %v617 = vunpack.c.l.b16 %v253
      %v618 = vunpack.c.h.b16 %v253
      %v619 = vunpack.c.l.b16 %v254
      %v620 = vunpack.c.h.b16 %v254
      %v621 = vunpack.c.l.b16 %v255
      %v622 = vunpack.c.h.b16 %v255
      %v623 = vunpack.c.l.b16 %v256
      %v624 = vunpack.c.h.b16 %v256
      %v625 = vunpack.c.l.b16 %v257
      %v626 = vunpack.c.h.b16 %v257
      %v627 = vunpack.c.l.b16 %v258
      %v628 = vunpack.c.h.b16 %v258
      %v629 = vunpack.c.l.b16 %v259
      %v630 = vunpack.c.h.b16 %v259
      %v631 = vunpack.c.l.b16 %v260
      %v632 = vunpack.c.h.b16 %v260
      %v633 = vunpack.c.l.b16 %v261
      %v634 = vunpack.c.h.b16 %v261
      %v635 = vunpack.c.l.b16 %v262
      %v636 = vunpack.c.h.b16 %v262
      %v637 = vunpack.c.l.b16 %v263
      %v638 = vunpack.c.h.b16 %v263
      %v639 = vunpack.c.l.b16 %v264
      %v640 = vunpack.c.h.b16 %v264
      %v641 = vunpack.c.l.b16 %v265
      %v642 = vunpack.c.h.b16 %v265
      %v643 = vunpack.c.l.b16 %v266
      %v644 = vunpack.c.h.b16 %v266
      %v645 = vunpack.c.l.b16 %v267
      %v646 = vunpack.c.h.b16 %v267
      %v647 = vunpack.c.l.b16 %v268
      %v648 = vunpack.c.h.b16 %v268
      %v649 = vunpack.c.l.b16 %v269
      %v650 = vunpack.c.h.b16 %v269
      %v651 = vunpack.c.l.b16 %v270
      %v652 = vunpack.c.h.b16 %v270
      %v653 = vunpack.c.l.b16 %v271
      %v654 = vunpack.c.h.b16 %v271
      %v655 = vunpack.c.l.b16 %v272
      %v656 = vunpack.c.h.b16 %v272
      %v657 = vunpack.c.l.b16 %v273
      %v658 = vunpack.c.h.b16 %v273
      %v659 = vunpack.c.l.b16 %v274
      %v660 = vunpack.c.h.b16 %v274
      %v661 = vunpack.c.l.b16 %v275
      %v662 = vunpack.c.h.b16 %v275
      %v663 = vunpack.c.l.b16 %v276
      %v664 = vunpack.c.h.b16 %v276
      %v665 = vunpack.c.l.b16 %v277
      %v666 = vunpack.c.h.b16 %v277
      %v667 = vunpack.c.l.b16 %v278
      %v668 = vunpack.c.h.b16 %v278
      %v669 = vunpack.c.l.b16 %v279
      %v670 = vunpack.c.h.b16 %v279
      %v671 = vunpack.c.l.b16 %v280
      %v672 = vunpack.c.h.b16 %v280
      %v673 = vunpack.c.l.b16 %v281
      %v674 = vunpack.c.h.b16 %v281
      %v675 = vunpack.c.l.b16 %v282
      %v676 = vunpack.c.h.b16 %v282
      %v677 = vunpack.c.l.b16 %v283
      %v678 = vunpack.c.h.b16 %v283
      %v679 = vunpack.c.l.b16 %v284
      %v680 = vunpack.c.h.b16 %v284
      %v681 = vunpack.c.l.b16 %v285
      %v682 = vunpack.c.h.b16 %v285
      %v683 = vunpack.c.l.b16 %v286
      %v684 = vunpack.c.h.b16 %v286
      %v685 = vunpack.c.l.b16 %v287
      %v686 = vunpack.c.h.b16 %v287
      %v687 = vunpack.c.l.b16 %v288
      %v688 = vunpack.c.h.b16 %v288
      %v689 = vunpack.c.l.b16 %v289
      %v690 = vunpack.c.h.b16 %v289
      %v691 = vunpack.c.l.b16 %v290
      %v692 = vunpack.c.h.b16 %v290
      %v693 = vunpack.c.l.b16 %v291
      %v694 = vunpack.c.h.b16 %v291
      %v695 = vunpack.c.l.b16 %v292
      %v696 = vunpack.c.h.b16 %v292
      %v697 = vunpack.c.l.b16 %v293
      %v698 = vunpack.c.h.b16 %v293
      %v699 = vunpack.c.l.b16 %v294
      %v700 = vunpack.c.h.b16 %v294
      %v701 = vunpack.c.l.b16 %v295
      %v702 = vunpack.c.h.b16 %v295
      %v703 = vunpack.c.l.b16 %v296
      %v704 = vunpack.c.h.b16 %v296
      %v705 = vunpack.c.l.b16 %v297
      %v706 = vunpack.c.h.b16 %v297
      %v707 = vunpack.c.l.b16 %v298
      %v708 = vunpack.c.h.b16 %v298
      %v709 = vunpack.c.l.b16 %v299
      %v710 = vunpack.c.h.b16 %v299
      %v711 = vunpack.c.l.b16 %v300
      %v712 = vunpack.c.h.b16 %v300
      %v713 = vunpack.c.l.b16 %v301
      %v714 = vunpack.c.h.b16 %v301
      %v715 = vunpack.c.l.b16 %v302
      %v716 = vunpack.c.h.b16 %v302
      %v717 = vpack.c.b16 %v467, %v465
      %v718 = vpack.c.b16 %v468, %v466
      %v719 = vpack.c.b16 %v471, %v469
      %v720 = vpack.c.b16 %v472, %v470
      %v721 = vpack.c.b16 %v475, %v473
      %v722 = vpack.c.b16 %v476, %v474
      %v723 = vpack.c.b16 %v479, %v477
      %v724 = vpack.c.b16 %v480, %v478
      %v725 = vpack.c.b16 %v483, %v481
      %v726 = vpack.c.b16 %v484, %v482
      %v727 = vpack.c.b16 %v487, %v485
      %v728 = vpack.c.b16 %v488, %v486
      %v729 = vpack.c.b16 %v491, %v489
      %v730 = vpack.c.b16 %v492, %v490
      %v731 = vpack.c.b16 %v495, %v493
      %v732 = vpack.c.b16 %v496, %v494
      %v733 = vpack.c.b16 %v499, %v497
      %v734 = vpack.c.b16 %v500, %v498
      %v735 = vpack.c.b16 %v503, %v501
      %v736 = vpack.c.b16 %v504, %v502
      %v737 = vpack.c.b16 %v507, %v505
      %v738 = vpack.c.b16 %v508, %v506
      %v739 = vpack.c.b16 %v511, %v509
      %v740 = vpack.c.b16 %v512, %v510
      %v741 = vpack.c.b16 %v515, %v513
      %v742 = vpack.c.b16 %v516, %v514
      %v743 = vpack.c.b16 %v519, %v517
      %v744 = vpack.c.b16 %v520, %v518
      %v745 = vpack.c.b16 %v523, %v521
      %v746 = vpack.c.b16 %v524, %v522
      %v747 = vpack.c.b16 %v527, %v525
      %v748 = vpack.c.b16 %v528, %v526
      %v749 = vpack.c.b16 %v531, %v529
      %v750 = vpack.c.b16 %v532, %v530
      %v751 = vpack.c.b16 %v535, %v533
      %v752 = vpack.c.b16 %v536, %v534
      %v753 = vpack.c.b16 %v539, %v537
      %v754 = vpack.c.b16 %v540, %v538
      %v755 = vpack.c.b16 %v543, %v541
      %v756 = vpack.c.b16 %v544, %v542
      %v757 = vpack.c.b16 %v547, %v545
      %v758 = vpack.c.b16 %v548, %v546
      %v759 = vpack.c.b16 %v551, %v549
      %v760 = vpack.c.b16 %v552, %v550
      %v761 = vpack.c.b16 %v555, %v553
      %v762 = vpack.c.b16 %v556, %v554
      %v763 = vpack.c.b16 %v559, %v557
      %v764 = vpack.c.b16 %v560, %v558
      %v765 = vpack.c.b16 %v563, %v561
      %v766 = vpack.c.b16 %v564, %v562
      %v767 = vpack.c.b16 %v567, %v565
      %v768 = vpack.c.b16 %v568, %v566
      %v769 = vpack.c.b16 %v571, %v569
      %v770 = vpack.c.b16 %v572, %v570
      %v771 = vpack.c.b16 %v575, %v573
      %v772 = vpack.c.b16 %v576, %v574
      %v773 = vpack.c.b16 %v579, %v577
      %v774 = vpack.c.b16 %v580, %v578
      %v775 = vpack.c.b16 %v583, %v581
      %v776 = vpack.c.b16 %v584, %v582
      %v777 = vpack.c.b16 %v587, %v585
      %v778 = vpack.c.b16 %v588, %v586
      %v779 = vpack.c.b16 %v591, %v589
      %v780 = vpack.c.b16 %v592, %v590
      %v781 = vpack.c.b16 %v595, %v593
      %v782 = vpack.c.b16 %v596, %v594
      %v783 = vpack.c.b16 %v599, %v597
      %v784 = vpack.c.b16 %v600, %v598
      %v785 = vpack.c.b16 %v603, %v601
      %v786 = vpack.c.b16 %v604, %v602
      %v787 = vpack.c.b16 %v607, %v605
      %v788 = vpack.c.b16 %v608, %v606
      %v789 = vpack.c.b16 %v611, %v609
      %v790 = vpack.c.b16 %v612, %v610
      %v791 = vpack.c.b16 %v615, %v613
      %v792 = vpack.c.b16 %v616, %v614
      %v793 = vpack.c.b16 %v619, %v617
      %v794 = vpack.c.b16 %v620, %v618
      %v795 = vpack.c.b16 %v623, %v621
      %v796 = vpack.c.b16 %v624, %v622
      %v797 = vpack.c.b16 %v627, %v625
      %v798 = vpack.c.b16 %v628, %v626
      %v799 = vpack.c.b16 %v631, %v629
      %v800 = vpack.c.b16 %v632, %v630
      %v801 = vpack.c.b16 %v635, %v633
      %v802 = vpack.c.b16 %v636, %v634
      %v803 = vpack.c.b16 %v639, %v637
      %v804 = vpack.c.b16 %v640, %v638
      %v805 = vpack.c.b16 %v643, %v641
      %v806 = vpack.c.b16 %v644, %v642
      %v807 = vpack.c.b16 %v647, %v645
      %v808 = vpack.c.b16 %v648, %v646
      %v809 = vpack.c.b16 %v651, %v649
      %v810 = vpack.c.b16 %v652, %v650
      %v811 = vpack.c.b16 %v655, %v653
      %v812 = vpack.c.b16 %v656, %v654
      %v813 = vpack.c.b16 %v659, %v657
      %v814 = vpack.c.b16 %v660, %v658
      %v815 = vpack.c.b16 %v663, %v661
      %v816 = vpack.c.b16 %v664, %v662
      %v817 = vpack.c.b16 %v667, %v665
      %v818 = vpack.c.b16 %v668, %v666
      %v819 = vpack.c.b16 %v671, %v669
      %v820 = vpack.c.b16 %v672, %v670
      %v821 = vpack.c.b16 %v675, %v673
      %v822 = vpack.c.b16 %v676, %v674
      %v823 = vpack.c.b16 %v679, %v677
      %v824 = vpack.c.b16 %v680, %v678
      %v825 = vpack.c.b16 %v683, %v681
      %v826 = vpack.c.b16 %v684, %v682
      %v827 = vpack.c.b16 %v687, %v685
      %v828 = vpack.c.b16 %v688, %v686
      %v829 = vpack.c.b16 %v691, %v689
      %v830 = vpack.c.b16 %v692, %v690
      %v831 = vpack.c.b16 %v695, %v693
      %v832 = vpack.c.b16 %v696, %v694
      %v833 = vpack.c.b16 %v699, %v697
      %v834 = vpack.c.b16 %v700, %v698
      %v835 = vpack.c.b16 %v703, %v701
      %v836 = vpack.c.b16 %v704, %v702
      %v837 = vpack.c.b16 %v707, %v705
      %v838 = vpack.c.b16 %v708, %v706
      %v839 = vpack.c.b16 %v711, %v709
      %v840 = vpack.c.b16 %v712, %v710
      %v841 = vpack.c.b16 %v715, %v713
      %v842 = vpack.c.b16 %v716, %v714
      %v1001 = vunpack.c.l.b16 %v303
      %v1002 = vunpack.c.l.b16 %v304
      %v1003 = vunpack.c.l.b16 %v305
      %v1004 = vunpack.c.l.b16 %v306
      %v1005 = vunpack.c.l.b16 %v307
      %v1006 = vunpack.c.l.b16 %v308
      %v1007 = vunpack.c.l.b16 %v309
      %v1008 = vunpack.c.l.b16 %v310
      %v1009 = vunpack.c.l.b16 %v311
      %v1010 = vunpack.c.l.b16 %v312
      %v1011 = vunpack.c.l.b16 %v313
      %v1012 = vunpack.c.l.b16 %v314
      %v1013 = vunpack.c.l.b16 %v315
      %v1014 = vunpack.c.l.b16 %v316
      %v1015 = vunpack.c.l.b16 %v317
      %v1016 = vunpack.c.l.b16 %v318
      %v1017 = vunpack.c.l.b16 %v319
      %v1018 = vunpack.c.l.b16 %v320
      %v1019 = vunpack.c.l.b16 %v321
      %v1020 = vunpack.c.l.b16 %v322
      %v1021 = vunpack.c.l.b16 %v323
      %v1022 = vunpack.c.l.b16 %v324
      %v1023 = vunpack.c.l.b16 %v325
      %v1024 = vunpack.c.l.b16 %v326
      %v1025 = vunpack.c.l.b16 %v327
      %v1026 = vunpack.c.l.b16 %v328
      %v1027 = vunpack.c.l.b16 %v329
      %v1028 = vunpack.c.l.b16 %v330
      %v1029 = vunpack.c.l.b16 %v331
      %v1030 = vunpack.c.l.b16 %v332
      %v1031 = vunpack.c.l.b16 %v333
      %v1032 = vunpack.c.l.b16 %v334
      %v1033 = vpack.c.b16 %v1002, %v1001
      %v1034 = vpack.c.b16 %v1004, %v1003
      %v1035 = vpack.c.b16 %v1006, %v1005
      %v1036 = vpack.c.b16 %v1008, %v1007
      %v1037 = vpack.c.b16 %v1010, %v1009
      %v1038 = vpack.c.b16 %v1012, %v1011
      %v1039 = vpack.c.b16 %v1014, %v1013
      %v1040 = vpack.c.b16 %v1016, %v1015
      %v1041 = vpack.c.b16 %v1018, %v1017
      %v1042 = vpack.c.b16 %v1020, %v1019
      %v1043 = vpack.c.b16 %v1022, %v1021
      %v1044 = vpack.c.b16 %v1024, %v1023
      %v1045 = vpack.c.b16 %v1026, %v1025
      %v1046 = vpack.c.b16 %v1028, %v1027
      %v1047 = vpack.c.b16 %v1030, %v1029
      %v1048 = vpack.c.b16 %v1032, %v1031
      %1065 = vmatpush.bf16.msra.mxu0 %v1040
      %1066 = vmatpush.bf16.msra.mxu0 %v1039
      %1067 = vmatpush.bf16.msra.mxu0 %v1038
      %1068 = vmatpush.bf16.msra.mxu0 %v1037
      %1069 = vmatpush.bf16.msra.mxu0 %v1036
      %1070 = vmatpush.bf16.msra.mxu0 %v1035
      %1071 = vmatpush.bf16.msra.mxu0 %v1034
      %1072 = vmatpush.bf16.msra.mxu0 %v1033
      %1073 = vmatmul.bf16.gmra.mxu0 %v717
      %v1074 = vpop.f32.mrf.mxu0
      %v1075 = vadd.f32 %v337, %v1074
      %v1076 = vpop.f32.mrf.mxu0
      %v1077 = vadd.f32 %v337, %v1076
      %1078 = vmatmul.bf16.gmra.mxu0 %v719
      %v1079 = vpop.f32.mrf.mxu0
      %v1080 = vadd.f32 %v337, %v1079
      %v1081 = vpop.f32.mrf.mxu0
      %v1082 = vadd.f32 %v337, %v1081
      %1083 = vmatmul.bf16.gmra.mxu0 %v721
      %v1084 = vpop.f32.mrf.mxu0
      %v1085 = vadd.f32 %v337, %v1084
      %v1086 = vpop.f32.mrf.mxu0
      %v1087 = vadd.f32 %v337, %v1086
      %1088 = vmatmul.bf16.gmra.mxu0 %v723
      %v1089 = vpop.f32.mrf.mxu0
      %v1090 = vadd.f32 %v337, %v1089
      %v1091 = vpop.f32.mrf.mxu0
      %v1092 = vadd.f32 %v337, %v1091
      %1093 = vmatmul.bf16.gmra.mxu0 %v725
      %v1094 = vpop.f32.mrf.mxu0
      %v1095 = vadd.f32 %v337, %v1094
      %v1096 = vpop.f32.mrf.mxu0
      %v1097 = vadd.f32 %v337, %v1096
      %1098 = vmatmul.bf16.gmra.mxu0 %v727
      %v1099 = vpop.f32.mrf.mxu0
      %v1100 = vadd.f32 %v337, %v1099
      %v1101 = vpop.f32.mrf.mxu0
      %v1102 = vadd.f32 %v337, %v1101
      %1103 = vmatmul.bf16.gmra.mxu0 %v729
      %v1104 = vpop.f32.mrf.mxu0
      %v1105 = vadd.f32 %v337, %v1104
      %v1106 = vpop.f32.mrf.mxu0
      %v1107 = vadd.f32 %v337, %v1106
      %1108 = vmatmul.bf16.gmra.mxu0 %v731
      %v1109 = vpop.f32.mrf.mxu0
      %v1110 = vadd.f32 %v337, %v1109
      %v1111 = vpop.f32.mrf.mxu0
      %v1112 = vadd.f32 %v337, %v1111
      %1113 = vmatmul.bf16.gmra.mxu0 %v733
      %v1114 = vpop.f32.mrf.mxu0
      %v1115 = vadd.f32 %v337, %v1114
      %v1116 = vpop.f32.mrf.mxu0
      %v1117 = vadd.f32 %v337, %v1116
      %1118 = vmatmul.bf16.gmra.mxu0 %v735
      %v1119 = vpop.f32.mrf.mxu0
      %v1120 = vadd.f32 %v337, %v1119
      %v1121 = vpop.f32.mrf.mxu0
      %v1122 = vadd.f32 %v337, %v1121
      %1123 = vmatmul.bf16.gmra.mxu0 %v737
      %v1124 = vpop.f32.mrf.mxu0
      %v1125 = vadd.f32 %v337, %v1124
      %v1126 = vpop.f32.mrf.mxu0
      %v1127 = vadd.f32 %v337, %v1126
      %1128 = vmatmul.bf16.gmra.mxu0 %v739
      %v1129 = vpop.f32.mrf.mxu0
      %v1130 = vadd.f32 %v337, %v1129
      %v1131 = vpop.f32.mrf.mxu0
      %v1132 = vadd.f32 %v337, %v1131
      %1133 = vmatmul.bf16.gmra.mxu0 %v741
      %v1134 = vpop.f32.mrf.mxu0
      %v1135 = vadd.f32 %v337, %v1134
      %v1136 = vpop.f32.mrf.mxu0
      %v1137 = vadd.f32 %v337, %v1136
      %1138 = vmatmul.bf16.gmra.mxu0 %v743
      %v1139 = vpop.f32.mrf.mxu0
      %v1140 = vadd.f32 %v337, %v1139
      %v1141 = vpop.f32.mrf.mxu0
      %v1142 = vadd.f32 %v337, %v1141
      %1143 = vmatmul.bf16.gmra.mxu0 %v745
      %v1144 = vpop.f32.mrf.mxu0
      %v1145 = vadd.f32 %v337, %v1144
      %v1146 = vpop.f32.mrf.mxu0
      %v1147 = vadd.f32 %v337, %v1146
      %1148 = vmatmul.bf16.gmra.mxu0 %v747
      %v1149 = vpop.f32.mrf.mxu0
      %v1150 = vadd.f32 %v337, %v1149
      %v1151 = vpop.f32.mrf.mxu0
      %v1152 = vadd.f32 %v337, %v1151
      %1153 = vmatmul.bf16.gmra.mxu0 %v749
      %v1154 = vpop.f32.mrf.mxu0
      %v1155 = vadd.f32 %v337, %v1154
      %v1156 = vpop.f32.mrf.mxu0
      %v1157 = vadd.f32 %v337, %v1156
      %1158 = vmatmul.bf16.gmra.mxu0 %v751
      %v1159 = vpop.f32.mrf.mxu0
      %v1160 = vadd.f32 %v337, %v1159
      %v1161 = vpop.f32.mrf.mxu0
      %v1162 = vadd.f32 %v337, %v1161
      %1163 = vmatmul.bf16.gmra.mxu0 %v753
      %v1164 = vpop.f32.mrf.mxu0
      %v1165 = vadd.f32 %v337, %v1164
      %v1166 = vpop.f32.mrf.mxu0
      %v1167 = vadd.f32 %v337, %v1166
      %1168 = vmatmul.bf16.gmra.mxu0 %v755
      %v1169 = vpop.f32.mrf.mxu0
      %v1170 = vadd.f32 %v337, %v1169
      %v1171 = vpop.f32.mrf.mxu0
      %v1172 = vadd.f32 %v337, %v1171
      %1173 = vmatmul.bf16.gmra.mxu0 %v757
      %v1174 = vpop.f32.mrf.mxu0
      %v1175 = vadd.f32 %v337, %v1174
      %v1176 = vpop.f32.mrf.mxu0
      %v1177 = vadd.f32 %v337, %v1176
      %1178 = vmatmul.bf16.gmra.mxu0 %v759
      %v1179 = vpop.f32.mrf.mxu0
      %v1180 = vadd.f32 %v337, %v1179
      %v1181 = vpop.f32.mrf.mxu0
      %v1182 = vadd.f32 %v337, %v1181
      %1183 = vmatmul.bf16.gmra.mxu0 %v761
      %v1184 = vpop.f32.mrf.mxu0
      %v1185 = vadd.f32 %v337, %v1184
      %v1186 = vpop.f32.mrf.mxu0
      %v1187 = vadd.f32 %v337, %v1186
      %1188 = vmatmul.bf16.gmra.mxu0 %v763
      %v1189 = vpop.f32.mrf.mxu0
      %v1190 = vadd.f32 %v337, %v1189
      %v1191 = vpop.f32.mrf.mxu0
      %v1192 = vadd.f32 %v337, %v1191
      %1193 = vmatmul.bf16.gmra.mxu0 %v765
      %v1194 = vpop.f32.mrf.mxu0
      %v1195 = vadd.f32 %v337, %v1194
      %v1196 = vpop.f32.mrf.mxu0
      %v1197 = vadd.f32 %v337, %v1196
      %1198 = vmatmul.bf16.gmra.mxu0 %v767
      %v1199 = vpop.f32.mrf.mxu0
      %v1200 = vadd.f32 %v337, %v1199
      %v1201 = vpop.f32.mrf.mxu0
      %v1202 = vadd.f32 %v337, %v1201
      %1203 = vmatmul.bf16.gmra.mxu0 %v769
      %v1204 = vpop.f32.mrf.mxu0
      %v1205 = vadd.f32 %v337, %v1204
      %v1206 = vpop.f32.mrf.mxu0
      %v1207 = vadd.f32 %v337, %v1206
      %1208 = vmatmul.bf16.gmra.mxu0 %v771
      %v1209 = vpop.f32.mrf.mxu0
      %v1210 = vadd.f32 %v337, %v1209
      %v1211 = vpop.f32.mrf.mxu0
      %v1212 = vadd.f32 %v337, %v1211
      %1213 = vmatmul.bf16.gmra.mxu0 %v773
      %v1214 = vpop.f32.mrf.mxu0
      %v1215 = vadd.f32 %v337, %v1214
      %v1216 = vpop.f32.mrf.mxu0
      %v1217 = vadd.f32 %v337, %v1216
      %1218 = vmatmul.bf16.gmra.mxu0 %v775
      %v1219 = vpop.f32.mrf.mxu0
      %v1220 = vadd.f32 %v337, %v1219
      %v1221 = vpop.f32.mrf.mxu0
      %v1222 = vadd.f32 %v337, %v1221
      %1223 = vmatmul.bf16.gmra.mxu0 %v777
      %v1224 = vpop.f32.mrf.mxu0
      %v1225 = vadd.f32 %v337, %v1224
      %v1226 = vpop.f32.mrf.mxu0
      %v1227 = vadd.f32 %v337, %v1226
      %1228 = vmatmul.bf16.gmra.mxu0 %v779
      %v1229 = vpop.f32.mrf.mxu0
      %v1230 = vadd.f32 %v337, %v1229
      %v1231 = vpop.f32.mrf.mxu0
      %v1232 = vadd.f32 %v337, %v1231
      %1233 = vmatmul.bf16.gmra.mxu0 %v781
      %v1234 = vpop.f32.mrf.mxu0
      %v1235 = vadd.f32 %v337, %v1234
      %v1236 = vpop.f32.mrf.mxu0
      %v1237 = vadd.f32 %v337, %v1236
      %1238 = vmatmul.bf16.gmra.mxu0 %v783
      %v1239 = vpop.f32.mrf.mxu0
      %v1240 = vadd.f32 %v337, %v1239
      %v1241 = vpop.f32.mrf.mxu0
      %v1242 = vadd.f32 %v337, %v1241
      %1243 = vmatmul.bf16.gmra.mxu0 %v785
      %v1244 = vpop.f32.mrf.mxu0
      %v1245 = vadd.f32 %v337, %v1244
      %v1246 = vpop.f32.mrf.mxu0
      %v1247 = vadd.f32 %v337, %v1246
      %1248 = vmatmul.bf16.gmra.mxu0 %v787
      %v1249 = vpop.f32.mrf.mxu0
      %v1250 = vadd.f32 %v337, %v1249
      %v1251 = vpop.f32.mrf.mxu0
      %v1252 = vadd.f32 %v337, %v1251
      %1253 = vmatmul.bf16.gmra.mxu0 %v789
      %v1254 = vpop.f32.mrf.mxu0
      %v1255 = vadd.f32 %v337, %v1254
      %v1256 = vpop.f32.mrf.mxu0
      %v1257 = vadd.f32 %v337, %v1256
      %1258 = vmatmul.bf16.gmra.mxu0 %v791
      %v1259 = vpop.f32.mrf.mxu0
      %v1260 = vadd.f32 %v337, %v1259
      %v1261 = vpop.f32.mrf.mxu0
      %v1262 = vadd.f32 %v337, %v1261
      %1263 = vmatmul.bf16.gmra.mxu0 %v793
      %v1264 = vpop.f32.mrf.mxu0
      %v1265 = vadd.f32 %v337, %v1264
      %v1266 = vpop.f32.mrf.mxu0
      %v1267 = vadd.f32 %v337, %v1266
      %1268 = vmatmul.bf16.gmra.mxu0 %v795
      %v1269 = vpop.f32.mrf.mxu0
      %v1270 = vadd.f32 %v337, %v1269
      %v1271 = vpop.f32.mrf.mxu0
      %v1272 = vadd.f32 %v337, %v1271
      %1273 = vmatmul.bf16.gmra.mxu0 %v797
      %v1274 = vpop.f32.mrf.mxu0
      %v1275 = vadd.f32 %v337, %v1274
      %v1276 = vpop.f32.mrf.mxu0
      %v1277 = vadd.f32 %v337, %v1276
      %1278 = vmatmul.bf16.gmra.mxu0 %v799
      %v1279 = vpop.f32.mrf.mxu0
      %v1280 = vadd.f32 %v337, %v1279
      %v1281 = vpop.f32.mrf.mxu0
      %v1282 = vadd.f32 %v337, %v1281
      %1283 = vmatmul.bf16.gmra.mxu0 %v801
      %v1284 = vpop.f32.mrf.mxu0
      %v1285 = vadd.f32 %v337, %v1284
      %v1286 = vpop.f32.mrf.mxu0
      %v1287 = vadd.f32 %v337, %v1286
      %1288 = vmatmul.bf16.gmra.mxu0 %v803
      %v1289 = vpop.f32.mrf.mxu0
      %v1290 = vadd.f32 %v337, %v1289
      %v1291 = vpop.f32.mrf.mxu0
      %v1292 = vadd.f32 %v337, %v1291
      %1293 = vmatmul.bf16.gmra.mxu0 %v805
      %v1294 = vpop.f32.mrf.mxu0
      %v1295 = vadd.f32 %v337, %v1294
      %v1296 = vpop.f32.mrf.mxu0
      %v1297 = vadd.f32 %v337, %v1296
      %1298 = vmatmul.bf16.gmra.mxu0 %v807
      %v1299 = vpop.f32.mrf.mxu0
      %v1300 = vadd.f32 %v337, %v1299
      %v1301 = vpop.f32.mrf.mxu0
      %v1302 = vadd.f32 %v337, %v1301
      %1303 = vmatmul.bf16.gmra.mxu0 %v809
      %v1304 = vpop.f32.mrf.mxu0
      %v1305 = vadd.f32 %v337, %v1304
      %v1306 = vpop.f32.mrf.mxu0
      %v1307 = vadd.f32 %v337, %v1306
      %1308 = vmatmul.bf16.gmra.mxu0 %v811
      %v1309 = vpop.f32.mrf.mxu0
      %v1310 = vadd.f32 %v337, %v1309
      %v1311 = vpop.f32.mrf.mxu0
      %v1312 = vadd.f32 %v337, %v1311
      %1313 = vmatmul.bf16.gmra.mxu0 %v813
      %v1314 = vpop.f32.mrf.mxu0
      %v1315 = vadd.f32 %v337, %v1314
      %v1316 = vpop.f32.mrf.mxu0
      %v1317 = vadd.f32 %v337, %v1316
      %1318 = vmatmul.bf16.gmra.mxu0 %v815
      %v1319 = vpop.f32.mrf.mxu0
      %v1320 = vadd.f32 %v337, %v1319
      %v1321 = vpop.f32.mrf.mxu0
      %v1322 = vadd.f32 %v337, %v1321
      %1323 = vmatmul.bf16.gmra.mxu0 %v817
      %v1324 = vpop.f32.mrf.mxu0
      %v1325 = vadd.f32 %v337, %v1324
      %v1326 = vpop.f32.mrf.mxu0
      %v1327 = vadd.f32 %v337, %v1326
      %1328 = vmatmul.bf16.gmra.mxu0 %v819
      %v1329 = vpop.f32.mrf.mxu0
      %v1330 = vadd.f32 %v337, %v1329
      %v1331 = vpop.f32.mrf.mxu0
      %v1332 = vadd.f32 %v337, %v1331
      %1333 = vmatmul.bf16.gmra.mxu0 %v821
      %v1334 = vpop.f32.mrf.mxu0
      %v1335 = vadd.f32 %v337, %v1334
      %v1336 = vpop.f32.mrf.mxu0
      %v1337 = vadd.f32 %v337, %v1336
      %1338 = vmatmul.bf16.gmra.mxu0 %v823
      %v1339 = vpop.f32.mrf.mxu0
      %v1340 = vadd.f32 %v337, %v1339
      %v1341 = vpop.f32.mrf.mxu0
      %v1342 = vadd.f32 %v337, %v1341
      %1343 = vmatmul.bf16.gmra.mxu0 %v825
      %v1344 = vpop.f32.mrf.mxu0
      %v1345 = vadd.f32 %v337, %v1344
      %v1346 = vpop.f32.mrf.mxu0
      %v1347 = vadd.f32 %v337, %v1346
      %1348 = vmatmul.bf16.gmra.mxu0 %v827
      %v1349 = vpop.f32.mrf.mxu0
      %v1350 = vadd.f32 %v337, %v1349
      %v1351 = vpop.f32.mrf.mxu0
      %v1352 = vadd.f32 %v337, %v1351
      %1353 = vmatmul.bf16.gmra.mxu0 %v829
      %v1354 = vpop.f32.mrf.mxu0
      %v1355 = vadd.f32 %v337, %v1354
      %v1356 = vpop.f32.mrf.mxu0
      %v1357 = vadd.f32 %v337, %v1356
      %1358 = vmatmul.bf16.gmra.mxu0 %v831
      %v1359 = vpop.f32.mrf.mxu0
      %v1360 = vadd.f32 %v337, %v1359
      %v1361 = vpop.f32.mrf.mxu0
      %v1362 = vadd.f32 %v337, %v1361
      %1363 = vmatmul.bf16.gmra.mxu0 %v833
      %v1364 = vpop.f32.mrf.mxu0
      %v1365 = vadd.f32 %v337, %v1364
      %v1366 = vpop.f32.mrf.mxu0
      %v1367 = vadd.f32 %v337, %v1366
      %1368 = vmatmul.bf16.gmra.mxu0 %v835
      %v1369 = vpop.f32.mrf.mxu0
      %v1370 = vadd.f32 %v337, %v1369
      %v1371 = vpop.f32.mrf.mxu0
      %v1372 = vadd.f32 %v337, %v1371
      %1373 = vmatmul.bf16.gmra.mxu0 %v837
      %v1374 = vpop.f32.mrf.mxu0
      %v1375 = vadd.f32 %v337, %v1374
      %v1376 = vpop.f32.mrf.mxu0
      %v1377 = vadd.f32 %v337, %v1376
      %1378 = vmatmul.bf16.gmra.mxu0 %v839
      %v1379 = vpop.f32.mrf.mxu0
      %v1380 = vadd.f32 %v337, %v1379
      %v1381 = vpop.f32.mrf.mxu0
      %v1382 = vadd.f32 %v337, %v1381
      %1383 = vmatmul.bf16.gmra.mxu0 %v841
      %v1384 = vpop.f32.mrf.mxu0
      %v1385 = vadd.f32 %v337, %v1384
      %v1386 = vpop.f32.mrf.mxu0
      %v1387 = vadd.f32 %v337, %v1386
      %1388 = vdwg.mxu0
      %1389 = vmatpush.bf16.msra.mxu0 %v1048
      %1390 = vmatpush.bf16.msra.mxu0 %v1047
      %1391 = vmatpush.bf16.msra.mxu0 %v1046
      %1392 = vmatpush.bf16.msra.mxu0 %v1045
      %1393 = vmatpush.bf16.msra.mxu0 %v1044
      %1394 = vmatpush.bf16.msra.mxu0 %v1043
      %1395 = vmatpush.bf16.msra.mxu0 %v1042
      %1396 = vmatpush.bf16.msra.mxu0 %v1041
      %1397 = vmatmul.bf16.gmra.mxu0 %v718
      %v1398 = vpop.f32.mrf.mxu0
      %v1399 = vadd.f32 %v1075, %v1398
      %v1400 = vpop.f32.mrf.mxu0
      %v1401 = vadd.f32 %v1077, %v1400
      %1402 = vmatmul.bf16.gmra.mxu0 %v720
      %v1403 = vpop.f32.mrf.mxu0
      %v1404 = vadd.f32 %v1080, %v1403
      %v1405 = vpop.f32.mrf.mxu0
      %v1406 = vadd.f32 %v1082, %v1405
      %1407 = vmatmul.bf16.gmra.mxu0 %v722
      %v1408 = vpop.f32.mrf.mxu0
      %v1409 = vadd.f32 %v1085, %v1408
      %v1410 = vpop.f32.mrf.mxu0
      %v1411 = vadd.f32 %v1087, %v1410
      %1412 = vmatmul.bf16.gmra.mxu0 %v724
      %v1413 = vpop.f32.mrf.mxu0
      %v1414 = vadd.f32 %v1090, %v1413
      %v1415 = vpop.f32.mrf.mxu0
      %v1416 = vadd.f32 %v1092, %v1415
      %1417 = vmatmul.bf16.gmra.mxu0 %v726
      %v1418 = vpop.f32.mrf.mxu0
      %v1419 = vadd.f32 %v1095, %v1418
      %v1420 = vpop.f32.mrf.mxu0
      %v1421 = vadd.f32 %v1097, %v1420
      %1422 = vmatmul.bf16.gmra.mxu0 %v728
      %v1423 = vpop.f32.mrf.mxu0
      %v1424 = vadd.f32 %v1100, %v1423
      %v1425 = vpop.f32.mrf.mxu0
      %v1426 = vadd.f32 %v1102, %v1425
      %1427 = vmatmul.bf16.gmra.mxu0 %v730
      %v1428 = vpop.f32.mrf.mxu0
      %v1429 = vadd.f32 %v1105, %v1428
      %v1430 = vpop.f32.mrf.mxu0
      %v1431 = vadd.f32 %v1107, %v1430
      %1432 = vmatmul.bf16.gmra.mxu0 %v732
      %v1433 = vpop.f32.mrf.mxu0
      %v1434 = vadd.f32 %v1110, %v1433
      %v1435 = vpop.f32.mrf.mxu0
      %v1436 = vadd.f32 %v1112, %v1435
      %1437 = vmatmul.bf16.gmra.mxu0 %v734
      %v1438 = vpop.f32.mrf.mxu0
      %v1439 = vadd.f32 %v1115, %v1438
      %v1440 = vpop.f32.mrf.mxu0
      %v1441 = vadd.f32 %v1117, %v1440
      %1442 = vmatmul.bf16.gmra.mxu0 %v736
      %v1443 = vpop.f32.mrf.mxu0
      %v1444 = vadd.f32 %v1120, %v1443
      %v1445 = vpop.f32.mrf.mxu0
      %v1446 = vadd.f32 %v1122, %v1445
      %1447 = vmatmul.bf16.gmra.mxu0 %v738
      %v1448 = vpop.f32.mrf.mxu0
      %v1449 = vadd.f32 %v1125, %v1448
      %v1450 = vpop.f32.mrf.mxu0
      %v1451 = vadd.f32 %v1127, %v1450
      %1452 = vmatmul.bf16.gmra.mxu0 %v740
      %v1453 = vpop.f32.mrf.mxu0
      %v1454 = vadd.f32 %v1130, %v1453
      %v1455 = vpop.f32.mrf.mxu0
      %v1456 = vadd.f32 %v1132, %v1455
      %1457 = vmatmul.bf16.gmra.mxu0 %v742
      %v1458 = vpop.f32.mrf.mxu0
      %v1459 = vadd.f32 %v1135, %v1458
      %v1460 = vpop.f32.mrf.mxu0
      %v1461 = vadd.f32 %v1137, %v1460
      %1462 = vmatmul.bf16.gmra.mxu0 %v744
      %v1463 = vpop.f32.mrf.mxu0
      %v1464 = vadd.f32 %v1140, %v1463
      %v1465 = vpop.f32.mrf.mxu0
      %v1466 = vadd.f32 %v1142, %v1465
      %1467 = vmatmul.bf16.gmra.mxu0 %v746
      %v1468 = vpop.f32.mrf.mxu0
      %v1469 = vadd.f32 %v1145, %v1468
      %v1470 = vpop.f32.mrf.mxu0
      %v1471 = vadd.f32 %v1147, %v1470
      %1472 = vmatmul.bf16.gmra.mxu0 %v748
      %v1473 = vpop.f32.mrf.mxu0
      %v1474 = vadd.f32 %v1150, %v1473
      %v1475 = vpop.f32.mrf.mxu0
      %v1476 = vadd.f32 %v1152, %v1475
      %1477 = vmatmul.bf16.gmra.mxu0 %v750
      %v1478 = vpop.f32.mrf.mxu0
      %v1479 = vadd.f32 %v1155, %v1478
      %v1480 = vpop.f32.mrf.mxu0
      %v1481 = vadd.f32 %v1157, %v1480
      %1482 = vmatmul.bf16.gmra.mxu0 %v752
      %v1483 = vpop.f32.mrf.mxu0
      %v1484 = vadd.f32 %v1160, %v1483
      %v1485 = vpop.f32.mrf.mxu0
      %v1486 = vadd.f32 %v1162, %v1485
      %1487 = vmatmul.bf16.gmra.mxu0 %v754
      %v1488 = vpop.f32.mrf.mxu0
      %v1489 = vadd.f32 %v1165, %v1488
      %v1490 = vpop.f32.mrf.mxu0
      %v1491 = vadd.f32 %v1167, %v1490
      %1492 = vmatmul.bf16.gmra.mxu0 %v756
      %v1493 = vpop.f32.mrf.mxu0
      %v1494 = vadd.f32 %v1170, %v1493
      %v1495 = vpop.f32.mrf.mxu0
      %v1496 = vadd.f32 %v1172, %v1495
      %1497 = vmatmul.bf16.gmra.mxu0 %v758
      %v1498 = vpop.f32.mrf.mxu0
      %v1499 = vadd.f32 %v1175, %v1498
      %v1500 = vpop.f32.mrf.mxu0
      %v1501 = vadd.f32 %v1177, %v1500
      %1502 = vmatmul.bf16.gmra.mxu0 %v760
      %v1503 = vpop.f32.mrf.mxu0
      %v1504 = vadd.f32 %v1180, %v1503
      %v1505 = vpop.f32.mrf.mxu0
      %v1506 = vadd.f32 %v1182, %v1505
      %1507 = vmatmul.bf16.gmra.mxu0 %v762
      %v1508 = vpop.f32.mrf.mxu0
      %v1509 = vadd.f32 %v1185, %v1508
      %v1510 = vpop.f32.mrf.mxu0
      %v1511 = vadd.f32 %v1187, %v1510
      %1512 = vmatmul.bf16.gmra.mxu0 %v764
      %v1513 = vpop.f32.mrf.mxu0
      %v1514 = vadd.f32 %v1190, %v1513
      %v1515 = vpop.f32.mrf.mxu0
      %v1516 = vadd.f32 %v1192, %v1515
      %1517 = vmatmul.bf16.gmra.mxu0 %v766
      %v1518 = vpop.f32.mrf.mxu0
      %v1519 = vadd.f32 %v1195, %v1518
      %v1520 = vpop.f32.mrf.mxu0
      %v1521 = vadd.f32 %v1197, %v1520
      %1522 = vmatmul.bf16.gmra.mxu0 %v768
      %v1523 = vpop.f32.mrf.mxu0
      %v1524 = vadd.f32 %v1200, %v1523
      %v1525 = vpop.f32.mrf.mxu0
      %v1526 = vadd.f32 %v1202, %v1525
      %1527 = vmatmul.bf16.gmra.mxu0 %v770
      %v1528 = vpop.f32.mrf.mxu0
      %v1529 = vadd.f32 %v1205, %v1528
      %v1530 = vpop.f32.mrf.mxu0
      %v1531 = vadd.f32 %v1207, %v1530
      %1532 = vmatmul.bf16.gmra.mxu0 %v772
      %v1533 = vpop.f32.mrf.mxu0
      %v1534 = vadd.f32 %v1210, %v1533
      %v1535 = vpop.f32.mrf.mxu0
      %v1536 = vadd.f32 %v1212, %v1535
      %1537 = vmatmul.bf16.gmra.mxu0 %v774
      %v1538 = vpop.f32.mrf.mxu0
      %v1539 = vadd.f32 %v1215, %v1538
      %v1540 = vpop.f32.mrf.mxu0
      %v1541 = vadd.f32 %v1217, %v1540
      %1542 = vmatmul.bf16.gmra.mxu0 %v776
      %v1543 = vpop.f32.mrf.mxu0
      %v1544 = vadd.f32 %v1220, %v1543
      %v1545 = vpop.f32.mrf.mxu0
      %v1546 = vadd.f32 %v1222, %v1545
      %1547 = vmatmul.bf16.gmra.mxu0 %v778
      %v1548 = vpop.f32.mrf.mxu0
      %v1549 = vadd.f32 %v1225, %v1548
      %v1550 = vpop.f32.mrf.mxu0
      %v1551 = vadd.f32 %v1227, %v1550
      %1552 = vmatmul.bf16.gmra.mxu0 %v780
      %v1553 = vpop.f32.mrf.mxu0
      %v1554 = vadd.f32 %v1230, %v1553
      %v1555 = vpop.f32.mrf.mxu0
      %v1556 = vadd.f32 %v1232, %v1555
      %1557 = vmatmul.bf16.gmra.mxu0 %v782
      %v1558 = vpop.f32.mrf.mxu0
      %v1559 = vadd.f32 %v1235, %v1558
      %v1560 = vpop.f32.mrf.mxu0
      %v1561 = vadd.f32 %v1237, %v1560
      %1562 = vmatmul.bf16.gmra.mxu0 %v784
      %v1563 = vpop.f32.mrf.mxu0
      %v1564 = vadd.f32 %v1240, %v1563
      %v1565 = vpop.f32.mrf.mxu0
      %v1566 = vadd.f32 %v1242, %v1565
      %1567 = vmatmul.bf16.gmra.mxu0 %v786
      %v1568 = vpop.f32.mrf.mxu0
      %v1569 = vadd.f32 %v1245, %v1568
      %v1570 = vpop.f32.mrf.mxu0
      %v1571 = vadd.f32 %v1247, %v1570
      %1572 = vmatmul.bf16.gmra.mxu0 %v788
      %v1573 = vpop.f32.mrf.mxu0
      %v1574 = vadd.f32 %v1250, %v1573
      %v1575 = vpop.f32.mrf.mxu0
      %v1576 = vadd.f32 %v1252, %v1575
      %1577 = vmatmul.bf16.gmra.mxu0 %v790
      %v1578 = vpop.f32.mrf.mxu0
      %v1579 = vadd.f32 %v1255, %v1578
      %v1580 = vpop.f32.mrf.mxu0
      %v1581 = vadd.f32 %v1257, %v1580
      %1582 = vmatmul.bf16.gmra.mxu0 %v792
      %v1583 = vpop.f32.mrf.mxu0
      %v1584 = vadd.f32 %v1260, %v1583
      %v1585 = vpop.f32.mrf.mxu0
      %v1586 = vadd.f32 %v1262, %v1585
      %1587 = vmatmul.bf16.gmra.mxu0 %v794
      %v1588 = vpop.f32.mrf.mxu0
      %v1589 = vadd.f32 %v1265, %v1588
      %v1590 = vpop.f32.mrf.mxu0
      %v1591 = vadd.f32 %v1267, %v1590
      %1592 = vmatmul.bf16.gmra.mxu0 %v796
      %v1593 = vpop.f32.mrf.mxu0
      %v1594 = vadd.f32 %v1270, %v1593
      %v1595 = vpop.f32.mrf.mxu0
      %v1596 = vadd.f32 %v1272, %v1595
      %1597 = vmatmul.bf16.gmra.mxu0 %v798
      %v1598 = vpop.f32.mrf.mxu0
      %v1599 = vadd.f32 %v1275, %v1598
      %v1600 = vpop.f32.mrf.mxu0
      %v1601 = vadd.f32 %v1277, %v1600
      %1602 = vmatmul.bf16.gmra.mxu0 %v800
      %v1603 = vpop.f32.mrf.mxu0
      %v1604 = vadd.f32 %v1280, %v1603
      %v1605 = vpop.f32.mrf.mxu0
      %v1606 = vadd.f32 %v1282, %v1605
      %1607 = vmatmul.bf16.gmra.mxu0 %v802
      %v1608 = vpop.f32.mrf.mxu0
      %v1609 = vadd.f32 %v1285, %v1608
      %v1610 = vpop.f32.mrf.mxu0
      %v1611 = vadd.f32 %v1287, %v1610
      %1612 = vmatmul.bf16.gmra.mxu0 %v804
      %v1613 = vpop.f32.mrf.mxu0
      %v1614 = vadd.f32 %v1290, %v1613
      %v1615 = vpop.f32.mrf.mxu0
      %v1616 = vadd.f32 %v1292, %v1615
      %1617 = vmatmul.bf16.gmra.mxu0 %v806
      %v1618 = vpop.f32.mrf.mxu0
      %v1619 = vadd.f32 %v1295, %v1618
      %v1620 = vpop.f32.mrf.mxu0
      %v1621 = vadd.f32 %v1297, %v1620
      %1622 = vmatmul.bf16.gmra.mxu0 %v808
      %v1623 = vpop.f32.mrf.mxu0
      %v1624 = vadd.f32 %v1300, %v1623
      %v1625 = vpop.f32.mrf.mxu0
      %v1626 = vadd.f32 %v1302, %v1625
      %1627 = vmatmul.bf16.gmra.mxu0 %v810
      %v1628 = vpop.f32.mrf.mxu0
      %v1629 = vadd.f32 %v1305, %v1628
      %v1630 = vpop.f32.mrf.mxu0
      %v1631 = vadd.f32 %v1307, %v1630
      %1632 = vmatmul.bf16.gmra.mxu0 %v812
      %v1633 = vpop.f32.mrf.mxu0
      %v1634 = vadd.f32 %v1310, %v1633
      %v1635 = vpop.f32.mrf.mxu0
      %v1636 = vadd.f32 %v1312, %v1635
      %1637 = vmatmul.bf16.gmra.mxu0 %v814
      %v1638 = vpop.f32.mrf.mxu0
      %v1639 = vadd.f32 %v1315, %v1638
      %v1640 = vpop.f32.mrf.mxu0
      %v1641 = vadd.f32 %v1317, %v1640
      %1642 = vmatmul.bf16.gmra.mxu0 %v816
      %v1643 = vpop.f32.mrf.mxu0
      %v1644 = vadd.f32 %v1320, %v1643
      %v1645 = vpop.f32.mrf.mxu0
      %v1646 = vadd.f32 %v1322, %v1645
      %1647 = vmatmul.bf16.gmra.mxu0 %v818
      %v1648 = vpop.f32.mrf.mxu0
      %v1649 = vadd.f32 %v1325, %v1648
      %v1650 = vpop.f32.mrf.mxu0
      %v1651 = vadd.f32 %v1327, %v1650
      %1652 = vmatmul.bf16.gmra.mxu0 %v820
      %v1653 = vpop.f32.mrf.mxu0
      %v1654 = vadd.f32 %v1330, %v1653
      %v1655 = vpop.f32.mrf.mxu0
      %v1656 = vadd.f32 %v1332, %v1655
      %1657 = vmatmul.bf16.gmra.mxu0 %v822
      %v1658 = vpop.f32.mrf.mxu0
      %v1659 = vadd.f32 %v1335, %v1658
      %v1660 = vpop.f32.mrf.mxu0
      %v1661 = vadd.f32 %v1337, %v1660
      %1662 = vmatmul.bf16.gmra.mxu0 %v824
      %v1663 = vpop.f32.mrf.mxu0
      %v1664 = vadd.f32 %v1340, %v1663
      %v1665 = vpop.f32.mrf.mxu0
      %v1666 = vadd.f32 %v1342, %v1665
      %1667 = vmatmul.bf16.gmra.mxu0 %v826
      %v1668 = vpop.f32.mrf.mxu0
      %v1669 = vadd.f32 %v1345, %v1668
      %v1670 = vpop.f32.mrf.mxu0
      %v1671 = vadd.f32 %v1347, %v1670
      %1672 = vmatmul.bf16.gmra.mxu0 %v828
      %v1673 = vpop.f32.mrf.mxu0
      %v1674 = vadd.f32 %v1350, %v1673
      %v1675 = vpop.f32.mrf.mxu0
      %v1676 = vadd.f32 %v1352, %v1675
      %1677 = vmatmul.bf16.gmra.mxu0 %v830
      %v1678 = vpop.f32.mrf.mxu0
      %v1679 = vadd.f32 %v1355, %v1678
      %v1680 = vpop.f32.mrf.mxu0
      %v1681 = vadd.f32 %v1357, %v1680
      %1682 = vmatmul.bf16.gmra.mxu0 %v832
      %v1683 = vpop.f32.mrf.mxu0
      %v1684 = vadd.f32 %v1360, %v1683
      %v1685 = vpop.f32.mrf.mxu0
      %v1686 = vadd.f32 %v1362, %v1685
      %1687 = vmatmul.bf16.gmra.mxu0 %v834
      %v1688 = vpop.f32.mrf.mxu0
      %v1689 = vadd.f32 %v1365, %v1688
      %v1690 = vpop.f32.mrf.mxu0
      %v1691 = vadd.f32 %v1367, %v1690
      %1692 = vmatmul.bf16.gmra.mxu0 %v836
      %v1693 = vpop.f32.mrf.mxu0
      %v1694 = vadd.f32 %v1370, %v1693
      %v1695 = vpop.f32.mrf.mxu0
      %v1696 = vadd.f32 %v1372, %v1695
      %1697 = vmatmul.bf16.gmra.mxu0 %v838
      %v1698 = vpop.f32.mrf.mxu0
      %v1699 = vadd.f32 %v1375, %v1698
      %v1700 = vpop.f32.mrf.mxu0
      %v1701 = vadd.f32 %v1377, %v1700
      %1702 = vmatmul.bf16.gmra.mxu0 %v840
      %v1703 = vpop.f32.mrf.mxu0
      %v1704 = vadd.f32 %v1380, %v1703
      %v1705 = vpop.f32.mrf.mxu0
      %v1706 = vadd.f32 %v1382, %v1705
      %1707 = vmatmul.bf16.gmra.mxu0 %v842
      %v1708 = vpop.f32.mrf.mxu0
      %v1709 = vadd.f32 %v1385, %v1708
      %v1710 = vpop.f32.mrf.mxu0
      %v1711 = vadd.f32 %v1387, %v1710
      %1712 = vdwg.mxu0
      %v1713 = vmax.f32 %v1399, 0.0
      %v1714 = vmax.f32 %v1401, 0.0
      %v1715 = vmax.f32 %v1404, 0.0
      %v1716 = vmax.f32 %v1406, 0.0
      %v1717 = vmax.f32 %v1409, 0.0
      %v1718 = vmax.f32 %v1411, 0.0
      %v1719 = vmax.f32 %v1414, 0.0
      %v1720 = vmax.f32 %v1416, 0.0
      %v1721 = vmax.f32 %v1419, 0.0
      %v1722 = vmax.f32 %v1421, 0.0
      %v1723 = vmax.f32 %v1424, 0.0
      %v1724 = vmax.f32 %v1426, 0.0
      %v1725 = vmax.f32 %v1429, 0.0
      %v1726 = vmax.f32 %v1431, 0.0
      %v1727 = vmax.f32 %v1434, 0.0
      %v1728 = vmax.f32 %v1436, 0.0
      %v1729 = vmax.f32 %v1439, 0.0
      %v1730 = vmax.f32 %v1441, 0.0
      %v1731 = vmax.f32 %v1444, 0.0
      %v1732 = vmax.f32 %v1446, 0.0
      %v1733 = vmax.f32 %v1449, 0.0
      %v1734 = vmax.f32 %v1451, 0.0
      %v1735 = vmax.f32 %v1454, 0.0
      %v1736 = vmax.f32 %v1456, 0.0
      %v1737 = vmax.f32 %v1459, 0.0
      %v1738 = vmax.f32 %v1461, 0.0
      %v1739 = vmax.f32 %v1464, 0.0
      %v1740 = vmax.f32 %v1466, 0.0
      %v1741 = vmax.f32 %v1469, 0.0
      %v1742 = vmax.f32 %v1471, 0.0
      %v1743 = vmax.f32 %v1474, 0.0
      %v1744 = vmax.f32 %v1476, 0.0
      %v1745 = vmax.f32 %v1479, 0.0
      %v1746 = vmax.f32 %v1481, 0.0
      %v1747 = vmax.f32 %v1484, 0.0
      %v1748 = vmax.f32 %v1486, 0.0
      %v1749 = vmax.f32 %v1489, 0.0
      %v1750 = vmax.f32 %v1491, 0.0
      %v1751 = vmax.f32 %v1494, 0.0
      %v1752 = vmax.f32 %v1496, 0.0
      %v1753 = vmax.f32 %v1499, 0.0
      %v1754 = vmax.f32 %v1501, 0.0
      %v1755 = vmax.f32 %v1504, 0.0
      %v1756 = vmax.f32 %v1506, 0.0
      %v1757 = vmax.f32 %v1509, 0.0
      %v1758 = vmax.f32 %v1511, 0.0
      %v1759 = vmax.f32 %v1514, 0.0
      %v1760 = vmax.f32 %v1516, 0.0
      %v1761 = vmax.f32 %v1519, 0.0
      %v1762 = vmax.f32 %v1521, 0.0
      %v1763 = vmax.f32 %v1524, 0.0
      %v1764 = vmax.f32 %v1526, 0.0
      %v1765 = vmax.f32 %v1529, 0.0
      %v1766 = vmax.f32 %v1531, 0.0
      %v1767 = vmax.f32 %v1534, 0.0
      %v1768 = vmax.f32 %v1536, 0.0
      %v1769 = vmax.f32 %v1539, 0.0
      %v1770 = vmax.f32 %v1541, 0.0
      %v1771 = vmax.f32 %v1544, 0.0
      %v1772 = vmax.f32 %v1546, 0.0
      %v1773 = vmax.f32 %v1549, 0.0
      %v1774 = vmax.f32 %v1551, 0.0
      %v1775 = vmax.f32 %v1554, 0.0
      %v1776 = vmax.f32 %v1556, 0.0
      %v1777 = vmax.f32 %v1559, 0.0
      %v1778 = vmax.f32 %v1561, 0.0
      %v1779 = vmax.f32 %v1564, 0.0
      %v1780 = vmax.f32 %v1566, 0.0
      %v1781 = vmax.f32 %v1569, 0.0
      %v1782 = vmax.f32 %v1571, 0.0
      %v1783 = vmax.f32 %v1574, 0.0
      %v1784 = vmax.f32 %v1576, 0.0
      %v1785 = vmax.f32 %v1579, 0.0
      %v1786 = vmax.f32 %v1581, 0.0
      %v1787 = vmax.f32 %v1584, 0.0
      %v1788 = vmax.f32 %v1586, 0.0
      %v1789 = vmax.f32 %v1589, 0.0
      %v1790 = vmax.f32 %v1591, 0.0
      %v1791 = vmax.f32 %v1594, 0.0
      %v1792 = vmax.f32 %v1596, 0.0
      %v1793 = vmax.f32 %v1599, 0.0
      %v1794 = vmax.f32 %v1601, 0.0
      %v1795 = vmax.f32 %v1604, 0.0
      %v1796 = vmax.f32 %v1606, 0.0
      %v1797 = vmax.f32 %v1609, 0.0
      %v1798 = vmax.f32 %v1611, 0.0
      %v1799 = vmax.f32 %v1614, 0.0
      %v1800 = vmax.f32 %v1616, 0.0
      %v1801 = vmax.f32 %v1619, 0.0
      %v1802 = vmax.f32 %v1621, 0.0
      %v1803 = vmax.f32 %v1624, 0.0
      %v1804 = vmax.f32 %v1626, 0.0
      %v1805 = vmax.f32 %v1629, 0.0
      %v1806 = vmax.f32 %v1631, 0.0
      %v1807 = vmax.f32 %v1634, 0.0
      %v1808 = vmax.f32 %v1636, 0.0
      %v1809 = vmax.f32 %v1639, 0.0
      %v1810 = vmax.f32 %v1641, 0.0
      %v1811 = vmax.f32 %v1644, 0.0
      %v1812 = vmax.f32 %v1646, 0.0
      %v1813 = vmax.f32 %v1649, 0.0
      %v1814 = vmax.f32 %v1651, 0.0
      %v1815 = vmax.f32 %v1654, 0.0
      %v1816 = vmax.f32 %v1656, 0.0
      %v1817 = vmax.f32 %v1659, 0.0
      %v1818 = vmax.f32 %v1661, 0.0
      %v1819 = vmax.f32 %v1664, 0.0
      %v1820 = vmax.f32 %v1666, 0.0
      %v1821 = vmax.f32 %v1669, 0.0
      %v1822 = vmax.f32 %v1671, 0.0
      %v1823 = vmax.f32 %v1674, 0.0
      %v1824 = vmax.f32 %v1676, 0.0
      %v1825 = vmax.f32 %v1679, 0.0
      %v1826 = vmax.f32 %v1681, 0.0
      %v1827 = vmax.f32 %v1684, 0.0
      %v1828 = vmax.f32 %v1686, 0.0
      %v1829 = vmax.f32 %v1689, 0.0
      %v1830 = vmax.f32 %v1691, 0.0
      %v1831 = vmax.f32 %v1694, 0.0
      %v1832 = vmax.f32 %v1696, 0.0
      %v1833 = vmax.f32 %v1699, 0.0
      %v1834 = vmax.f32 %v1701, 0.0
      %v1835 = vmax.f32 %v1704, 0.0
      %v1836 = vmax.f32 %v1706, 0.0
      %v1837 = vmax.f32 %v1709, 0.0
      %v1838 = vmax.f32 %v1711, 0.0
      %v1839 = vpack.c.bf16 %v1713, %v1713
      %v1840 = vpack.c.bf16 %v1714, %v1714
      %v1841 = vpack.c.bf16 %v1715, %v1715
      %v1842 = vpack.c.bf16 %v1716, %v1716
      %v1843 = vpack.c.bf16 %v1717, %v1717
      %v1844 = vpack.c.bf16 %v1718, %v1718
      %v1845 = vpack.c.bf16 %v1719, %v1719
      %v1846 = vpack.c.bf16 %v1720, %v1720
      %v1847 = vpack.c.bf16 %v1721, %v1721
      %v1848 = vpack.c.bf16 %v1722, %v1722
      %v1849 = vpack.c.bf16 %v1723, %v1723
      %v1850 = vpack.c.bf16 %v1724, %v1724
      %v1851 = vpack.c.bf16 %v1725, %v1725
      %v1852 = vpack.c.bf16 %v1726, %v1726
      %v1853 = vpack.c.bf16 %v1727, %v1727
      %v1854 = vpack.c.bf16 %v1728, %v1728
      %v1855 = vpack.c.bf16 %v1729, %v1729
      %v1856 = vpack.c.bf16 %v1730, %v1730
      %v1857 = vpack.c.bf16 %v1731, %v1731
      %v1858 = vpack.c.bf16 %v1732, %v1732
      %v1859 = vpack.c.bf16 %v1733, %v1733
      %v1860 = vpack.c.bf16 %v1734, %v1734
      %v1861 = vpack.c.bf16 %v1735, %v1735
      %v1862 = vpack.c.bf16 %v1736, %v1736
      %v1863 = vpack.c.bf16 %v1737, %v1737
      %v1864 = vpack.c.bf16 %v1738, %v1738
      %v1865 = vpack.c.bf16 %v1739, %v1739
      %v1866 = vpack.c.bf16 %v1740, %v1740
      %v1867 = vpack.c.bf16 %v1741, %v1741
      %v1868 = vpack.c.bf16 %v1742, %v1742
      %v1869 = vpack.c.bf16 %v1743, %v1743
      %v1870 = vpack.c.bf16 %v1744, %v1744
      %v1871 = vpack.c.bf16 %v1745, %v1745
      %v1872 = vpack.c.bf16 %v1746, %v1746
      %v1873 = vpack.c.bf16 %v1747, %v1747
      %v1874 = vpack.c.bf16 %v1748, %v1748
      %v1875 = vpack.c.bf16 %v1749, %v1749
      %v1876 = vpack.c.bf16 %v1750, %v1750
      %v1877 = vpack.c.bf16 %v1751, %v1751
      %v1878 = vpack.c.bf16 %v1752, %v1752
      %v1879 = vpack.c.bf16 %v1753, %v1753
      %v1880 = vpack.c.bf16 %v1754, %v1754
      %v1881 = vpack.c.bf16 %v1755, %v1755
      %v1882 = vpack.c.bf16 %v1756, %v1756
      %v1883 = vpack.c.bf16 %v1757, %v1757
      %v1884 = vpack.c.bf16 %v1758, %v1758
      %v1885 = vpack.c.bf16 %v1759, %v1759
      %v1886 = vpack.c.bf16 %v1760, %v1760
      %v1887 = vpack.c.bf16 %v1761, %v1761
      %v1888 = vpack.c.bf16 %v1762, %v1762
      %v1889 = vpack.c.bf16 %v1763, %v1763
      %v1890 = vpack.c.bf16 %v1764, %v1764
      %v1891 = vpack.c.bf16 %v1765, %v1765
      %v1892 = vpack.c.bf16 %v1766, %v1766
      %v1893 = vpack.c.bf16 %v1767, %v1767
      %v1894 = vpack.c.bf16 %v1768, %v1768
      %v1895 = vpack.c.bf16 %v1769, %v1769
      %v1896 = vpack.c.bf16 %v1770, %v1770
      %v1897 = vpack.c.bf16 %v1771, %v1771
      %v1898 = vpack.c.bf16 %v1772, %v1772
      %v1899 = vpack.c.bf16 %v1773, %v1773
      %v1900 = vpack.c.bf16 %v1774, %v1774
      %v1901 = vpack.c.bf16 %v1775, %v1775
      %v1902 = vpack.c.bf16 %v1776, %v1776
      %v1903 = vpack.c.bf16 %v1777, %v1777
      %v1904 = vpack.c.bf16 %v1778, %v1778
      %v1905 = vpack.c.bf16 %v1779, %v1779
      %v1906 = vpack.c.bf16 %v1780, %v1780
      %v1907 = vpack.c.bf16 %v1781, %v1781
      %v1908 = vpack.c.bf16 %v1782, %v1782
      %v1909 = vpack.c.bf16 %v1783, %v1783
      %v1910 = vpack.c.bf16 %v1784, %v1784
      %v1911 = vpack.c.bf16 %v1785, %v1785
      %v1912 = vpack.c.bf16 %v1786, %v1786
      %v1913 = vpack.c.bf16 %v1787, %v1787
      %v1914 = vpack.c.bf16 %v1788, %v1788
      %v1915 = vpack.c.bf16 %v1789, %v1789
      %v1916 = vpack.c.bf16 %v1790, %v1790
      %v1917 = vpack.c.bf16 %v1791, %v1791
      %v1918 = vpack.c.bf16 %v1792, %v1792
      %v1919 = vpack.c.bf16 %v1793, %v1793
      %v1920 = vpack.c.bf16 %v1794, %v1794
      %v1921 = vpack.c.bf16 %v1795, %v1795
      %v1922 = vpack.c.bf16 %v1796, %v1796
      %v1923 = vpack.c.bf16 %v1797, %v1797
      %v1924 = vpack.c.bf16 %v1798, %v1798
      %v1925 = vpack.c.bf16 %v1799, %v1799
      %v1926 = vpack.c.bf16 %v1800, %v1800
      %v1927 = vpack.c.bf16 %v1801, %v1801
      %v1928 = vpack.c.bf16 %v1802, %v1802
      %v1929 = vpack.c.bf16 %v1803, %v1803
      %v1930 = vpack.c.bf16 %v1804, %v1804
      %v1931 = vpack.c.bf16 %v1805, %v1805
      %v1932 = vpack.c.bf16 %v1806, %v1806
      %v1933 = vpack.c.bf16 %v1807, %v1807
      %v1934 = vpack.c.bf16 %v1808, %v1808
      %v1935 = vpack.c.bf16 %v1809, %v1809
      %v1936 = vpack.c.bf16 %v1810, %v1810
      %v1937 = vpack.c.bf16 %v1811, %v1811
      %v1938 = vpack.c.bf16 %v1812, %v1812
      %v1939 = vpack.c.bf16 %v1813, %v1813
      %v1940 = vpack.c.bf16 %v1814, %v1814
      %v1941 = vpack.c.bf16 %v1815, %v1815
      %v1942 = vpack.c.bf16 %v1816, %v1816
      %v1943 = vpack.c.bf16 %v1817, %v1817
      %v1944 = vpack.c.bf16 %v1818, %v1818
      %v1945 = vpack.c.bf16 %v1819, %v1819
      %v1946 = vpack.c.bf16 %v1820, %v1820
      %v1947 = vpack.c.bf16 %v1821, %v1821
      %v1948 = vpack.c.bf16 %v1822, %v1822
      %v1949 = vpack.c.bf16 %v1823, %v1823
      %v1950 = vpack.c.bf16 %v1824, %v1824
      %v1951 = vpack.c.bf16 %v1825, %v1825
      %v1952 = vpack.c.bf16 %v1826, %v1826
      %v1953 = vpack.c.bf16 %v1827, %v1827
      %v1954 = vpack.c.bf16 %v1828, %v1828
      %v1955 = vpack.c.bf16 %v1829, %v1829
      %v1956 = vpack.c.bf16 %v1830, %v1830
      %v1957 = vpack.c.bf16 %v1831, %v1831
      %v1958 = vpack.c.bf16 %v1832, %v1832
      %v1959 = vpack.c.bf16 %v1833, %v1833
      %v1960 = vpack.c.bf16 %v1834, %v1834
      %v1961 = vpack.c.bf16 %v1835, %v1835
      %v1962 = vpack.c.bf16 %v1836, %v1836
      %v1963 = vpack.c.bf16 %v1837, %v1837
      %v1964 = vpack.c.bf16 %v1838, %v1838
      %vm1965 = vcmask 257024
      %1966 = vst.msk [vmem:[%s175] sm:$0xf] %vm1965, %v1839
      %1967 = vst.msk [vmem:[%s175 + $0x4] sm:$0xf] %vm1965, %v1840
      %1968 = vst.msk [vmem:[%s175 + $0x8] sm:$0xf] %vm1965, %v1841
      %1969 = vst.msk [vmem:[%s175 + $0xc] sm:$0xf] %vm1965, %v1842
      %1970 = vst.msk [vmem:[%s175 + $0x10] sm:$0xf] %vm1965, %v1843
      %1971 = vst.msk [vmem:[%s175 + $0x14] sm:$0xf] %vm1965, %v1844
      %1972 = vst.msk [vmem:[%s175 + $0x18] sm:$0xf] %vm1965, %v1845
      %1973 = vst.msk [vmem:[%s175 + $0x1c] sm:$0xf] %vm1965, %v1846
      %1974 = vst.msk [vmem:[%s175 + $0x20] sm:$0xf] %vm1965, %v1847
      %1975 = vst.msk [vmem:[%s175 + $0x24] sm:$0xf] %vm1965, %v1848
      %1976 = vst.msk [vmem:[%s175 + $0x28] sm:$0xf] %vm1965, %v1849
      %1977 = vst.msk [vmem:[%s175 + $0x2c] sm:$0xf] %vm1965, %v1850
      %1978 = vst.msk [vmem:[%s175 + $0x30] sm:$0xf] %vm1965, %v1851
      %1979 = vst.msk [vmem:[%s175 + $0x34] sm:$0xf] %vm1965, %v1852
      %1980 = vst.msk [vmem:[%s175 + $0x38] sm:$0xf] %vm1965, %v1853
      %1981 = vst.msk [vmem:[%s175 + $0x3c] sm:$0xf] %vm1965, %v1854
      %1982 = vst.msk [vmem:[%s175 + $0x40] sm:$0xf] %vm1965, %v1855
      %1983 = vst.msk [vmem:[%s175 + $0x44] sm:$0xf] %vm1965, %v1856
      %1984 = vst.msk [vmem:[%s175 + $0x48] sm:$0xf] %vm1965, %v1857
      %1985 = vst.msk [vmem:[%s175 + $0x4c] sm:$0xf] %vm1965, %v1858
      %1986 = vst.msk [vmem:[%s175 + $0x50] sm:$0xf] %vm1965, %v1859
      %1987 = vst.msk [vmem:[%s175 + $0x54] sm:$0xf] %vm1965, %v1860
      %1988 = vst.msk [vmem:[%s175 + $0x58] sm:$0xf] %vm1965, %v1861
      %1989 = vst.msk [vmem:[%s175 + $0x5c] sm:$0xf] %vm1965, %v1862
      %1990 = vst.msk [vmem:[%s175 + $0x60] sm:$0xf] %vm1965, %v1863
      %1991 = vst.msk [vmem:[%s175 + $0x64] sm:$0xf] %vm1965, %v1864
      %1992 = vst.msk [vmem:[%s175 + $0x68] sm:$0xf] %vm1965, %v1865
      %1993 = vst.msk [vmem:[%s175 + $0x6c] sm:$0xf] %vm1965, %v1866
      %1994 = vst.msk [vmem:[%s175 + $0x70] sm:$0xf] %vm1965, %v1867
      %1995 = vst.msk [vmem:[%s175 + $0x74] sm:$0xf] %vm1965, %v1868
      %1996 = vst.msk [vmem:[%s175 + $0x78] sm:$0xf] %vm1965, %v1869
      %1997 = vst.msk [vmem:[%s175 + $0x7c] sm:$0xf] %vm1965, %v1870
      %1998 = vst.msk [vmem:[%s175 + $0x80] sm:$0xf] %vm1965, %v1871
      %1999 = vst.msk [vmem:[%s175 + $0x84] sm:$0xf] %vm1965, %v1872
      %2000 = vst.msk [vmem:[%s175 + $0x88] sm:$0xf] %vm1965, %v1873
      %2001 = vst.msk [vmem:[%s175 + $0x8c] sm:$0xf] %vm1965, %v1874
      %2002 = vst.msk [vmem:[%s175 + $0x90] sm:$0xf] %vm1965, %v1875
      %2003 = vst.msk [vmem:[%s175 + $0x94] sm:$0xf] %vm1965, %v1876
      %2004 = vst.msk [vmem:[%s175 + $0x98] sm:$0xf] %vm1965, %v1877
      %2005 = vst.msk [vmem:[%s175 + $0x9c] sm:$0xf] %vm1965, %v1878
      %2006 = vst.msk [vmem:[%s175 + $0xa0] sm:$0xf] %vm1965, %v1879
      %2007 = vst.msk [vmem:[%s175 + $0xa4] sm:$0xf] %vm1965, %v1880
      %2008 = vst.msk [vmem:[%s175 + $0xa8] sm:$0xf] %vm1965, %v1881
      %2009 = vst.msk [vmem:[%s175 + $0xac] sm:$0xf] %vm1965, %v1882
      %2010 = vst.msk [vmem:[%s175 + $0xb0] sm:$0xf] %vm1965, %v1883
      %2011 = vst.msk [vmem:[%s175 + $0xb4] sm:$0xf] %vm1965, %v1884
      %2012 = vst.msk [vmem:[%s175 + $0xb8] sm:$0xf] %vm1965, %v1885
      %2013 = vst.msk [vmem:[%s175 + $0xbc] sm:$0xf] %vm1965, %v1886
      %2014 = vst.msk [vmem:[%s175 + $0xc0] sm:$0xf] %vm1965, %v1887
      %2015 = vst.msk [vmem:[%s175 + $0xc4] sm:$0xf] %vm1965, %v1888
      %2016 = vst.msk [vmem:[%s175 + $0xc8] sm:$0xf] %vm1965, %v1889
      %2017 = vst.msk [vmem:[%s175 + $0xcc] sm:$0xf] %vm1965, %v1890
      %2018 = vst.msk [vmem:[%s175 + $0xd0] sm:$0xf] %vm1965, %v1891
      %2019 = vst.msk [vmem:[%s175 + $0xd4] sm:$0xf] %vm1965, %v1892
      %2020 = vst.msk [vmem:[%s175 + $0xd8] sm:$0xf] %vm1965, %v1893
      %2021 = vst.msk [vmem:[%s175 + $0xdc] sm:$0xf] %vm1965, %v1894
      %2022 = vst.msk [vmem:[%s175 + $0xe0] sm:$0xf] %vm1965, %v1895
      %2023 = vst.msk [vmem:[%s175 + $0xe4] sm:$0xf] %vm1965, %v1896
      %2024 = vst.msk [vmem:[%s175 + $0xe8] sm:$0xf] %vm1965, %v1897
      %2025 = vst.msk [vmem:[%s175 + $0xec] sm:$0xf] %vm1965, %v1898
      %2026 = vst.msk [vmem:[%s175 + $0xf0] sm:$0xf] %vm1965, %v1899
      %2027 = vst.msk [vmem:[%s175 + $0xf4] sm:$0xf] %vm1965, %v1900
      %2028 = vst.msk [vmem:[%s175 + $0xf8] sm:$0xf] %vm1965, %v1901
      %2029 = vst.msk [vmem:[%s175 + $0xfc] sm:$0xf] %vm1965, %v1902
      %2030 = vst.msk [vmem:[%s175 + $0x100] sm:$0xf] %vm1965, %v1903
      %2031 = vst.msk [vmem:[%s175 + $0x104] sm:$0xf] %vm1965, %v1904
      %2032 = vst.msk [vmem:[%s175 + $0x108] sm:$0xf] %vm1965, %v1905
      %2033 = vst.msk [vmem:[%s175 + $0x10c] sm:$0xf] %vm1965, %v1906
      %2034 = vst.msk [vmem:[%s175 + $0x110] sm:$0xf] %vm1965, %v1907
      %2035 = vst.msk [vmem:[%s175 + $0x114] sm:$0xf] %vm1965, %v1908
      %2036 = vst.msk [vmem:[%s175 + $0x118] sm:$0xf] %vm1965, %v1909
      %2037 = vst.msk [vmem:[%s175 + $0x11c] sm:$0xf] %vm1965, %v1910
      %2038 = vst.msk [vmem:[%s175 + $0x120] sm:$0xf] %vm1965, %v1911
      %2039 = vst.msk [vmem:[%s175 + $0x124] sm:$0xf] %vm1965, %v1912
      %2040 = vst.msk [vmem:[%s175 + $0x128] sm:$0xf] %vm1965, %v1913
      %2041 = vst.msk [vmem:[%s175 + $0x12c] sm:$0xf] %vm1965, %v1914
      %2042 = vst.msk [vmem:[%s175 + $0x130] sm:$0xf] %vm1965, %v1915
      %2043 = vst.msk [vmem:[%s175 + $0x134] sm:$0xf] %vm1965, %v1916
      %2044 = vst.msk [vmem:[%s175 + $0x138] sm:$0xf] %vm1965, %v1917
      %2045 = vst.msk [vmem:[%s175 + $0x13c] sm:$0xf] %vm1965, %v1918
      %2046 = vst.msk [vmem:[%s175 + $0x140] sm:$0xf] %vm1965, %v1919
      %2047 = vst.msk [vmem:[%s175 + $0x144] sm:$0xf] %vm1965, %v1920
      %2048 = vst.msk [vmem:[%s175 + $0x148] sm:$0xf] %vm1965, %v1921
      %2049 = vst.msk [vmem:[%s175 + $0x14c] sm:$0xf] %vm1965, %v1922
      %2050 = vst.msk [vmem:[%s175 + $0x150] sm:$0xf] %vm1965, %v1923
      %2051 = vst.msk [vmem:[%s175 + $0x154] sm:$0xf] %vm1965, %v1924
      %2052 = vst.msk [vmem:[%s175 + $0x158] sm:$0xf] %vm1965, %v1925
      %2053 = vst.msk [vmem:[%s175 + $0x15c] sm:$0xf] %vm1965, %v1926
      %2054 = vst.msk [vmem:[%s175 + $0x160] sm:$0xf] %vm1965, %v1927
      %2055 = vst.msk [vmem:[%s175 + $0x164] sm:$0xf] %vm1965, %v1928
      %2056 = vst.msk [vmem:[%s175 + $0x168] sm:$0xf] %vm1965, %v1929
      %2057 = vst.msk [vmem:[%s175 + $0x16c] sm:$0xf] %vm1965, %v1930
      %2058 = vst.msk [vmem:[%s175 + $0x170] sm:$0xf] %vm1965, %v1931
      %2059 = vst.msk [vmem:[%s175 + $0x174] sm:$0xf] %vm1965, %v1932
      %2060 = vst.msk [vmem:[%s175 + $0x178] sm:$0xf] %vm1965, %v1933
      %2061 = vst.msk [vmem:[%s175 + $0x17c] sm:$0xf] %vm1965, %v1934
      %2062 = vst.msk [vmem:[%s175 + $0x180] sm:$0xf] %vm1965, %v1935
      %2063 = vst.msk [vmem:[%s175 + $0x184] sm:$0xf] %vm1965, %v1936
      %2064 = vst.msk [vmem:[%s175 + $0x188] sm:$0xf] %vm1965, %v1937
      %2065 = vst.msk [vmem:[%s175 + $0x18c] sm:$0xf] %vm1965, %v1938
      %2066 = vst.msk [vmem:[%s175 + $0x190] sm:$0xf] %vm1965, %v1939
      %2067 = vst.msk [vmem:[%s175 + $0x194] sm:$0xf] %vm1965, %v1940
      %2068 = vst.msk [vmem:[%s175 + $0x198] sm:$0xf] %vm1965, %v1941
      %2069 = vst.msk [vmem:[%s175 + $0x19c] sm:$0xf] %vm1965, %v1942
      %2070 = vst.msk [vmem:[%s175 + $0x1a0] sm:$0xf] %vm1965, %v1943
      %2071 = vst.msk [vmem:[%s175 + $0x1a4] sm:$0xf] %vm1965, %v1944
      %2072 = vst.msk [vmem:[%s175 + $0x1a8] sm:$0xf] %vm1965, %v1945
      %2073 = vst.msk [vmem:[%s175 + $0x1ac] sm:$0xf] %vm1965, %v1946
      %2074 = vst.msk [vmem:[%s175 + $0x1b0] sm:$0xf] %vm1965, %v1947
      %2075 = vst.msk [vmem:[%s175 + $0x1b4] sm:$0xf] %vm1965, %v1948
      %2076 = vst.msk [vmem:[%s175 + $0x1b8] sm:$0xf] %vm1965, %v1949
      %2077 = vst.msk [vmem:[%s175 + $0x1bc] sm:$0xf] %vm1965, %v1950
      %2078 = vst.msk [vmem:[%s175 + $0x1c0] sm:$0xf] %vm1965, %v1951
      %2079 = vst.msk [vmem:[%s175 + $0x1c4] sm:$0xf] %vm1965, %v1952
      %2080 = vst.msk [vmem:[%s175 + $0x1c8] sm:$0xf] %vm1965, %v1953
      %2081 = vst.msk [vmem:[%s175 + $0x1cc] sm:$0xf] %vm1965, %v1954
      %2082 = vst.msk [vmem:[%s175 + $0x1d0] sm:$0xf] %vm1965, %v1955
      %2083 = vst.msk [vmem:[%s175 + $0x1d4] sm:$0xf] %vm1965, %v1956
      %2084 = vst.msk [vmem:[%s175 + $0x1d8] sm:$0xf] %vm1965, %v1957
      %2085 = vst.msk [vmem:[%s175 + $0x1dc] sm:$0xf] %vm1965, %v1958
      %2086 = vst.msk [vmem:[%s175 + $0x1e0] sm:$0xf] %vm1965, %v1959
      %2087 = vst.msk [vmem:[%s175 + $0x1e4] sm:$0xf] %vm1965, %v1960
      %2088 = vst.msk [vmem:[%s175 + $0x1e8] sm:$0xf] %vm1965, %v1961
      %2089 = vst.msk [vmem:[%s175 + $0x1ec] sm:$0xf] %vm1965, %v1962
      %2090 = vst.msk [vmem:[%s175 + $0x1f0] sm:$0xf] %vm1965, %v1963
      %2091 = vst.msk [vmem:[%s175 + $0x1f4] sm:$0xf] %vm1965, %v1964
      %s2092 = smul.u32 126, %s14
      %p2093 = scmp.lt.s32.totalorder %s2092, 881
      %s2094 = scalar_select %p2093, %s2092, 881
      %s2095 = smul.addr %s2094, 4
      %s2096 = scalar_lea.vmem %s3, %s2095
      // Predicated region
      $region33: #{dqn_forward.13} parent=31 // pred_check
        %p2097 = pneg %p100
      $region34: #{dqn_forward.13} parent=31 // pred_check_branch
        %2099 = sbr.rel (%p2097) target = $region36
      $region35: #{dqn_forward.13} parent=31 // pred_region
        %s2100 = smul.u32 126, %s14
      $region36: #{dqn_forward.13} parent=31 // pred_fallthru
        _
    $region32: #{dqn_forward.13} parent=5 // pred_fallthru
      _
    %p2101 = scmp.le.s32.totalorder 2, %s9
    // Predicated region
    $region37: #{dqn_forward.13} parent=5 // pred_check
      %p2102 = pneg %p2101
    $region38: #{dqn_forward.13} parent=5 // pred_check_branch
      %2104 = sbr.rel (%p2102) target = $region40
    $region39: #{dqn_forward.13} parent=5 // pred_region
      %s2105 = ssub.s32 %s9, 2
      // Predicated region
      $region41: #{dqn_forward.13} parent=39 // pred_check
        %p2106 = pneg %p106
      $region42: #{dqn_forward.13} parent=39 // pred_check_branch
        %2108 = sbr.rel (%p2106) target = $region44
      $region43: #{dqn_forward.13} parent=39 // pred_region
        %s2109 = smul.u32 126, %s15
        %p2110 = scmp.lt.s32.totalorder %s2109, 881
        %s2111 = scalar_select %p2110, %s2109, 881
        %s2112 = smul.addr %s2111, 4
        %s2113 = scalar_lea.vmem %s3, %s2112
      $region44: #{dqn_forward.13} parent=39 // pred_fallthru
        _
    $region40: #{dqn_forward.13} parent=5 // pred_fallthru
      _
  $region6: #{dqn_forward.13} parent=0 // loop_footer
    %s13 = sadd.s32 1, %s9
  $region7: #{dqn_forward.13} parent=0 // loop_footer_branch
    %8 = sbr.rel target = $region3
  $region8: #{dqn_forward.13} parent=0 // loop_exit
    _

// kernel: dqn_forward.14
$region0: #{dqn_forward.14}
  #allocation0 [shape = 'u32[]', space=smem, size = 0x4, offset = 0x4, fixed_abs, tag = 'smem constant byte address 0x4 - core index']
  #allocation1 [shape = 'u32[72,128]{1,0:T(1,128)}', space=vmem, size = 0x9000, scoped, tag = 'internal scratch']
  %s0 = inlined_call_operand.vmem [shape: bf16[3528,64], index: 0, kind: input, shape index: {}]
  %s1 = inlined_call_operand.vmem [shape: bf16[3528,32], index: 1, kind: output, shape index: {}]
  %s2 = sld [smem:[#allocation0]]
  $region14: #{dqn_forward.14} parent=0
    _
  %s4 = ssub.s32 1, %s2
  %s5 = scalar_select 0, %s4, %s2
  // Predicated region
  $region2: #{dqn_forward.14} parent=0 // pred_check
    _
  $region3: #{dqn_forward.14} parent=0 // pred_check_branch
    %7 = sbr.rel (0) target = $region5
  $region4: #{dqn_forward.14} parent=0 // pred_region
    _
  $region5: #{dqn_forward.14} parent=0 // pred_fallthru
    _
  %v8 = vld [vmem:[%s0] sm:$0xf]
  %v9 = vld [vmem:[%s0 + $0x4] sm:$0xf]
  %v10 = vld [vmem:[%s0 + $0x8] sm:$0xf]
  %v11 = vld [vmem:[%s0 + $0xc] sm:$0xf]
  %v12 = vld [vmem:[%s0 + $0x10] sm:$0xf]
  %v13 = vld [vmem:[%s0 + $0x14] sm:$0xf]
  %v14 = vld [vmem:[%s0 + $0x18] sm:$0xf]
  %v15 = vld [vmem:[%s0 + $0x1c] sm:$0xf]
  %v16 = vld [vmem:[%s0 + $0x20] sm:$0xf]
  %v17 = vld [vmem:[%s0 + $0x24] sm:$0xf]
  %v18 = vld [vmem:[%s0 + $0x28] sm:$0xf]
  %v19 = vld [vmem:[%s0 + $0x2c] sm:$0xf]
  %v20 = vld [vmem:[%s0 + $0x30] sm:$0xf]
  %v21 = vld [vmem:[%s0 + $0x34] sm:$0xf]
  %v22 = vld [vmem:[%s0 + $0x38] sm:$0xf]
  %v23 = vld [vmem:[%s0 + $0x3c] sm:$0xf]
  %v24 = vld [vmem:[%s0 + $0x40] sm:$0xf]
  %v25 = vld [vmem:[%s0 + $0x44] sm:$0xf]
  %v26 = vld [vmem:[%s0 + $0x48] sm:$0xf]
  %v27 = vld [vmem:[%s0 + $0x4c] sm:$0xf]
  %v28 = vld [vmem:[%s0 + $0x50] sm:$0xf]
  %v29 = vld [vmem:[%s0 + $0x54] sm:$0xf]
  %v30 = vld [vmem:[%s0 + $0x58] sm:$0xf]
  %v31 = vld [vmem:[%s0 + $0x5c] sm:$0xf]
  %v32 = vld [vmem:[%s0 + $0x60] sm:$0xf]
  %v33 = vld [vmem:[%s0 + $0x64] sm:$0xf]
  %v34 = vld [vmem:[%s0 + $0x68] sm:$0xf]
  %v35 = vld [vmem:[%s0 + $0x6c] sm:$0xf]
  %v36 = vld [vmem:[%s0 + $0x70] sm:$0xf]
  %v37 = vld [vmem:[%s0 + $0x74] sm:$0xf]
  %v38 = vld [vmem:[%s0 + $0x78] sm:$0xf]
  %v39 = vld [vmem:[%s0 + $0x7c] sm:$0xf]
  %v40 = vld [vmem:[%s0 + $0x80] sm:$0xf]
  %v41 = vld [vmem:[%s0 + $0x84] sm:$0xf]
  %v42 = vld [vmem:[%s0 + $0x88] sm:$0xf]
  %v43 = vld [vmem:[%s0 + $0x8c] sm:$0xf]
  %v44 = vld [vmem:[%s0 + $0x90] sm:$0xf]
  %v45 = vld [vmem:[%s0 + $0x94] sm:$0xf]
  %v46 = vld [vmem:[%s0 + $0x98] sm:$0xf]
  %v47 = vld [vmem:[%s0 + $0x9c] sm:$0xf]
  %v48 = vld [vmem:[%s0 + $0xa0] sm:$0xf]
  %v49 = vld [vmem:[%s0 + $0xa4] sm:$0xf]
  %v50 = vld [vmem:[%s0 + $0xa8] sm:$0xf]
  %v51 = vld [vmem:[%s0 + $0xac] sm:$0xf]
  %v52 = vld [vmem:[%s0 + $0xb0] sm:$0xf]
  %v53 = vld [vmem:[%s0 + $0xb4] sm:$0xf]
  %v54 = vld [vmem:[%s0 + $0xb8] sm:$0xf]
  %v55 = vld [vmem:[%s0 + $0xbc] sm:$0xf]
  %v56 = vld [vmem:[%s0 + $0xc0] sm:$0xf]
  %v57 = vld [vmem:[%s0 + $0xc4] sm:$0xf]
  %v58 = vld [vmem:[%s0 + $0xc8] sm:$0xf]
  %v59 = vld [vmem:[%s0 + $0xcc] sm:$0xf]
  %v60 = vld [vmem:[%s0 + $0xd0] sm:$0xf]
  %v61 = vld [vmem:[%s0 + $0xd4] sm:$0xf]
  %v62 = vld [vmem:[%s0 + $0xd8] sm:$0xf]
  %v63 = vld [vmem:[%s0 + $0xdc] sm:$0xf]
  %v64 = vld [vmem:[%s0 + $0xe0] sm:$0xf]
  %v65 = vld [vmem:[%s0 + $0xe4] sm:$0xf]
  %v66 = vld [vmem:[%s0 + $0xe8] sm:$0xf]
  %v67 = vld [vmem:[%s0 + $0xec] sm:$0xf]
  %v68 = vld [vmem:[%s0 + $0xf0] sm:$0xf]
  %v69 = vld [vmem:[%s0 + $0xf4] sm:$0xf]
  %v70 = vld [vmem:[%s0 + $0xf8] sm:$0xf]
  %v71 = vld [vmem:[%s0 + $0xfc] sm:$0xf]
  %v72 = vld [vmem:[%s0 + $0x100] sm:$0xf]
  %v73 = vld [vmem:[%s0 + $0x104] sm:$0xf]
  %v74 = vld [vmem:[%s0 + $0x108] sm:$0xf]
  %v75 = vld [vmem:[%s0 + $0x10c] sm:$0xf]
  %v76 = vld [vmem:[%s0 + $0x110] sm:$0xf]
  %v77 = vld [vmem:[%s0 + $0x114] sm:$0xf]
  %v78 = vld [vmem:[%s0 + $0x118] sm:$0xf]
  %v79 = vld [vmem:[%s0 + $0x11c] sm:$0xf]
  %v80 = vld [vmem:[%s0 + $0x120] sm:$0xf]
  %v81 = vld [vmem:[%s0 + $0x124] sm:$0xf]
  %v82 = vld [vmem:[%s0 + $0x128] sm:$0xf]
  %v83 = vld [vmem:[%s0 + $0x12c] sm:$0xf]
  %v84 = vld [vmem:[%s0 + $0x130] sm:$0xf]
  %v85 = vld [vmem:[%s0 + $0x134] sm:$0xf]
  %v86 = vld [vmem:[%s0 + $0x138] sm:$0xf]
  %v87 = vld [vmem:[%s0 + $0x13c] sm:$0xf]
  %v88 = vld [vmem:[%s0 + $0x140] sm:$0xf]
  %v89 = vld [vmem:[%s0 + $0x144] sm:$0xf]
  %v90 = vld [vmem:[%s0 + $0x148] sm:$0xf]
  %v91 = vld [vmem:[%s0 + $0x14c] sm:$0xf]
  %v92 = vld [vmem:[%s0 + $0x150] sm:$0xf]
  %v93 = vld [vmem:[%s0 + $0x154] sm:$0xf]
  %v94 = vld [vmem:[%s0 + $0x158] sm:$0xf]
  %v95 = vld [vmem:[%s0 + $0x15c] sm:$0xf]
  %v96 = vld [vmem:[%s0 + $0x160] sm:$0xf]
  %v97 = vld [vmem:[%s0 + $0x164] sm:$0xf]
  %v98 = vld [vmem:[%s0 + $0x168] sm:$0xf]
  %v99 = vld [vmem:[%s0 + $0x16c] sm:$0xf]
  %v100 = vld [vmem:[%s0 + $0x170] sm:$0xf]
  %v101 = vld [vmem:[%s0 + $0x174] sm:$0xf]
  %v102 = vld [vmem:[%s0 + $0x178] sm:$0xf]
  %v103 = vld [vmem:[%s0 + $0x17c] sm:$0xf]
  %v104 = vld [vmem:[%s0 + $0x180] sm:$0xf]
  %v105 = vld [vmem:[%s0 + $0x184] sm:$0xf]
  %v106 = vld [vmem:[%s0 + $0x188] sm:$0xf]
  %v107 = vld [vmem:[%s0 + $0x18c] sm:$0xf]
  %v108 = vld [vmem:[%s0 + $0x190] sm:$0xf]
  %v109 = vld [vmem:[%s0 + $0x194] sm:$0xf]
  %v110 = vld [vmem:[%s0 + $0x198] sm:$0xf]
  %v111 = vld [vmem:[%s0 + $0x19c] sm:$0xf]
  %v112 = vld [vmem:[%s0 + $0x1a0] sm:$0xf]
  %v113 = vld [vmem:[%s0 + $0x1a4] sm:$0xf]
  %v114 = vld [vmem:[%s0 + $0x1a8] sm:$0xf]
  %v115 = vld [vmem:[%s0 + $0x1ac] sm:$0xf]
  %v116 = vld [vmem:[%s0 + $0x1b0] sm:$0xf]
  %v117 = vld [vmem:[%s0 + $0x1b4] sm:$0xf]
  %v118 = vld [vmem:[%s0 + $0x1b8] sm:$0xf]
  %v119 = vld [vmem:[%s0 + $0x1bc] sm:$0xf]
  %v120 = vld [vmem:[%s0 + $0x1c0] sm:$0xf]
  %v121 = vld [vmem:[%s0 + $0x1c4] sm:$0xf]
  %v122 = vld [vmem:[%s0 + $0x1c8] sm:$0xf]
  %v123 = vld [vmem:[%s0 + $0x1cc] sm:$0xf]
  %v124 = vld [vmem:[%s0 + $0x1d0] sm:$0xf]
  %v125 = vld [vmem:[%s0 + $0x1d4] sm:$0xf]
  %v126 = vld [vmem:[%s0 + $0x1d8] sm:$0xf]
  %v127 = vld [vmem:[%s0 + $0x1dc] sm:$0xf]
  %v128 = vld [vmem:[%s0 + $0x1e0] sm:$0xf]
  %v129 = vld [vmem:[%s0 + $0x1e4] sm:$0xf]
  %v130 = vld [vmem:[%s0 + $0x1e8] sm:$0xf]
  %v131 = vld [vmem:[%s0 + $0x1ec] sm:$0xf]
  %v132 = vld [vmem:[%s0 + $0x1f0] sm:$0xf]
  %v133 = vld [vmem:[%s0 + $0x1f4] sm:$0xf]
  %v134 = vld [vmem:[%s0 + $0x1f8] sm:$0xf]
  %v135 = vld [vmem:[%s0 + $0x1fc] sm:$0xf]
  %v136 = vld [vmem:[%s0 + $0x200] sm:$0xf]
  %v137 = vld [vmem:[%s0 + $0x204] sm:$0xf]
  %v138 = vld [vmem:[%s0 + $0x208] sm:$0xf]
  %v139 = vld [vmem:[%s0 + $0x20c] sm:$0xf]
  %v140 = vld [vmem:[%s0 + $0x210] sm:$0xf]
  %v141 = vld [vmem:[%s0 + $0x214] sm:$0xf]
  %v142 = vld [vmem:[%s0 + $0x218] sm:$0xf]
  %v143 = vld [vmem:[%s0 + $0x21c] sm:$0xf]
  %v144 = vld [vmem:[%s0 + $0x220] sm:$0xf]
  %v145 = vld [vmem:[%s0 + $0x224] sm:$0xf]
  %v146 = vld [vmem:[%s0 + $0x228] sm:$0xf]
  %v147 = vld [vmem:[%s0 + $0x22c] sm:$0xf]
  %v148 = vld [vmem:[%s0 + $0x230] sm:$0xf]
  %v149 = vld [vmem:[%s0 + $0x234] sm:$0xf]
  %v150 = vld [vmem:[%s0 + $0x238] sm:$0xf]
  %v151 = vld [vmem:[%s0 + $0x23c] sm:$0xf]
  %v152 = vld [vmem:[%s0 + $0x240] sm:$0xf]
  %v153 = vld [vmem:[%s0 + $0x244] sm:$0xf]
  %v154 = vld [vmem:[%s0 + $0x248] sm:$0xf]
  %v155 = vld [vmem:[%s0 + $0x24c] sm:$0xf]
  %v156 = vld [vmem:[%s0 + $0x250] sm:$0xf]
  %v157 = vld [vmem:[%s0 + $0x254] sm:$0xf]
  %v158 = vld [vmem:[%s0 + $0x258] sm:$0xf]
  %v159 = vld [vmem:[%s0 + $0x25c] sm:$0xf]
  %v160 = vld [vmem:[%s0 + $0x260] sm:$0xf]
  %v161 = vld [vmem:[%s0 + $0x264] sm:$0xf]
  %v162 = vld [vmem:[%s0 + $0x268] sm:$0xf]
  %v163 = vld [vmem:[%s0 + $0x26c] sm:$0xf]
  %v164 = vld [vmem:[%s0 + $0x270] sm:$0xf]
  %v165 = vld [vmem:[%s0 + $0x274] sm:$0xf]
  %v166 = vld [vmem:[%s0 + $0x278] sm:$0xf]
  %v167 = vld [vmem:[%s0 + $0x27c] sm:$0xf]
  %v168 = vld [vmem:[%s0 + $0x280] sm:$0xf]
  %v169 = vld [vmem:[%s0 + $0x284] sm:$0xf]
  %v170 = vld [vmem:[%s0 + $0x288] sm:$0xf]
  %v171 = vld [vmem:[%s0 + $0x28c] sm:$0xf]
  %v172 = vld [vmem:[%s0 + $0x290] sm:$0xf]
  %v173 = vld [vmem:[%s0 + $0x294] sm:$0xf]
  %v174 = vld [vmem:[%s0 + $0x298] sm:$0xf]
  %v175 = vld [vmem:[%s0 + $0x29c] sm:$0xf]
  %v176 = vld [vmem:[%s0 + $0x2a0] sm:$0xf]
  %v177 = vld [vmem:[%s0 + $0x2a4] sm:$0xf]
  %v178 = vld [vmem:[%s0 + $0x2a8] sm:$0xf]
  %v179 = vld [vmem:[%s0 + $0x2ac] sm:$0xf]
  %v180 = vld [vmem:[%s0 + $0x2b0] sm:$0xf]
  %v181 = vld [vmem:[%s0 + $0x2b4] sm:$0xf]
  %v182 = vld [vmem:[%s0 + $0x2b8] sm:$0xf]
  %v183 = vld [vmem:[%s0 + $0x2bc] sm:$0xf]
  %v184 = vld [vmem:[%s0 + $0x2c0] sm:$0xf]
  %v185 = vld [vmem:[%s0 + $0x2c4] sm:$0xf]
  %v186 = vld [vmem:[%s0 + $0x2c8] sm:$0xf]
  %v187 = vld [vmem:[%s0 + $0x2cc] sm:$0xf]
  %v188 = vld [vmem:[%s0 + $0x2d0] sm:$0xf]
  %v189 = vld [vmem:[%s0 + $0x2d4] sm:$0xf]
  %v190 = vld [vmem:[%s0 + $0x2d8] sm:$0xf]
  %v191 = vld [vmem:[%s0 + $0x2dc] sm:$0xf]
  %v192 = vld [vmem:[%s0 + $0x2e0] sm:$0xf]
  %v193 = vld [vmem:[%s0 + $0x2e4] sm:$0xf]
  %v194 = vld [vmem:[%s0 + $0x2e8] sm:$0xf]
  %v195 = vld [vmem:[%s0 + $0x2ec] sm:$0xf]
  %v196 = vld [vmem:[%s0 + $0x2f0] sm:$0xf]
  %v197 = vld [vmem:[%s0 + $0x2f4] sm:$0xf]
  %v198 = vld [vmem:[%s0 + $0x2f8] sm:$0xf]
  %v199 = vld [vmem:[%s0 + $0x2fc] sm:$0xf]
  %v200 = vld [vmem:[%s0 + $0x300] sm:$0xf]
  %v201 = vld [vmem:[%s0 + $0x304] sm:$0xf]
  %v202 = vld [vmem:[%s0 + $0x308] sm:$0xf]
  %v203 = vld [vmem:[%s0 + $0x30c] sm:$0xf]
  %v204 = vld [vmem:[%s0 + $0x310] sm:$0xf]
  %v205 = vld [vmem:[%s0 + $0x314] sm:$0xf]
  %v206 = vld [vmem:[%s0 + $0x318] sm:$0xf]
  %v207 = vld [vmem:[%s0 + $0x31c] sm:$0xf]
  %v208 = vld [vmem:[%s0 + $0x320] sm:$0xf]
  %v209 = vld [vmem:[%s0 + $0x324] sm:$0xf]
  %v210 = vld [vmem:[%s0 + $0x328] sm:$0xf]
  %v211 = vld [vmem:[%s0 + $0x32c] sm:$0xf]
  %v212 = vld [vmem:[%s0 + $0x330] sm:$0xf]
  %v213 = vld [vmem:[%s0 + $0x334] sm:$0xf]
  %v214 = vld [vmem:[%s0 + $0x338] sm:$0xf]
  %v215 = vld [vmem:[%s0 + $0x33c] sm:$0xf]
  %v216 = vld [vmem:[%s0 + $0x340] sm:$0xf]
  %v217 = vld [vmem:[%s0 + $0x344] sm:$0xf]
  %v218 = vld [vmem:[%s0 + $0x348] sm:$0xf]
  %v219 = vld [vmem:[%s0 + $0x34c] sm:$0xf]
  %v220 = vld [vmem:[%s0 + $0x350] sm:$0xf]
  %v221 = vld [vmem:[%s0 + $0x354] sm:$0xf]
  %v222 = vld [vmem:[%s0 + $0x358] sm:$0xf]
  %v223 = vld [vmem:[%s0 + $0x35c] sm:$0xf]
  %v224 = vld [vmem:[%s0 + $0x360] sm:$0xf]
  %v225 = vld [vmem:[%s0 + $0x364] sm:$0xf]
  %v226 = vld [vmem:[%s0 + $0x368] sm:$0xf]
  %v227 = vld [vmem:[%s0 + $0x36c] sm:$0xf]
  %v228 = vld [vmem:[%s0 + $0x370] sm:$0xf]
  %v229 = vld [vmem:[%s0 + $0x374] sm:$0xf]
  %v230 = vld [vmem:[%s0 + $0x378] sm:$0xf]
  %v231 = vld [vmem:[%s0 + $0x37c] sm:$0xf]
  %v232 = vld [vmem:[%s0 + $0x380] sm:$0xf]
  %v233 = vld [vmem:[%s0 + $0x384] sm:$0xf]
  %v234 = vld [vmem:[%s0 + $0x388] sm:$0xf]
  %v235 = vld [vmem:[%s0 + $0x38c] sm:$0xf]
  %v236 = vld [vmem:[%s0 + $0x390] sm:$0xf]
  %v237 = vld [vmem:[%s0 + $0x394] sm:$0xf]
  %v238 = vld [vmem:[%s0 + $0x398] sm:$0xf]
  %v239 = vld [vmem:[%s0 + $0x39c] sm:$0xf]
  %v240 = vld [vmem:[%s0 + $0x3a0] sm:$0xf]
  %v241 = vld [vmem:[%s0 + $0x3a4] sm:$0xf]
  %v242 = vld [vmem:[%s0 + $0x3a8] sm:$0xf]
  %v243 = vld [vmem:[%s0 + $0x3ac] sm:$0xf]
  %v244 = vld [vmem:[%s0 + $0x3b0] sm:$0xf]
  %v245 = vld [vmem:[%s0 + $0x3b4] sm:$0xf]
  %v246 = vld [vmem:[%s0 + $0x3b8] sm:$0xf]
  %v247 = vld [vmem:[%s0 + $0x3bc] sm:$0xf]
  %v248 = vld [vmem:[%s0 + $0x3c0] sm:$0xf]
  %v249 = vld [vmem:[%s0 + $0x3c4] sm:$0xf]
  %v250 = vld [vmem:[%s0 + $0x3c8] sm:$0xf]
  %v251 = vld [vmem:[%s0 + $0x3cc] sm:$0xf]
  %v252 = vld [vmem:[%s0 + $0x3d0] sm:$0xf]
  %v253 = vld [vmem:[%s0 + $0x3d4] sm:$0xf]
  %v254 = vld [vmem:[%s0 + $0x3d8] sm:$0xf]
  %v255 = vld [vmem:[%s0 + $0x3dc] sm:$0xf]
  %v256 = vld [vmem:[%s0 + $0x3e0] sm:$0xf]
  %v257 = vld [vmem:[%s0 + $0x3e4] sm:$0xf]
  %v258 = vld [vmem:[%s0 + $0x3e8] sm:$0xf]
  %v259 = vld [vmem:[%s0 + $0x3ec] sm:$0xf]
  %v260 = vld [vmem:[%s0 + $0x3f0] sm:$0xf]
  %v261 = vld [vmem:[%s0 + $0x3f4] sm:$0xf]
  %v262 = vld [vmem:[%s0 + $0x3f8] sm:$0xf]
  %v263 = vld [vmem:[%s0 + $0x3fc] sm:$0xf]
  %v264 = vld [vmem:[%s0 + $0x400] sm:$0xf]
  %v265 = vld [vmem:[%s0 + $0x404] sm:$0xf]
  %v266 = vld [vmem:[%s0 + $0x408] sm:$0xf]
  %v267 = vld [vmem:[%s0 + $0x40c] sm:$0xf]
  %v268 = vld [vmem:[%s0 + $0x410] sm:$0xf]
  %v269 = vld [vmem:[%s0 + $0x414] sm:$0xf]
  %v270 = vld [vmem:[%s0 + $0x418] sm:$0xf]
  %v271 = vld [vmem:[%s0 + $0x41c] sm:$0xf]
  %v272 = vld [vmem:[%s0 + $0x420] sm:$0xf]
  %v273 = vld [vmem:[%s0 + $0x424] sm:$0xf]
  %v274 = vld [vmem:[%s0 + $0x428] sm:$0xf]
  %v275 = vld [vmem:[%s0 + $0x42c] sm:$0xf]
  %v276 = vld [vmem:[%s0 + $0x430] sm:$0xf]
  %v277 = vld [vmem:[%s0 + $0x434] sm:$0xf]
  %v278 = vld [vmem:[%s0 + $0x438] sm:$0xf]
  %v279 = vld [vmem:[%s0 + $0x43c] sm:$0xf]
  %v280 = vld [vmem:[%s0 + $0x440] sm:$0xf]
  %v281 = vld [vmem:[%s0 + $0x444] sm:$0xf]
  %v282 = vld [vmem:[%s0 + $0x448] sm:$0xf]
  %v283 = vld [vmem:[%s0 + $0x44c] sm:$0xf]
  %v284 = vld [vmem:[%s0 + $0x450] sm:$0xf]
  %v285 = vld [vmem:[%s0 + $0x454] sm:$0xf]
  %v286 = vld [vmem:[%s0 + $0x458] sm:$0xf]
  %v287 = vld [vmem:[%s0 + $0x45c] sm:$0xf]
  %v288 = vld [vmem:[%s0 + $0x460] sm:$0xf]
  %v289 = vld [vmem:[%s0 + $0x464] sm:$0xf]
  %v290 = vld [vmem:[%s0 + $0x468] sm:$0xf]
  %v291 = vld [vmem:[%s0 + $0x46c] sm:$0xf]
  %v292 = vld [vmem:[%s0 + $0x470] sm:$0xf]
  %v293 = vld [vmem:[%s0 + $0x474] sm:$0xf]
  %v294 = vld [vmem:[%s0 + $0x478] sm:$0xf]
  %v295 = vld [vmem:[%s0 + $0x47c] sm:$0xf]
  %v296 = vld [vmem:[%s0 + $0x480] sm:$0xf]
  %v297 = vld [vmem:[%s0 + $0x484] sm:$0xf]
  %v298 = vld [vmem:[%s0 + $0x488] sm:$0xf]
  %v299 = vld [vmem:[%s0 + $0x48c] sm:$0xf]
  %v300 = vld [vmem:[%s0 + $0x490] sm:$0xf]
  %v301 = vld [vmem:[%s0 + $0x494] sm:$0xf]
  %v302 = vld [vmem:[%s0 + $0x498] sm:$0xf]
  %v303 = vld [vmem:[%s0 + $0x49c] sm:$0xf]
  %v304 = vld [vmem:[%s0 + $0x4a0] sm:$0xf]
  %v305 = vld [vmem:[%s0 + $0x4a4] sm:$0xf]
  %v306 = vld [vmem:[%s0 + $0x4a8] sm:$0xf]
  %v307 = vld [vmem:[%s0 + $0x4ac] sm:$0xf]
  %v308 = vld [vmem:[%s0 + $0x4b0] sm:$0xf]
  %v309 = vld [vmem:[%s0 + $0x4b4] sm:$0xf]
  %v310 = vld [vmem:[%s0 + $0x4b8] sm:$0xf]
  %v311 = vld [vmem:[%s0 + $0x4bc] sm:$0xf]
  %v312 = vld [vmem:[%s0 + $0x4c0] sm:$0xf]
  %v313 = vld [vmem:[%s0 + $0x4c4] sm:$0xf]
  %v314 = vld [vmem:[%s0 + $0x4c8] sm:$0xf]
  %v315 = vld [vmem:[%s0 + $0x4cc] sm:$0xf]
  %v316 = vld [vmem:[%s0 + $0x4d0] sm:$0xf]
  %v317 = vld [vmem:[%s0 + $0x4d4] sm:$0xf]
  %v318 = vld [vmem:[%s0 + $0x4d8] sm:$0xf]
  %v319 = vld [vmem:[%s0 + $0x4dc] sm:$0xf]
  %v320 = vld [vmem:[%s0 + $0x4e0] sm:$0xf]
  %v321 = vld [vmem:[%s0 + $0x4e4] sm:$0xf]
  %v322 = vld [vmem:[%s0 + $0x4e8] sm:$0xf]
  %v323 = vld [vmem:[%s0 + $0x4ec] sm:$0xf]
  %v324 = vld [vmem:[%s0 + $0x4f0] sm:$0xf]
  %v325 = vld [vmem:[%s0 + $0x4f4] sm:$0xf]
  %v326 = vld [vmem:[%s0 + $0x4f8] sm:$0xf]
  %v327 = vld [vmem:[%s0 + $0x4fc] sm:$0xf]
  %v328 = vld [vmem:[%s0 + $0x500] sm:$0xf]
  %v329 = vld [vmem:[%s0 + $0x504] sm:$0xf]
  %v330 = vld [vmem:[%s0 + $0x508] sm:$0xf]
  %v331 = vld [vmem:[%s0 + $0x50c] sm:$0xf]
  %v332 = vld [vmem:[%s0 + $0x510] sm:$0xf]
  %v333 = vld [vmem:[%s0 + $0x514] sm:$0xf]
  %v334 = vld [vmem:[%s0 + $0x518] sm:$0xf]
  %v335 = vld [vmem:[%s0 + $0x51c] sm:$0xf]
  %v336 = vld [vmem:[%s0 + $0x520] sm:$0xf]
  %v337 = vld [vmem:[%s0 + $0x524] sm:$0xf]
  %v338 = vld [vmem:[%s0 + $0x528] sm:$0xf]
  %v339 = vld [vmem:[%s0 + $0x52c] sm:$0xf]
  %v340 = vld [vmem:[%s0 + $0x530] sm:$0xf]
  %v341 = vld [vmem:[%s0 + $0x534] sm:$0xf]
  %v342 = vld [vmem:[%s0 + $0x538] sm:$0xf]
  %v343 = vld [vmem:[%s0 + $0x53c] sm:$0xf]
  %v344 = vld [vmem:[%s0 + $0x540] sm:$0xf]
  %v345 = vld [vmem:[%s0 + $0x544] sm:$0xf]
  %v346 = vld [vmem:[%s0 + $0x548] sm:$0xf]
  %v347 = vld [vmem:[%s0 + $0x54c] sm:$0xf]
  %v348 = vld [vmem:[%s0 + $0x550] sm:$0xf]
  %v349 = vld [vmem:[%s0 + $0x554] sm:$0xf]
  %v350 = vld [vmem:[%s0 + $0x558] sm:$0xf]
  %v351 = vld [vmem:[%s0 + $0x55c] sm:$0xf]
  %v352 = vld [vmem:[%s0 + $0x560] sm:$0xf]
  %v353 = vld [vmem:[%s0 + $0x564] sm:$0xf]
  %v354 = vld [vmem:[%s0 + $0x568] sm:$0xf]
  %v355 = vld [vmem:[%s0 + $0x56c] sm:$0xf]
  %v356 = vld [vmem:[%s0 + $0x570] sm:$0xf]
  %v357 = vld [vmem:[%s0 + $0x574] sm:$0xf]
  %v358 = vld [vmem:[%s0 + $0x578] sm:$0xf]
  %v359 = vld [vmem:[%s0 + $0x57c] sm:$0xf]
  %v360 = vld [vmem:[%s0 + $0x580] sm:$0xf]
  %v361 = vld [vmem:[%s0 + $0x584] sm:$0xf]
  %v362 = vld [vmem:[%s0 + $0x588] sm:$0xf]
  %v363 = vld [vmem:[%s0 + $0x58c] sm:$0xf]
  %v364 = vld [vmem:[%s0 + $0x590] sm:$0xf]
  %v365 = vld [vmem:[%s0 + $0x594] sm:$0xf]
  %v366 = vld [vmem:[%s0 + $0x598] sm:$0xf]
  %v367 = vld [vmem:[%s0 + $0x59c] sm:$0xf]
  %v368 = vld [vmem:[%s0 + $0x5a0] sm:$0xf]
  %v369 = vld [vmem:[%s0 + $0x5a4] sm:$0xf]
  %v370 = vld [vmem:[%s0 + $0x5a8] sm:$0xf]
  %v371 = vld [vmem:[%s0 + $0x5ac] sm:$0xf]
  %v372 = vld [vmem:[%s0 + $0x5b0] sm:$0xf]
  %v373 = vld [vmem:[%s0 + $0x5b4] sm:$0xf]
  %v374 = vld [vmem:[%s0 + $0x5b8] sm:$0xf]
  %v375 = vld [vmem:[%s0 + $0x5bc] sm:$0xf]
  %v376 = vld [vmem:[%s0 + $0x5c0] sm:$0xf]
  %v377 = vld [vmem:[%s0 + $0x5c4] sm:$0xf]
  %v378 = vld [vmem:[%s0 + $0x5c8] sm:$0xf]
  %v379 = vld [vmem:[%s0 + $0x5cc] sm:$0xf]
  %v380 = vld [vmem:[%s0 + $0x5d0] sm:$0xf]
  %v381 = vld [vmem:[%s0 + $0x5d4] sm:$0xf]
  %v382 = vld [vmem:[%s0 + $0x5d8] sm:$0xf]
  %v383 = vld [vmem:[%s0 + $0x5dc] sm:$0xf]
  %v384 = vld [vmem:[%s0 + $0x5e0] sm:$0xf]
  %v385 = vld [vmem:[%s0 + $0x5e4] sm:$0xf]
  %v386 = vld [vmem:[%s0 + $0x5e8] sm:$0xf]
  %v387 = vld [vmem:[%s0 + $0x5ec] sm:$0xf]
  %v388 = vld [vmem:[%s0 + $0x5f0] sm:$0xf]
  %v389 = vld [vmem:[%s0 + $0x5f4] sm:$0xf]
  %v390 = vld [vmem:[%s0 + $0x5f8] sm:$0xf]
  %v391 = vld [vmem:[%s0 + $0x5fc] sm:$0xf]
  %v392 = vld [vmem:[%s0 + $0x600] sm:$0xf]
  %v393 = vld [vmem:[%s0 + $0x604] sm:$0xf]
  %v394 = vld [vmem:[%s0 + $0x608] sm:$0xf]
  %v395 = vld [vmem:[%s0 + $0x60c] sm:$0xf]
  %v396 = vld [vmem:[%s0 + $0x610] sm:$0xf]
  %v397 = vld [vmem:[%s0 + $0x614] sm:$0xf]
  %v398 = vld [vmem:[%s0 + $0x618] sm:$0xf]
  %v399 = vld [vmem:[%s0 + $0x61c] sm:$0xf]
  %v400 = vld [vmem:[%s0 + $0x620] sm:$0xf]
  %v401 = vld [vmem:[%s0 + $0x624] sm:$0xf]
  %v402 = vld [vmem:[%s0 + $0x628] sm:$0xf]
  %v403 = vld [vmem:[%s0 + $0x62c] sm:$0xf]
  %v404 = vld [vmem:[%s0 + $0x630] sm:$0xf]
  %v405 = vld [vmem:[%s0 + $0x634] sm:$0xf]
  %v406 = vld [vmem:[%s0 + $0x638] sm:$0xf]
  %v407 = vld [vmem:[%s0 + $0x63c] sm:$0xf]
  %v408 = vld [vmem:[%s0 + $0x640] sm:$0xf]
  %v409 = vld [vmem:[%s0 + $0x644] sm:$0xf]
  %v410 = vld [vmem:[%s0 + $0x648] sm:$0xf]
  %v411 = vld [vmem:[%s0 + $0x64c] sm:$0xf]
  %v412 = vld [vmem:[%s0 + $0x650] sm:$0xf]
  %v413 = vld [vmem:[%s0 + $0x654] sm:$0xf]
  %v414 = vld [vmem:[%s0 + $0x658] sm:$0xf]
  %v415 = vld [vmem:[%s0 + $0x65c] sm:$0xf]
  %v416 = vld [vmem:[%s0 + $0x660] sm:$0xf]
  %v417 = vld [vmem:[%s0 + $0x664] sm:$0xf]
  %v418 = vld [vmem:[%s0 + $0x668] sm:$0xf]
  %v419 = vld [vmem:[%s0 + $0x66c] sm:$0xf]
  %v420 = vld [vmem:[%s0 + $0x670] sm:$0xf]
  %v421 = vld [vmem:[%s0 + $0x674] sm:$0xf]
  %v422 = vld [vmem:[%s0 + $0x678] sm:$0xf]
  %v423 = vld [vmem:[%s0 + $0x67c] sm:$0xf]
  %v424 = vld [vmem:[%s0 + $0x680] sm:$0xf]
  %v425 = vld [vmem:[%s0 + $0x684] sm:$0xf]
  %v426 = vld [vmem:[%s0 + $0x688] sm:$0xf]
  %v427 = vld [vmem:[%s0 + $0x68c] sm:$0xf]
  %v428 = vld [vmem:[%s0 + $0x690] sm:$0xf]
  %v429 = vld [vmem:[%s0 + $0x694] sm:$0xf]
  %v430 = vld [vmem:[%s0 + $0x698] sm:$0xf]
  %v431 = vld [vmem:[%s0 + $0x69c] sm:$0xf]
  %v432 = vld [vmem:[%s0 + $0x6a0] sm:$0xf]
  %v433 = vld [vmem:[%s0 + $0x6a4] sm:$0xf]
  %v434 = vld [vmem:[%s0 + $0x6a8] sm:$0xf]
  %v435 = vld [vmem:[%s0 + $0x6ac] sm:$0xf]
  %v436 = vld [vmem:[%s0 + $0x6b0] sm:$0xf]
  %v437 = vld [vmem:[%s0 + $0x6b4] sm:$0xf]
  %v438 = vld [vmem:[%s0 + $0x6b8] sm:$0xf]
  %v439 = vld [vmem:[%s0 + $0x6bc] sm:$0xf]
  %v440 = vld [vmem:[%s0 + $0x6c0] sm:$0xf]
  %v441 = vld [vmem:[%s0 + $0x6c4] sm:$0xf]
  %v442 = vld [vmem:[%s0 + $0x6c8] sm:$0xf]
  %v443 = vld [vmem:[%s0 + $0x6cc] sm:$0xf]
  %v444 = vld [vmem:[%s0 + $0x6d0] sm:$0xf]
  %v445 = vld [vmem:[%s0 + $0x6d4] sm:$0xf]
  %v446 = vld [vmem:[%s0 + $0x6d8] sm:$0xf]
  %v447 = vld [vmem:[%s0 + $0x6dc] sm:$0xf]
  %v448 = vld [vmem:[%s0 + $0x6e0] sm:$0xf]
  %v449 = vunpack.c.l.bf16 %v8
  %v450 = vunpack.c.l.bf16 %v9
  %v451 = vunpack.c.l.bf16 %v10
  %v452 = vunpack.c.l.bf16 %v11
  %v453 = vunpack.c.l.bf16 %v12
  %v454 = vunpack.c.l.bf16 %v13
  %v455 = vunpack.c.l.bf16 %v14
  %v456 = vunpack.c.l.bf16 %v15
  %v457 = vunpack.c.l.bf16 %v16
  %v458 = vunpack.c.l.bf16 %v17
  %v459 = vunpack.c.l.bf16 %v18
  %v460 = vunpack.c.l.bf16 %v19
  %v461 = vunpack.c.l.bf16 %v20
  %v462 = vunpack.c.l.bf16 %v21
  %v463 = vunpack.c.l.bf16 %v22
  %v464 = vunpack.c.l.bf16 %v23
  %v465 = vunpack.c.l.bf16 %v24
  %v466 = vunpack.c.l.bf16 %v25
  %v467 = vunpack.c.l.bf16 %v26
  %v468 = vunpack.c.l.bf16 %v27
  %v469 = vunpack.c.l.bf16 %v28
  %v470 = vunpack.c.l.bf16 %v29
  %v471 = vunpack.c.l.bf16 %v30
  %v472 = vunpack.c.l.bf16 %v31
  %v473 = vunpack.c.l.bf16 %v32
  %v474 = vunpack.c.l.bf16 %v33
  %v475 = vunpack.c.l.bf16 %v34
  %v476 = vunpack.c.l.bf16 %v35
  %v477 = vunpack.c.l.bf16 %v36
  %v478 = vunpack.c.l.bf16 %v37
  %v479 = vunpack.c.l.bf16 %v38
  %v480 = vunpack.c.l.bf16 %v39
  %v481 = vunpack.c.l.bf16 %v40
  %v482 = vunpack.c.l.bf16 %v41
  %v483 = vunpack.c.l.bf16 %v42
  %v484 = vunpack.c.l.bf16 %v43
  %v485 = vunpack.c.l.bf16 %v44
  %v486 = vunpack.c.l.bf16 %v45
  %v487 = vunpack.c.l.bf16 %v46
  %v488 = vunpack.c.l.bf16 %v47
  %v489 = vunpack.c.l.bf16 %v48
  %v490 = vunpack.c.l.bf16 %v49
  %v491 = vunpack.c.l.bf16 %v50
  %v492 = vunpack.c.l.bf16 %v51
  %v493 = vunpack.c.l.bf16 %v52
  %v494 = vunpack.c.l.bf16 %v53
  %v495 = vunpack.c.l.bf16 %v54
  %v496 = vunpack.c.l.bf16 %v55
  %v497 = vunpack.c.l.bf16 %v56
  %v498 = vunpack.c.l.bf16 %v57
  %v499 = vunpack.c.l.bf16 %v58
  %v500 = vunpack.c.l.bf16 %v59
  %v501 = vunpack.c.l.bf16 %v60
  %v502 = vunpack.c.l.bf16 %v61
  %v503 = vunpack.c.l.bf16 %v62
  %v504 = vunpack.c.l.bf16 %v63
  %v505 = vunpack.c.l.bf16 %v64
  %v506 = vunpack.c.l.bf16 %v65
  %v507 = vunpack.c.l.bf16 %v66
  %v508 = vunpack.c.l.bf16 %v67
  %v509 = vunpack.c.l.bf16 %v68
  %v510 = vunpack.c.l.bf16 %v69
  %v511 = vunpack.c.l.bf16 %v70
  %v512 = vunpack.c.l.bf16 %v71
  %v513 = vunpack.c.l.bf16 %v72
  %v514 = vunpack.c.l.bf16 %v73
  %v515 = vunpack.c.l.bf16 %v74
  %v516 = vunpack.c.l.bf16 %v75
  %v517 = vunpack.c.l.bf16 %v76
  %v518 = vunpack.c.l.bf16 %v77
  %v519 = vunpack.c.l.bf16 %v78
  %v520 = vunpack.c.l.bf16 %v79
  %v521 = vunpack.c.l.bf16 %v80
  %v522 = vunpack.c.l.bf16 %v81
  %v523 = vunpack.c.l.bf16 %v82
  %v524 = vunpack.c.l.bf16 %v83
  %v525 = vunpack.c.l.bf16 %v84
  %v526 = vunpack.c.l.bf16 %v85
  %v527 = vunpack.c.l.bf16 %v86
  %v528 = vunpack.c.l.bf16 %v87
  %v529 = vunpack.c.l.bf16 %v88
  %v530 = vunpack.c.l.bf16 %v89
  %v531 = vunpack.c.l.bf16 %v90
  %v532 = vunpack.c.l.bf16 %v91
  %v533 = vunpack.c.l.bf16 %v92
  %v534 = vunpack.c.l.bf16 %v93
  %v535 = vunpack.c.l.bf16 %v94
  %v536 = vunpack.c.l.bf16 %v95
  %v537 = vunpack.c.l.bf16 %v96
  %v538 = vunpack.c.l.bf16 %v97
  %v539 = vunpack.c.l.bf16 %v98
  %v540 = vunpack.c.l.bf16 %v99
  %v541 = vunpack.c.l.bf16 %v100
  %v542 = vunpack.c.l.bf16 %v101
  %v543 = vunpack.c.l.bf16 %v102
  %v544 = vunpack.c.l.bf16 %v103
  %v545 = vunpack.c.l.bf16 %v104
  %v546 = vunpack.c.l.bf16 %v105
  %v547 = vunpack.c.l.bf16 %v106
  %v548 = vunpack.c.l.bf16 %v107
  %v549 = vunpack.c.l.bf16 %v108
  %v550 = vunpack.c.l.bf16 %v109
  %v551 = vunpack.c.l.bf16 %v110
  %v552 = vunpack.c.l.bf16 %v111
  %v553 = vunpack.c.l.bf16 %v112
  %v554 = vunpack.c.l.bf16 %v113
  %v555 = vunpack.c.l.bf16 %v114
  %v556 = vunpack.c.l.bf16 %v115
  %v557 = vunpack.c.l.bf16 %v116
  %v558 = vunpack.c.l.bf16 %v117
  %v559 = vunpack.c.l.bf16 %v118
  %v560 = vunpack.c.l.bf16 %v119
  %v561 = vunpack.c.l.bf16 %v120
  %v562 = vunpack.c.l.bf16 %v121
  %v563 = vunpack.c.l.bf16 %v122
  %v564 = vunpack.c.l.bf16 %v123
  %v565 = vunpack.c.l.bf16 %v124
  %v566 = vunpack.c.l.bf16 %v125
  %v567 = vunpack.c.l.bf16 %v126
  %v568 = vunpack.c.l.bf16 %v127
  %v569 = vunpack.c.l.bf16 %v128
  %v570 = vunpack.c.l.bf16 %v129
  %v571 = vunpack.c.l.bf16 %v130
  %v572 = vunpack.c.l.bf16 %v131
  %v573 = vunpack.c.l.bf16 %v132
  %v574 = vunpack.c.l.bf16 %v133
  %v575 = vunpack.c.l.bf16 %v134
  %v576 = vunpack.c.l.bf16 %v135
  %v577 = vunpack.c.l.bf16 %v136
  %v578 = vunpack.c.l.bf16 %v137
  %v579 = vunpack.c.l.bf16 %v138
  %v580 = vunpack.c.l.bf16 %v139
  %v581 = vunpack.c.l.bf16 %v140
  %v582 = vunpack.c.l.bf16 %v141
  %v583 = vunpack.c.l.bf16 %v142
  %v584 = vunpack.c.l.bf16 %v143
  %v585 = vunpack.c.l.bf16 %v144
  %v586 = vunpack.c.l.bf16 %v145
  %v587 = vunpack.c.l.bf16 %v146
  %v588 = vunpack.c.l.bf16 %v147
  %v589 = vunpack.c.l.bf16 %v148
  %v590 = vunpack.c.l.bf16 %v149
  %v591 = vunpack.c.l.bf16 %v150
  %v592 = vunpack.c.l.bf16 %v151
  %v593 = vunpack.c.l.bf16 %v152
  %v594 = vunpack.c.l.bf16 %v153
  %v595 = vunpack.c.l.bf16 %v154
  %v596 = vunpack.c.l.bf16 %v155
  %v597 = vunpack.c.l.bf16 %v156
  %v598 = vunpack.c.l.bf16 %v157
  %v599 = vunpack.c.l.bf16 %v158
  %v600 = vunpack.c.l.bf16 %v159
  %v601 = vunpack.c.l.bf16 %v160
  %v602 = vunpack.c.l.bf16 %v161
  %v603 = vunpack.c.l.bf16 %v162
  %v604 = vunpack.c.l.bf16 %v163
  %v605 = vunpack.c.l.bf16 %v164
  %v606 = vunpack.c.l.bf16 %v165
  %v607 = vunpack.c.l.bf16 %v166
  %v608 = vunpack.c.l.bf16 %v167
  %v609 = vunpack.c.l.bf16 %v168
  %v610 = vunpack.c.l.bf16 %v169
  %v611 = vunpack.c.l.bf16 %v170
  %v612 = vunpack.c.l.bf16 %v171
  %v613 = vunpack.c.l.bf16 %v172
  %v614 = vunpack.c.l.bf16 %v173
  %v615 = vunpack.c.l.bf16 %v174
  %v616 = vunpack.c.l.bf16 %v175
  %v617 = vunpack.c.l.bf16 %v176
  %v618 = vunpack.c.l.bf16 %v177
  %v619 = vunpack.c.l.bf16 %v178
  %v620 = vunpack.c.l.bf16 %v179
  %v621 = vunpack.c.l.bf16 %v180
  %v622 = vunpack.c.l.bf16 %v181
  %v623 = vunpack.c.l.bf16 %v182
  %v624 = vunpack.c.l.bf16 %v183
  %v625 = vunpack.c.l.bf16 %v184
  %v626 = vunpack.c.l.bf16 %v185
  %v627 = vunpack.c.l.bf16 %v186
  %v628 = vunpack.c.l.bf16 %v187
  %v629 = vunpack.c.l.bf16 %v188
  %v630 = vunpack.c.l.bf16 %v189
  %v631 = vunpack.c.l.bf16 %v190
  %v632 = vunpack.c.l.bf16 %v191
  %v633 = vunpack.c.l.bf16 %v192
  %v634 = vunpack.c.l.bf16 %v193
  %v635 = vunpack.c.l.bf16 %v194
  %v636 = vunpack.c.l.bf16 %v195
  %v637 = vunpack.c.l.bf16 %v196
  %v638 = vunpack.c.l.bf16 %v197
  %v639 = vunpack.c.l.bf16 %v198
  %v640 = vunpack.c.l.bf16 %v199
  %v641 = vunpack.c.l.bf16 %v200
  %v642 = vunpack.c.l.bf16 %v201
  %v643 = vunpack.c.l.bf16 %v202
  %v644 = vunpack.c.l.bf16 %v203
  %v645 = vunpack.c.l.bf16 %v204
  %v646 = vunpack.c.l.bf16 %v205
  %v647 = vunpack.c.l.bf16 %v206
  %v648 = vunpack.c.l.bf16 %v207
  %v649 = vunpack.c.l.bf16 %v208
  %v650 = vunpack.c.l.bf16 %v209
  %v651 = vunpack.c.l.bf16 %v210
  %v652 = vunpack.c.l.bf16 %v211
  %v653 = vunpack.c.l.bf16 %v212
  %v654 = vunpack.c.l.bf16 %v213
  %v655 = vunpack.c.l.bf16 %v214
  %v656 = vunpack.c.l.bf16 %v215
  %v657 = vunpack.c.l.bf16 %v216
  %v658 = vunpack.c.l.bf16 %v217
  %v659 = vunpack.c.l.bf16 %v218
  %v660 = vunpack.c.l.bf16 %v219
  %v661 = vunpack.c.l.bf16 %v220
  %v662 = vunpack.c.l.bf16 %v221
  %v663 = vunpack.c.l.bf16 %v222
  %v664 = vunpack.c.l.bf16 %v223
  %v665 = vunpack.c.l.bf16 %v224
  %v666 = vunpack.c.l.bf16 %v225
  %v667 = vunpack.c.l.bf16 %v226
  %v668 = vunpack.c.l.bf16 %v227
  %v669 = vunpack.c.l.bf16 %v228
  %v670 = vunpack.c.l.bf16 %v229
  %v671 = vunpack.c.l.bf16 %v230
  %v672 = vunpack.c.l.bf16 %v231
  %v673 = vunpack.c.l.bf16 %v232
  %v674 = vunpack.c.l.bf16 %v233
  %v675 = vunpack.c.l.bf16 %v234
  %v676 = vunpack.c.l.bf16 %v235
  %v677 = vunpack.c.l.bf16 %v236
  %v678 = vunpack.c.l.bf16 %v237
  %v679 = vunpack.c.l.bf16 %v238
  %v680 = vunpack.c.l.bf16 %v239
  %v681 = vunpack.c.l.bf16 %v240
  %v682 = vunpack.c.l.bf16 %v241
  %v683 = vunpack.c.l.bf16 %v242
  %v684 = vunpack.c.l.bf16 %v243
  %v685 = vunpack.c.l.bf16 %v244
  %v686 = vunpack.c.l.bf16 %v245
  %v687 = vunpack.c.l.bf16 %v246
  %v688 = vunpack.c.l.bf16 %v247
  %v689 = vunpack.c.l.bf16 %v248
  %v690 = vunpack.c.l.bf16 %v249
  %v691 = vunpack.c.l.bf16 %v250
  %v692 = vunpack.c.l.bf16 %v251
  %v693 = vunpack.c.l.bf16 %v252
  %v694 = vunpack.c.l.bf16 %v253
  %v695 = vunpack.c.l.bf16 %v254
  %v696 = vunpack.c.l.bf16 %v255
  %v697 = vunpack.c.l.bf16 %v256
  %v698 = vunpack.c.l.bf16 %v257
  %v699 = vunpack.c.l.bf16 %v258
  %v700 = vunpack.c.l.bf16 %v259
  %v701 = vunpack.c.l.bf16 %v260
  %v702 = vunpack.c.l.bf16 %v261
  %v703 = vunpack.c.l.bf16 %v262
  %v704 = vunpack.c.l.bf16 %v263
  %v705 = vunpack.c.l.bf16 %v264
  %v706 = vunpack.c.l.bf16 %v265
  %v707 = vunpack.c.l.bf16 %v266
  %v708 = vunpack.c.l.bf16 %v267
  %v709 = vunpack.c.l.bf16 %v268
  %v710 = vunpack.c.l.bf16 %v269
  %v711 = vunpack.c.l.bf16 %v270
  %v712 = vunpack.c.l.bf16 %v271
  %v713 = vunpack.c.l.bf16 %v272
  %v714 = vunpack.c.l.bf16 %v273
  %v715 = vunpack.c.l.bf16 %v274
  %v716 = vunpack.c.l.bf16 %v275
  %v717 = vunpack.c.l.bf16 %v276
  %v718 = vunpack.c.l.bf16 %v277
  %v719 = vunpack.c.l.bf16 %v278
  %v720 = vunpack.c.l.bf16 %v279
  %v721 = vunpack.c.l.bf16 %v280
  %v722 = vunpack.c.l.bf16 %v281
  %v723 = vunpack.c.l.bf16 %v282
  %v724 = vunpack.c.l.bf16 %v283
  %v725 = vunpack.c.l.bf16 %v284
  %v726 = vunpack.c.l.bf16 %v285
  %v727 = vunpack.c.l.bf16 %v286
  %v728 = vunpack.c.l.bf16 %v287
  %v729 = vunpack.c.l.bf16 %v288
  %v730 = vunpack.c.l.bf16 %v289
  %v731 = vunpack.c.l.bf16 %v290
  %v732 = vunpack.c.l.bf16 %v291
  %v733 = vunpack.c.l.bf16 %v292
  %v734 = vunpack.c.l.bf16 %v293
  %v735 = vunpack.c.l.bf16 %v294
  %v736 = vunpack.c.l.bf16 %v295
  %v737 = vunpack.c.l.bf16 %v296
  %v738 = vunpack.c.l.bf16 %v297
  %v739 = vunpack.c.l.bf16 %v298
  %v740 = vunpack.c.l.bf16 %v299
  %v741 = vunpack.c.l.bf16 %v300
  %v742 = vunpack.c.l.bf16 %v301
  %v743 = vunpack.c.l.bf16 %v302
  %v744 = vunpack.c.l.bf16 %v303
  %v745 = vunpack.c.l.bf16 %v304
  %v746 = vunpack.c.l.bf16 %v305
  %v747 = vunpack.c.l.bf16 %v306
  %v748 = vunpack.c.l.bf16 %v307
  %v749 = vunpack.c.l.bf16 %v308
  %v750 = vunpack.c.l.bf16 %v309
  %v751 = vunpack.c.l.bf16 %v310
  %v752 = vunpack.c.l.bf16 %v311
  %v753 = vunpack.c.l.bf16 %v312
  %v754 = vunpack.c.l.bf16 %v313
  %v755 = vunpack.c.l.bf16 %v314
  %v756 = vunpack.c.l.bf16 %v315
  %v757 = vunpack.c.l.bf16 %v316
  %v758 = vunpack.c.l.bf16 %v317
  %v759 = vunpack.c.l.bf16 %v318
  %v760 = vunpack.c.l.bf16 %v319
  %v761 = vunpack.c.l.bf16 %v320
  %v762 = vunpack.c.l.bf16 %v321
  %v763 = vunpack.c.l.bf16 %v322
  %v764 = vunpack.c.l.bf16 %v323
  %v765 = vunpack.c.l.bf16 %v324
  %v766 = vunpack.c.l.bf16 %v325
  %v767 = vunpack.c.l.bf16 %v326
  %v768 = vunpack.c.l.bf16 %v327
  %v769 = vunpack.c.l.bf16 %v328
  %v770 = vunpack.c.l.bf16 %v329
  %v771 = vunpack.c.l.bf16 %v330
  %v772 = vunpack.c.l.bf16 %v331
  %v773 = vunpack.c.l.bf16 %v332
  %v774 = vunpack.c.l.bf16 %v333
  %v775 = vunpack.c.l.bf16 %v334
  %v776 = vunpack.c.l.bf16 %v335
  %v777 = vunpack.c.l.bf16 %v336
  %v778 = vunpack.c.l.bf16 %v337
  %v779 = vunpack.c.l.bf16 %v338
  %v780 = vunpack.c.l.bf16 %v339
  %v781 = vunpack.c.l.bf16 %v340
  %v782 = vunpack.c.l.bf16 %v341
  %v783 = vunpack.c.l.bf16 %v342
  %v784 = vunpack.c.l.bf16 %v343
  %v785 = vunpack.c.l.bf16 %v344
  %v786 = vunpack.c.l.bf16 %v345
  %v787 = vunpack.c.l.bf16 %v346
  %v788 = vunpack.c.l.bf16 %v347
  %v789 = vunpack.c.l.bf16 %v348
  %v790 = vunpack.c.l.bf16 %v349
  %v791 = vunpack.c.l.bf16 %v350
  %v792 = vunpack.c.l.bf16 %v351
  %v793 = vunpack.c.l.bf16 %v352
  %v794 = vunpack.c.l.bf16 %v353
  %v795 = vunpack.c.l.bf16 %v354
  %v796 = vunpack.c.l.bf16 %v355
  %v797 = vunpack.c.l.bf16 %v356
  %v798 = vunpack.c.l.bf16 %v357
  %v799 = vunpack.c.l.bf16 %v358
  %v800 = vunpack.c.l.bf16 %v359
  %v801 = vunpack.c.l.bf16 %v360
  %v802 = vunpack.c.l.bf16 %v361
  %v803 = vunpack.c.l.bf16 %v362
  %v804 = vunpack.c.l.bf16 %v363
  %v805 = vunpack.c.l.bf16 %v364
  %v806 = vunpack.c.l.bf16 %v365
  %v807 = vunpack.c.l.bf16 %v366
  %v808 = vunpack.c.l.bf16 %v367
  %v809 = vunpack.c.l.bf16 %v368
  %v810 = vunpack.c.l.bf16 %v369
  %v811 = vunpack.c.l.bf16 %v370
  %v812 = vunpack.c.l.bf16 %v371
  %v813 = vunpack.c.l.bf16 %v372
  %v814 = vunpack.c.l.bf16 %v373
  %v815 = vunpack.c.l.bf16 %v374
  %v816 = vunpack.c.l.bf16 %v375
  %v817 = vunpack.c.l.bf16 %v376
  %v818 = vunpack.c.l.bf16 %v377
  %v819 = vunpack.c.l.bf16 %v378
  %v820 = vunpack.c.l.bf16 %v379
  %v821 = vunpack.c.l.bf16 %v380
  %v822 = vunpack.c.l.bf16 %v381
  %v823 = vunpack.c.l.bf16 %v382
  %v824 = vunpack.c.l.bf16 %v383
  %v825 = vunpack.c.l.bf16 %v384
  %v826 = vunpack.c.l.bf16 %v385
  %v827 = vunpack.c.l.bf16 %v386
  %v828 = vunpack.c.l.bf16 %v387
  %v829 = vunpack.c.l.bf16 %v388
  %v830 = vunpack.c.l.bf16 %v389
  %v831 = vunpack.c.l.bf16 %v390
  %v832 = vunpack.c.l.bf16 %v391
  %v833 = vunpack.c.l.bf16 %v392
  %v834 = vunpack.c.l.bf16 %v393
  %v835 = vunpack.c.l.bf16 %v394
  %v836 = vunpack.c.l.bf16 %v395
  %v837 = vunpack.c.l.bf16 %v396
  %v838 = vunpack.c.l.bf16 %v397
  %v839 = vunpack.c.l.bf16 %v398
  %v840 = vunpack.c.l.bf16 %v399
  %v841 = vunpack.c.l.bf16 %v400
  %v842 = vunpack.c.l.bf16 %v401
  %v843 = vunpack.c.l.bf16 %v402
  %v844 = vunpack.c.l.bf16 %v403
  %v845 = vunpack.c.l.bf16 %v404
  %v846 = vunpack.c.l.bf16 %v405
  %v847 = vunpack.c.l.bf16 %v406
  %v848 = vunpack.c.l.bf16 %v407
  %v849 = vunpack.c.l.bf16 %v408
  %v850 = vunpack.c.l.bf16 %v409
  %v851 = vunpack.c.l.bf16 %v410
  %v852 = vunpack.c.l.bf16 %v411
  %v853 = vunpack.c.l.bf16 %v412
  %v854 = vunpack.c.l.bf16 %v413
  %v855 = vunpack.c.l.bf16 %v414
  %v856 = vunpack.c.l.bf16 %v415
  %v857 = vunpack.c.l.bf16 %v416
  %v858 = vunpack.c.l.bf16 %v417
  %v859 = vunpack.c.l.bf16 %v418
  %v860 = vunpack.c.l.bf16 %v419
  %v861 = vunpack.c.l.bf16 %v420
  %v862 = vunpack.c.l.bf16 %v421
  %v863 = vunpack.c.l.bf16 %v422
  %v864 = vunpack.c.l.bf16 %v423
  %v865 = vunpack.c.l.bf16 %v424
  %v866 = vunpack.c.l.bf16 %v425
  %v867 = vunpack.c.l.bf16 %v426
  %v868 = vunpack.c.l.bf16 %v427
  %v869 = vunpack.c.l.bf16 %v428
  %v870 = vunpack.c.l.bf16 %v429
  %v871 = vunpack.c.l.bf16 %v430
  %v872 = vunpack.c.l.bf16 %v431
  %v873 = vunpack.c.l.bf16 %v432
  %v874 = vunpack.c.l.bf16 %v433
  %v875 = vunpack.c.l.bf16 %v434
  %v876 = vunpack.c.l.bf16 %v435
  %v877 = vunpack.c.l.bf16 %v436
  %v878 = vunpack.c.l.bf16 %v437
  %v879 = vunpack.c.l.bf16 %v438
  %v880 = vunpack.c.l.bf16 %v439
  %v881 = vunpack.c.l.bf16 %v440
  %v882 = vunpack.c.l.bf16 %v441
  %v883 = vunpack.c.l.bf16 %v442
  %v884 = vunpack.c.l.bf16 %v443
  %v885 = vunpack.c.l.bf16 %v444
  %v886 = vunpack.c.l.bf16 %v445
  %v887 = vunpack.c.l.bf16 %v446
  %v888 = vunpack.c.l.bf16 %v447
  %v889 = vunpack.c.l.bf16 %v448
  %1331 = vrot.lane.b32.xlu0 %v449, 96
  %v1332 = vpop.permute.xlu0 %1331
  %1333 = vrot.lane.b32.xlu0 %v450, 96
  %v1334 = vpop.permute.xlu0 %1333
  %1335 = vrot.lane.b32.xlu0 %v451, 96
  %v1336 = vpop.permute.xlu0 %1335
  %1337 = vrot.lane.b32.xlu0 %v452, 96
  %v1338 = vpop.permute.xlu0 %1337
  %1339 = vrot.lane.b32.xlu0 %v453, 96
  %v1340 = vpop.permute.xlu0 %1339
  %1341 = vrot.lane.b32.xlu0 %v454, 96
  %v1342 = vpop.permute.xlu0 %1341
  %1343 = vrot.lane.b32.xlu0 %v455, 96
  %v1344 = vpop.permute.xlu0 %1343
  %1345 = vrot.lane.b32.xlu0 %v456, 96
  %v1346 = vpop.permute.xlu0 %1345
  %1347 = vrot.lane.b32.xlu0 %v457, 96
  %v1348 = vpop.permute.xlu0 %1347
  %1349 = vrot.lane.b32.xlu0 %v458, 96
  %v1350 = vpop.permute.xlu0 %1349
  %1351 = vrot.lane.b32.xlu0 %v459, 96
  %v1352 = vpop.permute.xlu0 %1351
  %1353 = vrot.lane.b32.xlu0 %v460, 96
  %v1354 = vpop.permute.xlu0 %1353
  %1355 = vrot.lane.b32.xlu0 %v461, 96
  %v1356 = vpop.permute.xlu0 %1355
  %1357 = vrot.lane.b32.xlu0 %v462, 96
  %v1358 = vpop.permute.xlu0 %1357
  %1359 = vrot.lane.b32.xlu0 %v463, 96
  %v1360 = vpop.permute.xlu0 %1359
  %1361 = vrot.lane.b32.xlu0 %v464, 96
  %v1362 = vpop.permute.xlu0 %1361
  %1363 = vrot.lane.b32.xlu0 %v465, 96
  %v1364 = vpop.permute.xlu0 %1363
  %1365 = vrot.lane.b32.xlu0 %v466, 96
  %v1366 = vpop.permute.xlu0 %1365
  %1367 = vrot.lane.b32.xlu0 %v467, 96
  %v1368 = vpop.permute.xlu0 %1367
  %1369 = vrot.lane.b32.xlu0 %v468, 96
  %v1370 = vpop.permute.xlu0 %1369
  %1371 = vrot.lane.b32.xlu0 %v469, 96
  %v1372 = vpop.permute.xlu0 %1371
  %1373 = vrot.lane.b32.xlu0 %v470, 96
  %v1374 = vpop.permute.xlu0 %1373
  %1375 = vrot.lane.b32.xlu0 %v471, 96
  %v1376 = vpop.permute.xlu0 %1375
  %1377 = vrot.lane.b32.xlu0 %v472, 96
  %v1378 = vpop.permute.xlu0 %1377
  %1379 = vrot.lane.b32.xlu0 %v473, 96
  %v1380 = vpop.permute.xlu0 %1379
  %1381 = vrot.lane.b32.xlu0 %v474, 96
  %v1382 = vpop.permute.xlu0 %1381
  %1383 = vrot.lane.b32.xlu0 %v475, 96
  %v1384 = vpop.permute.xlu0 %1383
  %1385 = vrot.lane.b32.xlu0 %v476, 96
  %v1386 = vpop.permute.xlu0 %1385
  %1387 = vrot.lane.b32.xlu0 %v477, 96
  %v1388 = vpop.permute.xlu0 %1387
  %1389 = vrot.lane.b32.xlu0 %v478, 96
  %v1390 = vpop.permute.xlu0 %1389
  %1391 = vrot.lane.b32.xlu0 %v479, 96
  %v1392 = vpop.permute.xlu0 %1391
  %1393 = vrot.lane.b32.xlu0 %v480, 96
  %v1394 = vpop.permute.xlu0 %1393
  %1395 = vrot.lane.b32.xlu0 %v481, 96
  %v1396 = vpop.permute.xlu0 %1395
  %1397 = vrot.lane.b32.xlu0 %v482, 96
  %v1398 = vpop.permute.xlu0 %1397
  %1399 = vrot.lane.b32.xlu0 %v483, 96
  %v1400 = vpop.permute.xlu0 %1399
  %1401 = vrot.lane.b32.xlu0 %v484, 96
  %v1402 = vpop.permute.xlu0 %1401
  %1403 = vrot.lane.b32.xlu0 %v485, 96
  %v1404 = vpop.permute.xlu0 %1403
  %1405 = vrot.lane.b32.xlu0 %v486, 96
  %v1406 = vpop.permute.xlu0 %1405
  %1407 = vrot.lane.b32.xlu0 %v487, 96
  %v1408 = vpop.permute.xlu0 %1407
  %1409 = vrot.lane.b32.xlu0 %v488, 96
  %v1410 = vpop.permute.xlu0 %1409
  %1411 = vrot.lane.b32.xlu0 %v489, 96
  %v1412 = vpop.permute.xlu0 %1411
  %1413 = vrot.lane.b32.xlu0 %v490, 96
  %v1414 = vpop.permute.xlu0 %1413
  %1415 = vrot.lane.b32.xlu0 %v491, 96
  %v1416 = vpop.permute.xlu0 %1415
  %1417 = vrot.lane.b32.xlu0 %v492, 96
  %v1418 = vpop.permute.xlu0 %1417
  %1419 = vrot.lane.b32.xlu0 %v493, 96
  %v1420 = vpop.permute.xlu0 %1419
  %1421 = vrot.lane.b32.xlu0 %v494, 96
  %v1422 = vpop.permute.xlu0 %1421
  %1423 = vrot.lane.b32.xlu0 %v495, 96
  %v1424 = vpop.permute.xlu0 %1423
  %1425 = vrot.lane.b32.xlu0 %v496, 96
  %v1426 = vpop.permute.xlu0 %1425
  %1427 = vrot.lane.b32.xlu0 %v497, 96
  %v1428 = vpop.permute.xlu0 %1427
  %1429 = vrot.lane.b32.xlu0 %v498, 96
  %v1430 = vpop.permute.xlu0 %1429
  %1431 = vrot.lane.b32.xlu0 %v499, 96
  %v1432 = vpop.permute.xlu0 %1431
  %1433 = vrot.lane.b32.xlu0 %v500, 96
  %v1434 = vpop.permute.xlu0 %1433
  %1435 = vrot.lane.b32.xlu0 %v501, 96
  %v1436 = vpop.permute.xlu0 %1435
  %1437 = vrot.lane.b32.xlu0 %v502, 96
  %v1438 = vpop.permute.xlu0 %1437
  %1439 = vrot.lane.b32.xlu0 %v503, 96
  %v1440 = vpop.permute.xlu0 %1439
  %1441 = vrot.lane.b32.xlu0 %v504, 96
  %v1442 = vpop.permute.xlu0 %1441
  %1443 = vrot.lane.b32.xlu0 %v505, 96
  %v1444 = vpop.permute.xlu0 %1443
  %1445 = vrot.lane.b32.xlu0 %v506, 96
  %v1446 = vpop.permute.xlu0 %1445
  %1447 = vrot.lane.b32.xlu0 %v507, 96
  %v1448 = vpop.permute.xlu0 %1447
  %1449 = vrot.lane.b32.xlu0 %v508, 96
  %v1450 = vpop.permute.xlu0 %1449
  %1451 = vrot.lane.b32.xlu0 %v509, 96
  %v1452 = vpop.permute.xlu0 %1451
  %1453 = vrot.lane.b32.xlu0 %v510, 96
  %v1454 = vpop.permute.xlu0 %1453
  %1455 = vrot.lane.b32.xlu0 %v511, 96
  %v1456 = vpop.permute.xlu0 %1455
  %1457 = vrot.lane.b32.xlu0 %v512, 96
  %v1458 = vpop.permute.xlu0 %1457
  %1459 = vrot.lane.b32.xlu0 %v513, 96
  %v1460 = vpop.permute.xlu0 %1459
  %1461 = vrot.lane.b32.xlu0 %v514, 96
  %v1462 = vpop.permute.xlu0 %1461
  %1463 = vrot.lane.b32.xlu0 %v515, 96
  %v1464 = vpop.permute.xlu0 %1463
  %1465 = vrot.lane.b32.xlu0 %v516, 96
  %v1466 = vpop.permute.xlu0 %1465
  %1467 = vrot.lane.b32.xlu0 %v517, 96
  %v1468 = vpop.permute.xlu0 %1467
  %1469 = vrot.lane.b32.xlu0 %v518, 96
  %v1470 = vpop.permute.xlu0 %1469
  %1471 = vrot.lane.b32.xlu0 %v519, 96
  %v1472 = vpop.permute.xlu0 %1471
  %1473 = vrot.lane.b32.xlu0 %v520, 96
  %v1474 = vpop.permute.xlu0 %1473
  %1475 = vrot.lane.b32.xlu0 %v521, 96
  %v1476 = vpop.permute.xlu0 %1475
  %1477 = vrot.lane.b32.xlu0 %v522, 96
  %v1478 = vpop.permute.xlu0 %1477
  %1479 = vrot.lane.b32.xlu0 %v523, 96
  %v1480 = vpop.permute.xlu0 %1479
  %1481 = vrot.lane.b32.xlu0 %v524, 96
  %v1482 = vpop.permute.xlu0 %1481
  %1483 = vrot.lane.b32.xlu0 %v525, 96
  %v1484 = vpop.permute.xlu0 %1483
  %1485 = vrot.lane.b32.xlu0 %v526, 96
  %v1486 = vpop.permute.xlu0 %1485
  %1487 = vrot.lane.b32.xlu0 %v527, 96
  %v1488 = vpop.permute.xlu0 %1487
  %1489 = vrot.lane.b32.xlu0 %v528, 96
  %v1490 = vpop.permute.xlu0 %1489
  %1491 = vrot.lane.b32.xlu0 %v529, 96
  %v1492 = vpop.permute.xlu0 %1491
  %1493 = vrot.lane.b32.xlu0 %v530, 96
  %v1494 = vpop.permute.xlu0 %1493
  %1495 = vrot.lane.b32.xlu0 %v531, 96
  %v1496 = vpop.permute.xlu0 %1495
  %1497 = vrot.lane.b32.xlu0 %v532, 96
  %v1498 = vpop.permute.xlu0 %1497
  %1499 = vrot.lane.b32.xlu0 %v533, 96
  %v1500 = vpop.permute.xlu0 %1499
  %1501 = vrot.lane.b32.xlu0 %v534, 96
  %v1502 = vpop.permute.xlu0 %1501
  %1503 = vrot.lane.b32.xlu0 %v535, 96
  %v1504 = vpop.permute.xlu0 %1503
  %1505 = vrot.lane.b32.xlu0 %v536, 96
  %v1506 = vpop.permute.xlu0 %1505
  %1507 = vrot.lane.b32.xlu0 %v537, 96
  %v1508 = vpop.permute.xlu0 %1507
  %1509 = vrot.lane.b32.xlu0 %v538, 96
  %v1510 = vpop.permute.xlu0 %1509
  %1511 = vrot.lane.b32.xlu0 %v539, 96
  %v1512 = vpop.permute.xlu0 %1511
  %1513 = vrot.lane.b32.xlu0 %v540, 96
  %v1514 = vpop.permute.xlu0 %1513
  %1515 = vrot.lane.b32.xlu0 %v541, 96
  %v1516 = vpop.permute.xlu0 %1515
  %1517 = vrot.lane.b32.xlu0 %v542, 96
  %v1518 = vpop.permute.xlu0 %1517
  %1519 = vrot.lane.b32.xlu0 %v543, 96
  %v1520 = vpop.permute.xlu0 %1519
  %1521 = vrot.lane.b32.xlu0 %v544, 96
  %v1522 = vpop.permute.xlu0 %1521
  %1523 = vrot.lane.b32.xlu0 %v545, 96
  %v1524 = vpop.permute.xlu0 %1523
  %1525 = vrot.lane.b32.xlu0 %v546, 96
  %v1526 = vpop.permute.xlu0 %1525
  %1527 = vrot.lane.b32.xlu0 %v547, 96
  %v1528 = vpop.permute.xlu0 %1527
  %1529 = vrot.lane.b32.xlu0 %v548, 96
  %v1530 = vpop.permute.xlu0 %1529
  %1531 = vrot.lane.b32.xlu0 %v549, 96
  %v1532 = vpop.permute.xlu0 %1531
  %1533 = vrot.lane.b32.xlu0 %v550, 96
  %v1534 = vpop.permute.xlu0 %1533
  %1535 = vrot.lane.b32.xlu0 %v551, 96
  %v1536 = vpop.permute.xlu0 %1535
  %1537 = vrot.lane.b32.xlu0 %v552, 96
  %v1538 = vpop.permute.xlu0 %1537
  %1539 = vrot.lane.b32.xlu0 %v553, 96
  %v1540 = vpop.permute.xlu0 %1539
  %1541 = vrot.lane.b32.xlu0 %v554, 96
  %v1542 = vpop.permute.xlu0 %1541
  %1543 = vrot.lane.b32.xlu0 %v555, 96
  %v1544 = vpop.permute.xlu0 %1543
  %1545 = vrot.lane.b32.xlu0 %v556, 96
  %v1546 = vpop.permute.xlu0 %1545
  %1547 = vrot.lane.b32.xlu0 %v557, 96
  %v1548 = vpop.permute.xlu0 %1547
  %1549 = vrot.lane.b32.xlu0 %v558, 96
  %v1550 = vpop.permute.xlu0 %1549
  %1551 = vrot.lane.b32.xlu0 %v559, 96
  %v1552 = vpop.permute.xlu0 %1551
  %1553 = vrot.lane.b32.xlu0 %v560, 96
  %v1554 = vpop.permute.xlu0 %1553
  %1555 = vrot.lane.b32.xlu0 %v561, 96
  %v1556 = vpop.permute.xlu0 %1555
  %1557 = vrot.lane.b32.xlu0 %v562, 96
  %v1558 = vpop.permute.xlu0 %1557
  %1559 = vrot.lane.b32.xlu0 %v563, 96
  %v1560 = vpop.permute.xlu0 %1559
  %1561 = vrot.lane.b32.xlu0 %v564, 96
  %v1562 = vpop.permute.xlu0 %1561
  %1563 = vrot.lane.b32.xlu0 %v565, 96
  %v1564 = vpop.permute.xlu0 %1563
  %1565 = vrot.lane.b32.xlu0 %v566, 96
  %v1566 = vpop.permute.xlu0 %1565
  %1567 = vrot.lane.b32.xlu0 %v567, 96
  %v1568 = vpop.permute.xlu0 %1567
  %1569 = vrot.lane.b32.xlu0 %v568, 96
  %v1570 = vpop.permute.xlu0 %1569
  %1571 = vrot.lane.b32.xlu0 %v569, 96
  %v1572 = vpop.permute.xlu0 %1571
  %1573 = vrot.lane.b32.xlu0 %v570, 96
  %v1574 = vpop.permute.xlu0 %1573
  %1575 = vrot.lane.b32.xlu0 %v571, 96
  %v1576 = vpop.permute.xlu0 %1575
  %1577 = vrot.lane.b32.xlu0 %v572, 96
  %v1578 = vpop.permute.xlu0 %1577
  %1579 = vrot.lane.b32.xlu0 %v573, 96
  %v1580 = vpop.permute.xlu0 %1579
  %1581 = vrot.lane.b32.xlu0 %v574, 96
  %v1582 = vpop.permute.xlu0 %1581
  %1583 = vrot.lane.b32.xlu0 %v575, 96
  %v1584 = vpop.permute.xlu0 %1583
  %1585 = vrot.lane.b32.xlu0 %v576, 96
  %v1586 = vpop.permute.xlu0 %1585
  %1587 = vrot.lane.b32.xlu0 %v577, 96
  %v1588 = vpop.permute.xlu0 %1587
  %1589 = vrot.lane.b32.xlu0 %v578, 96
  %v1590 = vpop.permute.xlu0 %1589
  %1591 = vrot.lane.b32.xlu0 %v579, 96
  %v1592 = vpop.permute.xlu0 %1591
  %1593 = vrot.lane.b32.xlu0 %v580, 96
  %v1594 = vpop.permute.xlu0 %1593
  %1595 = vrot.lane.b32.xlu0 %v581, 96
  %v1596 = vpop.permute.xlu0 %1595
  %1597 = vrot.lane.b32.xlu0 %v582, 96
  %v1598 = vpop.permute.xlu0 %1597
  %1599 = vrot.lane.b32.xlu0 %v583, 96
  %v1600 = vpop.permute.xlu0 %1599
  %1601 = vrot.lane.b32.xlu0 %v584, 96
  %v1602 = vpop.permute.xlu0 %1601
  %1603 = vrot.lane.b32.xlu0 %v585, 96
  %v1604 = vpop.permute.xlu0 %1603
  %1605 = vrot.lane.b32.xlu0 %v586, 96
  %v1606 = vpop.permute.xlu0 %1605
  %1607 = vrot.lane.b32.xlu0 %v587, 96
  %v1608 = vpop.permute.xlu0 %1607
  %1609 = vrot.lane.b32.xlu0 %v588, 96
  %v1610 = vpop.permute.xlu0 %1609
  %1611 = vrot.lane.b32.xlu0 %v589, 96
  %v1612 = vpop.permute.xlu0 %1611
  %1613 = vrot.lane.b32.xlu0 %v590, 96
  %v1614 = vpop.permute.xlu0 %1613
  %1615 = vrot.lane.b32.xlu0 %v591, 96
  %v1616 = vpop.permute.xlu0 %1615
  %1617 = vrot.lane.b32.xlu0 %v592, 96
  %v1618 = vpop.permute.xlu0 %1617
  %1619 = vrot.lane.b32.xlu0 %v593, 96
  %v1620 = vpop.permute.xlu0 %1619
  %1621 = vrot.lane.b32.xlu0 %v594, 96
  %v1622 = vpop.permute.xlu0 %1621
  %1623 = vrot.lane.b32.xlu0 %v595, 96
  %v1624 = vpop.permute.xlu0 %1623
  %1625 = vrot.lane.b32.xlu0 %v596, 96
  %v1626 = vpop.permute.xlu0 %1625
  %1627 = vrot.lane.b32.xlu0 %v597, 96
  %v1628 = vpop.permute.xlu0 %1627
  %1629 = vrot.lane.b32.xlu0 %v598, 96
  %v1630 = vpop.permute.xlu0 %1629
  %1631 = vrot.lane.b32.xlu0 %v599, 96
  %v1632 = vpop.permute.xlu0 %1631
  %1633 = vrot.lane.b32.xlu0 %v600, 96
  %v1634 = vpop.permute.xlu0 %1633
  %1635 = vrot.lane.b32.xlu0 %v601, 96
  %v1636 = vpop.permute.xlu0 %1635
  %1637 = vrot.lane.b32.xlu0 %v602, 96
  %v1638 = vpop.permute.xlu0 %1637
  %1639 = vrot.lane.b32.xlu0 %v603, 96
  %v1640 = vpop.permute.xlu0 %1639
  %1641 = vrot.lane.b32.xlu0 %v604, 96
  %v1642 = vpop.permute.xlu0 %1641
  %1643 = vrot.lane.b32.xlu0 %v605, 96
  %v1644 = vpop.permute.xlu0 %1643
  %1645 = vrot.lane.b32.xlu0 %v606, 96
  %v1646 = vpop.permute.xlu0 %1645
  %1647 = vrot.lane.b32.xlu0 %v607, 96
  %v1648 = vpop.permute.xlu0 %1647
  %1649 = vrot.lane.b32.xlu0 %v608, 96
  %v1650 = vpop.permute.xlu0 %1649
  %1651 = vrot.lane.b32.xlu0 %v609, 96
  %v1652 = vpop.permute.xlu0 %1651
  %1653 = vrot.lane.b32.xlu0 %v610, 96
  %v1654 = vpop.permute.xlu0 %1653
  %1655 = vrot.lane.b32.xlu0 %v611, 96
  %v1656 = vpop.permute.xlu0 %1655
  %1657 = vrot.lane.b32.xlu0 %v612, 96
  %v1658 = vpop.permute.xlu0 %1657
  %1659 = vrot.lane.b32.xlu0 %v613, 96
  %v1660 = vpop.permute.xlu0 %1659
  %1661 = vrot.lane.b32.xlu0 %v614, 96
  %v1662 = vpop.permute.xlu0 %1661
  %1663 = vrot.lane.b32.xlu0 %v615, 96
  %v1664 = vpop.permute.xlu0 %1663
  %1665 = vrot.lane.b32.xlu0 %v616, 96
  %v1666 = vpop.permute.xlu0 %1665
  %1667 = vrot.lane.b32.xlu0 %v617, 96
  %v1668 = vpop.permute.xlu0 %1667
  %1669 = vrot.lane.b32.xlu0 %v618, 96
  %v1670 = vpop.permute.xlu0 %1669
  %1671 = vrot.lane.b32.xlu0 %v619, 96
  %v1672 = vpop.permute.xlu0 %1671
  %1673 = vrot.lane.b32.xlu0 %v620, 96
  %v1674 = vpop.permute.xlu0 %1673
  %1675 = vrot.lane.b32.xlu0 %v621, 96
  %v1676 = vpop.permute.xlu0 %1675
  %1677 = vrot.lane.b32.xlu0 %v622, 96
  %v1678 = vpop.permute.xlu0 %1677
  %1679 = vrot.lane.b32.xlu0 %v623, 96
  %v1680 = vpop.permute.xlu0 %1679
  %1681 = vrot.lane.b32.xlu0 %v624, 96
  %v1682 = vpop.permute.xlu0 %1681
  %1683 = vrot.lane.b32.xlu0 %v625, 96
  %v1684 = vpop.permute.xlu0 %1683
  %1685 = vrot.lane.b32.xlu0 %v626, 96
  %v1686 = vpop.permute.xlu0 %1685
  %1687 = vrot.lane.b32.xlu0 %v627, 96
  %v1688 = vpop.permute.xlu0 %1687
  %1689 = vrot.lane.b32.xlu0 %v628, 96
  %v1690 = vpop.permute.xlu0 %1689
  %1691 = vrot.lane.b32.xlu0 %v629, 96
  %v1692 = vpop.permute.xlu0 %1691
  %1693 = vrot.lane.b32.xlu0 %v630, 96
  %v1694 = vpop.permute.xlu0 %1693
  %1695 = vrot.lane.b32.xlu0 %v631, 96
  %v1696 = vpop.permute.xlu0 %1695
  %1697 = vrot.lane.b32.xlu0 %v632, 96
  %v1698 = vpop.permute.xlu0 %1697
  %1699 = vrot.lane.b32.xlu0 %v633, 96
  %v1700 = vpop.permute.xlu0 %1699
  %1701 = vrot.lane.b32.xlu0 %v634, 96
  %v1702 = vpop.permute.xlu0 %1701
  %1703 = vrot.lane.b32.xlu0 %v635, 96
  %v1704 = vpop.permute.xlu0 %1703
  %1705 = vrot.lane.b32.xlu0 %v636, 96
  %v1706 = vpop.permute.xlu0 %1705
  %1707 = vrot.lane.b32.xlu0 %v637, 96
  %v1708 = vpop.permute.xlu0 %1707
  %1709 = vrot.lane.b32.xlu0 %v638, 96
  %v1710 = vpop.permute.xlu0 %1709
  %1711 = vrot.lane.b32.xlu0 %v639, 96
  %v1712 = vpop.permute.xlu0 %1711
  %1713 = vrot.lane.b32.xlu0 %v640, 96
  %v1714 = vpop.permute.xlu0 %1713
  %1715 = vrot.lane.b32.xlu0 %v641, 96
  %v1716 = vpop.permute.xlu0 %1715
  %1717 = vrot.lane.b32.xlu0 %v642, 96
  %v1718 = vpop.permute.xlu0 %1717
  %1719 = vrot.lane.b32.xlu0 %v643, 96
  %v1720 = vpop.permute.xlu0 %1719
  %1721 = vrot.lane.b32.xlu0 %v644, 96
  %v1722 = vpop.permute.xlu0 %1721
  %1723 = vrot.lane.b32.xlu0 %v645, 96
  %v1724 = vpop.permute.xlu0 %1723
  %1725 = vrot.lane.b32.xlu0 %v646, 96
  %v1726 = vpop.permute.xlu0 %1725
  %1727 = vrot.lane.b32.xlu0 %v647, 96
  %v1728 = vpop.permute.xlu0 %1727
  %1729 = vrot.lane.b32.xlu0 %v648, 96
  %v1730 = vpop.permute.xlu0 %1729
  %1731 = vrot.lane.b32.xlu0 %v649, 96
  %v1732 = vpop.permute.xlu0 %1731
  %1733 = vrot.lane.b32.xlu0 %v650, 96
  %v1734 = vpop.permute.xlu0 %1733
  %1735 = vrot.lane.b32.xlu0 %v651, 96
  %v1736 = vpop.permute.xlu0 %1735
  %1737 = vrot.lane.b32.xlu0 %v652, 96
  %v1738 = vpop.permute.xlu0 %1737
  %1739 = vrot.lane.b32.xlu0 %v653, 96
  %v1740 = vpop.permute.xlu0 %1739
  %1741 = vrot.lane.b32.xlu0 %v654, 96
  %v1742 = vpop.permute.xlu0 %1741
  %1743 = vrot.lane.b32.xlu0 %v655, 96
  %v1744 = vpop.permute.xlu0 %1743
  %1745 = vrot.lane.b32.xlu0 %v656, 96
  %v1746 = vpop.permute.xlu0 %1745
  %1747 = vrot.lane.b32.xlu0 %v657, 96
  %v1748 = vpop.permute.xlu0 %1747
  %1749 = vrot.lane.b32.xlu0 %v658, 96
  %v1750 = vpop.permute.xlu0 %1749
  %1751 = vrot.lane.b32.xlu0 %v659, 96
  %v1752 = vpop.permute.xlu0 %1751
  %1753 = vrot.lane.b32.xlu0 %v660, 96
  %v1754 = vpop.permute.xlu0 %1753
  %1755 = vrot.lane.b32.xlu0 %v661, 96
  %v1756 = vpop.permute.xlu0 %1755
  %1757 = vrot.lane.b32.xlu0 %v662, 96
  %v1758 = vpop.permute.xlu0 %1757
  %1759 = vrot.lane.b32.xlu0 %v663, 96
  %v1760 = vpop.permute.xlu0 %1759
  %1761 = vrot.lane.b32.xlu0 %v664, 96
  %v1762 = vpop.permute.xlu0 %1761
  %1763 = vrot.lane.b32.xlu0 %v665, 96
  %v1764 = vpop.permute.xlu0 %1763
  %1765 = vrot.lane.b32.xlu0 %v666, 96
  %v1766 = vpop.permute.xlu0 %1765
  %1767 = vrot.lane.b32.xlu0 %v667, 96
  %v1768 = vpop.permute.xlu0 %1767
  %1769 = vrot.lane.b32.xlu0 %v668, 96
  %v1770 = vpop.permute.xlu0 %1769
  %1771 = vrot.lane.b32.xlu0 %v669, 96
  %v1772 = vpop.permute.xlu0 %1771
  %1773 = vrot.lane.b32.xlu0 %v670, 96
  %v1774 = vpop.permute.xlu0 %1773
  %1775 = vrot.lane.b32.xlu0 %v671, 96
  %v1776 = vpop.permute.xlu0 %1775
  %1777 = vrot.lane.b32.xlu0 %v672, 96
  %v1778 = vpop.permute.xlu0 %1777
  %1779 = vrot.lane.b32.xlu0 %v673, 96
  %v1780 = vpop.permute.xlu0 %1779
  %1781 = vrot.lane.b32.xlu0 %v674, 96
  %v1782 = vpop.permute.xlu0 %1781
  %1783 = vrot.lane.b32.xlu0 %v675, 96
  %v1784 = vpop.permute.xlu0 %1783
  %1785 = vrot.lane.b32.xlu0 %v676, 96
  %v1786 = vpop.permute.xlu0 %1785
  %1787 = vrot.lane.b32.xlu0 %v677, 96
  %v1788 = vpop.permute.xlu0 %1787
  %1789 = vrot.lane.b32.xlu0 %v678, 96
  %v1790 = vpop.permute.xlu0 %1789
  %1791 = vrot.lane.b32.xlu0 %v679, 96
  %v1792 = vpop.permute.xlu0 %1791
  %1793 = vrot.lane.b32.xlu0 %v680, 96
  %v1794 = vpop.permute.xlu0 %1793
  %1795 = vrot.lane.b32.xlu0 %v681, 96
  %v1796 = vpop.permute.xlu0 %1795
  %1797 = vrot.lane.b32.xlu0 %v682, 96
  %v1798 = vpop.permute.xlu0 %1797
  %1799 = vrot.lane.b32.xlu0 %v683, 96
  %v1800 = vpop.permute.xlu0 %1799
  %1801 = vrot.lane.b32.xlu0 %v684, 96
  %v1802 = vpop.permute.xlu0 %1801
  %1803 = vrot.lane.b32.xlu0 %v685, 96
  %v1804 = vpop.permute.xlu0 %1803
  %1805 = vrot.lane.b32.xlu0 %v686, 96
  %v1806 = vpop.permute.xlu0 %1805
  %1807 = vrot.lane.b32.xlu0 %v687, 96
  %v1808 = vpop.permute.xlu0 %1807
  %1809 = vrot.lane.b32.xlu0 %v688, 96
  %v1810 = vpop.permute.xlu0 %1809
  %1811 = vrot.lane.b32.xlu0 %v689, 96
  %v1812 = vpop.permute.xlu0 %1811
  %1813 = vrot.lane.b32.xlu0 %v690, 96
  %v1814 = vpop.permute.xlu0 %1813
  %1815 = vrot.lane.b32.xlu0 %v691, 96
  %v1816 = vpop.permute.xlu0 %1815
  %1817 = vrot.lane.b32.xlu0 %v692, 96
  %v1818 = vpop.permute.xlu0 %1817
  %1819 = vrot.lane.b32.xlu0 %v693, 96
  %v1820 = vpop.permute.xlu0 %1819
  %1821 = vrot.lane.b32.xlu0 %v694, 96
  %v1822 = vpop.permute.xlu0 %1821
  %1823 = vrot.lane.b32.xlu0 %v695, 96
  %v1824 = vpop.permute.xlu0 %1823
  %1825 = vrot.lane.b32.xlu0 %v696, 96
  %v1826 = vpop.permute.xlu0 %1825
  %1827 = vrot.lane.b32.xlu0 %v697, 96
  %v1828 = vpop.permute.xlu0 %1827
  %1829 = vrot.lane.b32.xlu0 %v698, 96
  %v1830 = vpop.permute.xlu0 %1829
  %1831 = vrot.lane.b32.xlu0 %v699, 96
  %v1832 = vpop.permute.xlu0 %1831
  %1833 = vrot.lane.b32.xlu0 %v700, 96
  %v1834 = vpop.permute.xlu0 %1833
  %1835 = vrot.lane.b32.xlu0 %v701, 96
  %v1836 = vpop.permute.xlu0 %1835
  %1837 = vrot.lane.b32.xlu0 %v702, 96
  %v1838 = vpop.permute.xlu0 %1837
  %1839 = vrot.lane.b32.xlu0 %v703, 96
  %v1840 = vpop.permute.xlu0 %1839
  %1841 = vrot.lane.b32.xlu0 %v704, 96
  %v1842 = vpop.permute.xlu0 %1841
  %1843 = vrot.lane.b32.xlu0 %v705, 96
  %v1844 = vpop.permute.xlu0 %1843
  %1845 = vrot.lane.b32.xlu0 %v706, 96
  %v1846 = vpop.permute.xlu0 %1845
  %1847 = vrot.lane.b32.xlu0 %v707, 96
  %v1848 = vpop.permute.xlu0 %1847
  %1849 = vrot.lane.b32.xlu0 %v708, 96
  %v1850 = vpop.permute.xlu0 %1849
  %1851 = vrot.lane.b32.xlu0 %v709, 96
  %v1852 = vpop.permute.xlu0 %1851
  %1853 = vrot.lane.b32.xlu0 %v710, 96
  %v1854 = vpop.permute.xlu0 %1853
  %1855 = vrot.lane.b32.xlu0 %v711, 96
  %v1856 = vpop.permute.xlu0 %1855
  %1857 = vrot.lane.b32.xlu0 %v712, 96
  %v1858 = vpop.permute.xlu0 %1857
  %1859 = vrot.lane.b32.xlu0 %v713, 96
  %v1860 = vpop.permute.xlu0 %1859
  %1861 = vrot.lane.b32.xlu0 %v714, 96
  %v1862 = vpop.permute.xlu0 %1861
  %1863 = vrot.lane.b32.xlu0 %v715, 96
  %v1864 = vpop.permute.xlu0 %1863
  %1865 = vrot.lane.b32.xlu0 %v716, 96
  %v1866 = vpop.permute.xlu0 %1865
  %1867 = vrot.lane.b32.xlu0 %v717, 96
  %v1868 = vpop.permute.xlu0 %1867
  %1869 = vrot.lane.b32.xlu0 %v718, 96
  %v1870 = vpop.permute.xlu0 %1869
  %1871 = vrot.lane.b32.xlu0 %v719, 96
  %v1872 = vpop.permute.xlu0 %1871
  %1873 = vrot.lane.b32.xlu0 %v720, 96
  %v1874 = vpop.permute.xlu0 %1873
  %1875 = vrot.lane.b32.xlu0 %v721, 96
  %v1876 = vpop.permute.xlu0 %1875
  %1877 = vrot.lane.b32.xlu0 %v722, 96
  %v1878 = vpop.permute.xlu0 %1877
  %1879 = vrot.lane.b32.xlu0 %v723, 96
  %v1880 = vpop.permute.xlu0 %1879
  %1881 = vrot.lane.b32.xlu0 %v724, 96
  %v1882 = vpop.permute.xlu0 %1881
  %1883 = vrot.lane.b32.xlu0 %v725, 96
  %v1884 = vpop.permute.xlu0 %1883
  %1885 = vrot.lane.b32.xlu0 %v726, 96
  %v1886 = vpop.permute.xlu0 %1885
  %1887 = vrot.lane.b32.xlu0 %v727, 96
  %v1888 = vpop.permute.xlu0 %1887
  %1889 = vrot.lane.b32.xlu0 %v728, 96
  %v1890 = vpop.permute.xlu0 %1889
  %1891 = vrot.lane.b32.xlu0 %v729, 96
  %v1892 = vpop.permute.xlu0 %1891
  %1893 = vrot.lane.b32.xlu0 %v730, 96
  %v1894 = vpop.permute.xlu0 %1893
  %1895 = vrot.lane.b32.xlu0 %v731, 96
  %v1896 = vpop.permute.xlu0 %1895
  %1897 = vrot.lane.b32.xlu0 %v732, 96
  %v1898 = vpop.permute.xlu0 %1897
  %1899 = vrot.lane.b32.xlu0 %v733, 96
  %v1900 = vpop.permute.xlu0 %1899
  %1901 = vrot.lane.b32.xlu0 %v734, 96
  %v1902 = vpop.permute.xlu0 %1901
  %1903 = vrot.lane.b32.xlu0 %v735, 96
  %v1904 = vpop.permute.xlu0 %1903
  %1905 = vrot.lane.b32.xlu0 %v736, 96
  %v1906 = vpop.permute.xlu0 %1905
  %1907 = vrot.lane.b32.xlu0 %v737, 96
  %v1908 = vpop.permute.xlu0 %1907
  %1909 = vrot.lane.b32.xlu0 %v738, 96
  %v1910 = vpop.permute.xlu0 %1909
  %1911 = vrot.lane.b32.xlu0 %v739, 96
  %v1912 = vpop.permute.xlu0 %1911
  %1913 = vrot.lane.b32.xlu0 %v740, 96
  %v1914 = vpop.permute.xlu0 %1913
  %1915 = vrot.lane.b32.xlu0 %v741, 96
  %v1916 = vpop.permute.xlu0 %1915
  %1917 = vrot.lane.b32.xlu0 %v742, 96
  %v1918 = vpop.permute.xlu0 %1917
  %1919 = vrot.lane.b32.xlu0 %v743, 96
  %v1920 = vpop.permute.xlu0 %1919
  %1921 = vrot.lane.b32.xlu0 %v744, 96
  %v1922 = vpop.permute.xlu0 %1921
  %1923 = vrot.lane.b32.xlu0 %v745, 96
  %v1924 = vpop.permute.xlu0 %1923
  %1925 = vrot.lane.b32.xlu0 %v746, 96
  %v1926 = vpop.permute.xlu0 %1925
  %1927 = vrot.lane.b32.xlu0 %v747, 96
  %v1928 = vpop.permute.xlu0 %1927
  %1929 = vrot.lane.b32.xlu0 %v748, 96
  %v1930 = vpop.permute.xlu0 %1929
  %1931 = vrot.lane.b32.xlu0 %v749, 96
  %v1932 = vpop.permute.xlu0 %1931
  %1933 = vrot.lane.b32.xlu0 %v750, 96
  %v1934 = vpop.permute.xlu0 %1933
  %1935 = vrot.lane.b32.xlu0 %v751, 96
  %v1936 = vpop.permute.xlu0 %1935
  %1937 = vrot.lane.b32.xlu0 %v752, 96
  %v1938 = vpop.permute.xlu0 %1937
  %1939 = vrot.lane.b32.xlu0 %v753, 96
  %v1940 = vpop.permute.xlu0 %1939
  %1941 = vrot.lane.b32.xlu0 %v754, 96
  %v1942 = vpop.permute.xlu0 %1941
  %1943 = vrot.lane.b32.xlu0 %v755, 96
  %v1944 = vpop.permute.xlu0 %1943
  %1945 = vrot.lane.b32.xlu0 %v756, 96
  %v1946 = vpop.permute.xlu0 %1945
  %1947 = vrot.lane.b32.xlu0 %v757, 96
  %v1948 = vpop.permute.xlu0 %1947
  %1949 = vrot.lane.b32.xlu0 %v758, 96
  %v1950 = vpop.permute.xlu0 %1949
  %1951 = vrot.lane.b32.xlu0 %v759, 96
  %v1952 = vpop.permute.xlu0 %1951
  %1953 = vrot.lane.b32.xlu0 %v760, 96
  %v1954 = vpop.permute.xlu0 %1953
  %1955 = vrot.lane.b32.xlu0 %v761, 96
  %v1956 = vpop.permute.xlu0 %1955
  %1957 = vrot.lane.b32.xlu0 %v762, 96
  %v1958 = vpop.permute.xlu0 %1957
  %1959 = vrot.lane.b32.xlu0 %v763, 96
  %v1960 = vpop.permute.xlu0 %1959
  %1961 = vrot.lane.b32.xlu0 %v764, 96
  %v1962 = vpop.permute.xlu0 %1961
  %1963 = vrot.lane.b32.xlu0 %v765, 96
  %v1964 = vpop.permute.xlu0 %1963
  %1965 = vrot.lane.b32.xlu0 %v766, 96
  %v1966 = vpop.permute.xlu0 %1965
  %1967 = vrot.lane.b32.xlu0 %v767, 96
  %v1968 = vpop.permute.xlu0 %1967
  %1969 = vrot.lane.b32.xlu0 %v768, 96
  %v1970 = vpop.permute.xlu0 %1969
  %1971 = vrot.lane.b32.xlu0 %v769, 96
  %v1972 = vpop.permute.xlu0 %1971
  %1973 = vrot.lane.b32.xlu0 %v770, 96
  %v1974 = vpop.permute.xlu0 %1973
  %1975 = vrot.lane.b32.xlu0 %v771, 96
  %v1976 = vpop.permute.xlu0 %1975
  %1977 = vrot.lane.b32.xlu0 %v772, 96
  %v1978 = vpop.permute.xlu0 %1977
  %1979 = vrot.lane.b32.xlu0 %v773, 96
  %v1980 = vpop.permute.xlu0 %1979
  %1981 = vrot.lane.b32.xlu0 %v774, 96
  %v1982 = vpop.permute.xlu0 %1981
  %1983 = vrot.lane.b32.xlu0 %v775, 96
  %v1984 = vpop.permute.xlu0 %1983
  %1985 = vrot.lane.b32.xlu0 %v776, 96
  %v1986 = vpop.permute.xlu0 %1985
  %1987 = vrot.lane.b32.xlu0 %v777, 96
  %v1988 = vpop.permute.xlu0 %1987
  %1989 = vrot.lane.b32.xlu0 %v778, 96
  %v1990 = vpop.permute.xlu0 %1989
  %1991 = vrot.lane.b32.xlu0 %v779, 96
  %v1992 = vpop.permute.xlu0 %1991
  %1993 = vrot.lane.b32.xlu0 %v780, 96
  %v1994 = vpop.permute.xlu0 %1993
  %1995 = vrot.lane.b32.xlu0 %v781, 96
  %v1996 = vpop.permute.xlu0 %1995
  %1997 = vrot.lane.b32.xlu0 %v782, 96
  %v1998 = vpop.permute.xlu0 %1997
  %1999 = vrot.lane.b32.xlu0 %v783, 96
  %v2000 = vpop.permute.xlu0 %1999
  %2001 = vrot.lane.b32.xlu0 %v784, 96
  %v2002 = vpop.permute.xlu0 %2001
  %2003 = vrot.lane.b32.xlu0 %v785, 96
  %v2004 = vpop.permute.xlu0 %2003
  %2005 = vrot.lane.b32.xlu0 %v786, 96
  %v2006 = vpop.permute.xlu0 %2005
  %2007 = vrot.lane.b32.xlu0 %v787, 96
  %v2008 = vpop.permute.xlu0 %2007
  %2009 = vrot.lane.b32.xlu0 %v788, 96
  %v2010 = vpop.permute.xlu0 %2009
  %2011 = vrot.lane.b32.xlu0 %v789, 96
  %v2012 = vpop.permute.xlu0 %2011
  %2013 = vrot.lane.b32.xlu0 %v790, 96
  %v2014 = vpop.permute.xlu0 %2013
  %2015 = vrot.lane.b32.xlu0 %v791, 96
  %v2016 = vpop.permute.xlu0 %2015
  %2017 = vrot.lane.b32.xlu0 %v792, 96
  %v2018 = vpop.permute.xlu0 %2017
  %2019 = vrot.lane.b32.xlu0 %v793, 96
  %v2020 = vpop.permute.xlu0 %2019
  %2021 = vrot.lane.b32.xlu0 %v794, 96
  %v2022 = vpop.permute.xlu0 %2021
  %2023 = vrot.lane.b32.xlu0 %v795, 96
  %v2024 = vpop.permute.xlu0 %2023
  %2025 = vrot.lane.b32.xlu0 %v796, 96
  %v2026 = vpop.permute.xlu0 %2025
  %2027 = vrot.lane.b32.xlu0 %v797, 96
  %v2028 = vpop.permute.xlu0 %2027
  %2029 = vrot.lane.b32.xlu0 %v798, 96
  %v2030 = vpop.permute.xlu0 %2029
  %2031 = vrot.lane.b32.xlu0 %v799, 96
  %v2032 = vpop.permute.xlu0 %2031
  %2033 = vrot.lane.b32.xlu0 %v800, 96
  %v2034 = vpop.permute.xlu0 %2033
  %2035 = vrot.lane.b32.xlu0 %v801, 96
  %v2036 = vpop.permute.xlu0 %2035
  %2037 = vrot.lane.b32.xlu0 %v802, 96
  %v2038 = vpop.permute.xlu0 %2037
  %2039 = vrot.lane.b32.xlu0 %v803, 96
  %v2040 = vpop.permute.xlu0 %2039
  %2041 = vrot.lane.b32.xlu0 %v804, 96
  %v2042 = vpop.permute.xlu0 %2041
  %2043 = vrot.lane.b32.xlu0 %v805, 96
  %v2044 = vpop.permute.xlu0 %2043
  %2045 = vrot.lane.b32.xlu0 %v806, 96
  %v2046 = vpop.permute.xlu0 %2045
  %2047 = vrot.lane.b32.xlu0 %v807, 96
  %v2048 = vpop.permute.xlu0 %2047
  %2049 = vrot.lane.b32.xlu0 %v808, 96
  %v2050 = vpop.permute.xlu0 %2049
  %2051 = vrot.lane.b32.xlu0 %v809, 96
  %v2052 = vpop.permute.xlu0 %2051
  %2053 = vrot.lane.b32.xlu0 %v810, 96
  %v2054 = vpop.permute.xlu0 %2053
  %2055 = vrot.lane.b32.xlu0 %v811, 96
  %v2056 = vpop.permute.xlu0 %2055
  %2057 = vrot.lane.b32.xlu0 %v812, 96
  %v2058 = vpop.permute.xlu0 %2057
  %2059 = vrot.lane.b32.xlu0 %v813, 96
  %v2060 = vpop.permute.xlu0 %2059
  %2061 = vrot.lane.b32.xlu0 %v814, 96
  %v2062 = vpop.permute.xlu0 %2061
  %2063 = vrot.lane.b32.xlu0 %v815, 96
  %v2064 = vpop.permute.xlu0 %2063
  %2065 = vrot.lane.b32.xlu0 %v816, 96
  %v2066 = vpop.permute.xlu0 %2065
  %2067 = vrot.lane.b32.xlu0 %v817, 96
  %v2068 = vpop.permute.xlu0 %2067
  %2069 = vrot.lane.b32.xlu0 %v818, 96
  %v2070 = vpop.permute.xlu0 %2069
  %2071 = vrot.lane.b32.xlu0 %v819, 96
  %v2072 = vpop.permute.xlu0 %2071
  %2073 = vrot.lane.b32.xlu0 %v820, 96
  %v2074 = vpop.permute.xlu0 %2073
  %2075 = vrot.lane.b32.xlu0 %v821, 96
  %v2076 = vpop.permute.xlu0 %2075
  %2077 = vrot.lane.b32.xlu0 %v822, 96
  %v2078 = vpop.permute.xlu0 %2077
  %2079 = vrot.lane.b32.xlu0 %v823, 96
  %v2080 = vpop.permute.xlu0 %2079
  %2081 = vrot.lane.b32.xlu0 %v824, 96
  %v2082 = vpop.permute.xlu0 %2081
  %2083 = vrot.lane.b32.xlu0 %v825, 96
  %v2084 = vpop.permute.xlu0 %2083
  %2085 = vrot.lane.b32.xlu0 %v826, 96
  %v2086 = vpop.permute.xlu0 %2085
  %2087 = vrot.lane.b32.xlu0 %v827, 96
  %v2088 = vpop.permute.xlu0 %2087
  %2089 = vrot.lane.b32.xlu0 %v828, 96
  %v2090 = vpop.permute.xlu0 %2089
  %2091 = vrot.lane.b32.xlu0 %v829, 96
  %v2092 = vpop.permute.xlu0 %2091
  %2093 = vrot.lane.b32.xlu0 %v830, 96
  %v2094 = vpop.permute.xlu0 %2093
  %2095 = vrot.lane.b32.xlu0 %v831, 96
  %v2096 = vpop.permute.xlu0 %2095
  %2097 = vrot.lane.b32.xlu0 %v832, 96
  %v2098 = vpop.permute.xlu0 %2097
  %2099 = vrot.lane.b32.xlu0 %v833, 96
  %v2100 = vpop.permute.xlu0 %2099
  %2101 = vrot.lane.b32.xlu0 %v834, 96
  %v2102 = vpop.permute.xlu0 %2101
  %2103 = vrot.lane.b32.xlu0 %v835, 96
  %v2104 = vpop.permute.xlu0 %2103
  %2105 = vrot.lane.b32.xlu0 %v836, 96
  %v2106 = vpop.permute.xlu0 %2105
  %2107 = vrot.lane.b32.xlu0 %v837, 96
  %v2108 = vpop.permute.xlu0 %2107
  %2109 = vrot.lane.b32.xlu0 %v838, 96
  %v2110 = vpop.permute.xlu0 %2109
  %2111 = vrot.lane.b32.xlu0 %v839, 96
  %v2112 = vpop.permute.xlu0 %2111
  %2113 = vrot.lane.b32.xlu0 %v840, 96
  %v2114 = vpop.permute.xlu0 %2113
  %2115 = vrot.lane.b32.xlu0 %v841, 96
  %v2116 = vpop.permute.xlu0 %2115
  %2117 = vrot.lane.b32.xlu0 %v842, 96
  %v2118 = vpop.permute.xlu0 %2117
  %2119 = vrot.lane.b32.xlu0 %v843, 96
  %v2120 = vpop.permute.xlu0 %2119
  %2121 = vrot.lane.b32.xlu0 %v844, 96
  %v2122 = vpop.permute.xlu0 %2121
  %2123 = vrot.lane.b32.xlu0 %v845, 96
  %v2124 = vpop.permute.xlu0 %2123
  %2125 = vrot.lane.b32.xlu0 %v846, 96
  %v2126 = vpop.permute.xlu0 %2125
  %2127 = vrot.lane.b32.xlu0 %v847, 96
  %v2128 = vpop.permute.xlu0 %2127
  %2129 = vrot.lane.b32.xlu0 %v848, 96
  %v2130 = vpop.permute.xlu0 %2129
  %2131 = vrot.lane.b32.xlu0 %v849, 96
  %v2132 = vpop.permute.xlu0 %2131
  %2133 = vrot.lane.b32.xlu0 %v850, 96
  %v2134 = vpop.permute.xlu0 %2133
  %2135 = vrot.lane.b32.xlu0 %v851, 96
  %v2136 = vpop.permute.xlu0 %2135
  %2137 = vrot.lane.b32.xlu0 %v852, 96
  %v2138 = vpop.permute.xlu0 %2137
  %2139 = vrot.lane.b32.xlu0 %v853, 96
  %v2140 = vpop.permute.xlu0 %2139
  %2141 = vrot.lane.b32.xlu0 %v854, 96
  %v2142 = vpop.permute.xlu0 %2141
  %2143 = vrot.lane.b32.xlu0 %v855, 96
  %v2144 = vpop.permute.xlu0 %2143
  %2145 = vrot.lane.b32.xlu0 %v856, 96
  %v2146 = vpop.permute.xlu0 %2145
  %2147 = vrot.lane.b32.xlu0 %v857, 96
  %v2148 = vpop.permute.xlu0 %2147
  %2149 = vrot.lane.b32.xlu0 %v858, 96
  %v2150 = vpop.permute.xlu0 %2149
  %2151 = vrot.lane.b32.xlu0 %v859, 96
  %v2152 = vpop.permute.xlu0 %2151
  %2153 = vrot.lane.b32.xlu0 %v860, 96
  %v2154 = vpop.permute.xlu0 %2153
  %2155 = vrot.lane.b32.xlu0 %v861, 96
  %v2156 = vpop.permute.xlu0 %2155
  %2157 = vrot.lane.b32.xlu0 %v862, 96
  %v2158 = vpop.permute.xlu0 %2157
  %2159 = vrot.lane.b32.xlu0 %v863, 96
  %v2160 = vpop.permute.xlu0 %2159
  %2161 = vrot.lane.b32.xlu0 %v864, 96
  %v2162 = vpop.permute.xlu0 %2161
  %2163 = vrot.lane.b32.xlu0 %v865, 96
  %v2164 = vpop.permute.xlu0 %2163
  %2165 = vrot.lane.b32.xlu0 %v866, 96
  %v2166 = vpop.permute.xlu0 %2165
  %2167 = vrot.lane.b32.xlu0 %v867, 96
  %v2168 = vpop.permute.xlu0 %2167
  %2169 = vrot.lane.b32.xlu0 %v868, 96
  %v2170 = vpop.permute.xlu0 %2169
  %2171 = vrot.lane.b32.xlu0 %v869, 96
  %v2172 = vpop.permute.xlu0 %2171
  %2173 = vrot.lane.b32.xlu0 %v870, 96
  %v2174 = vpop.permute.xlu0 %2173
  %2175 = vrot.lane.b32.xlu0 %v871, 96
  %v2176 = vpop.permute.xlu0 %2175
  %2177 = vrot.lane.b32.xlu0 %v872, 96
  %v2178 = vpop.permute.xlu0 %2177
  %2179 = vrot.lane.b32.xlu0 %v873, 96
  %v2180 = vpop.permute.xlu0 %2179
  %2181 = vrot.lane.b32.xlu0 %v874, 96
  %v2182 = vpop.permute.xlu0 %2181
  %2183 = vrot.lane.b32.xlu0 %v875, 96
  %v2184 = vpop.permute.xlu0 %2183
  %2185 = vrot.lane.b32.xlu0 %v876, 96
  %v2186 = vpop.permute.xlu0 %2185
  %2187 = vrot.lane.b32.xlu0 %v877, 96
  %v2188 = vpop.permute.xlu0 %2187
  %2189 = vrot.lane.b32.xlu0 %v878, 96
  %v2190 = vpop.permute.xlu0 %2189
  %2191 = vrot.lane.b32.xlu0 %v879, 96
  %v2192 = vpop.permute.xlu0 %2191
  %2193 = vrot.lane.b32.xlu0 %v880, 96
  %v2194 = vpop.permute.xlu0 %2193
  %2195 = vrot.lane.b32.xlu0 %v881, 96
  %v2196 = vpop.permute.xlu0 %2195
  %2197 = vrot.lane.b32.xlu0 %v882, 96
  %v2198 = vpop.permute.xlu0 %2197
  %2199 = vrot.lane.b32.xlu0 %v883, 96
  %v2200 = vpop.permute.xlu0 %2199
  %2201 = vrot.lane.b32.xlu0 %v884, 96
  %v2202 = vpop.permute.xlu0 %2201
  %2203 = vrot.lane.b32.xlu0 %v885, 96
  %v2204 = vpop.permute.xlu0 %2203
  %2205 = vrot.lane.b32.xlu0 %v886, 96
  %v2206 = vpop.permute.xlu0 %2205
  %2207 = vrot.lane.b32.xlu0 %v887, 96
  %v2208 = vpop.permute.xlu0 %2207
  %2209 = vrot.lane.b32.xlu0 %v888, 96
  %v2210 = vpop.permute.xlu0 %2209
  %2211 = vrot.lane.b32.xlu0 %v889, 96
  %v2212 = vpop.permute.xlu0 %2211
  %v2654 = vmax.f32 %v449, %v1332
  %v2655 = vmax.f32 %v450, %v1334
  %v2656 = vmax.f32 %v451, %v1336
  %v2657 = vmax.f32 %v452, %v1338
  %v2658 = vmax.f32 %v453, %v1340
  %v2659 = vmax.f32 %v454, %v1342
  %v2660 = vmax.f32 %v455, %v1344
  %v2661 = vmax.f32 %v456, %v1346
  %v2662 = vmax.f32 %v457, %v1348
  %v2663 = vmax.f32 %v458, %v1350
  %v2664 = vmax.f32 %v459, %v1352
  %v2665 = vmax.f32 %v460, %v1354
  %v2666 = vmax.f32 %v461, %v1356
  %v2667 = vmax.f32 %v462, %v1358
  %v2668 = vmax.f32 %v463, %v1360
  %v2669 = vmax.f32 %v464, %v1362
  %v2670 = vmax.f32 %v465, %v1364
  %v2671 = vmax.f32 %v466, %v1366
  %v2672 = vmax.f32 %v467, %v1368
  %v2673 = vmax.f32 %v468, %v1370
  %v2674 = vmax.f32 %v469, %v1372
  %v2675 = vmax.f32 %v470, %v1374
  %v2676 = vmax.f32 %v471, %v1376
  %v2677 = vmax.f32 %v472, %v1378
  %v2678 = vmax.f32 %v473, %v1380
  %v2679 = vmax.f32 %v474, %v1382
  %v2680 = vmax.f32 %v475, %v1384
  %v2681 = vmax.f32 %v476, %v1386
  %v2682 = vmax.f32 %v477, %v1388
  %v2683 = vmax.f32 %v478, %v1390
  %v2684 = vmax.f32 %v479, %v1392
  %v2685 = vmax.f32 %v480, %v1394
  %v2686 = vmax.f32 %v481, %v1396
  %v2687 = vmax.f32 %v482, %v1398
  %v2688 = vmax.f32 %v483, %v1400
  %v2689 = vmax.f32 %v484, %v1402
  %v2690 = vmax.f32 %v485, %v1404
  %v2691 = vmax.f32 %v486, %v1406
  %v2692 = vmax.f32 %v487, %v1408
  %v2693 = vmax.f32 %v488, %v1410
  %v2694 = vmax.f32 %v489, %v1412
  %v2695 = vmax.f32 %v490, %v1414
  %v2696 = vmax.f32 %v491, %v1416
  %v2697 = vmax.f32 %v492, %v1418
  %v2698 = vmax.f32 %v493, %v1420
  %v2699 = vmax.f32 %v494, %v1422
  %v2700 = vmax.f32 %v495, %v1424
  %v2701 = vmax.f32 %v496, %v1426
  %v2702 = vmax.f32 %v497, %v1428
  %v2703 = vmax.f32 %v498, %v1430
  %v2704 = vmax.f32 %v499, %v1432
  %v2705 = vmax.f32 %v500, %v1434
  %v2706 = vmax.f32 %v501, %v1436
  %v2707 = vmax.f32 %v502, %v1438
  %v2708 = vmax.f32 %v503, %v1440
  %v2709 = vmax.f32 %v504, %v1442
  %v2710 = vmax.f32 %v505, %v1444
  %v2711 = vmax.f32 %v506, %v1446
  %v2712 = vmax.f32 %v507, %v1448
  %v2713 = vmax.f32 %v508, %v1450
  %v2714 = vmax.f32 %v509, %v1452
  %v2715 = vmax.f32 %v510, %v1454
  %v2716 = vmax.f32 %v511, %v1456
  %v2717 = vmax.f32 %v512, %v1458
  %v2718 = vmax.f32 %v513, %v1460
  %v2719 = vmax.f32 %v514, %v1462
  %v2720 = vmax.f32 %v515, %v1464
  %v2721 = vmax.f32 %v516, %v1466
  %v2722 = vmax.f32 %v517, %v1468
  %v2723 = vmax.f32 %v518, %v1470
  %v2724 = vmax.f32 %v519, %v1472
  %v2725 = vmax.f32 %v520, %v1474
  %v2726 = vmax.f32 %v521, %v1476
  %v2727 = vmax.f32 %v522, %v1478
  %v2728 = vmax.f32 %v523, %v1480
  %v2729 = vmax.f32 %v524, %v1482
  %v2730 = vmax.f32 %v525, %v1484
  %v2731 = vmax.f32 %v526, %v1486
  %v2732 = vmax.f32 %v527, %v1488
  %v2733 = vmax.f32 %v528, %v1490
  %v2734 = vmax.f32 %v529, %v1492
  %v2735 = vmax.f32 %v530, %v1494
  %v2736 = vmax.f32 %v531, %v1496
  %v2737 = vmax.f32 %v532, %v1498
  %v2738 = vmax.f32 %v533, %v1500
  %v2739 = vmax.f32 %v534, %v1502
  %v2740 = vmax.f32 %v535, %v1504
  %v2741 = vmax.f32 %v536, %v1506
  %v2742 = vmax.f32 %v537, %v1508
  %v2743 = vmax.f32 %v538, %v1510
  %v2744 = vmax.f32 %v539, %v1512
  %v2745 = vmax.f32 %v540, %v1514
  %v2746 = vmax.f32 %v541, %v1516
  %v2747 = vmax.f32 %v542, %v1518
  %v2748 = vmax.f32 %v543, %v1520
  %v2749 = vmax.f32 %v544, %v1522
  %v2750 = vmax.f32 %v545, %v1524
  %v2751 = vmax.f32 %v546, %v1526
  %v2752 = vmax.f32 %v547, %v1528
  %v2753 = vmax.f32 %v548, %v1530
  %v2754 = vmax.f32 %v549, %v1532
  %v2755 = vmax.f32 %v550, %v1534
  %v2756 = vmax.f32 %v551, %v1536
  %v2757 = vmax.f32 %v552, %v1538
  %v2758 = vmax.f32 %v553, %v1540
  %v2759 = vmax.f32 %v554, %v1542
  %v2760 = vmax.f32 %v555, %v1544
  %v2761 = vmax.f32 %v556, %v1546
  %v2762 = vmax.f32 %v557, %v1548
  %v2763 = vmax.f32 %v558, %v1550
  %v2764 = vmax.f32 %v559, %v1552
  %v2765 = vmax.f32 %v560, %v1554
  %v2766 = vmax.f32 %v561, %v1556
  %v2767 = vmax.f32 %v562, %v1558
  %v2768 = vmax.f32 %v563, %v1560
  %v2769 = vmax.f32 %v564, %v1562
  %v2770 = vmax.f32 %v565, %v1564
  %v2771 = vmax.f32 %v566, %v1566
  %v2772 = vmax.f32 %v567, %v1568
  %v2773 = vmax.f32 %v568, %v1570
  %v2774 = vmax.f32 %v569, %v1572
  %v2775 = vmax.f32 %v570, %v1574
  %v2776 = vmax.f32 %v571, %v1576
  %v2777 = vmax.f32 %v572, %v1578
  %v2778 = vmax.f32 %v573, %v1580
  %v2779 = vmax.f32 %v574, %v1582
  %v2780 = vmax.f32 %v575, %v1584
  %v2781 = vmax.f32 %v576, %v1586
  %v2782 = vmax.f32 %v577, %v1588
  %v2783 = vmax.f32 %v578, %v1590
  %v2784 = vmax.f32 %v579, %v1592
  %v2785 = vmax.f32 %v580, %v1594
  %v2786 = vmax.f32 %v581, %v1596
  %v2787 = vmax.f32 %v582, %v1598
  %v2788 = vmax.f32 %v583, %v1600
  %v2789 = vmax.f32 %v584, %v1602
  %v2790 = vmax.f32 %v585, %v1604
  %v2791 = vmax.f32 %v586, %v1606
  %v2792 = vmax.f32 %v587, %v1608
  %v2793 = vmax.f32 %v588, %v1610
  %v2794 = vmax.f32 %v589, %v1612
  %v2795 = vmax.f32 %v590, %v1614
  %v2796 = vmax.f32 %v591, %v1616
  %v2797 = vmax.f32 %v592, %v1618
  %v2798 = vmax.f32 %v593, %v1620
  %v2799 = vmax.f32 %v594, %v1622
  %v2800 = vmax.f32 %v595, %v1624
  %v2801 = vmax.f32 %v596, %v1626
  %v2802 = vmax.f32 %v597, %v1628
  %v2803 = vmax.f32 %v598, %v1630
  %v2804 = vmax.f32 %v599, %v1632
  %v2805 = vmax.f32 %v600, %v1634
  %v2806 = vmax.f32 %v601, %v1636
  %v2807 = vmax.f32 %v602, %v1638
  %v2808 = vmax.f32 %v603, %v1640
  %v2809 = vmax.f32 %v604, %v1642
  %v2810 = vmax.f32 %v605, %v1644
  %v2811 = vmax.f32 %v606, %v1646
  %v2812 = vmax.f32 %v607, %v1648
  %v2813 = vmax.f32 %v608, %v1650
  %v2814 = vmax.f32 %v609, %v1652
  %v2815 = vmax.f32 %v610, %v1654
  %v2816 = vmax.f32 %v611, %v1656
  %v2817 = vmax.f32 %v612, %v1658
  %v2818 = vmax.f32 %v613, %v1660
  %v2819 = vmax.f32 %v614, %v1662
  %v2820 = vmax.f32 %v615, %v1664
  %v2821 = vmax.f32 %v616, %v1666
  %v2822 = vmax.f32 %v617, %v1668
  %v2823 = vmax.f32 %v618, %v1670
  %v2824 = vmax.f32 %v619, %v1672
  %v2825 = vmax.f32 %v620, %v1674
  %v2826 = vmax.f32 %v621, %v1676
  %v2827 = vmax.f32 %v622, %v1678
  %v2828 = vmax.f32 %v623, %v1680
  %v2829 = vmax.f32 %v624, %v1682
  %v2830 = vmax.f32 %v625, %v1684
  %v2831 = vmax.f32 %v626, %v1686
  %v2832 = vmax.f32 %v627, %v1688
  %v2833 = vmax.f32 %v628, %v1690
  %v2834 = vmax.f32 %v629, %v1692
  %v2835 = vmax.f32 %v630, %v1694
  %v2836 = vmax.f32 %v631, %v1696
  %v2837 = vmax.f32 %v632, %v1698
  %v2838 = vmax.f32 %v633, %v1700
  %v2839 = vmax.f32 %v634, %v1702
  %v2840 = vmax.f32 %v635, %v1704
  %v2841 = vmax.f32 %v636, %v1706
  %v2842 = vmax.f32 %v637, %v1708
  %v2843 = vmax.f32 %v638, %v1710
  %v2844 = vmax.f32 %v639, %v1712
  %v2845 = vmax.f32 %v640, %v1714
  %v2846 = vmax.f32 %v641, %v1716
  %v2847 = vmax.f32 %v642, %v1718
  %v2848 = vmax.f32 %v643, %v1720
  %v2849 = vmax.f32 %v644, %v1722
  %v2850 = vmax.f32 %v645, %v1724
  %v2851 = vmax.f32 %v646, %v1726
  %v2852 = vmax.f32 %v647, %v1728
  %v2853 = vmax.f32 %v648, %v1730
  %v2854 = vmax.f32 %v649, %v1732
  %v2855 = vmax.f32 %v650, %v1734
  %v2856 = vmax.f32 %v651, %v1736
  %v2857 = vmax.f32 %v652, %v1738
  %v2858 = vmax.f32 %v653, %v1740
  %v2859 = vmax.f32 %v654, %v1742
  %v2860 = vmax.f32 %v655, %v1744
  %v2861 = vmax.f32 %v656, %v1746
  %v2862 = vmax.f32 %v657, %v1748
  %v2863 = vmax.f32 %v658, %v1750
  %v2864 = vmax.f32 %v659, %v1752
  %v2865 = vmax.f32 %v660, %v1754
  %v2866 = vmax.f32 %v661, %v1756
  %v2867 = vmax.f32 %v662, %v1758
  %v2868 = vmax.f32 %v663, %v1760
  %v2869 = vmax.f32 %v664, %v1762
  %v2870 = vmax.f32 %v665, %v1764
  %v2871 = vmax.f32 %v666, %v1766
  %v2872 = vmax.f32 %v667, %v1768
  %v2873 = vmax.f32 %v668, %v1770
  %v2874 = vmax.f32 %v669, %v1772
  %v2875 = vmax.f32 %v670, %v1774
  %v2876 = vmax.f32 %v671, %v1776
  %v2877 = vmax.f32 %v672, %v1778
  %v2878 = vmax.f32 %v673, %v1780
  %v2879 = vmax.f32 %v674, %v1782
  %v2880 = vmax.f32 %v675, %v1784
  %v2881 = vmax.f32 %v676, %v1786
  %v2882 = vmax.f32 %v677, %v1788
  %v2883 = vmax.f32 %v678, %v1790
  %v2884 = vmax.f32 %v679, %v1792
  %v2885 = vmax.f32 %v680, %v1794
  %v2886 = vmax.f32 %v681, %v1796
  %v2887 = vmax.f32 %v682, %v1798
  %v2888 = vmax.f32 %v683, %v1800
  %v2889 = vmax.f32 %v684, %v1802
  %v2890 = vmax.f32 %v685, %v1804
  %v2891 = vmax.f32 %v686, %v1806
  %v2892 = vmax.f32 %v687, %v1808
  %v2893 = vmax.f32 %v688, %v1810
  %v2894 = vmax.f32 %v689, %v1812
  %v2895 = vmax.f32 %v690, %v1814
  %v2896 = vmax.f32 %v691, %v1816
  %v2897 = vmax.f32 %v692, %v1818
  %v2898 = vmax.f32 %v693, %v1820
  %v2899 = vmax.f32 %v694, %v1822
  %v2900 = vmax.f32 %v695, %v1824
  %v2901 = vmax.f32 %v696, %v1826
  %v2902 = vmax.f32 %v697, %v1828
  %v2903 = vmax.f32 %v698, %v1830
  %v2904 = vmax.f32 %v699, %v1832
  %v2905 = vmax.f32 %v700, %v1834
  %v2906 = vmax.f32 %v701, %v1836
  %v2907 = vmax.f32 %v702, %v1838
  %v2908 = vmax.f32 %v703, %v1840
  %v2909 = vmax.f32 %v704, %v1842
  %v2910 = vmax.f32 %v705, %v1844
  %v2911 = vmax.f32 %v706, %v1846
  %v2912 = vmax.f32 %v707, %v1848
  %v2913 = vmax.f32 %v708, %v1850
  %v2914 = vmax.f32 %v709, %v1852
  %v2915 = vmax.f32 %v710, %v1854
  %v2916 = vmax.f32 %v711, %v1856
  %v2917 = vmax.f32 %v712, %v1858
  %v2918 = vmax.f32 %v713, %v1860
  %v2919 = vmax.f32 %v714, %v1862
  %v2920 = vmax.f32 %v715, %v1864
  %v2921 = vmax.f32 %v716, %v1866
  %v2922 = vmax.f32 %v717, %v1868
  %v2923 = vmax.f32 %v718, %v1870
  %v2924 = vmax.f32 %v719, %v1872
  %v2925 = vmax.f32 %v720, %v1874
  %v2926 = vmax.f32 %v721, %v1876
  %v2927 = vmax.f32 %v722, %v1878
  %v2928 = vmax.f32 %v723, %v1880
  %v2929 = vmax.f32 %v724, %v1882
  %v2930 = vmax.f32 %v725, %v1884
  %v2931 = vmax.f32 %v726, %v1886
  %v2932 = vmax.f32 %v727, %v1888
  %v2933 = vmax.f32 %v728, %v1890
  %v2934 = vmax.f32 %v729, %v1892
  %v2935 = vmax.f32 %v730, %v1894
  %v2936 = vmax.f32 %v731, %v1896
  %v2937 = vmax.f32 %v732, %v1898
  %v2938 = vmax.f32 %v733, %v1900
  %v2939 = vmax.f32 %v734, %v1902
  %v2940 = vmax.f32 %v735, %v1904
  %v2941 = vmax.f32 %v736, %v1906
  %v2942 = vmax.f32 %v737, %v1908
  %v2943 = vmax.f32 %v738, %v1910
  %v2944 = vmax.f32 %v739, %v1912
  %v2945 = vmax.f32 %v740, %v1914
  %v2946 = vmax.f32 %v741, %v1916
  %v2947 = vmax.f32 %v742, %v1918
  %v2948 = vmax.f32 %v743, %v1920
  %v2949 = vmax.f32 %v744, %v1922
  %v2950 = vmax.f32 %v745, %v1924
  %v2951 = vmax.f32 %v746, %v1926
  %v2952 = vmax.f32 %v747, %v1928
  %v2953 = vmax.f32 %v748, %v1930
  %v2954 = vmax.f32 %v749, %v1932
  %v2955 = vmax.f32 %v750, %v1934
  %v2956 = vmax.f32 %v751, %v1936
  %v2957 = vmax.f32 %v752, %v1938
  %v2958 = vmax.f32 %v753, %v1940
  %v2959 = vmax.f32 %v754, %v1942
  %v2960 = vmax.f32 %v755, %v1944
  %v2961 = vmax.f32 %v756, %v1946
  %v2962 = vmax.f32 %v757, %v1948
  %v2963 = vmax.f32 %v758, %v1950
  %v2964 = vmax.f32 %v759, %v1952
  %v2965 = vmax.f32 %v760, %v1954
  %v2966 = vmax.f32 %v761, %v1956
  %v2967 = vmax.f32 %v762, %v1958
  %v2968 = vmax.f32 %v763, %v1960
  %v2969 = vmax.f32 %v764, %v1962
  %v2970 = vmax.f32 %v765, %v1964
  %v2971 = vmax.f32 %v766, %v1966
  %v2972 = vmax.f32 %v767, %v1968
  %v2973 = vmax.f32 %v768, %v1970
  %v2974 = vmax.f32 %v769, %v1972
  %v2975 = vmax.f32 %v770, %v1974
  %v2976 = vmax.f32 %v771, %v1976
  %v2977 = vmax.f32 %v772, %v1978
  %v2978 = vmax.f32 %v773, %v1980
  %v2979 = vmax.f32 %v774, %v1982
  %v2980 = vmax.f32 %v775, %v1984
  %v2981 = vmax.f32 %v776, %v1986
  %v2982 = vmax.f32 %v777, %v1988
  %v2983 = vmax.f32 %v778, %v1990
  %v2984 = vmax.f32 %v779, %v1992
  %v2985 = vmax.f32 %v780, %v1994
  %v2986 = vmax.f32 %v781, %v1996
  %v2987 = vmax.f32 %v782, %v1998
  %v2988 = vmax.f32 %v783, %v2000
  %v2989 = vmax.f32 %v784, %v2002
  %v2990 = vmax.f32 %v785, %v2004
  %v2991 = vmax.f32 %v786, %v2006
  %v2992 = vmax.f32 %v787, %v2008
  %v2993 = vmax.f32 %v788, %v2010
  %v2994 = vmax.f32 %v789, %v2012
  %v2995 = vmax.f32 %v790, %v2014
  %v2996 = vmax.f32 %v791, %v2016
  %v2997 = vmax.f32 %v792, %v2018
  %v2998 = vmax.f32 %v793, %v2020
  %v2999 = vmax.f32 %v794, %v2022
  %v3000 = vmax.f32 %v795, %v2024
  %v3001 = vmax.f32 %v796, %v2026
  %v3002 = vmax.f32 %v797, %v2028
  %v3003 = vmax.f32 %v798, %v2030
  %v3004 = vmax.f32 %v799, %v2032
  %v3005 = vmax.f32 %v800, %v2034
  %v3006 = vmax.f32 %v801, %v2036
  %v3007 = vmax.f32 %v802, %v2038
  %v3008 = vmax.f32 %v803, %v2040
  %v3009 = vmax.f32 %v804, %v2042
  %v3010 = vmax.f32 %v805, %v2044
  %v3011 = vmax.f32 %v806, %v2046
  %v3012 = vmax.f32 %v807, %v2048
  %v3013 = vmax.f32 %v808, %v2050
  %v3014 = vmax.f32 %v809, %v2052
  %v3015 = vmax.f32 %v810, %v2054
  %v3016 = vmax.f32 %v811, %v2056
  %v3017 = vmax.f32 %v812, %v2058
  %v3018 = vmax.f32 %v813, %v2060
  %v3019 = vmax.f32 %v814, %v2062
  %v3020 = vmax.f32 %v815, %v2064
  %v3021 = vmax.f32 %v816, %v2066
  %v3022 = vmax.f32 %v817, %v2068
  %v3023 = vmax.f32 %v818, %v2070
  %v3024 = vmax.f32 %v819, %v2072
  %v3025 = vmax.f32 %v820, %v2074
  %v3026 = vmax.f32 %v821, %v2076
  %v3027 = vmax.f32 %v822, %v2078
  %v3028 = vmax.f32 %v823, %v2080
  %v3029 = vmax.f32 %v824, %v2082
  %v3030 = vmax.f32 %v825, %v2084
  %v3031 = vmax.f32 %v826, %v2086
  %v3032 = vmax.f32 %v827, %v2088
  %v3033 = vmax.f32 %v828, %v2090
  %v3034 = vmax.f32 %v829, %v2092
  %v3035 = vmax.f32 %v830, %v2094
  %v3036 = vmax.f32 %v831, %v2096
  %v3037 = vmax.f32 %v832, %v2098
  %v3038 = vmax.f32 %v833, %v2100
  %v3039 = vmax.f32 %v834, %v2102
  %v3040 = vmax.f32 %v835, %v2104
  %v3041 = vmax.f32 %v836, %v2106
  %v3042 = vmax.f32 %v837, %v2108
  %v3043 = vmax.f32 %v838, %v2110
  %v3044 = vmax.f32 %v839, %v2112
  %v3045 = vmax.f32 %v840, %v2114
  %v3046 = vmax.f32 %v841, %v2116
  %v3047 = vmax.f32 %v842, %v2118
  %v3048 = vmax.f32 %v843, %v2120
  %v3049 = vmax.f32 %v844, %v2122
  %v3050 = vmax.f32 %v845, %v2124
  %v3051 = vmax.f32 %v846, %v2126
  %v3052 = vmax.f32 %v847, %v2128
  %v3053 = vmax.f32 %v848, %v2130
  %v3054 = vmax.f32 %v849, %v2132
  %v3055 = vmax.f32 %v850, %v2134
  %v3056 = vmax.f32 %v851, %v2136
  %v3057 = vmax.f32 %v852, %v2138
  %v3058 = vmax.f32 %v853, %v2140
  %v3059 = vmax.f32 %v854, %v2142
  %v3060 = vmax.f32 %v855, %v2144
  %v3061 = vmax.f32 %v856, %v2146
  %v3062 = vmax.f32 %v857, %v2148
  %v3063 = vmax.f32 %v858, %v2150
  %v3064 = vmax.f32 %v859, %v2152
  %v3065 = vmax.f32 %v860, %v2154
  %v3066 = vmax.f32 %v861, %v2156
  %v3067 = vmax.f32 %v862, %v2158
  %v3068 = vmax.f32 %v863, %v2160
  %v3069 = vmax.f32 %v864, %v2162
  %v3070 = vmax.f32 %v865, %v2164
  %v3071 = vmax.f32 %v866, %v2166
  %v3072 = vmax.f32 %v867, %v2168
  %v3073 = vmax.f32 %v868, %v2170
  %v3074 = vmax.f32 %v869, %v2172
  %v3075 = vmax.f32 %v870, %v2174
  %v3076 = vmax.f32 %v871, %v2176
  %v3077 = vmax.f32 %v872, %v2178
  %v3078 = vmax.f32 %v873, %v2180
  %v3079 = vmax.f32 %v874, %v2182
  %v3080 = vmax.f32 %v875, %v2184
  %v3081 = vmax.f32 %v876, %v2186
  %v3082 = vmax.f32 %v877, %v2188
  %v3083 = vmax.f32 %v878, %v2190
  %v3084 = vmax.f32 %v879, %v2192
  %v3085 = vmax.f32 %v880, %v2194
  %v3086 = vmax.f32 %v881, %v2196
  %v3087 = vmax.f32 %v882, %v2198
  %v3088 = vmax.f32 %v883, %v2200
  %v3089 = vmax.f32 %v884, %v2202
  %v3090 = vmax.f32 %v885, %v2204
  %v3091 = vmax.f32 %v886, %v2206
  %v3092 = vmax.f32 %v887, %v2208
  %v3093 = vmax.f32 %v888, %v2210
  %v3094 = vmax.f32 %v889, %v2212
  %v3095 = vpack.c.bf16 %v2654, %v2654
  %v3096 = vpack.c.bf16 %v2655, %v2655
  %v3097 = vpack.c.bf16 %v2656, %v2656
  %v3098 = vpack.c.bf16 %v2657, %v2657
  %v3099 = vpack.c.bf16 %v2658, %v2658
  %v3100 = vpack.c.bf16 %v2659, %v2659
  %v3101 = vpack.c.bf16 %v2660, %v2660
  %v3102 = vpack.c.bf16 %v2661, %v2661
  %v3103 = vpack.c.bf16 %v2662, %v2662
  %v3104 = vpack.c.bf16 %v2663, %v2663
  %v3105 = vpack.c.bf16 %v2664, %v2664
  %v3106 = vpack.c.bf16 %v2665, %v2665
  %v3107 = vpack.c.bf16 %v2666, %v2666
  %v3108 = vpack.c.bf16 %v2667, %v2667
  %v3109 = vpack.c.bf16 %v2668, %v2668
  %v3110 = vpack.c.bf16 %v2669, %v2669
  %v3111 = vpack.c.bf16 %v2670, %v2670
  %v3112 = vpack.c.bf16 %v2671, %v2671
  %v3113 = vpack.c.bf16 %v2672, %v2672
  %v3114 = vpack.c.bf16 %v2673, %v2673
  %v3115 = vpack.c.bf16 %v2674, %v2674
  %v3116 = vpack.c.bf16 %v2675, %v2675
  %v3117 = vpack.c.bf16 %v2676, %v2676
  %v3118 = vpack.c.bf16 %v2677, %v2677
  %v3119 = vpack.c.bf16 %v2678, %v2678
  %v3120 = vpack.c.bf16 %v2679, %v2679
  %v3121 = vpack.c.bf16 %v2680, %v2680
  %v3122 = vpack.c.bf16 %v2681, %v2681
  %v3123 = vpack.c.bf16 %v2682, %v2682
  %v3124 = vpack.c.bf16 %v2683, %v2683
  %v3125 = vpack.c.bf16 %v2684, %v2684
  %v3126 = vpack.c.bf16 %v2685, %v2685
  %v3127 = vpack.c.bf16 %v2686, %v2686
  %v3128 = vpack.c.bf16 %v2687, %v2687
  %v3129 = vpack.c.bf16 %v2688, %v2688
  %v3130 = vpack.c.bf16 %v2689, %v2689
  %v3131 = vpack.c.bf16 %v2690, %v2690
  %v3132 = vpack.c.bf16 %v2691, %v2691
  %v3133 = vpack.c.bf16 %v2692, %v2692
  %v3134 = vpack.c.bf16 %v2693, %v2693
  %v3135 = vpack.c.bf16 %v2694, %v2694
  %v3136 = vpack.c.bf16 %v2695, %v2695
  %v3137 = vpack.c.bf16 %v2696, %v2696
  %v3138 = vpack.c.bf16 %v2697, %v2697
  %v3139 = vpack.c.bf16 %v2698, %v2698
  %v3140 = vpack.c.bf16 %v2699, %v2699
  %v3141 = vpack.c.bf16 %v2700, %v2700
  %v3142 = vpack.c.bf16 %v2701, %v2701
  %v3143 = vpack.c.bf16 %v2702, %v2702
  %v3144 = vpack.c.bf16 %v2703, %v2703
  %v3145 = vpack.c.bf16 %v2704, %v2704
  %v3146 = vpack.c.bf16 %v2705, %v2705
  %v3147 = vpack.c.bf16 %v2706, %v2706
  %v3148 = vpack.c.bf16 %v2707, %v2707
  %v3149 = vpack.c.bf16 %v2708, %v2708
  %v3150 = vpack.c.bf16 %v2709, %v2709
  %v3151 = vpack.c.bf16 %v2710, %v2710
  %v3152 = vpack.c.bf16 %v2711, %v2711
  %v3153 = vpack.c.bf16 %v2712, %v2712
  %v3154 = vpack.c.bf16 %v2713, %v2713
  %v3155 = vpack.c.bf16 %v2714, %v2714
  %v3156 = vpack.c.bf16 %v2715, %v2715
  %v3157 = vpack.c.bf16 %v2716, %v2716
  %v3158 = vpack.c.bf16 %v2717, %v2717
  %v3159 = vpack.c.bf16 %v2718, %v2718
  %v3160 = vpack.c.bf16 %v2719, %v2719
  %v3161 = vpack.c.bf16 %v2720, %v2720
  %v3162 = vpack.c.bf16 %v2721, %v2721
  %v3163 = vpack.c.bf16 %v2722, %v2722
  %v3164 = vpack.c.bf16 %v2723, %v2723
  %v3165 = vpack.c.bf16 %v2724, %v2724
  %v3166 = vpack.c.bf16 %v2725, %v2725
  %v3167 = vpack.c.bf16 %v2726, %v2726
  %v3168 = vpack.c.bf16 %v2727, %v2727
  %v3169 = vpack.c.bf16 %v2728, %v2728
  %v3170 = vpack.c.bf16 %v2729, %v2729
  %v3171 = vpack.c.bf16 %v2730, %v2730
  %v3172 = vpack.c.bf16 %v2731, %v2731
  %v3173 = vpack.c.bf16 %v2732, %v2732
  %v3174 = vpack.c.bf16 %v2733, %v2733
  %v3175 = vpack.c.bf16 %v2734, %v2734
  %v3176 = vpack.c.bf16 %v2735, %v2735
  %v3177 = vpack.c.bf16 %v2736, %v2736
  %v3178 = vpack.c.bf16 %v2737, %v2737
  %v3179 = vpack.c.bf16 %v2738, %v2738
  %v3180 = vpack.c.bf16 %v2739, %v2739
  %v3181 = vpack.c.bf16 %v2740, %v2740
  %v3182 = vpack.c.bf16 %v2741, %v2741
  %v3183 = vpack.c.bf16 %v2742, %v2742
  %v3184 = vpack.c.bf16 %v2743, %v2743
  %v3185 = vpack.c.bf16 %v2744, %v2744
  %v3186 = vpack.c.bf16 %v2745, %v2745
  %v3187 = vpack.c.bf16 %v2746, %v2746
  %v3188 = vpack.c.bf16 %v2747, %v2747
  %v3189 = vpack.c.bf16 %v2748, %v2748
  %v3190 = vpack.c.bf16 %v2749, %v2749
  %v3191 = vpack.c.bf16 %v2750, %v2750
  %v3192 = vpack.c.bf16 %v2751, %v2751
  %v3193 = vpack.c.bf16 %v2752, %v2752
  %v3194 = vpack.c.bf16 %v2753, %v2753
  %v3195 = vpack.c.bf16 %v2754, %v2754
  %v3196 = vpack.c.bf16 %v2755, %v2755
  %v3197 = vpack.c.bf16 %v2756, %v2756
  %v3198 = vpack.c.bf16 %v2757, %v2757
  %v3199 = vpack.c.bf16 %v2758, %v2758
  %v3200 = vpack.c.bf16 %v2759, %v2759
  %v3201 = vpack.c.bf16 %v2760, %v2760
  %v3202 = vpack.c.bf16 %v2761, %v2761
  %v3203 = vpack.c.bf16 %v2762, %v2762
  %v3204 = vpack.c.bf16 %v2763, %v2763
  %v3205 = vpack.c.bf16 %v2764, %v2764
  %v3206 = vpack.c.bf16 %v2765, %v2765
  %v3207 = vpack.c.bf16 %v2766, %v2766
  %v3208 = vpack.c.bf16 %v2767, %v2767
  %v3209 = vpack.c.bf16 %v2768, %v2768
  %v3210 = vpack.c.bf16 %v2769, %v2769
  %v3211 = vpack.c.bf16 %v2770, %v2770
  %v3212 = vpack.c.bf16 %v2771, %v2771
  %v3213 = vpack.c.bf16 %v2772, %v2772
  %v3214 = vpack.c.bf16 %v2773, %v2773
  %v3215 = vpack.c.bf16 %v2774, %v2774
  %v3216 = vpack.c.bf16 %v2775, %v2775
  %v3217 = vpack.c.bf16 %v2776, %v2776
  %v3218 = vpack.c.bf16 %v2777, %v2777
  %v3219 = vpack.c.bf16 %v2778, %v2778
  %v3220 = vpack.c.bf16 %v2779, %v2779
  %v3221 = vpack.c.bf16 %v2780, %v2780
  %v3222 = vpack.c.bf16 %v2781, %v2781
  %v3223 = vpack.c.bf16 %v2782, %v2782
  %v3224 = vpack.c.bf16 %v2783, %v2783
  %v3225 = vpack.c.bf16 %v2784, %v2784
  %v3226 = vpack.c.bf16 %v2785, %v2785
  %v3227 = vpack.c.bf16 %v2786, %v2786
  %v3228 = vpack.c.bf16 %v2787, %v2787
  %v3229 = vpack.c.bf16 %v2788, %v2788
  %v3230 = vpack.c.bf16 %v2789, %v2789
  %v3231 = vpack.c.bf16 %v2790, %v2790
  %v3232 = vpack.c.bf16 %v2791, %v2791
  %v3233 = vpack.c.bf16 %v2792, %v2792
  %v3234 = vpack.c.bf16 %v2793, %v2793
  %v3235 = vpack.c.bf16 %v2794, %v2794
  %v3236 = vpack.c.bf16 %v2795, %v2795
  %v3237 = vpack.c.bf16 %v2796, %v2796
  %v3238 = vpack.c.bf16 %v2797, %v2797
  %v3239 = vpack.c.bf16 %v2798, %v2798
  %v3240 = vpack.c.bf16 %v2799, %v2799
  %v3241 = vpack.c.bf16 %v2800, %v2800
  %v3242 = vpack.c.bf16 %v2801, %v2801
  %v3243 = vpack.c.bf16 %v2802, %v2802
  %v3244 = vpack.c.bf16 %v2803, %v2803
  %v3245 = vpack.c.bf16 %v2804, %v2804
  %v3246 = vpack.c.bf16 %v2805, %v2805
  %v3247 = vpack.c.bf16 %v2806, %v2806
  %v3248 = vpack.c.bf16 %v2807, %v2807
  %v3249 = vpack.c.bf16 %v2808, %v2808
  %v3250 = vpack.c.bf16 %v2809, %v2809
  %v3251 = vpack.c.bf16 %v2810, %v2810
  %v3252 = vpack.c.bf16 %v2811, %v2811
  %v3253 = vpack.c.bf16 %v2812, %v2812
  %v3254 = vpack.c.bf16 %v2813, %v2813
  %v3255 = vpack.c.bf16 %v2814, %v2814
  %v3256 = vpack.c.bf16 %v2815, %v2815
  %v3257 = vpack.c.bf16 %v2816, %v2816
  %v3258 = vpack.c.bf16 %v2817, %v2817
  %v3259 = vpack.c.bf16 %v2818, %v2818
  %v3260 = vpack.c.bf16 %v2819, %v2819
  %v3261 = vpack.c.bf16 %v2820, %v2820
  %v3262 = vpack.c.bf16 %v2821, %v2821
  %v3263 = vpack.c.bf16 %v2822, %v2822
  %v3264 = vpack.c.bf16 %v2823, %v2823
  %v3265 = vpack.c.bf16 %v2824, %v2824
  %v3266 = vpack.c.bf16 %v2825, %v2825
  %v3267 = vpack.c.bf16 %v2826, %v2826
  %v3268 = vpack.c.bf16 %v2827, %v2827
  %v3269 = vpack.c.bf16 %v2828, %v2828
  %v3270 = vpack.c.bf16 %v2829, %v2829
  %v3271 = vpack.c.bf16 %v2830, %v2830
  %v3272 = vpack.c.bf16 %v2831, %v2831
  %v3273 = vpack.c.bf16 %v2832, %v2832
  %v3274 = vpack.c.bf16 %v2833, %v2833
  %v3275 = vpack.c.bf16 %v2834, %v2834
  %v3276 = vpack.c.bf16 %v2835, %v2835
  %v3277 = vpack.c.bf16 %v2836, %v2836
  %v3278 = vpack.c.bf16 %v2837, %v2837
  %v3279 = vpack.c.bf16 %v2838, %v2838
  %v3280 = vpack.c.bf16 %v2839, %v2839
  %v3281 = vpack.c.bf16 %v2840, %v2840
  %v3282 = vpack.c.bf16 %v2841, %v2841
  %v3283 = vpack.c.bf16 %v2842, %v2842
  %v3284 = vpack.c.bf16 %v2843, %v2843
  %v3285 = vpack.c.bf16 %v2844, %v2844
  %v3286 = vpack.c.bf16 %v2845, %v2845
  %v3287 = vpack.c.bf16 %v2846, %v2846
  %v3288 = vpack.c.bf16 %v2847, %v2847
  %v3289 = vpack.c.bf16 %v2848, %v2848
  %v3290 = vpack.c.bf16 %v2849, %v2849
  %v3291 = vpack.c.bf16 %v2850, %v2850
  %v3292 = vpack.c.bf16 %v2851, %v2851
  %v3293 = vpack.c.bf16 %v2852, %v2852
  %v3294 = vpack.c.bf16 %v2853, %v2853
  %v3295 = vpack.c.bf16 %v2854, %v2854
  %v3296 = vpack.c.bf16 %v2855, %v2855
  %v3297 = vpack.c.bf16 %v2856, %v2856
  %v3298 = vpack.c.bf16 %v2857, %v2857
  %v3299 = vpack.c.bf16 %v2858, %v2858
  %v3300 = vpack.c.bf16 %v2859, %v2859
  %v3301 = vpack.c.bf16 %v2860, %v2860
  %v3302 = vpack.c.bf16 %v2861, %v2861
  %v3303 = vpack.c.bf16 %v2862, %v2862
  %v3304 = vpack.c.bf16 %v2863, %v2863
  %v3305 = vpack.c.bf16 %v2864, %v2864
  %v3306 = vpack.c.bf16 %v2865, %v2865
  %v3307 = vpack.c.bf16 %v2866, %v2866
  %v3308 = vpack.c.bf16 %v2867, %v2867
  %v3309 = vpack.c.bf16 %v2868, %v2868
  %v3310 = vpack.c.bf16 %v2869, %v2869
  %v3311 = vpack.c.bf16 %v2870, %v2870
  %v3312 = vpack.c.bf16 %v2871, %v2871
  %v3313 = vpack.c.bf16 %v2872, %v2872
  %v3314 = vpack.c.bf16 %v2873, %v2873
  %v3315 = vpack.c.bf16 %v2874, %v2874
  %v3316 = vpack.c.bf16 %v2875, %v2875
  %v3317 = vpack.c.bf16 %v2876, %v2876
  %v3318 = vpack.c.bf16 %v2877, %v2877
  %v3319 = vpack.c.bf16 %v2878, %v2878
  %v3320 = vpack.c.bf16 %v2879, %v2879
  %v3321 = vpack.c.bf16 %v2880, %v2880
  %v3322 = vpack.c.bf16 %v2881, %v2881
  %v3323 = vpack.c.bf16 %v2882, %v2882
  %v3324 = vpack.c.bf16 %v2883, %v2883
  %v3325 = vpack.c.bf16 %v2884, %v2884
  %v3326 = vpack.c.bf16 %v2885, %v2885
  %v3327 = vpack.c.bf16 %v2886, %v2886
  %v3328 = vpack.c.bf16 %v2887, %v2887
  %v3329 = vpack.c.bf16 %v2888, %v2888
  %v3330 = vpack.c.bf16 %v2889, %v2889
  %v3331 = vpack.c.bf16 %v2890, %v2890
  %v3332 = vpack.c.bf16 %v2891, %v2891
  %v3333 = vpack.c.bf16 %v2892, %v2892
  %v3334 = vpack.c.bf16 %v2893, %v2893
  %v3335 = vpack.c.bf16 %v2894, %v2894
  %v3336 = vpack.c.bf16 %v2895, %v2895
  %v3337 = vpack.c.bf16 %v2896, %v2896
  %v3338 = vpack.c.bf16 %v2897, %v2897
  %v3339 = vpack.c.bf16 %v2898, %v2898
  %v3340 = vpack.c.bf16 %v2899, %v2899
  %v3341 = vpack.c.bf16 %v2900, %v2900
  %v3342 = vpack.c.bf16 %v2901, %v2901
  %v3343 = vpack.c.bf16 %v2902, %v2902
  %v3344 = vpack.c.bf16 %v2903, %v2903
  %v3345 = vpack.c.bf16 %v2904, %v2904
  %v3346 = vpack.c.bf16 %v2905, %v2905
  %v3347 = vpack.c.bf16 %v2906, %v2906
  %v3348 = vpack.c.bf16 %v2907, %v2907
  %v3349 = vpack.c.bf16 %v2908, %v2908
  %v3350 = vpack.c.bf16 %v2909, %v2909
  %v3351 = vpack.c.bf16 %v2910, %v2910
  %v3352 = vpack.c.bf16 %v2911, %v2911
  %v3353 = vpack.c.bf16 %v2912, %v2912
  %v3354 = vpack.c.bf16 %v2913, %v2913
  %v3355 = vpack.c.bf16 %v2914, %v2914
  %v3356 = vpack.c.bf16 %v2915, %v2915
  %v3357 = vpack.c.bf16 %v2916, %v2916
  %v3358 = vpack.c.bf16 %v2917, %v2917
  %v3359 = vpack.c.bf16 %v2918, %v2918
  %v3360 = vpack.c.bf16 %v2919, %v2919
  %v3361 = vpack.c.bf16 %v2920, %v2920
  %v3362 = vpack.c.bf16 %v2921, %v2921
  %v3363 = vpack.c.bf16 %v2922, %v2922
  %v3364 = vpack.c.bf16 %v2923, %v2923
  %v3365 = vpack.c.bf16 %v2924, %v2924
  %v3366 = vpack.c.bf16 %v2925, %v2925
  %v3367 = vpack.c.bf16 %v2926, %v2926
  %v3368 = vpack.c.bf16 %v2927, %v2927
  %v3369 = vpack.c.bf16 %v2928, %v2928
  %v3370 = vpack.c.bf16 %v2929, %v2929
  %v3371 = vpack.c.bf16 %v2930, %v2930
  %v3372 = vpack.c.bf16 %v2931, %v2931
  %v3373 = vpack.c.bf16 %v2932, %v2932
  %v3374 = vpack.c.bf16 %v2933, %v2933
  %v3375 = vpack.c.bf16 %v2934, %v2934
  %v3376 = vpack.c.bf16 %v2935, %v2935
  %v3377 = vpack.c.bf16 %v2936, %v2936
  %v3378 = vpack.c.bf16 %v2937, %v2937
  %v3379 = vpack.c.bf16 %v2938, %v2938
  %v3380 = vpack.c.bf16 %v2939, %v2939
  %v3381 = vpack.c.bf16 %v2940, %v2940
  %v3382 = vpack.c.bf16 %v2941, %v2941
  %v3383 = vpack.c.bf16 %v2942, %v2942
  %v3384 = vpack.c.bf16 %v2943, %v2943
  %v3385 = vpack.c.bf16 %v2944, %v2944
  %v3386 = vpack.c.bf16 %v2945, %v2945
  %v3387 = vpack.c.bf16 %v2946, %v2946
  %v3388 = vpack.c.bf16 %v2947, %v2947
  %v3389 = vpack.c.bf16 %v2948, %v2948
  %v3390 = vpack.c.bf16 %v2949, %v2949
  %v3391 = vpack.c.bf16 %v2950, %v2950
  %v3392 = vpack.c.bf16 %v2951, %v2951
  %v3393 = vpack.c.bf16 %v2952, %v2952
  %v3394 = vpack.c.bf16 %v2953, %v2953
  %v3395 = vpack.c.bf16 %v2954, %v2954
  %v3396 = vpack.c.bf16 %v2955, %v2955
  %v3397 = vpack.c.bf16 %v2956, %v2956
  %v3398 = vpack.c.bf16 %v2957, %v2957
  %v3399 = vpack.c.bf16 %v2958, %v2958
  %v3400 = vpack.c.bf16 %v2959, %v2959
  %v3401 = vpack.c.bf16 %v2960, %v2960
  %v3402 = vpack.c.bf16 %v2961, %v2961
  %v3403 = vpack.c.bf16 %v2962, %v2962
  %v3404 = vpack.c.bf16 %v2963, %v2963
  %v3405 = vpack.c.bf16 %v2964, %v2964
  %v3406 = vpack.c.bf16 %v2965, %v2965
  %v3407 = vpack.c.bf16 %v2966, %v2966
  %v3408 = vpack.c.bf16 %v2967, %v2967
  %v3409 = vpack.c.bf16 %v2968, %v2968
  %v3410 = vpack.c.bf16 %v2969, %v2969
  %v3411 = vpack.c.bf16 %v2970, %v2970
  %v3412 = vpack.c.bf16 %v2971, %v2971
  %v3413 = vpack.c.bf16 %v2972, %v2972
  %v3414 = vpack.c.bf16 %v2973, %v2973
  %v3415 = vpack.c.bf16 %v2974, %v2974
  %v3416 = vpack.c.bf16 %v2975, %v2975
  %v3417 = vpack.c.bf16 %v2976, %v2976
  %v3418 = vpack.c.bf16 %v2977, %v2977
  %v3419 = vpack.c.bf16 %v2978, %v2978
  %v3420 = vpack.c.bf16 %v2979, %v2979
  %v3421 = vpack.c.bf16 %v2980, %v2980
  %v3422 = vpack.c.bf16 %v2981, %v2981
  %v3423 = vpack.c.bf16 %v2982, %v2982
  %v3424 = vpack.c.bf16 %v2983, %v2983
  %v3425 = vpack.c.bf16 %v2984, %v2984
  %v3426 = vpack.c.bf16 %v2985, %v2985
  %v3427 = vpack.c.bf16 %v2986, %v2986
  %v3428 = vpack.c.bf16 %v2987, %v2987
  %v3429 = vpack.c.bf16 %v2988, %v2988
  %v3430 = vpack.c.bf16 %v2989, %v2989
  %v3431 = vpack.c.bf16 %v2990, %v2990
  %v3432 = vpack.c.bf16 %v2991, %v2991
  %v3433 = vpack.c.bf16 %v2992, %v2992
  %v3434 = vpack.c.bf16 %v2993, %v2993
  %v3435 = vpack.c.bf16 %v2994, %v2994
  %v3436 = vpack.c.bf16 %v2995, %v2995
  %v3437 = vpack.c.bf16 %v2996, %v2996
  %v3438 = vpack.c.bf16 %v2997, %v2997
  %v3439 = vpack.c.bf16 %v2998, %v2998
  %v3440 = vpack.c.bf16 %v2999, %v2999
  %v3441 = vpack.c.bf16 %v3000, %v3000
  %v3442 = vpack.c.bf16 %v3001, %v3001
  %v3443 = vpack.c.bf16 %v3002, %v3002
  %v3444 = vpack.c.bf16 %v3003, %v3003
  %v3445 = vpack.c.bf16 %v3004, %v3004
  %v3446 = vpack.c.bf16 %v3005, %v3005
  %v3447 = vpack.c.bf16 %v3006, %v3006
  %v3448 = vpack.c.bf16 %v3007, %v3007
  %v3449 = vpack.c.bf16 %v3008, %v3008
  %v3450 = vpack.c.bf16 %v3009, %v3009
  %v3451 = vpack.c.bf16 %v3010, %v3010
  %v3452 = vpack.c.bf16 %v3011, %v3011
  %v3453 = vpack.c.bf16 %v3012, %v3012
  %v3454 = vpack.c.bf16 %v3013, %v3013
  %v3455 = vpack.c.bf16 %v3014, %v3014
  %v3456 = vpack.c.bf16 %v3015, %v3015
  %v3457 = vpack.c.bf16 %v3016, %v3016
  %v3458 = vpack.c.bf16 %v3017, %v3017
  %v3459 = vpack.c.bf16 %v3018, %v3018
  %v3460 = vpack.c.bf16 %v3019, %v3019
  %v3461 = vpack.c.bf16 %v3020, %v3020
  %v3462 = vpack.c.bf16 %v3021, %v3021
  %v3463 = vpack.c.bf16 %v3022, %v3022
  %v3464 = vpack.c.bf16 %v3023, %v3023
  %v3465 = vpack.c.bf16 %v3024, %v3024
  %v3466 = vpack.c.bf16 %v3025, %v3025
  %v3467 = vpack.c.bf16 %v3026, %v3026
  %v3468 = vpack.c.bf16 %v3027, %v3027
  %v3469 = vpack.c.bf16 %v3028, %v3028
  %v3470 = vpack.c.bf16 %v3029, %v3029
  %v3471 = vpack.c.bf16 %v3030, %v3030
  %v3472 = vpack.c.bf16 %v3031, %v3031
  %v3473 = vpack.c.bf16 %v3032, %v3032
  %v3474 = vpack.c.bf16 %v3033, %v3033
  %v3475 = vpack.c.bf16 %v3034, %v3034
  %v3476 = vpack.c.bf16 %v3035, %v3035
  %v3477 = vpack.c.bf16 %v3036, %v3036
  %v3478 = vpack.c.bf16 %v3037, %v3037
  %v3479 = vpack.c.bf16 %v3038, %v3038
  %v3480 = vpack.c.bf16 %v3039, %v3039
  %v3481 = vpack.c.bf16 %v3040, %v3040
  %v3482 = vpack.c.bf16 %v3041, %v3041
  %v3483 = vpack.c.bf16 %v3042, %v3042
  %v3484 = vpack.c.bf16 %v3043, %v3043
  %v3485 = vpack.c.bf16 %v3044, %v3044
  %v3486 = vpack.c.bf16 %v3045, %v3045
  %v3487 = vpack.c.bf16 %v3046, %v3046
  %v3488 = vpack.c.bf16 %v3047, %v3047
  %v3489 = vpack.c.bf16 %v3048, %v3048
  %v3490 = vpack.c.bf16 %v3049, %v3049
  %v3491 = vpack.c.bf16 %v3050, %v3050
  %v3492 = vpack.c.bf16 %v3051, %v3051
  %v3493 = vpack.c.bf16 %v3052, %v3052
  %v3494 = vpack.c.bf16 %v3053, %v3053
  %v3495 = vpack.c.bf16 %v3054, %v3054
  %v3496 = vpack.c.bf16 %v3055, %v3055
  %v3497 = vpack.c.bf16 %v3056, %v3056
  %v3498 = vpack.c.bf16 %v3057, %v3057
  %v3499 = vpack.c.bf16 %v3058, %v3058
  %v3500 = vpack.c.bf16 %v3059, %v3059
  %v3501 = vpack.c.bf16 %v3060, %v3060
  %v3502 = vpack.c.bf16 %v3061, %v3061
  %v3503 = vpack.c.bf16 %v3062, %v3062
  %v3504 = vpack.c.bf16 %v3063, %v3063
  %v3505 = vpack.c.bf16 %v3064, %v3064
  %v3506 = vpack.c.bf16 %v3065, %v3065
  %v3507 = vpack.c.bf16 %v3066, %v3066
  %v3508 = vpack.c.bf16 %v3067, %v3067
  %v3509 = vpack.c.bf16 %v3068, %v3068
  %v3510 = vpack.c.bf16 %v3069, %v3069
  %v3511 = vpack.c.bf16 %v3070, %v3070
  %v3512 = vpack.c.bf16 %v3071, %v3071
  %v3513 = vpack.c.bf16 %v3072, %v3072
  %v3514 = vpack.c.bf16 %v3073, %v3073
  %v3515 = vpack.c.bf16 %v3074, %v3074
  %v3516 = vpack.c.bf16 %v3075, %v3075
  %v3517 = vpack.c.bf16 %v3076, %v3076
  %v3518 = vpack.c.bf16 %v3077, %v3077
  %v3519 = vpack.c.bf16 %v3078, %v3078
  %v3520 = vpack.c.bf16 %v3079, %v3079
  %v3521 = vpack.c.bf16 %v3080, %v3080
  %v3522 = vpack.c.bf16 %v3081, %v3081
  %v3523 = vpack.c.bf16 %v3082, %v3082
  %v3524 = vpack.c.bf16 %v3083, %v3083
  %v3525 = vpack.c.bf16 %v3084, %v3084
  %v3526 = vpack.c.bf16 %v3085, %v3085
  %v3527 = vpack.c.bf16 %v3086, %v3086
  %v3528 = vpack.c.bf16 %v3087, %v3087
  %v3529 = vpack.c.bf16 %v3088, %v3088
  %v3530 = vpack.c.bf16 %v3089, %v3089
  %v3531 = vpack.c.bf16 %v3090, %v3090
  %v3532 = vpack.c.bf16 %v3091, %v3091
  %v3533 = vpack.c.bf16 %v3092, %v3092
  %v3534 = vpack.c.bf16 %v3093, %v3093
  %v3535 = vpack.c.bf16 %v3094, %v3094
  %vm3536 = vcmask 257024
  %3537 = vst.msk [vmem:[%s1] sm:$0xf] %vm3536, %v3095
  %3538 = vst.msk [vmem:[%s1 + $0x4] sm:$0xf] %vm3536, %v3096
  %3539 = vst.msk [vmem:[%s1 + $0x8] sm:$0xf] %vm3536, %v3097
  %3540 = vst.msk [vmem:[%s1 + $0xc] sm:$0xf] %vm3536, %v3098
  %3541 = vst.msk [vmem:[%s1 + $0x10] sm:$0xf] %vm3536, %v3099
  %3542 = vst.msk [vmem:[%s1 + $0x14] sm:$0xf] %vm3536, %v3100
  %3543 = vst.msk [vmem:[%s1 + $0x18] sm:$0xf] %vm3536, %v3101
  %3544 = vst.msk [vmem:[%s1 + $0x1c] sm:$0xf] %vm3536, %v3102
  %3545 = vst.msk [vmem:[%s1 + $0x20] sm:$0xf] %vm3536, %v3103
  %3546 = vst.msk [vmem:[%s1 + $0x24] sm:$0xf] %vm3536, %v3104
  %3547 = vst.msk [vmem:[%s1 + $0x28] sm:$0xf] %vm3536, %v3105
  %3548 = vst.msk [vmem:[%s1 + $0x2c] sm:$0xf] %vm3536, %v3106
  %3549 = vst.msk [vmem:[%s1 + $0x30] sm:$0xf] %vm3536, %v3107
  %3550 = vst.msk [vmem:[%s1 + $0x34] sm:$0xf] %vm3536, %v3108
  %3551 = vst.msk [vmem:[%s1 + $0x38] sm:$0xf] %vm3536, %v3109
  %3552 = vst.msk [vmem:[%s1 + $0x3c] sm:$0xf] %vm3536, %v3110
  %3553 = vst.msk [vmem:[%s1 + $0x40] sm:$0xf] %vm3536, %v3111
  %3554 = vst.msk [vmem:[%s1 + $0x44] sm:$0xf] %vm3536, %v3112
  %3555 = vst.msk [vmem:[%s1 + $0x48] sm:$0xf] %vm3536, %v3113
  %3556 = vst.msk [vmem:[%s1 + $0x4c] sm:$0xf] %vm3536, %v3114
  %3557 = vst.msk [vmem:[%s1 + $0x50] sm:$0xf] %vm3536, %v3115
  %3558 = vst.msk [vmem:[%s1 + $0x54] sm:$0xf] %vm3536, %v3116
  %3559 = vst.msk [vmem:[%s1 + $0x58] sm:$0xf] %vm3536, %v3117
  %3560 = vst.msk [vmem:[%s1 + $0x5c] sm:$0xf] %vm3536, %v3118
  %3561 = vst.msk [vmem:[%s1 + $0x60] sm:$0xf] %vm3536, %v3119
  %3562 = vst.msk [vmem:[%s1 + $0x64] sm:$0xf] %vm3536, %v3120
  %3563 = vst.msk [vmem:[%s1 + $0x68] sm:$0xf] %vm3536, %v3121
  %3564 = vst.msk [vmem:[%s1 + $0x6c] sm:$0xf] %vm3536, %v3122
  %3565 = vst.msk [vmem:[%s1 + $0x70] sm:$0xf] %vm3536, %v3123
  %3566 = vst.msk [vmem:[%s1 + $0x74] sm:$0xf] %vm3536, %v3124
  %3567 = vst.msk [vmem:[%s1 + $0x78] sm:$0xf] %vm3536, %v3125
  %3568 = vst.msk [vmem:[%s1 + $0x7c] sm:$0xf] %vm3536, %v3126
  %3569 = vst.msk [vmem:[%s1 + $0x80] sm:$0xf] %vm3536, %v3127
  %3570 = vst.msk [vmem:[%s1 + $0x84] sm:$0xf] %vm3536, %v3128
  %3571 = vst.msk [vmem:[%s1 + $0x88] sm:$0xf] %vm3536, %v3129
  %3572 = vst.msk [vmem:[%s1 + $0x8c] sm:$0xf] %vm3536, %v3130
  %3573 = vst.msk [vmem:[%s1 + $0x90] sm:$0xf] %vm3536, %v3131
  %3574 = vst.msk [vmem:[%s1 + $0x94] sm:$0xf] %vm3536, %v3132
  %3575 = vst.msk [vmem:[%s1 + $0x98] sm:$0xf] %vm3536, %v3133
  %3576 = vst.msk [vmem:[%s1 + $0x9c] sm:$0xf] %vm3536, %v3134
  %3577 = vst.msk [vmem:[%s1 + $0xa0] sm:$0xf] %vm3536, %v3135
  %3578 = vst.msk [vmem:[%s1 + $0xa4] sm:$0xf] %vm3536, %v3136
  %3579 = vst.msk [vmem:[%s1 + $0xa8] sm:$0xf] %vm3536, %v3137
  %3580 = vst.msk [vmem:[%s1 + $0xac] sm:$0xf] %vm3536, %v3138
  %3581 = vst.msk [vmem:[%s1 + $0xb0] sm:$0xf] %vm3536, %v3139
  %3582 = vst.msk [vmem:[%s1 + $0xb4] sm:$0xf] %vm3536, %v3140
  %3583 = vst.msk [vmem:[%s1 + $0xb8] sm:$0xf] %vm3536, %v3141
  %3584 = vst.msk [vmem:[%s1 + $0xbc] sm:$0xf] %vm3536, %v3142
  %3585 = vst.msk [vmem:[%s1 + $0xc0] sm:$0xf] %vm3536, %v3143
  %3586 = vst.msk [vmem:[%s1 + $0xc4] sm:$0xf] %vm3536, %v3144
  %3587 = vst.msk [vmem:[%s1 + $0xc8] sm:$0xf] %vm3536, %v3145
  %3588 = vst.msk [vmem:[%s1 + $0xcc] sm:$0xf] %vm3536, %v3146
  %3589 = vst.msk [vmem:[%s1 + $0xd0] sm:$0xf] %vm3536, %v3147
  %3590 = vst.msk [vmem:[%s1 + $0xd4] sm:$0xf] %vm3536, %v3148
  %3591 = vst.msk [vmem:[%s1 + $0xd8] sm:$0xf] %vm3536, %v3149
  %3592 = vst.msk [vmem:[%s1 + $0xdc] sm:$0xf] %vm3536, %v3150
  %3593 = vst.msk [vmem:[%s1 + $0xe0] sm:$0xf] %vm3536, %v3151
  %3594 = vst.msk [vmem:[%s1 + $0xe4] sm:$0xf] %vm3536, %v3152
  %3595 = vst.msk [vmem:[%s1 + $0xe8] sm:$0xf] %vm3536, %v3153
  %3596 = vst.msk [vmem:[%s1 + $0xec] sm:$0xf] %vm3536, %v3154
  %3597 = vst.msk [vmem:[%s1 + $0xf0] sm:$0xf] %vm3536, %v3155
  %3598 = vst.msk [vmem:[%s1 + $0xf4] sm:$0xf] %vm3536, %v3156
  %3599 = vst.msk [vmem:[%s1 + $0xf8] sm:$0xf] %vm3536, %v3157
  %3600 = vst.msk [vmem:[%s1 + $0xfc] sm:$0xf] %vm3536, %v3158
  %3601 = vst.msk [vmem:[%s1 + $0x100] sm:$0xf] %vm3536, %v3159
  %3602 = vst.msk [vmem:[%s1 + $0x104] sm:$0xf] %vm3536, %v3160
  %3603 = vst.msk [vmem:[%s1 + $0x108] sm:$0xf] %vm3536, %v3161
  %3604 = vst.msk [vmem:[%s1 + $0x10c] sm:$0xf] %vm3536, %v3162
  %3605 = vst.msk [vmem:[%s1 + $0x110] sm:$0xf] %vm3536, %v3163
  %3606 = vst.msk [vmem:[%s1 + $0x114] sm:$0xf] %vm3536, %v3164
  %3607 = vst.msk [vmem:[%s1 + $0x118] sm:$0xf] %vm3536, %v3165
  %3608 = vst.msk [vmem:[%s1 + $0x11c] sm:$0xf] %vm3536, %v3166
  %3609 = vst.msk [vmem:[%s1 + $0x120] sm:$0xf] %vm3536, %v3167
  %3610 = vst.msk [vmem:[%s1 + $0x124] sm:$0xf] %vm3536, %v3168
  %3611 = vst.msk [vmem:[%s1 + $0x128] sm:$0xf] %vm3536, %v3169
  %3612 = vst.msk [vmem:[%s1 + $0x12c] sm:$0xf] %vm3536, %v3170
  %3613 = vst.msk [vmem:[%s1 + $0x130] sm:$0xf] %vm3536, %v3171
  %3614 = vst.msk [vmem:[%s1 + $0x134] sm:$0xf] %vm3536, %v3172
  %3615 = vst.msk [vmem:[%s1 + $0x138] sm:$0xf] %vm3536, %v3173
  %3616 = vst.msk [vmem:[%s1 + $0x13c] sm:$0xf] %vm3536, %v3174
  %3617 = vst.msk [vmem:[%s1 + $0x140] sm:$0xf] %vm3536, %v3175
  %3618 = vst.msk [vmem:[%s1 + $0x144] sm:$0xf] %vm3536, %v3176
  %3619 = vst.msk [vmem:[%s1 + $0x148] sm:$0xf] %vm3536, %v3177
  %3620 = vst.msk [vmem:[%s1 + $0x14c] sm:$0xf] %vm3536, %v3178
  %3621 = vst.msk [vmem:[%s1 + $0x150] sm:$0xf] %vm3536, %v3179
  %3622 = vst.msk [vmem:[%s1 + $0x154] sm:$0xf] %vm3536, %v3180
  %3623 = vst.msk [vmem:[%s1 + $0x158] sm:$0xf] %vm3536, %v3181
  %3624 = vst.msk [vmem:[%s1 + $0x15c] sm:$0xf] %vm3536, %v3182
  %3625 = vst.msk [vmem:[%s1 + $0x160] sm:$0xf] %vm3536, %v3183
  %3626 = vst.msk [vmem:[%s1 + $0x164] sm:$0xf] %vm3536, %v3184
  %3627 = vst.msk [vmem:[%s1 + $0x168] sm:$0xf] %vm3536, %v3185
  %3628 = vst.msk [vmem:[%s1 + $0x16c] sm:$0xf] %vm3536, %v3186
  %3629 = vst.msk [vmem:[%s1 + $0x170] sm:$0xf] %vm3536, %v3187
  %3630 = vst.msk [vmem:[%s1 + $0x174] sm:$0xf] %vm3536, %v3188
  %3631 = vst.msk [vmem:[%s1 + $0x178] sm:$0xf] %vm3536, %v3189
  %3632 = vst.msk [vmem:[%s1 + $0x17c] sm:$0xf] %vm3536, %v3190
  %3633 = vst.msk [vmem:[%s1 + $0x180] sm:$0xf] %vm3536, %v3191
  %3634 = vst.msk [vmem:[%s1 + $0x184] sm:$0xf] %vm3536, %v3192
  %3635 = vst.msk [vmem:[%s1 + $0x188] sm:$0xf] %vm3536, %v3193
  %3636 = vst.msk [vmem:[%s1 + $0x18c] sm:$0xf] %vm3536, %v3194
  %3637 = vst.msk [vmem:[%s1 + $0x190] sm:$0xf] %vm3536, %v3195
  %3638 = vst.msk [vmem:[%s1 + $0x194] sm:$0xf] %vm3536, %v3196
  %3639 = vst.msk [vmem:[%s1 + $0x198] sm:$0xf] %vm3536, %v3197
  %3640 = vst.msk [vmem:[%s1 + $0x19c] sm:$0xf] %vm3536, %v3198
  %3641 = vst.msk [vmem:[%s1 + $0x1a0] sm:$0xf] %vm3536, %v3199
  %3642 = vst.msk [vmem:[%s1 + $0x1a4] sm:$0xf] %vm3536, %v3200
  %3643 = vst.msk [vmem:[%s1 + $0x1a8] sm:$0xf] %vm3536, %v3201
  %3644 = vst.msk [vmem:[%s1 + $0x1ac] sm:$0xf] %vm3536, %v3202
  %3645 = vst.msk [vmem:[%s1 + $0x1b0] sm:$0xf] %vm3536, %v3203
  %3646 = vst.msk [vmem:[%s1 + $0x1b4] sm:$0xf] %vm3536, %v3204
  %3647 = vst.msk [vmem:[%s1 + $0x1b8] sm:$0xf] %vm3536, %v3205
  %3648 = vst.msk [vmem:[%s1 + $0x1bc] sm:$0xf] %vm3536, %v3206
  %3649 = vst.msk [vmem:[%s1 + $0x1c0] sm:$0xf] %vm3536, %v3207
  %3650 = vst.msk [vmem:[%s1 + $0x1c4] sm:$0xf] %vm3536, %v3208
  %3651 = vst.msk [vmem:[%s1 + $0x1c8] sm:$0xf] %vm3536, %v3209
  %3652 = vst.msk [vmem:[%s1 + $0x1cc] sm:$0xf] %vm3536, %v3210
  %3653 = vst.msk [vmem:[%s1 + $0x1d0] sm:$0xf] %vm3536, %v3211
  %3654 = vst.msk [vmem:[%s1 + $0x1d4] sm:$0xf] %vm3536, %v3212
  %3655 = vst.msk [vmem:[%s1 + $0x1d8] sm:$0xf] %vm3536, %v3213
  %3656 = vst.msk [vmem:[%s1 + $0x1dc] sm:$0xf] %vm3536, %v3214
  %3657 = vst.msk [vmem:[%s1 + $0x1e0] sm:$0xf] %vm3536, %v3215
  %3658 = vst.msk [vmem:[%s1 + $0x1e4] sm:$0xf] %vm3536, %v3216
  %3659 = vst.msk [vmem:[%s1 + $0x1e8] sm:$0xf] %vm3536, %v3217
  %3660 = vst.msk [vmem:[%s1 + $0x1ec] sm:$0xf] %vm3536, %v3218
  %3661 = vst.msk [vmem:[%s1 + $0x1f0] sm:$0xf] %vm3536, %v3219
  %3662 = vst.msk [vmem:[%s1 + $0x1f4] sm:$0xf] %vm3536, %v3220
  %3663 = vst.msk [vmem:[%s1 + $0x1f8] sm:$0xf] %vm3536, %v3221
  %3664 = vst.msk [vmem:[%s1 + $0x1fc] sm:$0xf] %vm3536, %v3222
  %3665 = vst.msk [vmem:[%s1 + $0x200] sm:$0xf] %vm3536, %v3223
  %3666 = vst.msk [vmem:[%s1 + $0x204] sm:$0xf] %vm3536, %v3224
  %3667 = vst.msk [vmem:[%s1 + $0x208] sm:$0xf] %vm3536, %v3225
  %3668 = vst.msk [vmem:[%s1 + $0x20c] sm:$0xf] %vm3536, %v3226
  %3669 = vst.msk [vmem:[%s1 + $0x210] sm:$0xf] %vm3536, %v3227
  %3670 = vst.msk [vmem:[%s1 + $0x214] sm:$0xf] %vm3536, %v3228
  %3671 = vst.msk [vmem:[%s1 + $0x218] sm:$0xf] %vm3536, %v3229
  %3672 = vst.msk [vmem:[%s1 + $0x21c] sm:$0xf] %vm3536, %v3230
  %3673 = vst.msk [vmem:[%s1 + $0x220] sm:$0xf] %vm3536, %v3231
  %3674 = vst.msk [vmem:[%s1 + $0x224] sm:$0xf] %vm3536, %v3232
  %3675 = vst.msk [vmem:[%s1 + $0x228] sm:$0xf] %vm3536, %v3233
  %3676 = vst.msk [vmem:[%s1 + $0x22c] sm:$0xf] %vm3536, %v3234
  %3677 = vst.msk [vmem:[%s1 + $0x230] sm:$0xf] %vm3536, %v3235
  %3678 = vst.msk [vmem:[%s1 + $0x234] sm:$0xf] %vm3536, %v3236
  %3679 = vst.msk [vmem:[%s1 + $0x238] sm:$0xf] %vm3536, %v3237
  %3680 = vst.msk [vmem:[%s1 + $0x23c] sm:$0xf] %vm3536, %v3238
  %3681 = vst.msk [vmem:[%s1 + $0x240] sm:$0xf] %vm3536, %v3239
  %3682 = vst.msk [vmem:[%s1 + $0x244] sm:$0xf] %vm3536, %v3240
  %3683 = vst.msk [vmem:[%s1 + $0x248] sm:$0xf] %vm3536, %v3241
  %3684 = vst.msk [vmem:[%s1 + $0x24c] sm:$0xf] %vm3536, %v3242
  %3685 = vst.msk [vmem:[%s1 + $0x250] sm:$0xf] %vm3536, %v3243
  %3686 = vst.msk [vmem:[%s1 + $0x254] sm:$0xf] %vm3536, %v3244
  %3687 = vst.msk [vmem:[%s1 + $0x258] sm:$0xf] %vm3536, %v3245
  %3688 = vst.msk [vmem:[%s1 + $0x25c] sm:$0xf] %vm3536, %v3246
  %3689 = vst.msk [vmem:[%s1 + $0x260] sm:$0xf] %vm3536, %v3247
  %3690 = vst.msk [vmem:[%s1 + $0x264] sm:$0xf] %vm3536, %v3248
  %3691 = vst.msk [vmem:[%s1 + $0x268] sm:$0xf] %vm3536, %v3249
  %3692 = vst.msk [vmem:[%s1 + $0x26c] sm:$0xf] %vm3536, %v3250
  %3693 = vst.msk [vmem:[%s1 + $0x270] sm:$0xf] %vm3536, %v3251
  %3694 = vst.msk [vmem:[%s1 + $0x274] sm:$0xf] %vm3536, %v3252
  %3695 = vst.msk [vmem:[%s1 + $0x278] sm:$0xf] %vm3536, %v3253
  %3696 = vst.msk [vmem:[%s1 + $0x27c] sm:$0xf] %vm3536, %v3254
  %3697 = vst.msk [vmem:[%s1 + $0x280] sm:$0xf] %vm3536, %v3255
  %3698 = vst.msk [vmem:[%s1 + $0x284] sm:$0xf] %vm3536, %v3256
  %3699 = vst.msk [vmem:[%s1 + $0x288] sm:$0xf] %vm3536, %v3257
  %3700 = vst.msk [vmem:[%s1 + $0x28c] sm:$0xf] %vm3536, %v3258
  %3701 = vst.msk [vmem:[%s1 + $0x290] sm:$0xf] %vm3536, %v3259
  %3702 = vst.msk [vmem:[%s1 + $0x294] sm:$0xf] %vm3536, %v3260
  %3703 = vst.msk [vmem:[%s1 + $0x298] sm:$0xf] %vm3536, %v3261
  %3704 = vst.msk [vmem:[%s1 + $0x29c] sm:$0xf] %vm3536, %v3262
  %3705 = vst.msk [vmem:[%s1 + $0x2a0] sm:$0xf] %vm3536, %v3263
  %3706 = vst.msk [vmem:[%s1 + $0x2a4] sm:$0xf] %vm3536, %v3264
  %3707 = vst.msk [vmem:[%s1 + $0x2a8] sm:$0xf] %vm3536, %v3265
  %3708 = vst.msk [vmem:[%s1 + $0x2ac] sm:$0xf] %vm3536, %v3266
  %3709 = vst.msk [vmem:[%s1 + $0x2b0] sm:$0xf] %vm3536, %v3267
  %3710 = vst.msk [vmem:[%s1 + $0x2b4] sm:$0xf] %vm3536, %v3268
  %3711 = vst.msk [vmem:[%s1 + $0x2b8] sm:$0xf] %vm3536, %v3269
  %3712 = vst.msk [vmem:[%s1 + $0x2bc] sm:$0xf] %vm3536, %v3270
  %3713 = vst.msk [vmem:[%s1 + $0x2c0] sm:$0xf] %vm3536, %v3271
  %3714 = vst.msk [vmem:[%s1 + $0x2c4] sm:$0xf] %vm3536, %v3272
  %3715 = vst.msk [vmem:[%s1 + $0x2c8] sm:$0xf] %vm3536, %v3273
  %3716 = vst.msk [vmem:[%s1 + $0x2cc] sm:$0xf] %vm3536, %v3274
  %3717 = vst.msk [vmem:[%s1 + $0x2d0] sm:$0xf] %vm3536, %v3275
  %3718 = vst.msk [vmem:[%s1 + $0x2d4] sm:$0xf] %vm3536, %v3276
  %3719 = vst.msk [vmem:[%s1 + $0x2d8] sm:$0xf] %vm3536, %v3277
  %3720 = vst.msk [vmem:[%s1 + $0x2dc] sm:$0xf] %vm3536, %v3278
  %3721 = vst.msk [vmem:[%s1 + $0x2e0] sm:$0xf] %vm3536, %v3279
  %3722 = vst.msk [vmem:[%s1 + $0x2e4] sm:$0xf] %vm3536, %v3280
  %3723 = vst.msk [vmem:[%s1 + $0x2e8] sm:$0xf] %vm3536, %v3281
  %3724 = vst.msk [vmem:[%s1 + $0x2ec] sm:$0xf] %vm3536, %v3282
  %3725 = vst.msk [vmem:[%s1 + $0x2f0] sm:$0xf] %vm3536, %v3283
  %3726 = vst.msk [vmem:[%s1 + $0x2f4] sm:$0xf] %vm3536, %v3284
  %3727 = vst.msk [vmem:[%s1 + $0x2f8] sm:$0xf] %vm3536, %v3285
  %3728 = vst.msk [vmem:[%s1 + $0x2fc] sm:$0xf] %vm3536, %v3286
  %3729 = vst.msk [vmem:[%s1 + $0x300] sm:$0xf] %vm3536, %v3287
  %3730 = vst.msk [vmem:[%s1 + $0x304] sm:$0xf] %vm3536, %v3288
  %3731 = vst.msk [vmem:[%s1 + $0x308] sm:$0xf] %vm3536, %v3289
  %3732 = vst.msk [vmem:[%s1 + $0x30c] sm:$0xf] %vm3536, %v3290
  %3733 = vst.msk [vmem:[%s1 + $0x310] sm:$0xf] %vm3536, %v3291
  %3734 = vst.msk [vmem:[%s1 + $0x314] sm:$0xf] %vm3536, %v3292
  %3735 = vst.msk [vmem:[%s1 + $0x318] sm:$0xf] %vm3536, %v3293
  %3736 = vst.msk [vmem:[%s1 + $0x31c] sm:$0xf] %vm3536, %v3294
  %3737 = vst.msk [vmem:[%s1 + $0x320] sm:$0xf] %vm3536, %v3295
  %3738 = vst.msk [vmem:[%s1 + $0x324] sm:$0xf] %vm3536, %v3296
  %3739 = vst.msk [vmem:[%s1 + $0x328] sm:$0xf] %vm3536, %v3297
  %3740 = vst.msk [vmem:[%s1 + $0x32c] sm:$0xf] %vm3536, %v3298
  %3741 = vst.msk [vmem:[%s1 + $0x330] sm:$0xf] %vm3536, %v3299
  %3742 = vst.msk [vmem:[%s1 + $0x334] sm:$0xf] %vm3536, %v3300
  %3743 = vst.msk [vmem:[%s1 + $0x338] sm:$0xf] %vm3536, %v3301
  %3744 = vst.msk [vmem:[%s1 + $0x33c] sm:$0xf] %vm3536, %v3302
  %3745 = vst.msk [vmem:[%s1 + $0x340] sm:$0xf] %vm3536, %v3303
  %3746 = vst.msk [vmem:[%s1 + $0x344] sm:$0xf] %vm3536, %v3304
  %3747 = vst.msk [vmem:[%s1 + $0x348] sm:$0xf] %vm3536, %v3305
  %3748 = vst.msk [vmem:[%s1 + $0x34c] sm:$0xf] %vm3536, %v3306
  %3749 = vst.msk [vmem:[%s1 + $0x350] sm:$0xf] %vm3536, %v3307
  %3750 = vst.msk [vmem:[%s1 + $0x354] sm:$0xf] %vm3536, %v3308
  %3751 = vst.msk [vmem:[%s1 + $0x358] sm:$0xf] %vm3536, %v3309
  %3752 = vst.msk [vmem:[%s1 + $0x35c] sm:$0xf] %vm3536, %v3310
  %3753 = vst.msk [vmem:[%s1 + $0x360] sm:$0xf] %vm3536, %v3311
  %3754 = vst.msk [vmem:[%s1 + $0x364] sm:$0xf] %vm3536, %v3312
  %3755 = vst.msk [vmem:[%s1 + $0x368] sm:$0xf] %vm3536, %v3313
  %3756 = vst.msk [vmem:[%s1 + $0x36c] sm:$0xf] %vm3536, %v3314
  %3757 = vst.msk [vmem:[%s1 + $0x370] sm:$0xf] %vm3536, %v3315
  %3758 = vst.msk [vmem:[%s1 + $0x374] sm:$0xf] %vm3536, %v3316
  %3759 = vst.msk [vmem:[%s1 + $0x378] sm:$0xf] %vm3536, %v3317
  %3760 = vst.msk [vmem:[%s1 + $0x37c] sm:$0xf] %vm3536, %v3318
  %3761 = vst.msk [vmem:[%s1 + $0x380] sm:$0xf] %vm3536, %v3319
  %3762 = vst.msk [vmem:[%s1 + $0x384] sm:$0xf] %vm3536, %v3320
  %3763 = vst.msk [vmem:[%s1 + $0x388] sm:$0xf] %vm3536, %v3321
  %3764 = vst.msk [vmem:[%s1 + $0x38c] sm:$0xf] %vm3536, %v3322
  %3765 = vst.msk [vmem:[%s1 + $0x390] sm:$0xf] %vm3536, %v3323
  %3766 = vst.msk [vmem:[%s1 + $0x394] sm:$0xf] %vm3536, %v3324
  %3767 = vst.msk [vmem:[%s1 + $0x398] sm:$0xf] %vm3536, %v3325
  %3768 = vst.msk [vmem:[%s1 + $0x39c] sm:$0xf] %vm3536, %v3326
  %3769 = vst.msk [vmem:[%s1 + $0x3a0] sm:$0xf] %vm3536, %v3327
  %3770 = vst.msk [vmem:[%s1 + $0x3a4] sm:$0xf] %vm3536, %v3328
  %3771 = vst.msk [vmem:[%s1 + $0x3a8] sm:$0xf] %vm3536, %v3329
  %3772 = vst.msk [vmem:[%s1 + $0x3ac] sm:$0xf] %vm3536, %v3330
  %3773 = vst.msk [vmem:[%s1 + $0x3b0] sm:$0xf] %vm3536, %v3331
  %3774 = vst.msk [vmem:[%s1 + $0x3b4] sm:$0xf] %vm3536, %v3332
  %3775 = vst.msk [vmem:[%s1 + $0x3b8] sm:$0xf] %vm3536, %v3333
  %3776 = vst.msk [vmem:[%s1 + $0x3bc] sm:$0xf] %vm3536, %v3334
  %3777 = vst.msk [vmem:[%s1 + $0x3c0] sm:$0xf] %vm3536, %v3335
  %3778 = vst.msk [vmem:[%s1 + $0x3c4] sm:$0xf] %vm3536, %v3336
  %3779 = vst.msk [vmem:[%s1 + $0x3c8] sm:$0xf] %vm3536, %v3337
  %3780 = vst.msk [vmem:[%s1 + $0x3cc] sm:$0xf] %vm3536, %v3338
  %3781 = vst.msk [vmem:[%s1 + $0x3d0] sm:$0xf] %vm3536, %v3339
  %3782 = vst.msk [vmem:[%s1 + $0x3d4] sm:$0xf] %vm3536, %v3340
  %3783 = vst.msk [vmem:[%s1 + $0x3d8] sm:$0xf] %vm3536, %v3341
  %3784 = vst.msk [vmem:[%s1 + $0x3dc] sm:$0xf] %vm3536, %v3342
  %3785 = vst.msk [vmem:[%s1 + $0x3e0] sm:$0xf] %vm3536, %v3343
  %3786 = vst.msk [vmem:[%s1 + $0x3e4] sm:$0xf] %vm3536, %v3344
  %3787 = vst.msk [vmem:[%s1 + $0x3e8] sm:$0xf] %vm3536, %v3345
  %3788 = vst.msk [vmem:[%s1 + $0x3ec] sm:$0xf] %vm3536, %v3346
  %3789 = vst.msk [vmem:[%s1 + $0x3f0] sm:$0xf] %vm3536, %v3347
  %3790 = vst.msk [vmem:[%s1 + $0x3f4] sm:$0xf] %vm3536, %v3348
  %3791 = vst.msk [vmem:[%s1 + $0x3f8] sm:$0xf] %vm3536, %v3349
  %3792 = vst.msk [vmem:[%s1 + $0x3fc] sm:$0xf] %vm3536, %v3350
  %3793 = vst.msk [vmem:[%s1 + $0x400] sm:$0xf] %vm3536, %v3351
  %3794 = vst.msk [vmem:[%s1 + $0x404] sm:$0xf] %vm3536, %v3352
  %3795 = vst.msk [vmem:[%s1 + $0x408] sm:$0xf] %vm3536, %v3353
  %3796 = vst.msk [vmem:[%s1 + $0x40c] sm:$0xf] %vm3536, %v3354
  %3797 = vst.msk [vmem:[%s1 + $0x410] sm:$0xf] %vm3536, %v3355
  %3798 = vst.msk [vmem:[%s1 + $0x414] sm:$0xf] %vm3536, %v3356
  %3799 = vst.msk [vmem:[%s1 + $0x418] sm:$0xf] %vm3536, %v3357
  %3800 = vst.msk [vmem:[%s1 + $0x41c] sm:$0xf] %vm3536, %v3358
  %3801 = vst.msk [vmem:[%s1 + $0x420] sm:$0xf] %vm3536, %v3359
  %3802 = vst.msk [vmem:[%s1 + $0x424] sm:$0xf] %vm3536, %v3360
  %3803 = vst.msk [vmem:[%s1 + $0x428] sm:$0xf] %vm3536, %v3361
  %3804 = vst.msk [vmem:[%s1 + $0x42c] sm:$0xf] %vm3536, %v3362
  %3805 = vst.msk [vmem:[%s1 + $0x430] sm:$0xf] %vm3536, %v3363
  %3806 = vst.msk [vmem:[%s1 + $0x434] sm:$0xf] %vm3536, %v3364
  %3807 = vst.msk [vmem:[%s1 + $0x438] sm:$0xf] %vm3536, %v3365
  %3808 = vst.msk [vmem:[%s1 + $0x43c] sm:$0xf] %vm3536, %v3366
  %3809 = vst.msk [vmem:[%s1 + $0x440] sm:$0xf] %vm3536, %v3367
  %3810 = vst.msk [vmem:[%s1 + $0x444] sm:$0xf] %vm3536, %v3368
  %3811 = vst.msk [vmem:[%s1 + $0x448] sm:$0xf] %vm3536, %v3369
  %3812 = vst.msk [vmem:[%s1 + $0x44c] sm:$0xf] %vm3536, %v3370
  %3813 = vst.msk [vmem:[%s1 + $0x450] sm:$0xf] %vm3536, %v3371
  %3814 = vst.msk [vmem:[%s1 + $0x454] sm:$0xf] %vm3536, %v3372
  %3815 = vst.msk [vmem:[%s1 + $0x458] sm:$0xf] %vm3536, %v3373
  %3816 = vst.msk [vmem:[%s1 + $0x45c] sm:$0xf] %vm3536, %v3374
  %3817 = vst.msk [vmem:[%s1 + $0x460] sm:$0xf] %vm3536, %v3375
  %3818 = vst.msk [vmem:[%s1 + $0x464] sm:$0xf] %vm3536, %v3376
  %3819 = vst.msk [vmem:[%s1 + $0x468] sm:$0xf] %vm3536, %v3377
  %3820 = vst.msk [vmem:[%s1 + $0x46c] sm:$0xf] %vm3536, %v3378
  %3821 = vst.msk [vmem:[%s1 + $0x470] sm:$0xf] %vm3536, %v3379
  %3822 = vst.msk [vmem:[%s1 + $0x474] sm:$0xf] %vm3536, %v3380
  %3823 = vst.msk [vmem:[%s1 + $0x478] sm:$0xf] %vm3536, %v3381
  %3824 = vst.msk [vmem:[%s1 + $0x47c] sm:$0xf] %vm3536, %v3382
  %3825 = vst.msk [vmem:[%s1 + $0x480] sm:$0xf] %vm3536, %v3383
  %3826 = vst.msk [vmem:[%s1 + $0x484] sm:$0xf] %vm3536, %v3384
  %3827 = vst.msk [vmem:[%s1 + $0x488] sm:$0xf] %vm3536, %v3385
  %3828 = vst.msk [vmem:[%s1 + $0x48c] sm:$0xf] %vm3536, %v3386
  %3829 = vst.msk [vmem:[%s1 + $0x490] sm:$0xf] %vm3536, %v3387
  %3830 = vst.msk [vmem:[%s1 + $0x494] sm:$0xf] %vm3536, %v3388
  %3831 = vst.msk [vmem:[%s1 + $0x498] sm:$0xf] %vm3536, %v3389
  %3832 = vst.msk [vmem:[%s1 + $0x49c] sm:$0xf] %vm3536, %v3390
  %3833 = vst.msk [vmem:[%s1 + $0x4a0] sm:$0xf] %vm3536, %v3391
  %3834 = vst.msk [vmem:[%s1 + $0x4a4] sm:$0xf] %vm3536, %v3392
  %3835 = vst.msk [vmem:[%s1 + $0x4a8] sm:$0xf] %vm3536, %v3393
  %3836 = vst.msk [vmem:[%s1 + $0x4ac] sm:$0xf] %vm3536, %v3394
  %3837 = vst.msk [vmem:[%s1 + $0x4b0] sm:$0xf] %vm3536, %v3395
  %3838 = vst.msk [vmem:[%s1 + $0x4b4] sm:$0xf] %vm3536, %v3396
  %3839 = vst.msk [vmem:[%s1 + $0x4b8] sm:$0xf] %vm3536, %v3397
  %3840 = vst.msk [vmem:[%s1 + $0x4bc] sm:$0xf] %vm3536, %v3398
  %3841 = vst.msk [vmem:[%s1 + $0x4c0] sm:$0xf] %vm3536, %v3399
  %3842 = vst.msk [vmem:[%s1 + $0x4c4] sm:$0xf] %vm3536, %v3400
  %3843 = vst.msk [vmem:[%s1 + $0x4c8] sm:$0xf] %vm3536, %v3401
  %3844 = vst.msk [vmem:[%s1 + $0x4cc] sm:$0xf] %vm3536, %v3402
  %3845 = vst.msk [vmem:[%s1 + $0x4d0] sm:$0xf] %vm3536, %v3403
  %3846 = vst.msk [vmem:[%s1 + $0x4d4] sm:$0xf] %vm3536, %v3404
  %3847 = vst.msk [vmem:[%s1 + $0x4d8] sm:$0xf] %vm3536, %v3405
  %3848 = vst.msk [vmem:[%s1 + $0x4dc] sm:$0xf] %vm3536, %v3406
  %3849 = vst.msk [vmem:[%s1 + $0x4e0] sm:$0xf] %vm3536, %v3407
  %3850 = vst.msk [vmem:[%s1 + $0x4e4] sm:$0xf] %vm3536, %v3408
  %3851 = vst.msk [vmem:[%s1 + $0x4e8] sm:$0xf] %vm3536, %v3409
  %3852 = vst.msk [vmem:[%s1 + $0x4ec] sm:$0xf] %vm3536, %v3410
  %3853 = vst.msk [vmem:[%s1 + $0x4f0] sm:$0xf] %vm3536, %v3411
  %3854 = vst.msk [vmem:[%s1 + $0x4f4] sm:$0xf] %vm3536, %v3412
  %3855 = vst.msk [vmem:[%s1 + $0x4f8] sm:$0xf] %vm3536, %v3413
  %3856 = vst.msk [vmem:[%s1 + $0x4fc] sm:$0xf] %vm3536, %v3414
  %3857 = vst.msk [vmem:[%s1 + $0x500] sm:$0xf] %vm3536, %v3415
  %3858 = vst.msk [vmem:[%s1 + $0x504] sm:$0xf] %vm3536, %v3416
  %3859 = vst.msk [vmem:[%s1 + $0x508] sm:$0xf] %vm3536, %v3417
  %3860 = vst.msk [vmem:[%s1 + $0x50c] sm:$0xf] %vm3536, %v3418
  %3861 = vst.msk [vmem:[%s1 + $0x510] sm:$0xf] %vm3536, %v3419
  %3862 = vst.msk [vmem:[%s1 + $0x514] sm:$0xf] %vm3536, %v3420
  %3863 = vst.msk [vmem:[%s1 + $0x518] sm:$0xf] %vm3536, %v3421
  %3864 = vst.msk [vmem:[%s1 + $0x51c] sm:$0xf] %vm3536, %v3422
  %3865 = vst.msk [vmem:[%s1 + $0x520] sm:$0xf] %vm3536, %v3423
  %3866 = vst.msk [vmem:[%s1 + $0x524] sm:$0xf] %vm3536, %v3424
  %3867 = vst.msk [vmem:[%s1 + $0x528] sm:$0xf] %vm3536, %v3425
  %3868 = vst.msk [vmem:[%s1 + $0x52c] sm:$0xf] %vm3536, %v3426
  %3869 = vst.msk [vmem:[%s1 + $0x530] sm:$0xf] %vm3536, %v3427
  %3870 = vst.msk [vmem:[%s1 + $0x534] sm:$0xf] %vm3536, %v3428
  %3871 = vst.msk [vmem:[%s1 + $0x538] sm:$0xf] %vm3536, %v3429
  %3872 = vst.msk [vmem:[%s1 + $0x53c] sm:$0xf] %vm3536, %v3430
  %3873 = vst.msk [vmem:[%s1 + $0x540] sm:$0xf] %vm3536, %v3431
  %3874 = vst.msk [vmem:[%s1 + $0x544] sm:$0xf] %vm3536, %v3432
  %3875 = vst.msk [vmem:[%s1 + $0x548] sm:$0xf] %vm3536, %v3433
  %3876 = vst.msk [vmem:[%s1 + $0x54c] sm:$0xf] %vm3536, %v3434
  %3877 = vst.msk [vmem:[%s1 + $0x550] sm:$0xf] %vm3536, %v3435
  %3878 = vst.msk [vmem:[%s1 + $0x554] sm:$0xf] %vm3536, %v3436
  %3879 = vst.msk [vmem:[%s1 + $0x558] sm:$0xf] %vm3536, %v3437
  %3880 = vst.msk [vmem:[%s1 + $0x55c] sm:$0xf] %vm3536, %v3438
  %3881 = vst.msk [vmem:[%s1 + $0x560] sm:$0xf] %vm3536, %v3439
  %3882 = vst.msk [vmem:[%s1 + $0x564] sm:$0xf] %vm3536, %v3440
  %3883 = vst.msk [vmem:[%s1 + $0x568] sm:$0xf] %vm3536, %v3441
  %3884 = vst.msk [vmem:[%s1 + $0x56c] sm:$0xf] %vm3536, %v3442
  %3885 = vst.msk [vmem:[%s1 + $0x570] sm:$0xf] %vm3536, %v3443
  %3886 = vst.msk [vmem:[%s1 + $0x574] sm:$0xf] %vm3536, %v3444
  %3887 = vst.msk [vmem:[%s1 + $0x578] sm:$0xf] %vm3536, %v3445
  %3888 = vst.msk [vmem:[%s1 + $0x57c] sm:$0xf] %vm3536, %v3446
  %3889 = vst.msk [vmem:[%s1 + $0x580] sm:$0xf] %vm3536, %v3447
  %3890 = vst.msk [vmem:[%s1 + $0x584] sm:$0xf] %vm3536, %v3448
  %3891 = vst.msk [vmem:[%s1 + $0x588] sm:$0xf] %vm3536, %v3449
  %3892 = vst.msk [vmem:[%s1 + $0x58c] sm:$0xf] %vm3536, %v3450
  %3893 = vst.msk [vmem:[%s1 + $0x590] sm:$0xf] %vm3536, %v3451
  %3894 = vst.msk [vmem:[%s1 + $0x594] sm:$0xf] %vm3536, %v3452
  %3895 = vst.msk [vmem:[%s1 + $0x598] sm:$0xf] %vm3536, %v3453
  %3896 = vst.msk [vmem:[%s1 + $0x59c] sm:$0xf] %vm3536, %v3454
  %3897 = vst.msk [vmem:[%s1 + $0x5a0] sm:$0xf] %vm3536, %v3455
  %3898 = vst.msk [vmem:[%s1 + $0x5a4] sm:$0xf] %vm3536, %v3456
  %3899 = vst.msk [vmem:[%s1 + $0x5a8] sm:$0xf] %vm3536, %v3457
  %3900 = vst.msk [vmem:[%s1 + $0x5ac] sm:$0xf] %vm3536, %v3458
  %3901 = vst.msk [vmem:[%s1 + $0x5b0] sm:$0xf] %vm3536, %v3459
  %3902 = vst.msk [vmem:[%s1 + $0x5b4] sm:$0xf] %vm3536, %v3460
  %3903 = vst.msk [vmem:[%s1 + $0x5b8] sm:$0xf] %vm3536, %v3461
  %3904 = vst.msk [vmem:[%s1 + $0x5bc] sm:$0xf] %vm3536, %v3462
  %3905 = vst.msk [vmem:[%s1 + $0x5c0] sm:$0xf] %vm3536, %v3463
  %3906 = vst.msk [vmem:[%s1 + $0x5c4] sm:$0xf] %vm3536, %v3464
  %3907 = vst.msk [vmem:[%s1 + $0x5c8] sm:$0xf] %vm3536, %v3465
  %3908 = vst.msk [vmem:[%s1 + $0x5cc] sm:$0xf] %vm3536, %v3466
  %3909 = vst.msk [vmem:[%s1 + $0x5d0] sm:$0xf] %vm3536, %v3467
  %3910 = vst.msk [vmem:[%s1 + $0x5d4] sm:$0xf] %vm3536, %v3468
  %3911 = vst.msk [vmem:[%s1 + $0x5d8] sm:$0xf] %vm3536, %v3469
  %3912 = vst.msk [vmem:[%s1 + $0x5dc] sm:$0xf] %vm3536, %v3470
  %3913 = vst.msk [vmem:[%s1 + $0x5e0] sm:$0xf] %vm3536, %v3471
  %3914 = vst.msk [vmem:[%s1 + $0x5e4] sm:$0xf] %vm3536, %v3472
  %3915 = vst.msk [vmem:[%s1 + $0x5e8] sm:$0xf] %vm3536, %v3473
  %3916 = vst.msk [vmem:[%s1 + $0x5ec] sm:$0xf] %vm3536, %v3474
  %3917 = vst.msk [vmem:[%s1 + $0x5f0] sm:$0xf] %vm3536, %v3475
  %3918 = vst.msk [vmem:[%s1 + $0x5f4] sm:$0xf] %vm3536, %v3476
  %3919 = vst.msk [vmem:[%s1 + $0x5f8] sm:$0xf] %vm3536, %v3477
  %3920 = vst.msk [vmem:[%s1 + $0x5fc] sm:$0xf] %vm3536, %v3478
  %3921 = vst.msk [vmem:[%s1 + $0x600] sm:$0xf] %vm3536, %v3479
  %3922 = vst.msk [vmem:[%s1 + $0x604] sm:$0xf] %vm3536, %v3480
  %3923 = vst.msk [vmem:[%s1 + $0x608] sm:$0xf] %vm3536, %v3481
  %3924 = vst.msk [vmem:[%s1 + $0x60c] sm:$0xf] %vm3536, %v3482
  %3925 = vst.msk [vmem:[%s1 + $0x610] sm:$0xf] %vm3536, %v3483
  %3926 = vst.msk [vmem:[%s1 + $0x614] sm:$0xf] %vm3536, %v3484
  %3927 = vst.msk [vmem:[%s1 + $0x618] sm:$0xf] %vm3536, %v3485
  %3928 = vst.msk [vmem:[%s1 + $0x61c] sm:$0xf] %vm3536, %v3486
  %3929 = vst.msk [vmem:[%s1 + $0x620] sm:$0xf] %vm3536, %v3487
  %3930 = vst.msk [vmem:[%s1 + $0x624] sm:$0xf] %vm3536, %v3488
  %3931 = vst.msk [vmem:[%s1 + $0x628] sm:$0xf] %vm3536, %v3489
  %3932 = vst.msk [vmem:[%s1 + $0x62c] sm:$0xf] %vm3536, %v3490
  %3933 = vst.msk [vmem:[%s1 + $0x630] sm:$0xf] %vm3536, %v3491
  %3934 = vst.msk [vmem:[%s1 + $0x634] sm:$0xf] %vm3536, %v3492
  %3935 = vst.msk [vmem:[%s1 + $0x638] sm:$0xf] %vm3536, %v3493
  %3936 = vst.msk [vmem:[%s1 + $0x63c] sm:$0xf] %vm3536, %v3494
  %3937 = vst.msk [vmem:[%s1 + $0x640] sm:$0xf] %vm3536, %v3495
  %3938 = vst.msk [vmem:[%s1 + $0x644] sm:$0xf] %vm3536, %v3496
  %3939 = vst.msk [vmem:[%s1 + $0x648] sm:$0xf] %vm3536, %v3497
  %3940 = vst.msk [vmem:[%s1 + $0x64c] sm:$0xf] %vm3536, %v3498
  %3941 = vst.msk [vmem:[%s1 + $0x650] sm:$0xf] %vm3536, %v3499
  %3942 = vst.msk [vmem:[%s1 + $0x654] sm:$0xf] %vm3536, %v3500
  %3943 = vst.msk [vmem:[%s1 + $0x658] sm:$0xf] %vm3536, %v3501
  %3944 = vst.msk [vmem:[%s1 + $0x65c] sm:$0xf] %vm3536, %v3502
  %3945 = vst.msk [vmem:[%s1 + $0x660] sm:$0xf] %vm3536, %v3503
  %3946 = vst.msk [vmem:[%s1 + $0x664] sm:$0xf] %vm3536, %v3504
  %3947 = vst.msk [vmem:[%s1 + $0x668] sm:$0xf] %vm3536, %v3505
  %3948 = vst.msk [vmem:[%s1 + $0x66c] sm:$0xf] %vm3536, %v3506
  %3949 = vst.msk [vmem:[%s1 + $0x670] sm:$0xf] %vm3536, %v3507
  %3950 = vst.msk [vmem:[%s1 + $0x674] sm:$0xf] %vm3536, %v3508
  %3951 = vst.msk [vmem:[%s1 + $0x678] sm:$0xf] %vm3536, %v3509
  %3952 = vst.msk [vmem:[%s1 + $0x67c] sm:$0xf] %vm3536, %v3510
  %3953 = vst.msk [vmem:[%s1 + $0x680] sm:$0xf] %vm3536, %v3511
  %3954 = vst.msk [vmem:[%s1 + $0x684] sm:$0xf] %vm3536, %v3512
  %3955 = vst.msk [vmem:[%s1 + $0x688] sm:$0xf] %vm3536, %v3513
  %3956 = vst.msk [vmem:[%s1 + $0x68c] sm:$0xf] %vm3536, %v3514
  %3957 = vst.msk [vmem:[%s1 + $0x690] sm:$0xf] %vm3536, %v3515
  %3958 = vst.msk [vmem:[%s1 + $0x694] sm:$0xf] %vm3536, %v3516
  %3959 = vst.msk [vmem:[%s1 + $0x698] sm:$0xf] %vm3536, %v3517
  %3960 = vst.msk [vmem:[%s1 + $0x69c] sm:$0xf] %vm3536, %v3518
  %3961 = vst.msk [vmem:[%s1 + $0x6a0] sm:$0xf] %vm3536, %v3519
  %3962 = vst.msk [vmem:[%s1 + $0x6a4] sm:$0xf] %vm3536, %v3520
  %3963 = vst.msk [vmem:[%s1 + $0x6a8] sm:$0xf] %vm3536, %v3521
  %3964 = vst.msk [vmem:[%s1 + $0x6ac] sm:$0xf] %vm3536, %v3522
  %3965 = vst.msk [vmem:[%s1 + $0x6b0] sm:$0xf] %vm3536, %v3523
  %3966 = vst.msk [vmem:[%s1 + $0x6b4] sm:$0xf] %vm3536, %v3524
  %3967 = vst.msk [vmem:[%s1 + $0x6b8] sm:$0xf] %vm3536, %v3525
  %3968 = vst.msk [vmem:[%s1 + $0x6bc] sm:$0xf] %vm3536, %v3526
  %3969 = vst.msk [vmem:[%s1 + $0x6c0] sm:$0xf] %vm3536, %v3527
  %3970 = vst.msk [vmem:[%s1 + $0x6c4] sm:$0xf] %vm3536, %v3528
  %3971 = vst.msk [vmem:[%s1 + $0x6c8] sm:$0xf] %vm3536, %v3529
  %3972 = vst.msk [vmem:[%s1 + $0x6cc] sm:$0xf] %vm3536, %v3530
  %3973 = vst.msk [vmem:[%s1 + $0x6d0] sm:$0xf] %vm3536, %v3531
  %3974 = vst.msk [vmem:[%s1 + $0x6d4] sm:$0xf] %vm3536, %v3532
  %3975 = vst.msk [vmem:[%s1 + $0x6d8] sm:$0xf] %vm3536, %v3533
  %3976 = vst.msk [vmem:[%s1 + $0x6dc] sm:$0xf] %vm3536, %v3534
  %3977 = vst.msk [vmem:[%s1 + $0x6e0] sm:$0xf] %vm3536, %v3535
  // Predicated region
  $region6: #{dqn_forward.14} parent=0 // pred_check
    _
  $region7: #{dqn_forward.14} parent=0 // pred_check_branch
    %3979 = sbr.rel (0) target = $region9
  $region8: #{dqn_forward.14} parent=0 // pred_region
    _
  $region9: #{dqn_forward.14} parent=0 // pred_fallthru
    _
  // Predicated region
  $region10: #{dqn_forward.14} parent=0 // pred_check
    _
  $region11: #{dqn_forward.14} parent=0 // pred_check_branch
    %3981 = sbr.rel (0) target = $region13
  $region12: #{dqn_forward.14} parent=0 // pred_region
    _
  $region13: #{dqn_forward.14} parent=0 // pred_fallthru
    _

// kernel: dqn_forward.15
$region0: #{dqn_forward.15}
  #allocation0 [shape = 'u32[]', space=smem, size = 0x4, offset = 0x4, fixed_abs, tag = 'smem constant byte address 0x4 - core index']
  #allocation1 [shape = 'u32[72,128]{1,0:T(1,128)}', space=vmem, size = 0x9000, scoped, tag = 'internal scratch']
  %s0 = inlined_call_operand.vmem [shape: bf16[42,2688], index: 0, kind: input, shape index: {}]
  %s1 = inlined_call_operand.vmem [shape: bf16[42,1344], index: 1, kind: output, shape index: {}]
  %s2 = sld [smem:[#allocation0]]
  $region14: #{dqn_forward.15} parent=0
    _
  %s4 = ssub.s32 1, %s2
  %s5 = scalar_select 0, %s4, %s2
  // Predicated region
  $region2: #{dqn_forward.15} parent=0 // pred_check
    _
  $region3: #{dqn_forward.15} parent=0 // pred_check_branch
    %7 = sbr.rel (0) target = $region5
  $region4: #{dqn_forward.15} parent=0 // pred_region
    _
  $region5: #{dqn_forward.15} parent=0 // pred_fallthru
    _
  %v8 = vld [vmem:[%s0] sm:$0xff]
  %v9 = vld [vmem:[%s0 + $0x8] sm:$0xff]
  %v10 = vld [vmem:[%s0 + $0x10] sm:$0xff]
  %v11 = vld [vmem:[%s0 + $0x18] sm:$0xff]
  %v12 = vld [vmem:[%s0 + $0x20] sm:$0xff]
  %v13 = vld [vmem:[%s0 + $0x28] sm:$0xff]
  %v14 = vld [vmem:[%s0 + $0x30] sm:$0xff]
  %v15 = vld [vmem:[%s0 + $0x38] sm:$0xff]
  %v16 = vld [vmem:[%s0 + $0x40] sm:$0xff]
  %v17 = vld [vmem:[%s0 + $0x48] sm:$0xff]
  %v18 = vld [vmem:[%s0 + $0x50] sm:$0xf]
  %v19 = vld [vmem:[%s0 + $0x54] sm:$0xff]
  %v20 = vld [vmem:[%s0 + $0x5c] sm:$0xff]
  %v21 = vld [vmem:[%s0 + $0x64] sm:$0xff]
  %v22 = vld [vmem:[%s0 + $0x6c] sm:$0xff]
  %v23 = vld [vmem:[%s0 + $0x74] sm:$0xff]
  %v24 = vld [vmem:[%s0 + $0x7c] sm:$0xff]
  %v25 = vld [vmem:[%s0 + $0x84] sm:$0xff]
  %v26 = vld [vmem:[%s0 + $0x8c] sm:$0xff]
  %v27 = vld [vmem:[%s0 + $0x94] sm:$0xff]
  %v28 = vld [vmem:[%s0 + $0x9c] sm:$0xff]
  %v29 = vld [vmem:[%s0 + $0xa4] sm:$0xf]
  %v30 = vld [vmem:[%s0 + $0xa8] sm:$0xff]
  %v31 = vld [vmem:[%s0 + $0xb0] sm:$0xff]
  %v32 = vld [vmem:[%s0 + $0xb8] sm:$0xff]
  %v33 = vld [vmem:[%s0 + $0xc0] sm:$0xff]
  %v34 = vld [vmem:[%s0 + $0xc8] sm:$0xff]
  %v35 = vld [vmem:[%s0 + $0xd0] sm:$0xff]
  %v36 = vld [vmem:[%s0 + $0xd8] sm:$0xff]
  %v37 = vld [vmem:[%s0 + $0xe0] sm:$0xff]
  %v38 = vld [vmem:[%s0 + $0xe8] sm:$0xff]
  %v39 = vld [vmem:[%s0 + $0xf0] sm:$0xff]
  %v40 = vld [vmem:[%s0 + $0xf8] sm:$0xf]
  %v41 = vld [vmem:[%s0 + $0xfc] sm:$0xff]
  %v42 = vld [vmem:[%s0 + $0x104] sm:$0xff]
  %v43 = vld [vmem:[%s0 + $0x10c] sm:$0xff]
  %v44 = vld [vmem:[%s0 + $0x114] sm:$0xff]
  %v45 = vld [vmem:[%s0 + $0x11c] sm:$0xff]
  %v46 = vld [vmem:[%s0 + $0x124] sm:$0xff]
  %v47 = vld [vmem:[%s0 + $0x12c] sm:$0xff]
  %v48 = vld [vmem:[%s0 + $0x134] sm:$0xff]
  %v49 = vld [vmem:[%s0 + $0x13c] sm:$0xff]
  %v50 = vld [vmem:[%s0 + $0x144] sm:$0xff]
  %v51 = vld [vmem:[%s0 + $0x14c] sm:$0xf]
  %v52 = vld [vmem:[%s0 + $0x150] sm:$0xff]
  %v53 = vld [vmem:[%s0 + $0x158] sm:$0xff]
  %v54 = vld [vmem:[%s0 + $0x160] sm:$0xff]
  %v55 = vld [vmem:[%s0 + $0x168] sm:$0xff]
  %v56 = vld [vmem:[%s0 + $0x170] sm:$0xff]
  %v57 = vld [vmem:[%s0 + $0x178] sm:$0xff]
  %v58 = vld [vmem:[%s0 + $0x180] sm:$0xff]
  %v59 = vld [vmem:[%s0 + $0x188] sm:$0xff]
  %v60 = vld [vmem:[%s0 + $0x190] sm:$0xff]
  %v61 = vld [vmem:[%s0 + $0x198] sm:$0xff]
  %v62 = vld [vmem:[%s0 + $0x1a0] sm:$0xf]
  %v63 = vld [vmem:[%s0 + $0x1a4] sm:$0x11]
  %v64 = vld [vmem:[%s0 + $0x1ac] sm:$0x11]
  %v65 = vld [vmem:[%s0 + $0x1b4] sm:$0x11]
  %v66 = vld [vmem:[%s0 + $0x1bc] sm:$0x11]
  %v67 = vld [vmem:[%s0 + $0x1c4] sm:$0x11]
  %v68 = vld [vmem:[%s0 + $0x1cc] sm:$0x11]
  %v69 = vld [vmem:[%s0 + $0x1d4] sm:$0x11]
  %v70 = vld [vmem:[%s0 + $0x1dc] sm:$0x11]
  %v71 = vld [vmem:[%s0 + $0x1e4] sm:$0x11]
  %v72 = vld [vmem:[%s0 + $0x1ec] sm:$0x11]
  %v73 = vld [vmem:[%s0 + $0x1f4] sm:$0x1]
  %v74 = vunpack.c.l.bf16 %v8
  %v75 = vunpack.c.h.bf16 %v8
  %v76 = vunpack.c.l.bf16 %v9
  %v77 = vunpack.c.h.bf16 %v9
  %v78 = vunpack.c.l.bf16 %v10
  %v79 = vunpack.c.h.bf16 %v10
  %v80 = vunpack.c.l.bf16 %v11
  %v81 = vunpack.c.h.bf16 %v11
  %v82 = vunpack.c.l.bf16 %v12
  %v83 = vunpack.c.h.bf16 %v12
  %v84 = vunpack.c.l.bf16 %v13
  %v85 = vunpack.c.l.bf16 %v19
  %v86 = vunpack.c.h.bf16 %v19
  %v87 = vunpack.c.l.bf16 %v20
  %v88 = vunpack.c.h.bf16 %v20
  %v89 = vunpack.c.l.bf16 %v21
  %v90 = vunpack.c.h.bf16 %v21
  %v91 = vunpack.c.l.bf16 %v22
  %v92 = vunpack.c.h.bf16 %v22
  %v93 = vunpack.c.l.bf16 %v23
  %v94 = vunpack.c.h.bf16 %v23
  %v95 = vunpack.c.l.bf16 %v24
  %v96 = vunpack.c.l.bf16 %v30
  %v97 = vunpack.c.h.bf16 %v30
  %v98 = vunpack.c.l.bf16 %v31
  %v99 = vunpack.c.h.bf16 %v31
  %v100 = vunpack.c.l.bf16 %v32
  %v101 = vunpack.c.h.bf16 %v32
  %v102 = vunpack.c.l.bf16 %v33
  %v103 = vunpack.c.h.bf16 %v33
  %v104 = vunpack.c.l.bf16 %v34
  %v105 = vunpack.c.h.bf16 %v34
  %v106 = vunpack.c.l.bf16 %v35
  %v107 = vunpack.c.l.bf16 %v41
  %v108 = vunpack.c.h.bf16 %v41
  %v109 = vunpack.c.l.bf16 %v42
  %v110 = vunpack.c.h.bf16 %v42
  %v111 = vunpack.c.l.bf16 %v43
  %v112 = vunpack.c.h.bf16 %v43
  %v113 = vunpack.c.l.bf16 %v44
  %v114 = vunpack.c.h.bf16 %v44
  %v115 = vunpack.c.l.bf16 %v45
  %v116 = vunpack.c.h.bf16 %v45
  %v117 = vunpack.c.l.bf16 %v46
  %v118 = vunpack.c.l.bf16 %v52
  %v119 = vunpack.c.h.bf16 %v52
  %v120 = vunpack.c.l.bf16 %v53
  %v121 = vunpack.c.h.bf16 %v53
  %v122 = vunpack.c.l.bf16 %v54
  %v123 = vunpack.c.h.bf16 %v54
  %v124 = vunpack.c.l.bf16 %v55
  %v125 = vunpack.c.h.bf16 %v55
  %v126 = vunpack.c.l.bf16 %v56
  %v127 = vunpack.c.h.bf16 %v56
  %v128 = vunpack.c.l.bf16 %v57
  %v129 = vunpack.c.l.bf16 %v63
  %v130 = vunpack.c.h.bf16 %v63
  %v131 = vunpack.c.l.bf16 %v64
  %v132 = vunpack.c.h.bf16 %v64
  %v133 = vunpack.c.l.bf16 %v65
  %v134 = vunpack.c.h.bf16 %v65
  %v135 = vunpack.c.l.bf16 %v66
  %v136 = vunpack.c.h.bf16 %v66
  %v137 = vunpack.c.l.bf16 %v67
  %v138 = vunpack.c.h.bf16 %v67
  %v139 = vunpack.c.l.bf16 %v68
  %v140 = vunpack.c.h.bf16 %v13
  %v141 = vunpack.c.l.bf16 %v14
  %v142 = vunpack.c.h.bf16 %v14
  %v143 = vunpack.c.l.bf16 %v15
  %v144 = vunpack.c.h.bf16 %v15
  %v145 = vunpack.c.l.bf16 %v16
  %v146 = vunpack.c.h.bf16 %v16
  %v147 = vunpack.c.l.bf16 %v17
  %v148 = vunpack.c.h.bf16 %v17
  %v149 = vunpack.c.l.bf16 %v18
  %v150 = vunpack.c.h.bf16 %v24
  %v151 = vunpack.c.l.bf16 %v25
  %v152 = vunpack.c.h.bf16 %v25
  %v153 = vunpack.c.l.bf16 %v26
  %v154 = vunpack.c.h.bf16 %v26
  %v155 = vunpack.c.l.bf16 %v27
  %v156 = vunpack.c.h.bf16 %v27
  %v157 = vunpack.c.l.bf16 %v28
  %v158 = vunpack.c.h.bf16 %v28
  %v159 = vunpack.c.l.bf16 %v29
  %v160 = vunpack.c.h.bf16 %v35
  %v161 = vunpack.c.l.bf16 %v36
  %v162 = vunpack.c.h.bf16 %v36
  %v163 = vunpack.c.l.bf16 %v37
  %v164 = vunpack.c.h.bf16 %v37
  %v165 = vunpack.c.l.bf16 %v38
  %v166 = vunpack.c.h.bf16 %v38
  %v167 = vunpack.c.l.bf16 %v39
  %v168 = vunpack.c.h.bf16 %v39
  %v169 = vunpack.c.l.bf16 %v40
  %v170 = vunpack.c.h.bf16 %v46
  %v171 = vunpack.c.l.bf16 %v47
  %v172 = vunpack.c.h.bf16 %v47
  %v173 = vunpack.c.l.bf16 %v48
  %v174 = vunpack.c.h.bf16 %v48
  %v175 = vunpack.c.l.bf16 %v49
  %v176 = vunpack.c.h.bf16 %v49
  %v177 = vunpack.c.l.bf16 %v50
  %v178 = vunpack.c.h.bf16 %v50
  %v179 = vunpack.c.l.bf16 %v51
  %v180 = vunpack.c.h.bf16 %v57
  %v181 = vunpack.c.l.bf16 %v58
  %v182 = vunpack.c.h.bf16 %v58
  %v183 = vunpack.c.l.bf16 %v59
  %v184 = vunpack.c.h.bf16 %v59
  %v185 = vunpack.c.l.bf16 %v60
  %v186 = vunpack.c.h.bf16 %v60
  %v187 = vunpack.c.l.bf16 %v61
  %v188 = vunpack.c.h.bf16 %v61
  %v189 = vunpack.c.l.bf16 %v62
  %v190 = vunpack.c.h.bf16 %v68
  %v191 = vunpack.c.l.bf16 %v69
  %v192 = vunpack.c.h.bf16 %v69
  %v193 = vunpack.c.l.bf16 %v70
  %v194 = vunpack.c.h.bf16 %v70
  %v195 = vunpack.c.l.bf16 %v71
  %v196 = vunpack.c.h.bf16 %v71
  %v197 = vunpack.c.l.bf16 %v72
  %v198 = vunpack.c.h.bf16 %v72
  %v199 = vunpack.c.l.bf16 %v73
  %266 = vrot.lane.b32.xlu0 %v84, 64
  %v267 = vpop.permute.xlu0 %266
  %268 = vrot.lane.b32.xlu0 %v140, 64
  %v269 = vpop.permute.xlu0 %268
  %270 = vrot.lane.b32.xlu0 %v141, 64
  %v271 = vpop.permute.xlu0 %270
  %272 = vrot.lane.b32.xlu0 %v142, 64
  %v273 = vpop.permute.xlu0 %272
  %274 = vrot.lane.b32.xlu0 %v143, 64
  %v275 = vpop.permute.xlu0 %274
  %276 = vrot.lane.b32.xlu0 %v144, 64
  %v277 = vpop.permute.xlu0 %276
  %278 = vrot.lane.b32.xlu0 %v145, 64
  %v279 = vpop.permute.xlu0 %278
  %280 = vrot.lane.b32.xlu0 %v146, 64
  %v281 = vpop.permute.xlu0 %280
  %282 = vrot.lane.b32.xlu0 %v147, 64
  %v283 = vpop.permute.xlu0 %282
  %284 = vrot.lane.b32.xlu0 %v148, 64
  %v285 = vpop.permute.xlu0 %284
  %286 = vrot.lane.b32.xlu0 %v149, 64
  %v287 = vpop.permute.xlu0 %286
  %288 = vrot.lane.b32.xlu0 %v95, 64
  %v289 = vpop.permute.xlu0 %288
  %290 = vrot.lane.b32.xlu0 %v150, 64
  %v291 = vpop.permute.xlu0 %290
  %292 = vrot.lane.b32.xlu0 %v151, 64
  %v293 = vpop.permute.xlu0 %292
  %294 = vrot.lane.b32.xlu0 %v152, 64
  %v295 = vpop.permute.xlu0 %294
  %296 = vrot.lane.b32.xlu0 %v153, 64
  %v297 = vpop.permute.xlu0 %296
  %298 = vrot.lane.b32.xlu0 %v154, 64
  %v299 = vpop.permute.xlu0 %298
  %300 = vrot.lane.b32.xlu0 %v155, 64
  %v301 = vpop.permute.xlu0 %300
  %302 = vrot.lane.b32.xlu0 %v156, 64
  %v303 = vpop.permute.xlu0 %302
  %304 = vrot.lane.b32.xlu0 %v157, 64
  %v305 = vpop.permute.xlu0 %304
  %306 = vrot.lane.b32.xlu0 %v158, 64
  %v307 = vpop.permute.xlu0 %306
  %308 = vrot.lane.b32.xlu0 %v159, 64
  %v309 = vpop.permute.xlu0 %308
  %310 = vrot.lane.b32.xlu0 %v106, 64
  %v311 = vpop.permute.xlu0 %310
  %312 = vrot.lane.b32.xlu0 %v160, 64
  %v313 = vpop.permute.xlu0 %312
  %314 = vrot.lane.b32.xlu0 %v161, 64
  %v315 = vpop.permute.xlu0 %314
  %316 = vrot.lane.b32.xlu0 %v162, 64
  %v317 = vpop.permute.xlu0 %316
  %318 = vrot.lane.b32.xlu0 %v163, 64
  %v319 = vpop.permute.xlu0 %318
  %320 = vrot.lane.b32.xlu0 %v164, 64
  %v321 = vpop.permute.xlu0 %320
  %322 = vrot.lane.b32.xlu0 %v165, 64
  %v323 = vpop.permute.xlu0 %322
  %324 = vrot.lane.b32.xlu0 %v166, 64
  %v325 = vpop.permute.xlu0 %324
  %326 = vrot.lane.b32.xlu0 %v167, 64
  %v327 = vpop.permute.xlu0 %326
  %328 = vrot.lane.b32.xlu0 %v168, 64
  %v329 = vpop.permute.xlu0 %328
  %330 = vrot.lane.b32.xlu0 %v169, 64
  %v331 = vpop.permute.xlu0 %330
  %332 = vrot.lane.b32.xlu0 %v117, 64
  %v333 = vpop.permute.xlu0 %332
  %334 = vrot.lane.b32.xlu0 %v170, 64
  %v335 = vpop.permute.xlu0 %334
  %336 = vrot.lane.b32.xlu0 %v171, 64
  %v337 = vpop.permute.xlu0 %336
  %338 = vrot.lane.b32.xlu0 %v172, 64
  %v339 = vpop.permute.xlu0 %338
  %340 = vrot.lane.b32.xlu0 %v173, 64
  %v341 = vpop.permute.xlu0 %340
  %342 = vrot.lane.b32.xlu0 %v174, 64
  %v343 = vpop.permute.xlu0 %342
  %344 = vrot.lane.b32.xlu0 %v175, 64
  %v345 = vpop.permute.xlu0 %344
  %346 = vrot.lane.b32.xlu0 %v176, 64
  %v347 = vpop.permute.xlu0 %346
  %348 = vrot.lane.b32.xlu0 %v177, 64
  %v349 = vpop.permute.xlu0 %348
  %350 = vrot.lane.b32.xlu0 %v178, 64
  %v351 = vpop.permute.xlu0 %350
  %352 = vrot.lane.b32.xlu0 %v179, 64
  %v353 = vpop.permute.xlu0 %352
  %354 = vrot.lane.b32.xlu0 %v128, 64
  %v355 = vpop.permute.xlu0 %354
  %356 = vrot.lane.b32.xlu0 %v180, 64
  %v357 = vpop.permute.xlu0 %356
  %358 = vrot.lane.b32.xlu0 %v181, 64
  %v359 = vpop.permute.xlu0 %358
  %360 = vrot.lane.b32.xlu0 %v182, 64
  %v361 = vpop.permute.xlu0 %360
  %362 = vrot.lane.b32.xlu0 %v183, 64
  %v363 = vpop.permute.xlu0 %362
  %364 = vrot.lane.b32.xlu0 %v184, 64
  %v365 = vpop.permute.xlu0 %364
  %366 = vrot.lane.b32.xlu0 %v185, 64
  %v367 = vpop.permute.xlu0 %366
  %368 = vrot.lane.b32.xlu0 %v186, 64
  %v369 = vpop.permute.xlu0 %368
  %370 = vrot.lane.b32.xlu0 %v187, 64
  %v371 = vpop.permute.xlu0 %370
  %372 = vrot.lane.b32.xlu0 %v188, 64
  %v373 = vpop.permute.xlu0 %372
  %374 = vrot.lane.b32.xlu0 %v189, 64
  %v375 = vpop.permute.xlu0 %374
  %376 = vrot.lane.b32.xlu0 %v139, 64
  %v377 = vpop.permute.xlu0 %376
  %378 = vrot.lane.b32.xlu0 %v190, 64
  %v379 = vpop.permute.xlu0 %378
  %380 = vrot.lane.b32.xlu0 %v191, 64
  %v381 = vpop.permute.xlu0 %380
  %382 = vrot.lane.b32.xlu0 %v192, 64
  %v383 = vpop.permute.xlu0 %382
  %384 = vrot.lane.b32.xlu0 %v193, 64
  %v385 = vpop.permute.xlu0 %384
  %386 = vrot.lane.b32.xlu0 %v194, 64
  %v387 = vpop.permute.xlu0 %386
  %388 = vrot.lane.b32.xlu0 %v195, 64
  %v389 = vpop.permute.xlu0 %388
  %390 = vrot.lane.b32.xlu0 %v196, 64
  %v391 = vpop.permute.xlu0 %390
  %392 = vrot.lane.b32.xlu0 %v197, 64
  %v393 = vpop.permute.xlu0 %392
  %394 = vrot.lane.b32.xlu0 %v198, 64
  %v395 = vpop.permute.xlu0 %394
  %396 = vrot.lane.b32.xlu0 %v199, 64
  %v397 = vpop.permute.xlu0 %396
  %vm398 = vcmask 523264
  %v399 = vsel %vm398, %v267, %v269
  %v400 = vsel %vm398, %v269, %v271
  %v401 = vsel %vm398, %v271, %v273
  %v402 = vsel %vm398, %v273, %v275
  %v403 = vsel %vm398, %v275, %v277
  %v404 = vsel %vm398, %v277, %v279
  %v405 = vsel %vm398, %v279, %v281
  %v406 = vsel %vm398, %v281, %v283
  %v407 = vsel %vm398, %v283, %v285
  %v408 = vsel %vm398, %v285, %v287
  %v409 = vsel %vm398, %v289, %v291
  %v410 = vsel %vm398, %v291, %v293
  %v411 = vsel %vm398, %v293, %v295
  %v412 = vsel %vm398, %v295, %v297
  %v413 = vsel %vm398, %v297, %v299
  %v414 = vsel %vm398, %v299, %v301
  %v415 = vsel %vm398, %v301, %v303
  %v416 = vsel %vm398, %v303, %v305
  %v417 = vsel %vm398, %v305, %v307
  %v418 = vsel %vm398, %v307, %v309
  %v419 = vsel %vm398, %v311, %v313
  %v420 = vsel %vm398, %v313, %v315
  %v421 = vsel %vm398, %v315, %v317
  %v422 = vsel %vm398, %v317, %v319
  %v423 = vsel %vm398, %v319, %v321
  %v424 = vsel %vm398, %v321, %v323
  %v425 = vsel %vm398, %v323, %v325
  %v426 = vsel %vm398, %v325, %v327
  %v427 = vsel %vm398, %v327, %v329
  %v428 = vsel %vm398, %v329, %v331
  %v429 = vsel %vm398, %v333, %v335
  %v430 = vsel %vm398, %v335, %v337
  %v431 = vsel %vm398, %v337, %v339
  %v432 = vsel %vm398, %v339, %v341
  %v433 = vsel %vm398, %v341, %v343
  %v434 = vsel %vm398, %v343, %v345
  %v435 = vsel %vm398, %v345, %v347
  %v436 = vsel %vm398, %v347, %v349
  %v437 = vsel %vm398, %v349, %v351
  %v438 = vsel %vm398, %v351, %v353
  %v439 = vsel %vm398, %v355, %v357
  %v440 = vsel %vm398, %v357, %v359
  %v441 = vsel %vm398, %v359, %v361
  %v442 = vsel %vm398, %v361, %v363
  %v443 = vsel %vm398, %v363, %v365
  %v444 = vsel %vm398, %v365, %v367
  %v445 = vsel %vm398, %v367, %v369
  %v446 = vsel %vm398, %v369, %v371
  %v447 = vsel %vm398, %v371, %v373
  %v448 = vsel %vm398, %v373, %v375
  %v449 = vsel %vm398, %v377, %v379
  %v450 = vsel %vm398, %v379, %v381
  %v451 = vsel %vm398, %v381, %v383
  %v452 = vsel %vm398, %v383, %v385
  %v453 = vsel %vm398, %v385, %v387
  %v454 = vsel %vm398, %v387, %v389
  %v455 = vsel %vm398, %v389, %v391
  %v456 = vsel %vm398, %v391, %v393
  %v457 = vsel %vm398, %v393, %v395
  %v458 = vsel %vm398, %v395, %v397
  %v525 = vmax.f32 %v74, %v399
  %v526 = vmax.f32 %v75, %v400
  %v527 = vmax.f32 %v76, %v401
  %v528 = vmax.f32 %v77, %v402
  %v529 = vmax.f32 %v78, %v403
  %v530 = vmax.f32 %v79, %v404
  %v531 = vmax.f32 %v80, %v405
  %v532 = vmax.f32 %v81, %v406
  %v533 = vmax.f32 %v82, %v407
  %v534 = vmax.f32 %v83, %v408
  %v535 = vmax.f32 %v84, %v287
  %v536 = vmax.f32 %v85, %v409
  %v537 = vmax.f32 %v86, %v410
  %v538 = vmax.f32 %v87, %v411
  %v539 = vmax.f32 %v88, %v412
  %v540 = vmax.f32 %v89, %v413
  %v541 = vmax.f32 %v90, %v414
  %v542 = vmax.f32 %v91, %v415
  %v543 = vmax.f32 %v92, %v416
  %v544 = vmax.f32 %v93, %v417
  %v545 = vmax.f32 %v94, %v418
  %v546 = vmax.f32 %v95, %v309
  %v547 = vmax.f32 %v96, %v419
  %v548 = vmax.f32 %v97, %v420
  %v549 = vmax.f32 %v98, %v421
  %v550 = vmax.f32 %v99, %v422
  %v551 = vmax.f32 %v100, %v423
  %v552 = vmax.f32 %v101, %v424
  %v553 = vmax.f32 %v102, %v425
  %v554 = vmax.f32 %v103, %v426
  %v555 = vmax.f32 %v104, %v427
  %v556 = vmax.f32 %v105, %v428
  %v557 = vmax.f32 %v106, %v331
  %v558 = vmax.f32 %v107, %v429
  %v559 = vmax.f32 %v108, %v430
  %v560 = vmax.f32 %v109, %v431
  %v561 = vmax.f32 %v110, %v432
  %v562 = vmax.f32 %v111, %v433
  %v563 = vmax.f32 %v112, %v434
  %v564 = vmax.f32 %v113, %v435
  %v565 = vmax.f32 %v114, %v436
  %v566 = vmax.f32 %v115, %v437
  %v567 = vmax.f32 %v116, %v438
  %v568 = vmax.f32 %v117, %v353
  %v569 = vmax.f32 %v118, %v439
  %v570 = vmax.f32 %v119, %v440
  %v571 = vmax.f32 %v120, %v441
  %v572 = vmax.f32 %v121, %v442
  %v573 = vmax.f32 %v122, %v443
  %v574 = vmax.f32 %v123, %v444
  %v575 = vmax.f32 %v124, %v445
  %v576 = vmax.f32 %v125, %v446
  %v577 = vmax.f32 %v126, %v447
  %v578 = vmax.f32 %v127, %v448
  %v579 = vmax.f32 %v128, %v375
  %v580 = vmax.f32 %v129, %v449
  %v581 = vmax.f32 %v130, %v450
  %v582 = vmax.f32 %v131, %v451
  %v583 = vmax.f32 %v132, %v452
  %v584 = vmax.f32 %v133, %v453
  %v585 = vmax.f32 %v134, %v454
  %v586 = vmax.f32 %v135, %v455
  %v587 = vmax.f32 %v136, %v456
  %v588 = vmax.f32 %v137, %v457
  %v589 = vmax.f32 %v138, %v458
  %v590 = vmax.f32 %v139, %v397
  %v591 = vpack.c.bf16 %v526, %v525
  %v592 = vpack.c.bf16 %v528, %v527
  %v593 = vpack.c.bf16 %v530, %v529
  %v594 = vpack.c.bf16 %v532, %v531
  %v595 = vpack.c.bf16 %v534, %v533
  %v596 = vpack.c.bf16 %v535, %v535
  %v597 = vpack.c.bf16 %v537, %v536
  %v598 = vpack.c.bf16 %v539, %v538
  %v599 = vpack.c.bf16 %v541, %v540
  %v600 = vpack.c.bf16 %v543, %v542
  %v601 = vpack.c.bf16 %v545, %v544
  %v602 = vpack.c.bf16 %v546, %v546
  %v603 = vpack.c.bf16 %v548, %v547
  %v604 = vpack.c.bf16 %v550, %v549
  %v605 = vpack.c.bf16 %v552, %v551
  %v606 = vpack.c.bf16 %v554, %v553
  %v607 = vpack.c.bf16 %v556, %v555
  %v608 = vpack.c.bf16 %v557, %v557
  %v609 = vpack.c.bf16 %v559, %v558
  %v610 = vpack.c.bf16 %v561, %v560
  %v611 = vpack.c.bf16 %v563, %v562
  %v612 = vpack.c.bf16 %v565, %v564
  %v613 = vpack.c.bf16 %v567, %v566
  %v614 = vpack.c.bf16 %v568, %v568
  %v615 = vpack.c.bf16 %v570, %v569
  %v616 = vpack.c.bf16 %v572, %v571
  %v617 = vpack.c.bf16 %v574, %v573
  %v618 = vpack.c.bf16 %v576, %v575
  %v619 = vpack.c.bf16 %v578, %v577
  %v620 = vpack.c.bf16 %v579, %v579
  %v621 = vpack.c.bf16 %v581, %v580
  %v622 = vpack.c.bf16 %v583, %v582
  %v623 = vpack.c.bf16 %v585, %v584
  %v624 = vpack.c.bf16 %v587, %v586
  %v625 = vpack.c.bf16 %v589, %v588
  %v626 = vpack.c.bf16 %v590, %v590
  %627 = vst [vmem:[%s1] sm:$0xff] %v591
  %628 = vst [vmem:[%s1 + $0x8] sm:$0xff] %v592
  %629 = vst [vmem:[%s1 + $0x10] sm:$0xff] %v593
  %630 = vst [vmem:[%s1 + $0x18] sm:$0xff] %v594
  %631 = vst [vmem:[%s1 + $0x20] sm:$0xff] %v595
  %vm632 = vcmask 519168
  %633 = vst.msk [vmem:[%s1 + $0x28] sm:$0xf] %vm632, %v596
  %634 = vst [vmem:[%s1 + $0x2c] sm:$0xff] %v597
  %635 = vst [vmem:[%s1 + $0x34] sm:$0xff] %v598
  %636 = vst [vmem:[%s1 + $0x3c] sm:$0xff] %v599
  %637 = vst [vmem:[%s1 + $0x44] sm:$0xff] %v600
  %638 = vst [vmem:[%s1 + $0x4c] sm:$0xff] %v601
  %639 = vst.msk [vmem:[%s1 + $0x54] sm:$0xf] %vm632, %v602
  %640 = vst [vmem:[%s1 + $0x58] sm:$0xff] %v603
  %641 = vst [vmem:[%s1 + $0x60] sm:$0xff] %v604
  %642 = vst [vmem:[%s1 + $0x68] sm:$0xff] %v605
  %643 = vst [vmem:[%s1 + $0x70] sm:$0xff] %v606
  %644 = vst [vmem:[%s1 + $0x78] sm:$0xff] %v607
  %645 = vst.msk [vmem:[%s1 + $0x80] sm:$0xf] %vm632, %v608
  %646 = vst [vmem:[%s1 + $0x84] sm:$0xff] %v609
  %647 = vst [vmem:[%s1 + $0x8c] sm:$0xff] %v610
  %648 = vst [vmem:[%s1 + $0x94] sm:$0xff] %v611
  %649 = vst [vmem:[%s1 + $0x9c] sm:$0xff] %v612
  %650 = vst [vmem:[%s1 + $0xa4] sm:$0xff] %v613
  %651 = vst.msk [vmem:[%s1 + $0xac] sm:$0xf] %vm632, %v614
  %652 = vst [vmem:[%s1 + $0xb0] sm:$0xff] %v615
  %653 = vst [vmem:[%s1 + $0xb8] sm:$0xff] %v616
  %654 = vst [vmem:[%s1 + $0xc0] sm:$0xff] %v617
  %655 = vst [vmem:[%s1 + $0xc8] sm:$0xff] %v618
  %656 = vst [vmem:[%s1 + $0xd0] sm:$0xff] %v619
  %657 = vst.msk [vmem:[%s1 + $0xd8] sm:$0xf] %vm632, %v620
  %658 = vst [vmem:[%s1 + $0xdc] sm:$0x11] %v621
  %659 = vst [vmem:[%s1 + $0xe4] sm:$0x11] %v622
  %660 = vst [vmem:[%s1 + $0xec] sm:$0x11] %v623
  %661 = vst [vmem:[%s1 + $0xf4] sm:$0x11] %v624
  %662 = vst [vmem:[%s1 + $0xfc] sm:$0x11] %v625
  %vm663 = vcmask 516096
  %664 = vst.msk [vmem:[%s1 + $0x104] sm:$0x1] %vm663, %v626
  // Predicated region
  $region6: #{dqn_forward.15} parent=0 // pred_check
    _
  $region7: #{dqn_forward.15} parent=0 // pred_check_branch
    %666 = sbr.rel (0) target = $region9
  $region8: #{dqn_forward.15} parent=0 // pred_region
    _
  $region9: #{dqn_forward.15} parent=0 // pred_fallthru
    _
  // Predicated region
  $region10: #{dqn_forward.15} parent=0 // pred_check
    _
  $region11: #{dqn_forward.15} parent=0 // pred_check_branch
    %668 = sbr.rel (0) target = $region13
  $region12: #{dqn_forward.15} parent=0 // pred_region
    _
  $region13: #{dqn_forward.15} parent=0 // pred_fallthru
    _

// kernel: dqn_forward.16
$region0: #{dqn_forward.16}
  #allocation0 [shape = 'u32[]', space=smem, size = 0x4, offset = 0x4, fixed_abs, tag = 'smem constant byte address 0x4 - core index']
  #allocation1 [shape = 'u32[72,128]{1,0:T(1,128)}', space=vmem, size = 0x9000, scoped, tag = 'internal scratch']
  %s0 = inlined_call_operand.vmem [shape: bf16[400,512], index: 0, kind: input, shape index: {}]
  %s1 = inlined_call_operand.vmem [shape: bf16[512,64], index: 1, kind: input, shape index: {}]
  %s2 = inlined_call_operand.vmem [shape: f32[1,64], index: 2, kind: input, shape index: {}]
  %s3 = inlined_call_operand.vmem [shape: bf16[400,64], index: 3, kind: output, shape index: {}]
  %s4 = sld [smem:[#allocation0]]
  $region22: #{dqn_forward.16} parent=0
    _
  %s6 = ssub.s32 1, %s4
  %s7 = scalar_select 0, %s6, %s4
  // Predicated region
  $region2: #{dqn_forward.16} parent=0 // pred_check
    _
  $region3: #{dqn_forward.16} parent=0 // pred_check_branch
    %9 = sbr.rel (0) target = $region5
  $region4: #{dqn_forward.16} parent=0 // pred_region
    _
  $region5: #{dqn_forward.16} parent=0 // pred_fallthru
    _
  // Predicated region
  $region6: #{dqn_forward.16} parent=0 // pred_check
    _
  $region7: #{dqn_forward.16} parent=0 // pred_check_branch
    %11 = sbr.rel (0) target = $region9
  $region8: #{dqn_forward.16} parent=0 // pred_region
    _
  $region9: #{dqn_forward.16} parent=0 // pred_fallthru
    _
  // Predicated region
  $region10: #{dqn_forward.16} parent=0 // pred_check
    _
  $region11: #{dqn_forward.16} parent=0 // pred_check_branch
    %13 = sbr.rel (0) target = $region13
  $region12: #{dqn_forward.16} parent=0 // pred_region
    _
  $region13: #{dqn_forward.16} parent=0 // pred_fallthru
    _
  %v14 = vld [vmem:[%s0] sm:$0xff]
  %v15 = vld [vmem:[%s0 + $0x8] sm:$0xff]
  %v16 = vld [vmem:[%s0 + $0x10] sm:$0xff]
  %v17 = vld [vmem:[%s0 + $0x18] sm:$0xff]
  %v18 = vld [vmem:[%s0 + $0x20] sm:$0xff]
  %v19 = vld [vmem:[%s0 + $0x28] sm:$0xff]
  %v20 = vld [vmem:[%s0 + $0x30] sm:$0xff]
  %v21 = vld [vmem:[%s0 + $0x38] sm:$0xff]
  %v22 = vld [vmem:[%s0 + $0x40] sm:$0xff]
  %v23 = vld [vmem:[%s0 + $0x48] sm:$0xff]
  %v24 = vld [vmem:[%s0 + $0x50] sm:$0xff]
  %v25 = vld [vmem:[%s0 + $0x58] sm:$0xff]
  %v26 = vld [vmem:[%s0 + $0x60] sm:$0xff]
  %v27 = vld [vmem:[%s0 + $0x68] sm:$0xff]
  %v28 = vld [vmem:[%s0 + $0x70] sm:$0xff]
  %v29 = vld [vmem:[%s0 + $0x78] sm:$0xff]
  %v30 = vld [vmem:[%s0 + $0x80] sm:$0xff]
  %v31 = vld [vmem:[%s0 + $0x88] sm:$0xff]
  %v32 = vld [vmem:[%s0 + $0x90] sm:$0xff]
  %v33 = vld [vmem:[%s0 + $0x98] sm:$0xff]
  %v34 = vld [vmem:[%s0 + $0xa0] sm:$0xff]
  %v35 = vld [vmem:[%s0 + $0xa8] sm:$0xff]
  %v36 = vld [vmem:[%s0 + $0xb0] sm:$0xff]
  %v37 = vld [vmem:[%s0 + $0xb8] sm:$0xff]
  %v38 = vld [vmem:[%s0 + $0xc0] sm:$0xff]
  %v39 = vld [vmem:[%s0 + $0xc8] sm:$0xff]
  %v40 = vld [vmem:[%s0 + $0xd0] sm:$0xff]
  %v41 = vld [vmem:[%s0 + $0xd8] sm:$0xff]
  %v42 = vld [vmem:[%s0 + $0xe0] sm:$0xff]
  %v43 = vld [vmem:[%s0 + $0xe8] sm:$0xff]
  %v44 = vld [vmem:[%s0 + $0xf0] sm:$0xff]
  %v45 = vld [vmem:[%s0 + $0xf8] sm:$0xff]
  %v46 = vld [vmem:[%s0 + $0x100] sm:$0xff]
  %v47 = vld [vmem:[%s0 + $0x108] sm:$0xff]
  %v48 = vld [vmem:[%s0 + $0x110] sm:$0xff]
  %v49 = vld [vmem:[%s0 + $0x118] sm:$0xff]
  %v50 = vld [vmem:[%s0 + $0x120] sm:$0xff]
  %v51 = vld [vmem:[%s0 + $0x128] sm:$0xff]
  %v52 = vld [vmem:[%s0 + $0x130] sm:$0xff]
  %v53 = vld [vmem:[%s0 + $0x138] sm:$0xff]
  %v54 = vld [vmem:[%s0 + $0x140] sm:$0xff]
  %v55 = vld [vmem:[%s0 + $0x148] sm:$0xff]
  %v56 = vld [vmem:[%s0 + $0x150] sm:$0xff]
  %v57 = vld [vmem:[%s0 + $0x158] sm:$0xff]
  %v58 = vld [vmem:[%s0 + $0x160] sm:$0xff]
  %v59 = vld [vmem:[%s0 + $0x168] sm:$0xff]
  %v60 = vld [vmem:[%s0 + $0x170] sm:$0xff]
  %v61 = vld [vmem:[%s0 + $0x178] sm:$0xff]
  %v62 = vld [vmem:[%s0 + $0x180] sm:$0xff]
  %v63 = vld [vmem:[%s0 + $0x188] sm:$0xff]
  %v64 = vld [vmem:[%s0 + $0x190] sm:$0xff]
  %v65 = vld [vmem:[%s0 + $0x198] sm:$0xff]
  %v66 = vld [vmem:[%s0 + $0x1a0] sm:$0xff]
  %v67 = vld [vmem:[%s0 + $0x1a8] sm:$0xff]
  %v68 = vld [vmem:[%s0 + $0x1b0] sm:$0xff]
  %v69 = vld [vmem:[%s0 + $0x1b8] sm:$0xff]
  %v70 = vld [vmem:[%s0 + $0x1c0] sm:$0xff]
  %v71 = vld [vmem:[%s0 + $0x1c8] sm:$0xff]
  %v72 = vld [vmem:[%s0 + $0x1d0] sm:$0xff]
  %v73 = vld [vmem:[%s0 + $0x1d8] sm:$0xff]
  %v74 = vld [vmem:[%s0 + $0x1e0] sm:$0xff]
  %v75 = vld [vmem:[%s0 + $0x1e8] sm:$0xff]
  %v76 = vld [vmem:[%s0 + $0x1f0] sm:$0xff]
  %v77 = vld [vmem:[%s0 + $0x1f8] sm:$0xff]
  %v78 = vld [vmem:[%s0 + $0x200] sm:$0xff]
  %v79 = vld [vmem:[%s0 + $0x208] sm:$0xff]
  %v80 = vld [vmem:[%s0 + $0x210] sm:$0xff]
  %v81 = vld [vmem:[%s0 + $0x218] sm:$0xff]
  %v82 = vld [vmem:[%s0 + $0x220] sm:$0xff]
  %v83 = vld [vmem:[%s0 + $0x228] sm:$0xff]
  %v84 = vld [vmem:[%s0 + $0x230] sm:$0xff]
  %v85 = vld [vmem:[%s0 + $0x238] sm:$0xff]
  %v86 = vld [vmem:[%s0 + $0x240] sm:$0xff]
  %v87 = vld [vmem:[%s0 + $0x248] sm:$0xff]
  %v88 = vld [vmem:[%s0 + $0x250] sm:$0xff]
  %v89 = vld [vmem:[%s0 + $0x258] sm:$0xff]
  %v90 = vld [vmem:[%s0 + $0x260] sm:$0xff]
  %v91 = vld [vmem:[%s0 + $0x268] sm:$0xff]
  %v92 = vld [vmem:[%s0 + $0x270] sm:$0xff]
  %v93 = vld [vmem:[%s0 + $0x278] sm:$0xff]
  %v94 = vld [vmem:[%s0 + $0x280] sm:$0xff]
  %v95 = vld [vmem:[%s0 + $0x288] sm:$0xff]
  %v96 = vld [vmem:[%s0 + $0x290] sm:$0xff]
  %v97 = vld [vmem:[%s0 + $0x298] sm:$0xff]
  %v98 = vld [vmem:[%s0 + $0x2a0] sm:$0xff]
  %v99 = vld [vmem:[%s0 + $0x2a8] sm:$0xff]
  %v100 = vld [vmem:[%s0 + $0x2b0] sm:$0xff]
  %v101 = vld [vmem:[%s0 + $0x2b8] sm:$0xff]
  %v102 = vld [vmem:[%s0 + $0x2c0] sm:$0xff]
  %v103 = vld [vmem:[%s0 + $0x2c8] sm:$0xff]
  %v104 = vld [vmem:[%s0 + $0x2d0] sm:$0xff]
  %v105 = vld [vmem:[%s0 + $0x2d8] sm:$0xff]
  %v106 = vld [vmem:[%s0 + $0x2e0] sm:$0xff]
  %v107 = vld [vmem:[%s0 + $0x2e8] sm:$0xff]
  %v108 = vld [vmem:[%s0 + $0x2f0] sm:$0xff]
  %v109 = vld [vmem:[%s0 + $0x2f8] sm:$0xff]
  %v110 = vld [vmem:[%s0 + $0x300] sm:$0xff]
  %v111 = vld [vmem:[%s0 + $0x308] sm:$0xff]
  %v112 = vld [vmem:[%s0 + $0x310] sm:$0xff]
  %v113 = vld [vmem:[%s0 + $0x318] sm:$0xff]
  %v114 = vld [vmem:[%s1] sm:$0xf]
  %v115 = vld [vmem:[%s1 + $0x4] sm:$0xf]
  %v116 = vld [vmem:[%s1 + $0x8] sm:$0xf]
  %v117 = vld [vmem:[%s1 + $0xc] sm:$0xf]
  %v118 = vld [vmem:[%s1 + $0x10] sm:$0xf]
  %v119 = vld [vmem:[%s1 + $0x14] sm:$0xf]
  %v120 = vld [vmem:[%s1 + $0x18] sm:$0xf]
  %v121 = vld [vmem:[%s1 + $0x1c] sm:$0xf]
  %v122 = vld [vmem:[%s1 + $0x20] sm:$0xf]
  %v123 = vld [vmem:[%s1 + $0x24] sm:$0xf]
  %v124 = vld [vmem:[%s1 + $0x28] sm:$0xf]
  %v125 = vld [vmem:[%s1 + $0x2c] sm:$0xf]
  %v126 = vld [vmem:[%s1 + $0x30] sm:$0xf]
  %v127 = vld [vmem:[%s1 + $0x34] sm:$0xf]
  %v128 = vld [vmem:[%s1 + $0x38] sm:$0xf]
  %v129 = vld [vmem:[%s1 + $0x3c] sm:$0xf]
  %v130 = vld [vmem:[%s1 + $0x40] sm:$0xf]
  %v131 = vld [vmem:[%s1 + $0x44] sm:$0xf]
  %v132 = vld [vmem:[%s1 + $0x48] sm:$0xf]
  %v133 = vld [vmem:[%s1 + $0x4c] sm:$0xf]
  %v134 = vld [vmem:[%s1 + $0x50] sm:$0xf]
  %v135 = vld [vmem:[%s1 + $0x54] sm:$0xf]
  %v136 = vld [vmem:[%s1 + $0x58] sm:$0xf]
  %v137 = vld [vmem:[%s1 + $0x5c] sm:$0xf]
  %v138 = vld [vmem:[%s1 + $0x60] sm:$0xf]
  %v139 = vld [vmem:[%s1 + $0x64] sm:$0xf]
  %v140 = vld [vmem:[%s1 + $0x68] sm:$0xf]
  %v141 = vld [vmem:[%s1 + $0x6c] sm:$0xf]
  %v142 = vld [vmem:[%s1 + $0x70] sm:$0xf]
  %v143 = vld [vmem:[%s1 + $0x74] sm:$0xf]
  %v144 = vld [vmem:[%s1 + $0x78] sm:$0xf]
  %v145 = vld [vmem:[%s1 + $0x7c] sm:$0xf]
  %v146 = vld [vmem:[%s1 + $0x80] sm:$0xf]
  %v147 = vld [vmem:[%s1 + $0x84] sm:$0xf]
  %v148 = vld [vmem:[%s1 + $0x88] sm:$0xf]
  %v149 = vld [vmem:[%s1 + $0x8c] sm:$0xf]
  %v150 = vld [vmem:[%s1 + $0x90] sm:$0xf]
  %v151 = vld [vmem:[%s1 + $0x94] sm:$0xf]
  %v152 = vld [vmem:[%s1 + $0x98] sm:$0xf]
  %v153 = vld [vmem:[%s1 + $0x9c] sm:$0xf]
  %v154 = vld [vmem:[%s1 + $0xa0] sm:$0xf]
  %v155 = vld [vmem:[%s1 + $0xa4] sm:$0xf]
  %v156 = vld [vmem:[%s1 + $0xa8] sm:$0xf]
  %v157 = vld [vmem:[%s1 + $0xac] sm:$0xf]
  %v158 = vld [vmem:[%s1 + $0xb0] sm:$0xf]
  %v159 = vld [vmem:[%s1 + $0xb4] sm:$0xf]
  %v160 = vld [vmem:[%s1 + $0xb8] sm:$0xf]
  %v161 = vld [vmem:[%s1 + $0xbc] sm:$0xf]
  %v162 = vld [vmem:[%s1 + $0xc0] sm:$0xf]
  %v163 = vld [vmem:[%s1 + $0xc4] sm:$0xf]
  %v164 = vld [vmem:[%s1 + $0xc8] sm:$0xf]
  %v165 = vld [vmem:[%s1 + $0xcc] sm:$0xf]
  %v166 = vld [vmem:[%s1 + $0xd0] sm:$0xf]
  %v167 = vld [vmem:[%s1 + $0xd4] sm:$0xf]
  %v168 = vld [vmem:[%s1 + $0xd8] sm:$0xf]
  %v169 = vld [vmem:[%s1 + $0xdc] sm:$0xf]
  %v170 = vld [vmem:[%s1 + $0xe0] sm:$0xf]
  %v171 = vld [vmem:[%s1 + $0xe4] sm:$0xf]
  %v172 = vld [vmem:[%s1 + $0xe8] sm:$0xf]
  %v173 = vld [vmem:[%s1 + $0xec] sm:$0xf]
  %v174 = vld [vmem:[%s1 + $0xf0] sm:$0xf]
  %v175 = vld [vmem:[%s1 + $0xf4] sm:$0xf]
  %v176 = vld [vmem:[%s1 + $0xf8] sm:$0xf]
  %v177 = vld [vmem:[%s1 + $0xfc] sm:$0xf]
  %v178 = vld [vmem:[%s2] sm:$0x1]
  %v180 = vperm.slane %v178, 0
  %v282 = vunpack.c.l.b16 %v14
  %v283 = vunpack.c.h.b16 %v14
  %v284 = vunpack.c.l.b16 %v15
  %v285 = vunpack.c.h.b16 %v15
  %v286 = vunpack.c.l.b16 %v16
  %v287 = vunpack.c.h.b16 %v16
  %v288 = vunpack.c.l.b16 %v17
  %v289 = vunpack.c.h.b16 %v17
  %v290 = vunpack.c.l.b16 %v18
  %v291 = vunpack.c.h.b16 %v18
  %v292 = vunpack.c.l.b16 %v19
  %v293 = vunpack.c.h.b16 %v19
  %v294 = vunpack.c.l.b16 %v20
  %v295 = vunpack.c.h.b16 %v20
  %v296 = vunpack.c.l.b16 %v21
  %v297 = vunpack.c.h.b16 %v21
  %v298 = vunpack.c.l.b16 %v22
  %v299 = vunpack.c.h.b16 %v22
  %v300 = vunpack.c.l.b16 %v23
  %v301 = vunpack.c.h.b16 %v23
  %v302 = vunpack.c.l.b16 %v24
  %v303 = vunpack.c.h.b16 %v24
  %v304 = vunpack.c.l.b16 %v25
  %v305 = vunpack.c.h.b16 %v25
  %v306 = vunpack.c.l.b16 %v26
  %v307 = vunpack.c.h.b16 %v26
  %v308 = vunpack.c.l.b16 %v27
  %v309 = vunpack.c.h.b16 %v27
  %v310 = vunpack.c.l.b16 %v28
  %v311 = vunpack.c.h.b16 %v28
  %v312 = vunpack.c.l.b16 %v29
  %v313 = vunpack.c.h.b16 %v29
  %v314 = vunpack.c.l.b16 %v30
  %v315 = vunpack.c.h.b16 %v30
  %v316 = vunpack.c.l.b16 %v31
  %v317 = vunpack.c.h.b16 %v31
  %v318 = vunpack.c.l.b16 %v32
  %v319 = vunpack.c.h.b16 %v32
  %v320 = vunpack.c.l.b16 %v33
  %v321 = vunpack.c.h.b16 %v33
  %v322 = vunpack.c.l.b16 %v34
  %v323 = vunpack.c.h.b16 %v34
  %v324 = vunpack.c.l.b16 %v35
  %v325 = vunpack.c.h.b16 %v35
  %v326 = vunpack.c.l.b16 %v36
  %v327 = vunpack.c.h.b16 %v36
  %v328 = vunpack.c.l.b16 %v37
  %v329 = vunpack.c.h.b16 %v37
  %v330 = vunpack.c.l.b16 %v38
  %v331 = vunpack.c.h.b16 %v38
  %v332 = vunpack.c.l.b16 %v39
  %v333 = vunpack.c.h.b16 %v39
  %v334 = vunpack.c.l.b16 %v40
  %v335 = vunpack.c.h.b16 %v40
  %v336 = vunpack.c.l.b16 %v41
  %v337 = vunpack.c.h.b16 %v41
  %v338 = vunpack.c.l.b16 %v42
  %v339 = vunpack.c.h.b16 %v42
  %v340 = vunpack.c.l.b16 %v43
  %v341 = vunpack.c.h.b16 %v43
  %v342 = vunpack.c.l.b16 %v44
  %v343 = vunpack.c.h.b16 %v44
  %v344 = vunpack.c.l.b16 %v45
  %v345 = vunpack.c.h.b16 %v45
  %v346 = vunpack.c.l.b16 %v46
  %v347 = vunpack.c.h.b16 %v46
  %v348 = vunpack.c.l.b16 %v47
  %v349 = vunpack.c.h.b16 %v47
  %v350 = vunpack.c.l.b16 %v48
  %v351 = vunpack.c.h.b16 %v48
  %v352 = vunpack.c.l.b16 %v49
  %v353 = vunpack.c.h.b16 %v49
  %v354 = vunpack.c.l.b16 %v50
  %v355 = vunpack.c.h.b16 %v50
  %v356 = vunpack.c.l.b16 %v51
  %v357 = vunpack.c.h.b16 %v51
  %v358 = vunpack.c.l.b16 %v52
  %v359 = vunpack.c.h.b16 %v52
  %v360 = vunpack.c.l.b16 %v53
  %v361 = vunpack.c.h.b16 %v53
  %v362 = vunpack.c.l.b16 %v54
  %v363 = vunpack.c.h.b16 %v54
  %v364 = vunpack.c.l.b16 %v55
  %v365 = vunpack.c.h.b16 %v55
  %v366 = vunpack.c.l.b16 %v56
  %v367 = vunpack.c.h.b16 %v56
  %v368 = vunpack.c.l.b16 %v57
  %v369 = vunpack.c.h.b16 %v57
  %v370 = vunpack.c.l.b16 %v58
  %v371 = vunpack.c.h.b16 %v58
  %v372 = vunpack.c.l.b16 %v59
  %v373 = vunpack.c.h.b16 %v59
  %v374 = vunpack.c.l.b16 %v60
  %v375 = vunpack.c.h.b16 %v60
  %v376 = vunpack.c.l.b16 %v61
  %v377 = vunpack.c.h.b16 %v61
  %v378 = vunpack.c.l.b16 %v62
  %v379 = vunpack.c.h.b16 %v62
  %v380 = vunpack.c.l.b16 %v63
  %v381 = vunpack.c.h.b16 %v63
  %v382 = vunpack.c.l.b16 %v64
  %v383 = vunpack.c.h.b16 %v64
  %v384 = vunpack.c.l.b16 %v65
  %v385 = vunpack.c.h.b16 %v65
  %v386 = vunpack.c.l.b16 %v66
  %v387 = vunpack.c.h.b16 %v66
  %v388 = vunpack.c.l.b16 %v67
  %v389 = vunpack.c.h.b16 %v67
  %v390 = vunpack.c.l.b16 %v68
  %v391 = vunpack.c.h.b16 %v68
  %v392 = vunpack.c.l.b16 %v69
  %v393 = vunpack.c.h.b16 %v69
  %v394 = vunpack.c.l.b16 %v70
  %v395 = vunpack.c.h.b16 %v70
  %v396 = vunpack.c.l.b16 %v71
  %v397 = vunpack.c.h.b16 %v71
  %v398 = vunpack.c.l.b16 %v72
  %v399 = vunpack.c.h.b16 %v72
  %v400 = vunpack.c.l.b16 %v73
  %v401 = vunpack.c.h.b16 %v73
  %v402 = vunpack.c.l.b16 %v74
  %v403 = vunpack.c.h.b16 %v74
  %v404 = vunpack.c.l.b16 %v75
  %v405 = vunpack.c.h.b16 %v75
  %v406 = vunpack.c.l.b16 %v76
  %v407 = vunpack.c.h.b16 %v76
  %v408 = vunpack.c.l.b16 %v77
  %v409 = vunpack.c.h.b16 %v77
  %v410 = vunpack.c.l.b16 %v78
  %v411 = vunpack.c.h.b16 %v78
  %v412 = vunpack.c.l.b16 %v79
  %v413 = vunpack.c.h.b16 %v79
  %v414 = vunpack.c.l.b16 %v80
  %v415 = vunpack.c.h.b16 %v80
  %v416 = vunpack.c.l.b16 %v81
  %v417 = vunpack.c.h.b16 %v81
  %v418 = vunpack.c.l.b16 %v82
  %v419 = vunpack.c.h.b16 %v82
  %v420 = vunpack.c.l.b16 %v83
  %v421 = vunpack.c.h.b16 %v83
  %v422 = vunpack.c.l.b16 %v84
  %v423 = vunpack.c.h.b16 %v84
  %v424 = vunpack.c.l.b16 %v85
  %v425 = vunpack.c.h.b16 %v85
  %v426 = vunpack.c.l.b16 %v86
  %v427 = vunpack.c.h.b16 %v86
  %v428 = vunpack.c.l.b16 %v87
  %v429 = vunpack.c.h.b16 %v87
  %v430 = vunpack.c.l.b16 %v88
  %v431 = vunpack.c.h.b16 %v88
  %v432 = vunpack.c.l.b16 %v89
  %v433 = vunpack.c.h.b16 %v89
  %v434 = vunpack.c.l.b16 %v90
  %v435 = vunpack.c.h.b16 %v90
  %v436 = vunpack.c.l.b16 %v91
  %v437 = vunpack.c.h.b16 %v91
  %v438 = vunpack.c.l.b16 %v92
  %v439 = vunpack.c.h.b16 %v92
  %v440 = vunpack.c.l.b16 %v93
  %v441 = vunpack.c.h.b16 %v93
  %v442 = vunpack.c.l.b16 %v94
  %v443 = vunpack.c.h.b16 %v94
  %v444 = vunpack.c.l.b16 %v95
  %v445 = vunpack.c.h.b16 %v95
  %v446 = vunpack.c.l.b16 %v96
  %v447 = vunpack.c.h.b16 %v96
  %v448 = vunpack.c.l.b16 %v97
  %v449 = vunpack.c.h.b16 %v97
  %v450 = vunpack.c.l.b16 %v98
  %v451 = vunpack.c.h.b16 %v98
  %v452 = vunpack.c.l.b16 %v99
  %v453 = vunpack.c.h.b16 %v99
  %v454 = vunpack.c.l.b16 %v100
  %v455 = vunpack.c.h.b16 %v100
  %v456 = vunpack.c.l.b16 %v101
  %v457 = vunpack.c.h.b16 %v101
  %v458 = vunpack.c.l.b16 %v102
  %v459 = vunpack.c.h.b16 %v102
  %v460 = vunpack.c.l.b16 %v103
  %v461 = vunpack.c.h.b16 %v103
  %v462 = vunpack.c.l.b16 %v104
  %v463 = vunpack.c.h.b16 %v104
  %v464 = vunpack.c.l.b16 %v105
  %v465 = vunpack.c.h.b16 %v105
  %v466 = vunpack.c.l.b16 %v106
  %v467 = vunpack.c.h.b16 %v106
  %v468 = vunpack.c.l.b16 %v107
  %v469 = vunpack.c.h.b16 %v107
  %v470 = vunpack.c.l.b16 %v108
  %v471 = vunpack.c.h.b16 %v108
  %v472 = vunpack.c.l.b16 %v109
  %v473 = vunpack.c.h.b16 %v109
  %v474 = vunpack.c.l.b16 %v110
  %v475 = vunpack.c.h.b16 %v110
  %v476 = vunpack.c.l.b16 %v111
  %v477 = vunpack.c.h.b16 %v111
  %v478 = vunpack.c.l.b16 %v112
  %v479 = vunpack.c.h.b16 %v112
  %v480 = vunpack.c.l.b16 %v113
  %v481 = vunpack.c.h.b16 %v113
  %v482 = vpack.c.b16 %v286, %v282
  %v483 = vpack.c.b16 %v287, %v283
  %v484 = vpack.c.b16 %v288, %v284
  %v485 = vpack.c.b16 %v289, %v285
  %v486 = vpack.c.b16 %v294, %v290
  %v487 = vpack.c.b16 %v295, %v291
  %v488 = vpack.c.b16 %v296, %v292
  %v489 = vpack.c.b16 %v297, %v293
  %v490 = vpack.c.b16 %v302, %v298
  %v491 = vpack.c.b16 %v303, %v299
  %v492 = vpack.c.b16 %v304, %v300
  %v493 = vpack.c.b16 %v305, %v301
  %v494 = vpack.c.b16 %v310, %v306
  %v495 = vpack.c.b16 %v311, %v307
  %v496 = vpack.c.b16 %v312, %v308
  %v497 = vpack.c.b16 %v313, %v309
  %v498 = vpack.c.b16 %v318, %v314
  %v499 = vpack.c.b16 %v319, %v315
  %v500 = vpack.c.b16 %v320, %v316
  %v501 = vpack.c.b16 %v321, %v317
  %v502 = vpack.c.b16 %v326, %v322
  %v503 = vpack.c.b16 %v327, %v323
  %v504 = vpack.c.b16 %v328, %v324
  %v505 = vpack.c.b16 %v329, %v325
  %v506 = vpack.c.b16 %v334, %v330
  %v507 = vpack.c.b16 %v335, %v331
  %v508 = vpack.c.b16 %v336, %v332
  %v509 = vpack.c.b16 %v337, %v333
  %v510 = vpack.c.b16 %v342, %v338
  %v511 = vpack.c.b16 %v343, %v339
  %v512 = vpack.c.b16 %v344, %v340
  %v513 = vpack.c.b16 %v345, %v341
  %v514 = vpack.c.b16 %v350, %v346
  %v515 = vpack.c.b16 %v351, %v347
  %v516 = vpack.c.b16 %v352, %v348
  %v517 = vpack.c.b16 %v353, %v349
  %v518 = vpack.c.b16 %v358, %v354
  %v519 = vpack.c.b16 %v359, %v355
  %v520 = vpack.c.b16 %v360, %v356
  %v521 = vpack.c.b16 %v361, %v357
  %v522 = vpack.c.b16 %v366, %v362
  %v523 = vpack.c.b16 %v367, %v363
  %v524 = vpack.c.b16 %v368, %v364
  %v525 = vpack.c.b16 %v369, %v365
  %v526 = vpack.c.b16 %v374, %v370
  %v527 = vpack.c.b16 %v375, %v371
  %v528 = vpack.c.b16 %v376, %v372
  %v529 = vpack.c.b16 %v377, %v373
  %v530 = vpack.c.b16 %v382, %v378
  %v531 = vpack.c.b16 %v383, %v379
  %v532 = vpack.c.b16 %v384, %v380
  %v533 = vpack.c.b16 %v385, %v381
  %v534 = vpack.c.b16 %v390, %v386
  %v535 = vpack.c.b16 %v391, %v387
  %v536 = vpack.c.b16 %v392, %v388
  %v537 = vpack.c.b16 %v393, %v389
  %v538 = vpack.c.b16 %v398, %v394
  %v539 = vpack.c.b16 %v399, %v395
  %v540 = vpack.c.b16 %v400, %v396
  %v541 = vpack.c.b16 %v401, %v397
  %v542 = vpack.c.b16 %v406, %v402
  %v543 = vpack.c.b16 %v407, %v403
  %v544 = vpack.c.b16 %v408, %v404
  %v545 = vpack.c.b16 %v409, %v405
  %v546 = vpack.c.b16 %v414, %v410
  %v547 = vpack.c.b16 %v415, %v411
  %v548 = vpack.c.b16 %v416, %v412
  %v549 = vpack.c.b16 %v417, %v413
  %v550 = vpack.c.b16 %v422, %v418
  %v551 = vpack.c.b16 %v423, %v419
  %v552 = vpack.c.b16 %v424, %v420
  %v553 = vpack.c.b16 %v425, %v421
  %v554 = vpack.c.b16 %v430, %v426
  %v555 = vpack.c.b16 %v431, %v427
  %v556 = vpack.c.b16 %v432, %v428
  %v557 = vpack.c.b16 %v433, %v429
  %v558 = vpack.c.b16 %v438, %v434
  %v559 = vpack.c.b16 %v439, %v435
  %v560 = vpack.c.b16 %v440, %v436
  %v561 = vpack.c.b16 %v441, %v437
  %v562 = vpack.c.b16 %v446, %v442
  %v563 = vpack.c.b16 %v447, %v443
  %v564 = vpack.c.b16 %v448, %v444
  %v565 = vpack.c.b16 %v449, %v445
  %v566 = vpack.c.b16 %v454, %v450
  %v567 = vpack.c.b16 %v455, %v451
  %v568 = vpack.c.b16 %v456, %v452
  %v569 = vpack.c.b16 %v457, %v453
  %v570 = vpack.c.b16 %v462, %v458
  %v571 = vpack.c.b16 %v463, %v459
  %v572 = vpack.c.b16 %v464, %v460
  %v573 = vpack.c.b16 %v465, %v461
  %v574 = vpack.c.b16 %v470, %v466
  %v575 = vpack.c.b16 %v471, %v467
  %v576 = vpack.c.b16 %v472, %v468
  %v577 = vpack.c.b16 %v473, %v469
  %v578 = vpack.c.b16 %v478, %v474
  %v579 = vpack.c.b16 %v479, %v475
  %v580 = vpack.c.b16 %v480, %v476
  %v581 = vpack.c.b16 %v481, %v477
  %v746 = vunpack.c.l.b16 %v114
  %v747 = vunpack.c.l.b16 %v115
  %v748 = vunpack.c.l.b16 %v116
  %v749 = vunpack.c.l.b16 %v117
  %v750 = vunpack.c.l.b16 %v118
  %v751 = vunpack.c.l.b16 %v119
  %v752 = vunpack.c.l.b16 %v120
  %v753 = vunpack.c.l.b16 %v121
  %v754 = vunpack.c.l.b16 %v122
  %v755 = vunpack.c.l.b16 %v123
  %v756 = vunpack.c.l.b16 %v124
  %v757 = vunpack.c.l.b16 %v125
  %v758 = vunpack.c.l.b16 %v126
  %v759 = vunpack.c.l.b16 %v127
  %v760 = vunpack.c.l.b16 %v128
  %v761 = vunpack.c.l.b16 %v129
  %v762 = vunpack.c.l.b16 %v130
  %v763 = vunpack.c.l.b16 %v131
  %v764 = vunpack.c.l.b16 %v132
  %v765 = vunpack.c.l.b16 %v133
  %v766 = vunpack.c.l.b16 %v134
  %v767 = vunpack.c.l.b16 %v135
  %v768 = vunpack.c.l.b16 %v136
  %v769 = vunpack.c.l.b16 %v137
  %v770 = vunpack.c.l.b16 %v138
  %v771 = vunpack.c.l.b16 %v139
  %v772 = vunpack.c.l.b16 %v140
  %v773 = vunpack.c.l.b16 %v141
  %v774 = vunpack.c.l.b16 %v142
  %v775 = vunpack.c.l.b16 %v143
  %v776 = vunpack.c.l.b16 %v144
  %v777 = vunpack.c.l.b16 %v145
  %v778 = vunpack.c.l.b16 %v146
  %v779 = vunpack.c.l.b16 %v147
  %v780 = vunpack.c.l.b16 %v148
  %v781 = vunpack.c.l.b16 %v149
  %v782 = vunpack.c.l.b16 %v150
  %v783 = vunpack.c.l.b16 %v151
  %v784 = vunpack.c.l.b16 %v152
  %v785 = vunpack.c.l.b16 %v153
  %v786 = vunpack.c.l.b16 %v154
  %v787 = vunpack.c.l.b16 %v155
  %v788 = vunpack.c.l.b16 %v156
  %v789 = vunpack.c.l.b16 %v157
  %v790 = vunpack.c.l.b16 %v158
  %v791 = vunpack.c.l.b16 %v159
  %v792 = vunpack.c.l.b16 %v160
  %v793 = vunpack.c.l.b16 %v161
  %v794 = vunpack.c.l.b16 %v162
  %v795 = vunpack.c.l.b16 %v163
  %v796 = vunpack.c.l.b16 %v164
  %v797 = vunpack.c.l.b16 %v165
  %v798 = vunpack.c.l.b16 %v166
  %v799 = vunpack.c.l.b16 %v167
  %v800 = vunpack.c.l.b16 %v168
  %v801 = vunpack.c.l.b16 %v169
  %v802 = vunpack.c.l.b16 %v170
  %v803 = vunpack.c.l.b16 %v171
  %v804 = vunpack.c.l.b16 %v172
  %v805 = vunpack.c.l.b16 %v173
  %v806 = vunpack.c.l.b16 %v174
  %v807 = vunpack.c.l.b16 %v175
  %v808 = vunpack.c.l.b16 %v176
  %v809 = vunpack.c.l.b16 %v177
  %v810 = vpack.c.b16 %v747, %v746
  %v811 = vpack.c.b16 %v749, %v748
  %v812 = vpack.c.b16 %v751, %v750
  %v813 = vpack.c.b16 %v753, %v752
  %v814 = vpack.c.b16 %v755, %v754
  %v815 = vpack.c.b16 %v757, %v756
  %v816 = vpack.c.b16 %v759, %v758
  %v817 = vpack.c.b16 %v761, %v760
  %v818 = vpack.c.b16 %v763, %v762
  %v819 = vpack.c.b16 %v765, %v764
  %v820 = vpack.c.b16 %v767, %v766
  %v821 = vpack.c.b16 %v769, %v768
  %v822 = vpack.c.b16 %v771, %v770
  %v823 = vpack.c.b16 %v773, %v772
  %v824 = vpack.c.b16 %v775, %v774
  %v825 = vpack.c.b16 %v777, %v776
  %v826 = vpack.c.b16 %v779, %v778
  %v827 = vpack.c.b16 %v781, %v780
  %v828 = vpack.c.b16 %v783, %v782
  %v829 = vpack.c.b16 %v785, %v784
  %v830 = vpack.c.b16 %v787, %v786
  %v831 = vpack.c.b16 %v789, %v788
  %v832 = vpack.c.b16 %v791, %v790
  %v833 = vpack.c.b16 %v793, %v792
  %v834 = vpack.c.b16 %v795, %v794
  %v835 = vpack.c.b16 %v797, %v796
  %v836 = vpack.c.b16 %v799, %v798
  %v837 = vpack.c.b16 %v801, %v800
  %v838 = vpack.c.b16 %v803, %v802
  %v839 = vpack.c.b16 %v805, %v804
  %v840 = vpack.c.b16 %v807, %v806
  %v841 = vpack.c.b16 %v809, %v808
  %874 = vmatpush.bf16.msra.mxu0 %v817
  %875 = vmatpush.bf16.msra.mxu0 %v816
  %876 = vmatpush.bf16.msra.mxu0 %v815
  %877 = vmatpush.bf16.msra.mxu0 %v814
  %878 = vmatpush.bf16.msra.mxu0 %v813
  %879 = vmatpush.bf16.msra.mxu0 %v812
  %880 = vmatpush.bf16.msra.mxu0 %v811
  %881 = vmatpush.bf16.msra.mxu0 %v810
  %882 = vmatmul.bf16.gmra.mxu0 %v482
  %v883 = vpop.f32.mrf.mxu0
  %v884 = vadd.f32 %v180, %v883
  %v885 = vpop.f32.mrf.mxu0
  %v886 = vadd.f32 %v180, %v885
  %887 = vmatmul.bf16.gmra.mxu0 %v486
  %v888 = vpop.f32.mrf.mxu0
  %v889 = vadd.f32 %v180, %v888
  %v890 = vpop.f32.mrf.mxu0
  %v891 = vadd.f32 %v180, %v890
  %892 = vmatmul.bf16.gmra.mxu0 %v490
  %v893 = vpop.f32.mrf.mxu0
  %v894 = vadd.f32 %v180, %v893
  %v895 = vpop.f32.mrf.mxu0
  %v896 = vadd.f32 %v180, %v895
  %897 = vmatmul.bf16.gmra.mxu0 %v494
  %v898 = vpop.f32.mrf.mxu0
  %v899 = vadd.f32 %v180, %v898
  %v900 = vpop.f32.mrf.mxu0
  %v901 = vadd.f32 %v180, %v900
  %902 = vmatmul.bf16.gmra.mxu0 %v498
  %v903 = vpop.f32.mrf.mxu0
  %v904 = vadd.f32 %v180, %v903
  %v905 = vpop.f32.mrf.mxu0
  %v906 = vadd.f32 %v180, %v905
  %907 = vmatmul.bf16.gmra.mxu0 %v502
  %v908 = vpop.f32.mrf.mxu0
  %v909 = vadd.f32 %v180, %v908
  %v910 = vpop.f32.mrf.mxu0
  %v911 = vadd.f32 %v180, %v910
  %912 = vmatmul.bf16.gmra.mxu0 %v506
  %v913 = vpop.f32.mrf.mxu0
  %v914 = vadd.f32 %v180, %v913
  %v915 = vpop.f32.mrf.mxu0
  %v916 = vadd.f32 %v180, %v915
  %917 = vmatmul.bf16.gmra.mxu0 %v510
  %v918 = vpop.f32.mrf.mxu0
  %v919 = vadd.f32 %v180, %v918
  %v920 = vpop.f32.mrf.mxu0
  %v921 = vadd.f32 %v180, %v920
  %922 = vmatmul.bf16.gmra.mxu0 %v514
  %v923 = vpop.f32.mrf.mxu0
  %v924 = vadd.f32 %v180, %v923
  %v925 = vpop.f32.mrf.mxu0
  %v926 = vadd.f32 %v180, %v925
  %927 = vmatmul.bf16.gmra.mxu0 %v518
  %v928 = vpop.f32.mrf.mxu0
  %v929 = vadd.f32 %v180, %v928
  %v930 = vpop.f32.mrf.mxu0
  %v931 = vadd.f32 %v180, %v930
  %932 = vmatmul.bf16.gmra.mxu0 %v522
  %v933 = vpop.f32.mrf.mxu0
  %v934 = vadd.f32 %v180, %v933
  %v935 = vpop.f32.mrf.mxu0
  %v936 = vadd.f32 %v180, %v935
  %937 = vmatmul.bf16.gmra.mxu0 %v526
  %v938 = vpop.f32.mrf.mxu0
  %v939 = vadd.f32 %v180, %v938
  %v940 = vpop.f32.mrf.mxu0
  %v941 = vadd.f32 %v180, %v940
  %942 = vmatmul.bf16.gmra.mxu0 %v530
  %v943 = vpop.f32.mrf.mxu0
  %v944 = vadd.f32 %v180, %v943
  %v945 = vpop.f32.mrf.mxu0
  %v946 = vadd.f32 %v180, %v945
  %947 = vmatmul.bf16.gmra.mxu0 %v534
  %v948 = vpop.f32.mrf.mxu0
  %v949 = vadd.f32 %v180, %v948
  %v950 = vpop.f32.mrf.mxu0
  %v951 = vadd.f32 %v180, %v950
  %952 = vmatmul.bf16.gmra.mxu0 %v538
  %v953 = vpop.f32.mrf.mxu0
  %v954 = vadd.f32 %v180, %v953
  %v955 = vpop.f32.mrf.mxu0
  %v956 = vadd.f32 %v180, %v955
  %957 = vmatmul.bf16.gmra.mxu0 %v542
  %v958 = vpop.f32.mrf.mxu0
  %v959 = vadd.f32 %v180, %v958
  %v960 = vpop.f32.mrf.mxu0
  %v961 = vadd.f32 %v180, %v960
  %962 = vmatmul.bf16.gmra.mxu0 %v546
  %v963 = vpop.f32.mrf.mxu0
  %v964 = vadd.f32 %v180, %v963
  %v965 = vpop.f32.mrf.mxu0
  %v966 = vadd.f32 %v180, %v965
  %967 = vmatmul.bf16.gmra.mxu0 %v550
  %v968 = vpop.f32.mrf.mxu0
  %v969 = vadd.f32 %v180, %v968
  %v970 = vpop.f32.mrf.mxu0
  %v971 = vadd.f32 %v180, %v970
  %972 = vmatmul.bf16.gmra.mxu0 %v554
  %v973 = vpop.f32.mrf.mxu0
  %v974 = vadd.f32 %v180, %v973
  %v975 = vpop.f32.mrf.mxu0
  %v976 = vadd.f32 %v180, %v975
  %977 = vmatmul.bf16.gmra.mxu0 %v558
  %v978 = vpop.f32.mrf.mxu0
  %v979 = vadd.f32 %v180, %v978
  %v980 = vpop.f32.mrf.mxu0
  %v981 = vadd.f32 %v180, %v980
  %982 = vmatmul.bf16.gmra.mxu0 %v562
  %v983 = vpop.f32.mrf.mxu0
  %v984 = vadd.f32 %v180, %v983
  %v985 = vpop.f32.mrf.mxu0
  %v986 = vadd.f32 %v180, %v985
  %987 = vmatmul.bf16.gmra.mxu0 %v566
  %v988 = vpop.f32.mrf.mxu0
  %v989 = vadd.f32 %v180, %v988
  %v990 = vpop.f32.mrf.mxu0
  %v991 = vadd.f32 %v180, %v990
  %992 = vmatmul.bf16.gmra.mxu0 %v570
  %v993 = vpop.f32.mrf.mxu0
  %v994 = vadd.f32 %v180, %v993
  %v995 = vpop.f32.mrf.mxu0
  %v996 = vadd.f32 %v180, %v995
  %997 = vmatmul.bf16.gmra.mxu0 %v574
  %v998 = vpop.f32.mrf.mxu0
  %v999 = vadd.f32 %v180, %v998
  %v1000 = vpop.f32.mrf.mxu0
  %v1001 = vadd.f32 %v180, %v1000
  %1002 = vmatmul.bf16.gmra.mxu0 %v578
  %v1003 = vpop.f32.mrf.mxu0
  %v1004 = vadd.f32 %v180, %v1003
  %v1005 = vpop.f32.mrf.mxu0
  %v1006 = vadd.f32 %v180, %v1005
  %1007 = vdwg.mxu0
  %1008 = vmatpush.bf16.msra.mxu0 %v825
  %1009 = vmatpush.bf16.msra.mxu0 %v824
  %1010 = vmatpush.bf16.msra.mxu0 %v823
  %1011 = vmatpush.bf16.msra.mxu0 %v822
  %1012 = vmatpush.bf16.msra.mxu0 %v821
  %1013 = vmatpush.bf16.msra.mxu0 %v820
  %1014 = vmatpush.bf16.msra.mxu0 %v819
  %1015 = vmatpush.bf16.msra.mxu0 %v818
  %1016 = vmatmul.bf16.gmra.mxu0 %v483
  %v1017 = vpop.f32.mrf.mxu0
  %v1018 = vadd.f32 %v884, %v1017
  %v1019 = vpop.f32.mrf.mxu0
  %v1020 = vadd.f32 %v886, %v1019
  %1021 = vmatmul.bf16.gmra.mxu0 %v487
  %v1022 = vpop.f32.mrf.mxu0
  %v1023 = vadd.f32 %v889, %v1022
  %v1024 = vpop.f32.mrf.mxu0
  %v1025 = vadd.f32 %v891, %v1024
  %1026 = vmatmul.bf16.gmra.mxu0 %v491
  %v1027 = vpop.f32.mrf.mxu0
  %v1028 = vadd.f32 %v894, %v1027
  %v1029 = vpop.f32.mrf.mxu0
  %v1030 = vadd.f32 %v896, %v1029
  %1031 = vmatmul.bf16.gmra.mxu0 %v495
  %v1032 = vpop.f32.mrf.mxu0
  %v1033 = vadd.f32 %v899, %v1032
  %v1034 = vpop.f32.mrf.mxu0
  %v1035 = vadd.f32 %v901, %v1034
  %1036 = vmatmul.bf16.gmra.mxu0 %v499
  %v1037 = vpop.f32.mrf.mxu0
  %v1038 = vadd.f32 %v904, %v1037
  %v1039 = vpop.f32.mrf.mxu0
  %v1040 = vadd.f32 %v906, %v1039
  %1041 = vmatmul.bf16.gmra.mxu0 %v503
  %v1042 = vpop.f32.mrf.mxu0
  %v1043 = vadd.f32 %v909, %v1042
  %v1044 = vpop.f32.mrf.mxu0
  %v1045 = vadd.f32 %v911, %v1044
  %1046 = vmatmul.bf16.gmra.mxu0 %v507
  %v1047 = vpop.f32.mrf.mxu0
  %v1048 = vadd.f32 %v914, %v1047
  %v1049 = vpop.f32.mrf.mxu0
  %v1050 = vadd.f32 %v916, %v1049
  %1051 = vmatmul.bf16.gmra.mxu0 %v511
  %v1052 = vpop.f32.mrf.mxu0
  %v1053 = vadd.f32 %v919, %v1052
  %v1054 = vpop.f32.mrf.mxu0
  %v1055 = vadd.f32 %v921, %v1054
  %1056 = vmatmul.bf16.gmra.mxu0 %v515
  %v1057 = vpop.f32.mrf.mxu0
  %v1058 = vadd.f32 %v924, %v1057
  %v1059 = vpop.f32.mrf.mxu0
  %v1060 = vadd.f32 %v926, %v1059
  %1061 = vmatmul.bf16.gmra.mxu0 %v519
  %v1062 = vpop.f32.mrf.mxu0
  %v1063 = vadd.f32 %v929, %v1062
  %v1064 = vpop.f32.mrf.mxu0
  %v1065 = vadd.f32 %v931, %v1064
  %1066 = vmatmul.bf16.gmra.mxu0 %v523
  %v1067 = vpop.f32.mrf.mxu0
  %v1068 = vadd.f32 %v934, %v1067
  %v1069 = vpop.f32.mrf.mxu0
  %v1070 = vadd.f32 %v936, %v1069
  %1071 = vmatmul.bf16.gmra.mxu0 %v527
  %v1072 = vpop.f32.mrf.mxu0
  %v1073 = vadd.f32 %v939, %v1072
  %v1074 = vpop.f32.mrf.mxu0
  %v1075 = vadd.f32 %v941, %v1074
  %1076 = vmatmul.bf16.gmra.mxu0 %v531
  %v1077 = vpop.f32.mrf.mxu0
  %v1078 = vadd.f32 %v944, %v1077
  %v1079 = vpop.f32.mrf.mxu0
  %v1080 = vadd.f32 %v946, %v1079
  %1081 = vmatmul.bf16.gmra.mxu0 %v535
  %v1082 = vpop.f32.mrf.mxu0
  %v1083 = vadd.f32 %v949, %v1082
  %v1084 = vpop.f32.mrf.mxu0
  %v1085 = vadd.f32 %v951, %v1084
  %1086 = vmatmul.bf16.gmra.mxu0 %v539
  %v1087 = vpop.f32.mrf.mxu0
  %v1088 = vadd.f32 %v954, %v1087
  %v1089 = vpop.f32.mrf.mxu0
  %v1090 = vadd.f32 %v956, %v1089
  %1091 = vmatmul.bf16.gmra.mxu0 %v543
  %v1092 = vpop.f32.mrf.mxu0
  %v1093 = vadd.f32 %v959, %v1092
  %v1094 = vpop.f32.mrf.mxu0
  %v1095 = vadd.f32 %v961, %v1094
  %1096 = vmatmul.bf16.gmra.mxu0 %v547
  %v1097 = vpop.f32.mrf.mxu0
  %v1098 = vadd.f32 %v964, %v1097
  %v1099 = vpop.f32.mrf.mxu0
  %v1100 = vadd.f32 %v966, %v1099
  %1101 = vmatmul.bf16.gmra.mxu0 %v551
  %v1102 = vpop.f32.mrf.mxu0
  %v1103 = vadd.f32 %v969, %v1102
  %v1104 = vpop.f32.mrf.mxu0
  %v1105 = vadd.f32 %v971, %v1104
  %1106 = vmatmul.bf16.gmra.mxu0 %v555
  %v1107 = vpop.f32.mrf.mxu0
  %v1108 = vadd.f32 %v974, %v1107
  %v1109 = vpop.f32.mrf.mxu0
  %v1110 = vadd.f32 %v976, %v1109
  %1111 = vmatmul.bf16.gmra.mxu0 %v559
  %v1112 = vpop.f32.mrf.mxu0
  %v1113 = vadd.f32 %v979, %v1112
  %v1114 = vpop.f32.mrf.mxu0
  %v1115 = vadd.f32 %v981, %v1114
  %1116 = vmatmul.bf16.gmra.mxu0 %v563
  %v1117 = vpop.f32.mrf.mxu0
  %v1118 = vadd.f32 %v984, %v1117
  %v1119 = vpop.f32.mrf.mxu0
  %v1120 = vadd.f32 %v986, %v1119
  %1121 = vmatmul.bf16.gmra.mxu0 %v567
  %v1122 = vpop.f32.mrf.mxu0
  %v1123 = vadd.f32 %v989, %v1122
  %v1124 = vpop.f32.mrf.mxu0
  %v1125 = vadd.f32 %v991, %v1124
  %1126 = vmatmul.bf16.gmra.mxu0 %v571
  %v1127 = vpop.f32.mrf.mxu0
  %v1128 = vadd.f32 %v994, %v1127
  %v1129 = vpop.f32.mrf.mxu0
  %v1130 = vadd.f32 %v996, %v1129
  %1131 = vmatmul.bf16.gmra.mxu0 %v575
  %v1132 = vpop.f32.mrf.mxu0
  %v1133 = vadd.f32 %v999, %v1132
  %v1134 = vpop.f32.mrf.mxu0
  %v1135 = vadd.f32 %v1001, %v1134
  %1136 = vmatmul.bf16.gmra.mxu0 %v579
  %v1137 = vpop.f32.mrf.mxu0
  %v1138 = vadd.f32 %v1004, %v1137
  %v1139 = vpop.f32.mrf.mxu0
  %v1140 = vadd.f32 %v1006, %v1139
  %1141 = vdwg.mxu0
  %1142 = vmatpush.bf16.msra.mxu0 %v833
  %1143 = vmatpush.bf16.msra.mxu0 %v832
  %1144 = vmatpush.bf16.msra.mxu0 %v831
  %1145 = vmatpush.bf16.msra.mxu0 %v830
  %1146 = vmatpush.bf16.msra.mxu0 %v829
  %1147 = vmatpush.bf16.msra.mxu0 %v828
  %1148 = vmatpush.bf16.msra.mxu0 %v827
  %1149 = vmatpush.bf16.msra.mxu0 %v826
  %1150 = vmatmul.bf16.gmra.mxu0 %v484
  %v1151 = vpop.f32.mrf.mxu0
  %v1152 = vadd.f32 %v1018, %v1151
  %v1153 = vpop.f32.mrf.mxu0
  %v1154 = vadd.f32 %v1020, %v1153
  %1155 = vmatmul.bf16.gmra.mxu0 %v488
  %v1156 = vpop.f32.mrf.mxu0
  %v1157 = vadd.f32 %v1023, %v1156
  %v1158 = vpop.f32.mrf.mxu0
  %v1159 = vadd.f32 %v1025, %v1158
  %1160 = vmatmul.bf16.gmra.mxu0 %v492
  %v1161 = vpop.f32.mrf.mxu0
  %v1162 = vadd.f32 %v1028, %v1161
  %v1163 = vpop.f32.mrf.mxu0
  %v1164 = vadd.f32 %v1030, %v1163
  %1165 = vmatmul.bf16.gmra.mxu0 %v496
  %v1166 = vpop.f32.mrf.mxu0
  %v1167 = vadd.f32 %v1033, %v1166
  %v1168 = vpop.f32.mrf.mxu0
  %v1169 = vadd.f32 %v1035, %v1168
  %1170 = vmatmul.bf16.gmra.mxu0 %v500
  %v1171 = vpop.f32.mrf.mxu0
  %v1172 = vadd.f32 %v1038, %v1171
  %v1173 = vpop.f32.mrf.mxu0
  %v1174 = vadd.f32 %v1040, %v1173
  %1175 = vmatmul.bf16.gmra.mxu0 %v504
  %v1176 = vpop.f32.mrf.mxu0
  %v1177 = vadd.f32 %v1043, %v1176
  %v1178 = vpop.f32.mrf.mxu0
  %v1179 = vadd.f32 %v1045, %v1178
  %1180 = vmatmul.bf16.gmra.mxu0 %v508
  %v1181 = vpop.f32.mrf.mxu0
  %v1182 = vadd.f32 %v1048, %v1181
  %v1183 = vpop.f32.mrf.mxu0
  %v1184 = vadd.f32 %v1050, %v1183
  %1185 = vmatmul.bf16.gmra.mxu0 %v512
  %v1186 = vpop.f32.mrf.mxu0
  %v1187 = vadd.f32 %v1053, %v1186
  %v1188 = vpop.f32.mrf.mxu0
  %v1189 = vadd.f32 %v1055, %v1188
  %1190 = vmatmul.bf16.gmra.mxu0 %v516
  %v1191 = vpop.f32.mrf.mxu0
  %v1192 = vadd.f32 %v1058, %v1191
  %v1193 = vpop.f32.mrf.mxu0
  %v1194 = vadd.f32 %v1060, %v1193
  %1195 = vmatmul.bf16.gmra.mxu0 %v520
  %v1196 = vpop.f32.mrf.mxu0
  %v1197 = vadd.f32 %v1063, %v1196
  %v1198 = vpop.f32.mrf.mxu0
  %v1199 = vadd.f32 %v1065, %v1198
  %1200 = vmatmul.bf16.gmra.mxu0 %v524
  %v1201 = vpop.f32.mrf.mxu0
  %v1202 = vadd.f32 %v1068, %v1201
  %v1203 = vpop.f32.mrf.mxu0
  %v1204 = vadd.f32 %v1070, %v1203
  %1205 = vmatmul.bf16.gmra.mxu0 %v528
  %v1206 = vpop.f32.mrf.mxu0
  %v1207 = vadd.f32 %v1073, %v1206
  %v1208 = vpop.f32.mrf.mxu0
  %v1209 = vadd.f32 %v1075, %v1208
  %1210 = vmatmul.bf16.gmra.mxu0 %v532
  %v1211 = vpop.f32.mrf.mxu0
  %v1212 = vadd.f32 %v1078, %v1211
  %v1213 = vpop.f32.mrf.mxu0
  %v1214 = vadd.f32 %v1080, %v1213
  %1215 = vmatmul.bf16.gmra.mxu0 %v536
  %v1216 = vpop.f32.mrf.mxu0
  %v1217 = vadd.f32 %v1083, %v1216
  %v1218 = vpop.f32.mrf.mxu0
  %v1219 = vadd.f32 %v1085, %v1218
  %1220 = vmatmul.bf16.gmra.mxu0 %v540
  %v1221 = vpop.f32.mrf.mxu0
  %v1222 = vadd.f32 %v1088, %v1221
  %v1223 = vpop.f32.mrf.mxu0
  %v1224 = vadd.f32 %v1090, %v1223
  %1225 = vmatmul.bf16.gmra.mxu0 %v544
  %v1226 = vpop.f32.mrf.mxu0
  %v1227 = vadd.f32 %v1093, %v1226
  %v1228 = vpop.f32.mrf.mxu0
  %v1229 = vadd.f32 %v1095, %v1228
  %1230 = vmatmul.bf16.gmra.mxu0 %v548
  %v1231 = vpop.f32.mrf.mxu0
  %v1232 = vadd.f32 %v1098, %v1231
  %v1233 = vpop.f32.mrf.mxu0
  %v1234 = vadd.f32 %v1100, %v1233
  %1235 = vmatmul.bf16.gmra.mxu0 %v552
  %v1236 = vpop.f32.mrf.mxu0
  %v1237 = vadd.f32 %v1103, %v1236
  %v1238 = vpop.f32.mrf.mxu0
  %v1239 = vadd.f32 %v1105, %v1238
  %1240 = vmatmul.bf16.gmra.mxu0 %v556
  %v1241 = vpop.f32.mrf.mxu0
  %v1242 = vadd.f32 %v1108, %v1241
  %v1243 = vpop.f32.mrf.mxu0
  %v1244 = vadd.f32 %v1110, %v1243
  %1245 = vmatmul.bf16.gmra.mxu0 %v560
  %v1246 = vpop.f32.mrf.mxu0
  %v1247 = vadd.f32 %v1113, %v1246
  %v1248 = vpop.f32.mrf.mxu0
  %v1249 = vadd.f32 %v1115, %v1248
  %1250 = vmatmul.bf16.gmra.mxu0 %v564
  %v1251 = vpop.f32.mrf.mxu0
  %v1252 = vadd.f32 %v1118, %v1251
  %v1253 = vpop.f32.mrf.mxu0
  %v1254 = vadd.f32 %v1120, %v1253
  %1255 = vmatmul.bf16.gmra.mxu0 %v568
  %v1256 = vpop.f32.mrf.mxu0
  %v1257 = vadd.f32 %v1123, %v1256
  %v1258 = vpop.f32.mrf.mxu0
  %v1259 = vadd.f32 %v1125, %v1258
  %1260 = vmatmul.bf16.gmra.mxu0 %v572
  %v1261 = vpop.f32.mrf.mxu0
  %v1262 = vadd.f32 %v1128, %v1261
  %v1263 = vpop.f32.mrf.mxu0
  %v1264 = vadd.f32 %v1130, %v1263
  %1265 = vmatmul.bf16.gmra.mxu0 %v576
  %v1266 = vpop.f32.mrf.mxu0
  %v1267 = vadd.f32 %v1133, %v1266
  %v1268 = vpop.f32.mrf.mxu0
  %v1269 = vadd.f32 %v1135, %v1268
  %1270 = vmatmul.bf16.gmra.mxu0 %v580
  %v1271 = vpop.f32.mrf.mxu0
  %v1272 = vadd.f32 %v1138, %v1271
  %v1273 = vpop.f32.mrf.mxu0
  %v1274 = vadd.f32 %v1140, %v1273
  %1275 = vdwg.mxu0
  %1276 = vmatpush.bf16.msra.mxu0 %v841
  %1277 = vmatpush.bf16.msra.mxu0 %v840
  %1278 = vmatpush.bf16.msra.mxu0 %v839
  %1279 = vmatpush.bf16.msra.mxu0 %v838
  %1280 = vmatpush.bf16.msra.mxu0 %v837
  %1281 = vmatpush.bf16.msra.mxu0 %v836
  %1282 = vmatpush.bf16.msra.mxu0 %v835
  %1283 = vmatpush.bf16.msra.mxu0 %v834
  %1284 = vmatmul.bf16.gmra.mxu0 %v485
  %v1285 = vpop.f32.mrf.mxu0
  %v1286 = vadd.f32 %v1152, %v1285
  %v1287 = vpop.f32.mrf.mxu0
  %v1288 = vadd.f32 %v1154, %v1287
  %1289 = vmatmul.bf16.gmra.mxu0 %v489
  %v1290 = vpop.f32.mrf.mxu0
  %v1291 = vadd.f32 %v1157, %v1290
  %v1292 = vpop.f32.mrf.mxu0
  %v1293 = vadd.f32 %v1159, %v1292
  %1294 = vmatmul.bf16.gmra.mxu0 %v493
  %v1295 = vpop.f32.mrf.mxu0
  %v1296 = vadd.f32 %v1162, %v1295
  %v1297 = vpop.f32.mrf.mxu0
  %v1298 = vadd.f32 %v1164, %v1297
  %1299 = vmatmul.bf16.gmra.mxu0 %v497
  %v1300 = vpop.f32.mrf.mxu0
  %v1301 = vadd.f32 %v1167, %v1300
  %v1302 = vpop.f32.mrf.mxu0
  %v1303 = vadd.f32 %v1169, %v1302
  %1304 = vmatmul.bf16.gmra.mxu0 %v501
  %v1305 = vpop.f32.mrf.mxu0
  %v1306 = vadd.f32 %v1172, %v1305
  %v1307 = vpop.f32.mrf.mxu0
  %v1308 = vadd.f32 %v1174, %v1307
  %1309 = vmatmul.bf16.gmra.mxu0 %v505
  %v1310 = vpop.f32.mrf.mxu0
  %v1311 = vadd.f32 %v1177, %v1310
  %v1312 = vpop.f32.mrf.mxu0
  %v1313 = vadd.f32 %v1179, %v1312
  %1314 = vmatmul.bf16.gmra.mxu0 %v509
  %v1315 = vpop.f32.mrf.mxu0
  %v1316 = vadd.f32 %v1182, %v1315
  %v1317 = vpop.f32.mrf.mxu0
  %v1318 = vadd.f32 %v1184, %v1317
  %1319 = vmatmul.bf16.gmra.mxu0 %v513
  %v1320 = vpop.f32.mrf.mxu0
  %v1321 = vadd.f32 %v1187, %v1320
  %v1322 = vpop.f32.mrf.mxu0
  %v1323 = vadd.f32 %v1189, %v1322
  %1324 = vmatmul.bf16.gmra.mxu0 %v517
  %v1325 = vpop.f32.mrf.mxu0
  %v1326 = vadd.f32 %v1192, %v1325
  %v1327 = vpop.f32.mrf.mxu0
  %v1328 = vadd.f32 %v1194, %v1327
  %1329 = vmatmul.bf16.gmra.mxu0 %v521
  %v1330 = vpop.f32.mrf.mxu0
  %v1331 = vadd.f32 %v1197, %v1330
  %v1332 = vpop.f32.mrf.mxu0
  %v1333 = vadd.f32 %v1199, %v1332
  %1334 = vmatmul.bf16.gmra.mxu0 %v525
  %v1335 = vpop.f32.mrf.mxu0
  %v1336 = vadd.f32 %v1202, %v1335
  %v1337 = vpop.f32.mrf.mxu0
  %v1338 = vadd.f32 %v1204, %v1337
  %1339 = vmatmul.bf16.gmra.mxu0 %v529
  %v1340 = vpop.f32.mrf.mxu0
  %v1341 = vadd.f32 %v1207, %v1340
  %v1342 = vpop.f32.mrf.mxu0
  %v1343 = vadd.f32 %v1209, %v1342
  %1344 = vmatmul.bf16.gmra.mxu0 %v533
  %v1345 = vpop.f32.mrf.mxu0
  %v1346 = vadd.f32 %v1212, %v1345
  %v1347 = vpop.f32.mrf.mxu0
  %v1348 = vadd.f32 %v1214, %v1347
  %1349 = vmatmul.bf16.gmra.mxu0 %v537
  %v1350 = vpop.f32.mrf.mxu0
  %v1351 = vadd.f32 %v1217, %v1350
  %v1352 = vpop.f32.mrf.mxu0
  %v1353 = vadd.f32 %v1219, %v1352
  %1354 = vmatmul.bf16.gmra.mxu0 %v541
  %v1355 = vpop.f32.mrf.mxu0
  %v1356 = vadd.f32 %v1222, %v1355
  %v1357 = vpop.f32.mrf.mxu0
  %v1358 = vadd.f32 %v1224, %v1357
  %1359 = vmatmul.bf16.gmra.mxu0 %v545
  %v1360 = vpop.f32.mrf.mxu0
  %v1361 = vadd.f32 %v1227, %v1360
  %v1362 = vpop.f32.mrf.mxu0
  %v1363 = vadd.f32 %v1229, %v1362
  %1364 = vmatmul.bf16.gmra.mxu0 %v549
  %v1365 = vpop.f32.mrf.mxu0
  %v1366 = vadd.f32 %v1232, %v1365
  %v1367 = vpop.f32.mrf.mxu0
  %v1368 = vadd.f32 %v1234, %v1367
  %1369 = vmatmul.bf16.gmra.mxu0 %v553
  %v1370 = vpop.f32.mrf.mxu0
  %v1371 = vadd.f32 %v1237, %v1370
  %v1372 = vpop.f32.mrf.mxu0
  %v1373 = vadd.f32 %v1239, %v1372
  %1374 = vmatmul.bf16.gmra.mxu0 %v557
  %v1375 = vpop.f32.mrf.mxu0
  %v1376 = vadd.f32 %v1242, %v1375
  %v1377 = vpop.f32.mrf.mxu0
  %v1378 = vadd.f32 %v1244, %v1377
  %1379 = vmatmul.bf16.gmra.mxu0 %v561
  %v1380 = vpop.f32.mrf.mxu0
  %v1381 = vadd.f32 %v1247, %v1380
  %v1382 = vpop.f32.mrf.mxu0
  %v1383 = vadd.f32 %v1249, %v1382
  %1384 = vmatmul.bf16.gmra.mxu0 %v565
  %v1385 = vpop.f32.mrf.mxu0
  %v1386 = vadd.f32 %v1252, %v1385
  %v1387 = vpop.f32.mrf.mxu0
  %v1388 = vadd.f32 %v1254, %v1387
  %1389 = vmatmul.bf16.gmra.mxu0 %v569
  %v1390 = vpop.f32.mrf.mxu0
  %v1391 = vadd.f32 %v1257, %v1390
  %v1392 = vpop.f32.mrf.mxu0
  %v1393 = vadd.f32 %v1259, %v1392
  %1394 = vmatmul.bf16.gmra.mxu0 %v573
  %v1395 = vpop.f32.mrf.mxu0
  %v1396 = vadd.f32 %v1262, %v1395
  %v1397 = vpop.f32.mrf.mxu0
  %v1398 = vadd.f32 %v1264, %v1397
  %1399 = vmatmul.bf16.gmra.mxu0 %v577
  %v1400 = vpop.f32.mrf.mxu0
  %v1401 = vadd.f32 %v1267, %v1400
  %v1402 = vpop.f32.mrf.mxu0
  %v1403 = vadd.f32 %v1269, %v1402
  %1404 = vmatmul.bf16.gmra.mxu0 %v581
  %v1405 = vpop.f32.mrf.mxu0
  %v1406 = vadd.f32 %v1272, %v1405
  %v1407 = vpop.f32.mrf.mxu0
  %v1408 = vadd.f32 %v1274, %v1407
  %1409 = vdwg.mxu0
  %v1410 = vmax.f32 %v1286, 0.0
  %v1411 = vmax.f32 %v1288, 0.0
  %v1412 = vmax.f32 %v1291, 0.0
  %v1413 = vmax.f32 %v1293, 0.0
  %v1414 = vmax.f32 %v1296, 0.0
  %v1415 = vmax.f32 %v1298, 0.0
  %v1416 = vmax.f32 %v1301, 0.0
  %v1417 = vmax.f32 %v1303, 0.0
  %v1418 = vmax.f32 %v1306, 0.0
  %v1419 = vmax.f32 %v1308, 0.0
  %v1420 = vmax.f32 %v1311, 0.0
  %v1421 = vmax.f32 %v1313, 0.0
  %v1422 = vmax.f32 %v1316, 0.0
  %v1423 = vmax.f32 %v1318, 0.0
  %v1424 = vmax.f32 %v1321, 0.0
  %v1425 = vmax.f32 %v1323, 0.0
  %v1426 = vmax.f32 %v1326, 0.0
  %v1427 = vmax.f32 %v1328, 0.0
  %v1428 = vmax.f32 %v1331, 0.0
  %v1429 = vmax.f32 %v1333, 0.0
  %v1430 = vmax.f32 %v1336, 0.0
  %v1431 = vmax.f32 %v1338, 0.0
  %v1432 = vmax.f32 %v1341, 0.0
  %v1433 = vmax.f32 %v1343, 0.0
  %v1434 = vmax.f32 %v1346, 0.0
  %v1435 = vmax.f32 %v1348, 0.0
  %v1436 = vmax.f32 %v1351, 0.0
  %v1437 = vmax.f32 %v1353, 0.0
  %v1438 = vmax.f32 %v1356, 0.0
  %v1439 = vmax.f32 %v1358, 0.0
  %v1440 = vmax.f32 %v1361, 0.0
  %v1441 = vmax.f32 %v1363, 0.0
  %v1442 = vmax.f32 %v1366, 0.0
  %v1443 = vmax.f32 %v1368, 0.0
  %v1444 = vmax.f32 %v1371, 0.0
  %v1445 = vmax.f32 %v1373, 0.0
  %v1446 = vmax.f32 %v1376, 0.0
  %v1447 = vmax.f32 %v1378, 0.0
  %v1448 = vmax.f32 %v1381, 0.0
  %v1449 = vmax.f32 %v1383, 0.0
  %v1450 = vmax.f32 %v1386, 0.0
  %v1451 = vmax.f32 %v1388, 0.0
  %v1452 = vmax.f32 %v1391, 0.0
  %v1453 = vmax.f32 %v1393, 0.0
  %v1454 = vmax.f32 %v1396, 0.0
  %v1455 = vmax.f32 %v1398, 0.0
  %v1456 = vmax.f32 %v1401, 0.0
  %v1457 = vmax.f32 %v1403, 0.0
  %v1458 = vmax.f32 %v1406, 0.0
  %v1459 = vmax.f32 %v1408, 0.0
  %v1460 = vpack.c.bf16 %v1410, %v1410
  %v1461 = vpack.c.bf16 %v1411, %v1411
  %v1462 = vpack.c.bf16 %v1412, %v1412
  %v1463 = vpack.c.bf16 %v1413, %v1413
  %v1464 = vpack.c.bf16 %v1414, %v1414
  %v1465 = vpack.c.bf16 %v1415, %v1415
  %v1466 = vpack.c.bf16 %v1416, %v1416
  %v1467 = vpack.c.bf16 %v1417, %v1417
  %v1468 = vpack.c.bf16 %v1418, %v1418
  %v1469 = vpack.c.bf16 %v1419, %v1419
  %v1470 = vpack.c.bf16 %v1420, %v1420
  %v1471 = vpack.c.bf16 %v1421, %v1421
  %v1472 = vpack.c.bf16 %v1422, %v1422
  %v1473 = vpack.c.bf16 %v1423, %v1423
  %v1474 = vpack.c.bf16 %v1424, %v1424
  %v1475 = vpack.c.bf16 %v1425, %v1425
  %v1476 = vpack.c.bf16 %v1426, %v1426
  %v1477 = vpack.c.bf16 %v1427, %v1427
  %v1478 = vpack.c.bf16 %v1428, %v1428
  %v1479 = vpack.c.bf16 %v1429, %v1429
  %v1480 = vpack.c.bf16 %v1430, %v1430
  %v1481 = vpack.c.bf16 %v1431, %v1431
  %v1482 = vpack.c.bf16 %v1432, %v1432
  %v1483 = vpack.c.bf16 %v1433, %v1433
  %v1484 = vpack.c.bf16 %v1434, %v1434
  %v1485 = vpack.c.bf16 %v1435, %v1435
  %v1486 = vpack.c.bf16 %v1436, %v1436
  %v1487 = vpack.c.bf16 %v1437, %v1437
  %v1488 = vpack.c.bf16 %v1438, %v1438
  %v1489 = vpack.c.bf16 %v1439, %v1439
  %v1490 = vpack.c.bf16 %v1440, %v1440
  %v1491 = vpack.c.bf16 %v1441, %v1441
  %v1492 = vpack.c.bf16 %v1442, %v1442
  %v1493 = vpack.c.bf16 %v1443, %v1443
  %v1494 = vpack.c.bf16 %v1444, %v1444
  %v1495 = vpack.c.bf16 %v1445, %v1445
  %v1496 = vpack.c.bf16 %v1446, %v1446
  %v1497 = vpack.c.bf16 %v1447, %v1447
  %v1498 = vpack.c.bf16 %v1448, %v1448
  %v1499 = vpack.c.bf16 %v1449, %v1449
  %v1500 = vpack.c.bf16 %v1450, %v1450
  %v1501 = vpack.c.bf16 %v1451, %v1451
  %v1502 = vpack.c.bf16 %v1452, %v1452
  %v1503 = vpack.c.bf16 %v1453, %v1453
  %v1504 = vpack.c.bf16 %v1454, %v1454
  %v1505 = vpack.c.bf16 %v1455, %v1455
  %v1506 = vpack.c.bf16 %v1456, %v1456
  %v1507 = vpack.c.bf16 %v1457, %v1457
  %v1508 = vpack.c.bf16 %v1458, %v1458
  %v1509 = vpack.c.bf16 %v1459, %v1459
  %vm1510 = vcmask 519168
  %1511 = vst.msk [vmem:[%s3] sm:$0xf] %vm1510, %v1460
  %1512 = vst.msk [vmem:[%s3 + $0x4] sm:$0xf] %vm1510, %v1461
  %1513 = vst.msk [vmem:[%s3 + $0x8] sm:$0xf] %vm1510, %v1462
  %1514 = vst.msk [vmem:[%s3 + $0xc] sm:$0xf] %vm1510, %v1463
  %1515 = vst.msk [vmem:[%s3 + $0x10] sm:$0xf] %vm1510, %v1464
  %1516 = vst.msk [vmem:[%s3 + $0x14] sm:$0xf] %vm1510, %v1465
  %1517 = vst.msk [vmem:[%s3 + $0x18] sm:$0xf] %vm1510, %v1466
  %1518 = vst.msk [vmem:[%s3 + $0x1c] sm:$0xf] %vm1510, %v1467
  %1519 = vst.msk [vmem:[%s3 + $0x20] sm:$0xf] %vm1510, %v1468
  %1520 = vst.msk [vmem:[%s3 + $0x24] sm:$0xf] %vm1510, %v1469
  %1521 = vst.msk [vmem:[%s3 + $0x28] sm:$0xf] %vm1510, %v1470
  %1522 = vst.msk [vmem:[%s3 + $0x2c] sm:$0xf] %vm1510, %v1471
  %1523 = vst.msk [vmem:[%s3 + $0x30] sm:$0xf] %vm1510, %v1472
  %1524 = vst.msk [vmem:[%s3 + $0x34] sm:$0xf] %vm1510, %v1473
  %1525 = vst.msk [vmem:[%s3 + $0x38] sm:$0xf] %vm1510, %v1474
  %1526 = vst.msk [vmem:[%s3 + $0x3c] sm:$0xf] %vm1510, %v1475
  %1527 = vst.msk [vmem:[%s3 + $0x40] sm:$0xf] %vm1510, %v1476
  %1528 = vst.msk [vmem:[%s3 + $0x44] sm:$0xf] %vm1510, %v1477
  %1529 = vst.msk [vmem:[%s3 + $0x48] sm:$0xf] %vm1510, %v1478
  %1530 = vst.msk [vmem:[%s3 + $0x4c] sm:$0xf] %vm1510, %v1479
  %1531 = vst.msk [vmem:[%s3 + $0x50] sm:$0xf] %vm1510, %v1480
  %1532 = vst.msk [vmem:[%s3 + $0x54] sm:$0xf] %vm1510, %v1481
  %1533 = vst.msk [vmem:[%s3 + $0x58] sm:$0xf] %vm1510, %v1482
  %1534 = vst.msk [vmem:[%s3 + $0x5c] sm:$0xf] %vm1510, %v1483
  %1535 = vst.msk [vmem:[%s3 + $0x60] sm:$0xf] %vm1510, %v1484
  %1536 = vst.msk [vmem:[%s3 + $0x64] sm:$0xf] %vm1510, %v1485
  %1537 = vst.msk [vmem:[%s3 + $0x68] sm:$0xf] %vm1510, %v1486
  %1538 = vst.msk [vmem:[%s3 + $0x6c] sm:$0xf] %vm1510, %v1487
  %1539 = vst.msk [vmem:[%s3 + $0x70] sm:$0xf] %vm1510, %v1488
  %1540 = vst.msk [vmem:[%s3 + $0x74] sm:$0xf] %vm1510, %v1489
  %1541 = vst.msk [vmem:[%s3 + $0x78] sm:$0xf] %vm1510, %v1490
  %1542 = vst.msk [vmem:[%s3 + $0x7c] sm:$0xf] %vm1510, %v1491
  %1543 = vst.msk [vmem:[%s3 + $0x80] sm:$0xf] %vm1510, %v1492
  %1544 = vst.msk [vmem:[%s3 + $0x84] sm:$0xf] %vm1510, %v1493
  %1545 = vst.msk [vmem:[%s3 + $0x88] sm:$0xf] %vm1510, %v1494
  %1546 = vst.msk [vmem:[%s3 + $0x8c] sm:$0xf] %vm1510, %v1495
  %1547 = vst.msk [vmem:[%s3 + $0x90] sm:$0xf] %vm1510, %v1496
  %1548 = vst.msk [vmem:[%s3 + $0x94] sm:$0xf] %vm1510, %v1497
  %1549 = vst.msk [vmem:[%s3 + $0x98] sm:$0xf] %vm1510, %v1498
  %1550 = vst.msk [vmem:[%s3 + $0x9c] sm:$0xf] %vm1510, %v1499
  %1551 = vst.msk [vmem:[%s3 + $0xa0] sm:$0xf] %vm1510, %v1500
  %1552 = vst.msk [vmem:[%s3 + $0xa4] sm:$0xf] %vm1510, %v1501
  %1553 = vst.msk [vmem:[%s3 + $0xa8] sm:$0xf] %vm1510, %v1502
  %1554 = vst.msk [vmem:[%s3 + $0xac] sm:$0xf] %vm1510, %v1503
  %1555 = vst.msk [vmem:[%s3 + $0xb0] sm:$0xf] %vm1510, %v1504
  %1556 = vst.msk [vmem:[%s3 + $0xb4] sm:$0xf] %vm1510, %v1505
  %1557 = vst.msk [vmem:[%s3 + $0xb8] sm:$0xf] %vm1510, %v1506
  %1558 = vst.msk [vmem:[%s3 + $0xbc] sm:$0xf] %vm1510, %v1507
  %1559 = vst.msk [vmem:[%s3 + $0xc0] sm:$0xf] %vm1510, %v1508
  %1560 = vst.msk [vmem:[%s3 + $0xc4] sm:$0xf] %vm1510, %v1509
  // Predicated region
  $region14: #{dqn_forward.16} parent=0 // pred_check
    _
  $region15: #{dqn_forward.16} parent=0 // pred_check_branch
    %1562 = sbr.rel (0) target = $region17
  $region16: #{dqn_forward.16} parent=0 // pred_region
    _
  $region17: #{dqn_forward.16} parent=0 // pred_fallthru
    _
  // Predicated region
  $region18: #{dqn_forward.16} parent=0 // pred_check
    _
  $region19: #{dqn_forward.16} parent=0 // pred_check_branch
    %1564 = sbr.rel (0) target = $region21
  $region20: #{dqn_forward.16} parent=0 // pred_region
    _
  $region21: #{dqn_forward.16} parent=0 // pred_fallthru
    _

// kernel: dqn_forward.17
$region0: #{dqn_forward.17}
  #allocation0 [shape = 'u32[]', space=smem, size = 0x4, offset = 0x4, fixed_abs, tag = 'smem constant byte address 0x4 - core index']
  #allocation1 [shape = 'u32[72,128]{1,0:T(1,128)}', space=vmem, size = 0x9000, scoped, tag = 'internal scratch']
  %s0 = inlined_call_operand.vmem [shape: bf16[200,128], index: 0, kind: input, shape index: {}]
  %s1 = inlined_call_operand.vmem [shape: bf16[200,64], index: 1, kind: output, shape index: {}]
  %s2 = sld [smem:[#allocation0]]
  $region14: #{dqn_forward.17} parent=0
    _
  %s4 = ssub.s32 1, %s2
  %s5 = scalar_select 0, %s4, %s2
  // Predicated region
  $region2: #{dqn_forward.17} parent=0 // pred_check
    _
  $region3: #{dqn_forward.17} parent=0 // pred_check_branch
    %7 = sbr.rel (0) target = $region5
  $region4: #{dqn_forward.17} parent=0 // pred_region
    _
  $region5: #{dqn_forward.17} parent=0 // pred_fallthru
    _
  %v8 = vld [vmem:[%s0] sm:$0xf]
  %v9 = vld [vmem:[%s0 + $0x4] sm:$0xf]
  %v10 = vld [vmem:[%s0 + $0x8] sm:$0xf]
  %v11 = vld [vmem:[%s0 + $0xc] sm:$0xf]
  %v12 = vld [vmem:[%s0 + $0x10] sm:$0xf]
  %v13 = vld [vmem:[%s0 + $0x14] sm:$0xf]
  %v14 = vld [vmem:[%s0 + $0x18] sm:$0xf]
  %v15 = vld [vmem:[%s0 + $0x1c] sm:$0xf]
  %v16 = vld [vmem:[%s0 + $0x20] sm:$0xf]
  %v17 = vld [vmem:[%s0 + $0x24] sm:$0xf]
  %v18 = vld [vmem:[%s0 + $0x28] sm:$0xf]
  %v19 = vld [vmem:[%s0 + $0x2c] sm:$0xf]
  %v20 = vld [vmem:[%s0 + $0x30] sm:$0xf]
  %v21 = vld [vmem:[%s0 + $0x34] sm:$0xf]
  %v22 = vld [vmem:[%s0 + $0x38] sm:$0xf]
  %v23 = vld [vmem:[%s0 + $0x3c] sm:$0xf]
  %v24 = vld [vmem:[%s0 + $0x40] sm:$0xf]
  %v25 = vld [vmem:[%s0 + $0x44] sm:$0xf]
  %v26 = vld [vmem:[%s0 + $0x48] sm:$0xf]
  %v27 = vld [vmem:[%s0 + $0x4c] sm:$0xf]
  %v28 = vld [vmem:[%s0 + $0x50] sm:$0xf]
  %v29 = vld [vmem:[%s0 + $0x54] sm:$0xf]
  %v30 = vld [vmem:[%s0 + $0x58] sm:$0xf]
  %v31 = vld [vmem:[%s0 + $0x5c] sm:$0xf]
  %v32 = vld [vmem:[%s0 + $0x60] sm:$0xf]
  %v33 = vunpack.c.l.bf16 %v8
  %v34 = vunpack.c.l.bf16 %v9
  %v35 = vunpack.c.l.bf16 %v10
  %v36 = vunpack.c.l.bf16 %v11
  %v37 = vunpack.c.l.bf16 %v12
  %v38 = vunpack.c.l.bf16 %v13
  %v39 = vunpack.c.l.bf16 %v14
  %v40 = vunpack.c.l.bf16 %v15
  %v41 = vunpack.c.l.bf16 %v16
  %v42 = vunpack.c.l.bf16 %v17
  %v43 = vunpack.c.l.bf16 %v18
  %v44 = vunpack.c.l.bf16 %v19
  %v45 = vunpack.c.l.bf16 %v20
  %v46 = vunpack.c.l.bf16 %v21
  %v47 = vunpack.c.l.bf16 %v22
  %v48 = vunpack.c.l.bf16 %v23
  %v49 = vunpack.c.l.bf16 %v24
  %v50 = vunpack.c.l.bf16 %v25
  %v51 = vunpack.c.l.bf16 %v26
  %v52 = vunpack.c.l.bf16 %v27
  %v53 = vunpack.c.l.bf16 %v28
  %v54 = vunpack.c.l.bf16 %v29
  %v55 = vunpack.c.l.bf16 %v30
  %v56 = vunpack.c.l.bf16 %v31
  %v57 = vunpack.c.l.bf16 %v32
  %83 = vrot.lane.b32.xlu0 %v33, 64
  %v84 = vpop.permute.xlu0 %83
  %85 = vrot.lane.b32.xlu0 %v34, 64
  %v86 = vpop.permute.xlu0 %85
  %87 = vrot.lane.b32.xlu0 %v35, 64
  %v88 = vpop.permute.xlu0 %87
  %89 = vrot.lane.b32.xlu0 %v36, 64
  %v90 = vpop.permute.xlu0 %89
  %91 = vrot.lane.b32.xlu0 %v37, 64
  %v92 = vpop.permute.xlu0 %91
  %93 = vrot.lane.b32.xlu0 %v38, 64
  %v94 = vpop.permute.xlu0 %93
  %95 = vrot.lane.b32.xlu0 %v39, 64
  %v96 = vpop.permute.xlu0 %95
  %97 = vrot.lane.b32.xlu0 %v40, 64
  %v98 = vpop.permute.xlu0 %97
  %99 = vrot.lane.b32.xlu0 %v41, 64
  %v100 = vpop.permute.xlu0 %99
  %101 = vrot.lane.b32.xlu0 %v42, 64
  %v102 = vpop.permute.xlu0 %101
  %103 = vrot.lane.b32.xlu0 %v43, 64
  %v104 = vpop.permute.xlu0 %103
  %105 = vrot.lane.b32.xlu0 %v44, 64
  %v106 = vpop.permute.xlu0 %105
  %107 = vrot.lane.b32.xlu0 %v45, 64
  %v108 = vpop.permute.xlu0 %107
  %109 = vrot.lane.b32.xlu0 %v46, 64
  %v110 = vpop.permute.xlu0 %109
  %111 = vrot.lane.b32.xlu0 %v47, 64
  %v112 = vpop.permute.xlu0 %111
  %113 = vrot.lane.b32.xlu0 %v48, 64
  %v114 = vpop.permute.xlu0 %113
  %115 = vrot.lane.b32.xlu0 %v49, 64
  %v116 = vpop.permute.xlu0 %115
  %117 = vrot.lane.b32.xlu0 %v50, 64
  %v118 = vpop.permute.xlu0 %117
  %119 = vrot.lane.b32.xlu0 %v51, 64
  %v120 = vpop.permute.xlu0 %119
  %121 = vrot.lane.b32.xlu0 %v52, 64
  %v122 = vpop.permute.xlu0 %121
  %123 = vrot.lane.b32.xlu0 %v53, 64
  %v124 = vpop.permute.xlu0 %123
  %125 = vrot.lane.b32.xlu0 %v54, 64
  %v126 = vpop.permute.xlu0 %125
  %127 = vrot.lane.b32.xlu0 %v55, 64
  %v128 = vpop.permute.xlu0 %127
  %129 = vrot.lane.b32.xlu0 %v56, 64
  %v130 = vpop.permute.xlu0 %129
  %131 = vrot.lane.b32.xlu0 %v57, 64
  %v132 = vpop.permute.xlu0 %131
  %v158 = vmax.f32 %v33, %v84
  %v159 = vmax.f32 %v34, %v86
  %v160 = vmax.f32 %v35, %v88
  %v161 = vmax.f32 %v36, %v90
  %v162 = vmax.f32 %v37, %v92
  %v163 = vmax.f32 %v38, %v94
  %v164 = vmax.f32 %v39, %v96
  %v165 = vmax.f32 %v40, %v98
  %v166 = vmax.f32 %v41, %v100
  %v167 = vmax.f32 %v42, %v102
  %v168 = vmax.f32 %v43, %v104
  %v169 = vmax.f32 %v44, %v106
  %v170 = vmax.f32 %v45, %v108
  %v171 = vmax.f32 %v46, %v110
  %v172 = vmax.f32 %v47, %v112
  %v173 = vmax.f32 %v48, %v114
  %v174 = vmax.f32 %v49, %v116
  %v175 = vmax.f32 %v50, %v118
  %v176 = vmax.f32 %v51, %v120
  %v177 = vmax.f32 %v52, %v122
  %v178 = vmax.f32 %v53, %v124
  %v179 = vmax.f32 %v54, %v126
  %v180 = vmax.f32 %v55, %v128
  %v181 = vmax.f32 %v56, %v130
  %v182 = vmax.f32 %v57, %v132
  %v183 = vpack.c.bf16 %v158, %v158
  %v184 = vpack.c.bf16 %v159, %v159
  %v185 = vpack.c.bf16 %v160, %v160
  %v186 = vpack.c.bf16 %v161, %v161
  %v187 = vpack.c.bf16 %v162, %v162
  %v188 = vpack.c.bf16 %v163, %v163
  %v189 = vpack.c.bf16 %v164, %v164
  %v190 = vpack.c.bf16 %v165, %v165
  %v191 = vpack.c.bf16 %v166, %v166
  %v192 = vpack.c.bf16 %v167, %v167
  %v193 = vpack.c.bf16 %v168, %v168
  %v194 = vpack.c.bf16 %v169, %v169
  %v195 = vpack.c.bf16 %v170, %v170
  %v196 = vpack.c.bf16 %v171, %v171
  %v197 = vpack.c.bf16 %v172, %v172
  %v198 = vpack.c.bf16 %v173, %v173
  %v199 = vpack.c.bf16 %v174, %v174
  %v200 = vpack.c.bf16 %v175, %v175
  %v201 = vpack.c.bf16 %v176, %v176
  %v202 = vpack.c.bf16 %v177, %v177
  %v203 = vpack.c.bf16 %v178, %v178
  %v204 = vpack.c.bf16 %v179, %v179
  %v205 = vpack.c.bf16 %v180, %v180
  %v206 = vpack.c.bf16 %v181, %v181
  %v207 = vpack.c.bf16 %v182, %v182
  %vm208 = vcmask 519168
  %209 = vst.msk [vmem:[%s1] sm:$0xf] %vm208, %v183
  %210 = vst.msk [vmem:[%s1 + $0x4] sm:$0xf] %vm208, %v184
  %211 = vst.msk [vmem:[%s1 + $0x8] sm:$0xf] %vm208, %v185
  %212 = vst.msk [vmem:[%s1 + $0xc] sm:$0xf] %vm208, %v186
  %213 = vst.msk [vmem:[%s1 + $0x10] sm:$0xf] %vm208, %v187
  %214 = vst.msk [vmem:[%s1 + $0x14] sm:$0xf] %vm208, %v188
  %215 = vst.msk [vmem:[%s1 + $0x18] sm:$0xf] %vm208, %v189
  %216 = vst.msk [vmem:[%s1 + $0x1c] sm:$0xf] %vm208, %v190
  %217 = vst.msk [vmem:[%s1 + $0x20] sm:$0xf] %vm208, %v191
  %218 = vst.msk [vmem:[%s1 + $0x24] sm:$0xf] %vm208, %v192
  %219 = vst.msk [vmem:[%s1 + $0x28] sm:$0xf] %vm208, %v193
  %220 = vst.msk [vmem:[%s1 + $0x2c] sm:$0xf] %vm208, %v194
  %221 = vst.msk [vmem:[%s1 + $0x30] sm:$0xf] %vm208, %v195
  %222 = vst.msk [vmem:[%s1 + $0x34] sm:$0xf] %vm208, %v196
  %223 = vst.msk [vmem:[%s1 + $0x38] sm:$0xf] %vm208, %v197
  %224 = vst.msk [vmem:[%s1 + $0x3c] sm:$0xf] %vm208, %v198
  %225 = vst.msk [vmem:[%s1 + $0x40] sm:$0xf] %vm208, %v199
  %226 = vst.msk [vmem:[%s1 + $0x44] sm:$0xf] %vm208, %v200
  %227 = vst.msk [vmem:[%s1 + $0x48] sm:$0xf] %vm208, %v201
  %228 = vst.msk [vmem:[%s1 + $0x4c] sm:$0xf] %vm208, %v202
  %229 = vst.msk [vmem:[%s1 + $0x50] sm:$0xf] %vm208, %v203
  %230 = vst.msk [vmem:[%s1 + $0x54] sm:$0xf] %vm208, %v204
  %231 = vst.msk [vmem:[%s1 + $0x58] sm:$0xf] %vm208, %v205
  %232 = vst.msk [vmem:[%s1 + $0x5c] sm:$0xf] %vm208, %v206
  %233 = vst.msk [vmem:[%s1 + $0x60] sm:$0xf] %vm208, %v207
  // Predicated region
  $region6: #{dqn_forward.17} parent=0 // pred_check
    _
  $region7: #{dqn_forward.17} parent=0 // pred_check_branch
    %235 = sbr.rel (0) target = $region9
  $region8: #{dqn_forward.17} parent=0 // pred_region
    _
  $region9: #{dqn_forward.17} parent=0 // pred_fallthru
    _
  // Predicated region
  $region10: #{dqn_forward.17} parent=0 // pred_check
    _
  $region11: #{dqn_forward.17} parent=0 // pred_check_branch
    %237 = sbr.rel (0) target = $region13
  $region12: #{dqn_forward.17} parent=0 // pred_region
    _
  $region13: #{dqn_forward.17} parent=0 // pred_fallthru
    _

// kernel: dqn_forward.18
$region0: #{dqn_forward.18}
  #allocation0 [shape = 'u32[]', space=smem, size = 0x4, offset = 0x4, fixed_abs, tag = 'smem constant byte address 0x4 - core index']
  #allocation1 [shape = 'u32[72,128]{1,0:T(1,128)}', space=vmem, size = 0x9000, scoped, tag = 'internal scratch']
  %s0 = inlined_call_operand.vmem [shape: bf16[10,1280], index: 0, kind: input, shape index: {}]
  %s1 = inlined_call_operand.vmem [shape: bf16[10,640], index: 1, kind: output, shape index: {}]
  %s2 = sld [smem:[#allocation0]]
  $region14: #{dqn_forward.18} parent=0
    _
  %s4 = ssub.s32 1, %s2
  %s5 = scalar_select 0, %s4, %s2
  // Predicated region
  $region2: #{dqn_forward.18} parent=0 // pred_check
    _
  $region3: #{dqn_forward.18} parent=0 // pred_check_branch
    %7 = sbr.rel (0) target = $region5
  $region4: #{dqn_forward.18} parent=0 // pred_region
    _
  $region5: #{dqn_forward.18} parent=0 // pred_fallthru
    _
  %v8 = vld [vmem:[%s0] sm:$0xff]
  %v9 = vld [vmem:[%s0 + $0x8] sm:$0xff]
  %v10 = vld [vmem:[%s0 + $0x10] sm:$0xff]
  %v11 = vld [vmem:[%s0 + $0x18] sm:$0xff]
  %v12 = vld [vmem:[%s0 + $0x20] sm:$0xff]
  %v13 = vld [vmem:[%s0 + $0x28] sm:$0x11]
  %v14 = vld [vmem:[%s0 + $0x30] sm:$0x11]
  %v15 = vld [vmem:[%s0 + $0x38] sm:$0x11]
  %v16 = vld [vmem:[%s0 + $0x40] sm:$0x11]
  %v17 = vld [vmem:[%s0 + $0x48] sm:$0x11]
  %v18 = vunpack.c.l.bf16 %v8
  %v19 = vunpack.c.h.bf16 %v8
  %v20 = vunpack.c.l.bf16 %v9
  %v21 = vunpack.c.h.bf16 %v9
  %v22 = vunpack.c.l.bf16 %v10
  %v23 = vunpack.c.l.bf16 %v13
  %v24 = vunpack.c.h.bf16 %v13
  %v25 = vunpack.c.l.bf16 %v14
  %v26 = vunpack.c.h.bf16 %v14
  %v27 = vunpack.c.l.bf16 %v15
  %v34 = vrot.slane %v10, 4
  %v35 = vrot.slane %v11, 4
  %v36 = vrot.slane %v12, 4
  %v37 = vrot.slane %v15, 4
  %v38 = vrot.slane %v16, 4
  %v39 = vrot.slane %v17, 4
  %vm40 = vcmask 1043456
  %v41 = vsel %vm40, %v34, %v35
  %v42 = vsel %vm40, %v35, %v36
  %v43 = vsel %vm40, %v37, %v38
  %v44 = vsel %vm40, %v38, %v39
  %v51 = vunpack.c.l.bf16 %v41
  %v52 = vunpack.c.h.bf16 %v41
  %v53 = vunpack.c.l.bf16 %v42
  %v54 = vunpack.c.h.bf16 %v42
  %v55 = vunpack.c.l.bf16 %v36
  %v56 = vunpack.c.l.bf16 %v43
  %v57 = vunpack.c.h.bf16 %v43
  %v58 = vunpack.c.l.bf16 %v44
  %v59 = vunpack.c.h.bf16 %v44
  %v60 = vunpack.c.l.bf16 %v39
  %v61 = vmax.f32 %v18, %v51
  %v62 = vmax.f32 %v19, %v52
  %v63 = vmax.f32 %v20, %v53
  %v64 = vmax.f32 %v21, %v54
  %v65 = vmax.f32 %v22, %v55
  %v66 = vmax.f32 %v23, %v56
  %v67 = vmax.f32 %v24, %v57
  %v68 = vmax.f32 %v25, %v58
  %v69 = vmax.f32 %v26, %v59
  %v70 = vmax.f32 %v27, %v60
  %v71 = vpack.c.bf16 %v62, %v61
  %v72 = vpack.c.bf16 %v64, %v63
  %v73 = vpack.c.bf16 %v65, %v65
  %v74 = vpack.c.bf16 %v67, %v66
  %v75 = vpack.c.bf16 %v69, %v68
  %v76 = vpack.c.bf16 %v70, %v70
  %77 = vst [vmem:[%s1] sm:$0xff] %v71
  %78 = vst [vmem:[%s1 + $0x8] sm:$0xff] %v72
  %79 = vst [vmem:[%s1 + $0x10] sm:$0xf] %v73
  %80 = vst [vmem:[%s1 + $0x14] sm:$0x11] %v74
  %81 = vst [vmem:[%s1 + $0x1c] sm:$0x11] %v75
  %82 = vst [vmem:[%s1 + $0x24] sm:$0x1] %v76
  // Predicated region
  $region6: #{dqn_forward.18} parent=0 // pred_check
    _
  $region7: #{dqn_forward.18} parent=0 // pred_check_branch
    %84 = sbr.rel (0) target = $region9
  $region8: #{dqn_forward.18} parent=0 // pred_region
    _
  $region9: #{dqn_forward.18} parent=0 // pred_fallthru
    _
  // Predicated region
  $region10: #{dqn_forward.18} parent=0 // pred_check
    _
  $region11: #{dqn_forward.18} parent=0 // pred_check_branch
    %86 = sbr.rel (0) target = $region13
  $region12: #{dqn_forward.18} parent=0 // pred_region
    _
  $region13: #{dqn_forward.18} parent=0 // pred_fallthru
    _

// kernel: dqn_forward.20
$region0: #{dqn_forward.20}
  #allocation0 [shape = 'u32[]', space=smem, size = 0x4, offset = 0x4, fixed_abs, tag = 'smem constant byte address 0x4 - core index']
  #allocation1 [shape = 'u32[72,128]{1,0:T(1,128)}', space=vmem, size = 0x9000, scoped, tag = 'internal scratch']
  %s0 = inlined_call_operand.vmem [shape: bf16[32,256], index: 0, kind: input, shape index: {}]
  %s1 = inlined_call_operand.vmem [shape: bf16[32,128], index: 1, kind: output, shape index: {}]
  %s2 = sld [smem:[#allocation0]]
  $region14: #{dqn_forward.20} parent=0
    _
  %s4 = ssub.s32 1, %s2
  %s5 = scalar_select 0, %s4, %s2
  // Predicated region
  $region2: #{dqn_forward.20} parent=0 // pred_check
    _
  $region3: #{dqn_forward.20} parent=0 // pred_check_branch
    %7 = sbr.rel (0) target = $region5
  $region4: #{dqn_forward.20} parent=0 // pred_region
    _
  $region5: #{dqn_forward.20} parent=0 // pred_fallthru
    _
  %v8 = vld [vmem:[%s0] sm:$0xff]
  %v9 = vld [vmem:[%s0 + $0x8] sm:$0xff]
  %v10 = vld [vmem:[%s0 + $0x10] sm:$0xff]
  %v11 = vld [vmem:[%s0 + $0x18] sm:$0xff]
  %v12 = vunpack.c.l.bf16 %v8
  %v13 = vunpack.c.l.bf16 %v9
  %v14 = vunpack.c.l.bf16 %v10
  %v15 = vunpack.c.l.bf16 %v11
  %v20 = vrot.slane %v8, 4
  %v21 = vrot.slane %v9, 4
  %v22 = vrot.slane %v10, 4
  %v23 = vrot.slane %v11, 4
  %v28 = vunpack.c.l.bf16 %v20
  %v29 = vunpack.c.l.bf16 %v21
  %v30 = vunpack.c.l.bf16 %v22
  %v31 = vunpack.c.l.bf16 %v23
  %v32 = vmax.f32 %v12, %v28
  %v33 = vmax.f32 %v13, %v29
  %v34 = vmax.f32 %v14, %v30
  %v35 = vmax.f32 %v15, %v31
  %v36 = vpack.c.bf16 %v32, %v32
  %v37 = vpack.c.bf16 %v33, %v33
  %v38 = vpack.c.bf16 %v34, %v34
  %v39 = vpack.c.bf16 %v35, %v35
  %40 = vst [vmem:[%s1] sm:$0xf] %v36
  %41 = vst [vmem:[%s1 + $0x4] sm:$0xf] %v37
  %42 = vst [vmem:[%s1 + $0x8] sm:$0xf] %v38
  %43 = vst [vmem:[%s1 + $0xc] sm:$0xf] %v39
  // Predicated region
  $region6: #{dqn_forward.20} parent=0 // pred_check
    _
  $region7: #{dqn_forward.20} parent=0 // pred_check_branch
    %45 = sbr.rel (0) target = $region9
  $region8: #{dqn_forward.20} parent=0 // pred_region
    _
  $region9: #{dqn_forward.20} parent=0 // pred_fallthru
    _
  // Predicated region
  $region10: #{dqn_forward.20} parent=0 // pred_check
    _
  $region11: #{dqn_forward.20} parent=0 // pred_check_branch
    %47 = sbr.rel (0) target = $region13
  $region12: #{dqn_forward.20} parent=0 // pred_region
    _
  $region13: #{dqn_forward.20} parent=0 // pred_fallthru
    _

// kernel: dqn_forward.19
$region0: #{dqn_forward.19}
  #allocation0 [shape = 'u32[]', space=smem, size = 0x4, offset = 0x4, fixed_abs, tag = 'smem constant byte address 0x4 - core index']
  #allocation1 [shape = 'u32[72,128]{1,0:T(1,128)}', space=vmem, size = 0x9000, scoped, tag = 'internal scratch']
  %s0 = inlined_call_operand.vmem [shape: bf16[64,640], index: 0, kind: input, shape index: {}]
  %s1 = inlined_call_operand.vmem [shape: bf16[640,128], index: 1, kind: input, shape index: {}]
  %s2 = inlined_call_operand.vmem [shape: f32[1,128], index: 2, kind: input, shape index: {}]
  %s3 = inlined_call_operand.vmem [shape: bf16[64,128], index: 3, kind: output, shape index: {}]
  %s4 = sld [smem:[#allocation0]]
  $region22: #{dqn_forward.19} parent=0
    _
  %s6 = ssub.s32 1, %s4
  %s7 = scalar_select 0, %s6, %s4
  // Predicated region
  $region2: #{dqn_forward.19} parent=0 // pred_check
    _
  $region3: #{dqn_forward.19} parent=0 // pred_check_branch
    %9 = sbr.rel (0) target = $region5
  $region4: #{dqn_forward.19} parent=0 // pred_region
    _
  $region5: #{dqn_forward.19} parent=0 // pred_fallthru
    _
  // Predicated region
  $region6: #{dqn_forward.19} parent=0 // pred_check
    _
  $region7: #{dqn_forward.19} parent=0 // pred_check_branch
    %11 = sbr.rel (0) target = $region9
  $region8: #{dqn_forward.19} parent=0 // pred_region
    _
  $region9: #{dqn_forward.19} parent=0 // pred_fallthru
    _
  // Predicated region
  $region10: #{dqn_forward.19} parent=0 // pred_check
    _
  $region11: #{dqn_forward.19} parent=0 // pred_check_branch
    %13 = sbr.rel (0) target = $region13
  $region12: #{dqn_forward.19} parent=0 // pred_region
    _
  $region13: #{dqn_forward.19} parent=0 // pred_fallthru
    _
  %v14 = vld [vmem:[%s0] sm:$0xff]
  %v15 = vld [vmem:[%s0 + $0x8] sm:$0xff]
  %v16 = vld [vmem:[%s0 + $0x10] sm:$0xf]
  %v17 = vld [vmem:[%s0 + $0x14] sm:$0xff]
  %v18 = vld [vmem:[%s0 + $0x1c] sm:$0xff]
  %v19 = vld [vmem:[%s0 + $0x24] sm:$0xf]
  %v20 = vld [vmem:[%s0 + $0x28] sm:$0xff]
  %v21 = vld [vmem:[%s0 + $0x30] sm:$0xff]
  %v22 = vld [vmem:[%s0 + $0x38] sm:$0xf]
  %v23 = vld [vmem:[%s0 + $0x3c] sm:$0xff]
  %v24 = vld [vmem:[%s0 + $0x44] sm:$0xff]
  %v25 = vld [vmem:[%s0 + $0x4c] sm:$0xf]
  %v26 = vld [vmem:[%s0 + $0x50] sm:$0xff]
  %v27 = vld [vmem:[%s0 + $0x58] sm:$0xff]
  %v28 = vld [vmem:[%s0 + $0x60] sm:$0xf]
  %v29 = vld [vmem:[%s0 + $0x64] sm:$0xff]
  %v30 = vld [vmem:[%s0 + $0x6c] sm:$0xff]
  %v31 = vld [vmem:[%s0 + $0x74] sm:$0xf]
  %v32 = vld [vmem:[%s0 + $0x78] sm:$0xff]
  %v33 = vld [vmem:[%s0 + $0x80] sm:$0xff]
  %v34 = vld [vmem:[%s0 + $0x88] sm:$0xf]
  %v35 = vld [vmem:[%s0 + $0x8c] sm:$0xff]
  %v36 = vld [vmem:[%s0 + $0x94] sm:$0xff]
  %v37 = vld [vmem:[%s0 + $0x9c] sm:$0xf]
  %v38 = vld [vmem:[%s1] sm:$0xf]
  %v39 = vld [vmem:[%s1 + $0x4] sm:$0xf]
  %v40 = vld [vmem:[%s1 + $0x8] sm:$0xf]
  %v41 = vld [vmem:[%s1 + $0xc] sm:$0xf]
  %v42 = vld [vmem:[%s1 + $0x10] sm:$0xf]
  %v43 = vld [vmem:[%s1 + $0x14] sm:$0xf]
  %v44 = vld [vmem:[%s1 + $0x18] sm:$0xf]
  %v45 = vld [vmem:[%s1 + $0x1c] sm:$0xf]
  %v46 = vld [vmem:[%s1 + $0x20] sm:$0xf]
  %v47 = vld [vmem:[%s1 + $0x24] sm:$0xf]
  %v48 = vld [vmem:[%s1 + $0x28] sm:$0xf]
  %v49 = vld [vmem:[%s1 + $0x2c] sm:$0xf]
  %v50 = vld [vmem:[%s1 + $0x30] sm:$0xf]
  %v51 = vld [vmem:[%s1 + $0x34] sm:$0xf]
  %v52 = vld [vmem:[%s1 + $0x38] sm:$0xf]
  %v53 = vld [vmem:[%s1 + $0x3c] sm:$0xf]
  %v54 = vld [vmem:[%s1 + $0x40] sm:$0xf]
  %v55 = vld [vmem:[%s1 + $0x44] sm:$0xf]
  %v56 = vld [vmem:[%s1 + $0x48] sm:$0xf]
  %v57 = vld [vmem:[%s1 + $0x4c] sm:$0xf]
  %v58 = vld [vmem:[%s1 + $0x50] sm:$0xf]
  %v59 = vld [vmem:[%s1 + $0x54] sm:$0xf]
  %v60 = vld [vmem:[%s1 + $0x58] sm:$0xf]
  %v61 = vld [vmem:[%s1 + $0x5c] sm:$0xf]
  %v62 = vld [vmem:[%s1 + $0x60] sm:$0xf]
  %v63 = vld [vmem:[%s1 + $0x64] sm:$0xf]
  %v64 = vld [vmem:[%s1 + $0x68] sm:$0xf]
  %v65 = vld [vmem:[%s1 + $0x6c] sm:$0xf]
  %v66 = vld [vmem:[%s1 + $0x70] sm:$0xf]
  %v67 = vld [vmem:[%s1 + $0x74] sm:$0xf]
  %v68 = vld [vmem:[%s1 + $0x78] sm:$0xf]
  %v69 = vld [vmem:[%s1 + $0x7c] sm:$0xf]
  %v70 = vld [vmem:[%s1 + $0x80] sm:$0xf]
  %v71 = vld [vmem:[%s1 + $0x84] sm:$0xf]
  %v72 = vld [vmem:[%s1 + $0x88] sm:$0xf]
  %v73 = vld [vmem:[%s1 + $0x8c] sm:$0xf]
  %v74 = vld [vmem:[%s1 + $0x90] sm:$0xf]
  %v75 = vld [vmem:[%s1 + $0x94] sm:$0xf]
  %v76 = vld [vmem:[%s1 + $0x98] sm:$0xf]
  %v77 = vld [vmem:[%s1 + $0x9c] sm:$0xf]
  %v78 = vld [vmem:[%s1 + $0xa0] sm:$0xf]
  %v79 = vld [vmem:[%s1 + $0xa4] sm:$0xf]
  %v80 = vld [vmem:[%s1 + $0xa8] sm:$0xf]
  %v81 = vld [vmem:[%s1 + $0xac] sm:$0xf]
  %v82 = vld [vmem:[%s1 + $0xb0] sm:$0xf]
  %v83 = vld [vmem:[%s1 + $0xb4] sm:$0xf]
  %v84 = vld [vmem:[%s1 + $0xb8] sm:$0xf]
  %v85 = vld [vmem:[%s1 + $0xbc] sm:$0xf]
  %v86 = vld [vmem:[%s1 + $0xc0] sm:$0xf]
  %v87 = vld [vmem:[%s1 + $0xc4] sm:$0xf]
  %v88 = vld [vmem:[%s1 + $0xc8] sm:$0xf]
  %v89 = vld [vmem:[%s1 + $0xcc] sm:$0xf]
  %v90 = vld [vmem:[%s1 + $0xd0] sm:$0xf]
  %v91 = vld [vmem:[%s1 + $0xd4] sm:$0xf]
  %v92 = vld [vmem:[%s1 + $0xd8] sm:$0xf]
  %v93 = vld [vmem:[%s1 + $0xdc] sm:$0xf]
  %v94 = vld [vmem:[%s1 + $0xe0] sm:$0xf]
  %v95 = vld [vmem:[%s1 + $0xe4] sm:$0xf]
  %v96 = vld [vmem:[%s1 + $0xe8] sm:$0xf]
  %v97 = vld [vmem:[%s1 + $0xec] sm:$0xf]
  %v98 = vld [vmem:[%s1 + $0xf0] sm:$0xf]
  %v99 = vld [vmem:[%s1 + $0xf4] sm:$0xf]
  %v100 = vld [vmem:[%s1 + $0xf8] sm:$0xf]
  %v101 = vld [vmem:[%s1 + $0xfc] sm:$0xf]
  %v102 = vld [vmem:[%s1 + $0x100] sm:$0xf]
  %v103 = vld [vmem:[%s1 + $0x104] sm:$0xf]
  %v104 = vld [vmem:[%s1 + $0x108] sm:$0xf]
  %v105 = vld [vmem:[%s1 + $0x10c] sm:$0xf]
  %v106 = vld [vmem:[%s1 + $0x110] sm:$0xf]
  %v107 = vld [vmem:[%s1 + $0x114] sm:$0xf]
  %v108 = vld [vmem:[%s1 + $0x118] sm:$0xf]
  %v109 = vld [vmem:[%s1 + $0x11c] sm:$0xf]
  %v110 = vld [vmem:[%s1 + $0x120] sm:$0xf]
  %v111 = vld [vmem:[%s1 + $0x124] sm:$0xf]
  %v112 = vld [vmem:[%s1 + $0x128] sm:$0xf]
  %v113 = vld [vmem:[%s1 + $0x12c] sm:$0xf]
  %v114 = vld [vmem:[%s1 + $0x130] sm:$0xf]
  %v115 = vld [vmem:[%s1 + $0x134] sm:$0xf]
  %v116 = vld [vmem:[%s1 + $0x138] sm:$0xf]
  %v117 = vld [vmem:[%s1 + $0x13c] sm:$0xf]
  %v118 = vld [vmem:[%s2] sm:$0x1]
  %v120 = vperm.slane %v118, 0
  %v146 = vunpack.c.l.b16 %v14
  %v147 = vunpack.c.h.b16 %v14
  %v148 = vunpack.c.l.b16 %v15
  %v149 = vunpack.c.h.b16 %v15
  %v150 = vunpack.c.l.b16 %v16
  %v151 = vunpack.c.l.b16 %v17
  %v152 = vunpack.c.h.b16 %v17
  %v153 = vunpack.c.l.b16 %v18
  %v154 = vunpack.c.h.b16 %v18
  %v155 = vunpack.c.l.b16 %v19
  %v156 = vunpack.c.l.b16 %v20
  %v157 = vunpack.c.h.b16 %v20
  %v158 = vunpack.c.l.b16 %v21
  %v159 = vunpack.c.h.b16 %v21
  %v160 = vunpack.c.l.b16 %v22
  %v161 = vunpack.c.l.b16 %v23
  %v162 = vunpack.c.h.b16 %v23
  %v163 = vunpack.c.l.b16 %v24
  %v164 = vunpack.c.h.b16 %v24
  %v165 = vunpack.c.l.b16 %v25
  %v166 = vunpack.c.l.b16 %v26
  %v167 = vunpack.c.h.b16 %v26
  %v168 = vunpack.c.l.b16 %v27
  %v169 = vunpack.c.h.b16 %v27
  %v170 = vunpack.c.l.b16 %v28
  %v171 = vunpack.c.l.b16 %v29
  %v172 = vunpack.c.h.b16 %v29
  %v173 = vunpack.c.l.b16 %v30
  %v174 = vunpack.c.h.b16 %v30
  %v175 = vunpack.c.l.b16 %v31
  %v176 = vunpack.c.l.b16 %v32
  %v177 = vunpack.c.h.b16 %v32
  %v178 = vunpack.c.l.b16 %v33
  %v179 = vunpack.c.h.b16 %v33
  %v180 = vunpack.c.l.b16 %v34
  %v181 = vunpack.c.l.b16 %v35
  %v182 = vunpack.c.h.b16 %v35
  %v183 = vunpack.c.l.b16 %v36
  %v184 = vunpack.c.h.b16 %v36
  %v185 = vunpack.c.l.b16 %v37
  %v186 = vpack.c.b16 %v151, %v146
  %v187 = vpack.c.b16 %v152, %v147
  %v188 = vpack.c.b16 %v153, %v148
  %v189 = vpack.c.b16 %v154, %v149
  %v190 = vpack.c.b16 %v155, %v150
  %v191 = vpack.c.b16 %v161, %v156
  %v192 = vpack.c.b16 %v162, %v157
  %v193 = vpack.c.b16 %v163, %v158
  %v194 = vpack.c.b16 %v164, %v159
  %v195 = vpack.c.b16 %v165, %v160
  %v196 = vpack.c.b16 %v171, %v166
  %v197 = vpack.c.b16 %v172, %v167
  %v198 = vpack.c.b16 %v173, %v168
  %v199 = vpack.c.b16 %v174, %v169
  %v200 = vpack.c.b16 %v175, %v170
  %v201 = vpack.c.b16 %v181, %v176
  %v202 = vpack.c.b16 %v182, %v177
  %v203 = vpack.c.b16 %v183, %v178
  %v204 = vpack.c.b16 %v184, %v179
  %v205 = vpack.c.b16 %v185, %v180
  %v306 = vunpack.c.l.b16 %v38
  %v307 = vunpack.c.l.b16 %v39
  %v308 = vunpack.c.l.b16 %v40
  %v309 = vunpack.c.l.b16 %v41
  %v310 = vunpack.c.l.b16 %v42
  %v311 = vunpack.c.l.b16 %v43
  %v312 = vunpack.c.l.b16 %v44
  %v313 = vunpack.c.l.b16 %v45
  %v314 = vunpack.c.l.b16 %v46
  %v315 = vunpack.c.l.b16 %v47
  %v316 = vunpack.c.l.b16 %v48
  %v317 = vunpack.c.l.b16 %v49
  %v318 = vunpack.c.l.b16 %v50
  %v319 = vunpack.c.l.b16 %v51
  %v320 = vunpack.c.l.b16 %v52
  %v321 = vunpack.c.l.b16 %v53
  %v322 = vunpack.c.l.b16 %v54
  %v323 = vunpack.c.l.b16 %v55
  %v324 = vunpack.c.l.b16 %v56
  %v325 = vunpack.c.l.b16 %v57
  %v326 = vunpack.c.l.b16 %v58
  %v327 = vunpack.c.l.b16 %v59
  %v328 = vunpack.c.l.b16 %v60
  %v329 = vunpack.c.l.b16 %v61
  %v330 = vunpack.c.l.b16 %v62
  %v331 = vunpack.c.l.b16 %v63
  %v332 = vunpack.c.l.b16 %v64
  %v333 = vunpack.c.l.b16 %v65
  %v334 = vunpack.c.l.b16 %v66
  %v335 = vunpack.c.l.b16 %v67
  %v336 = vunpack.c.l.b16 %v68
  %v337 = vunpack.c.l.b16 %v69
  %v338 = vunpack.c.l.b16 %v70
  %v339 = vunpack.c.l.b16 %v71
  %v340 = vunpack.c.l.b16 %v72
  %v341 = vunpack.c.l.b16 %v73
  %v342 = vunpack.c.l.b16 %v74
  %v343 = vunpack.c.l.b16 %v75
  %v344 = vunpack.c.l.b16 %v76
  %v345 = vunpack.c.l.b16 %v77
  %v346 = vunpack.c.l.b16 %v78
  %v347 = vunpack.c.l.b16 %v79
  %v348 = vunpack.c.l.b16 %v80
  %v349 = vunpack.c.l.b16 %v81
  %v350 = vunpack.c.l.b16 %v82
  %v351 = vunpack.c.l.b16 %v83
  %v352 = vunpack.c.l.b16 %v84
  %v353 = vunpack.c.l.b16 %v85
  %v354 = vunpack.c.l.b16 %v86
  %v355 = vunpack.c.l.b16 %v87
  %v356 = vunpack.c.l.b16 %v88
  %v357 = vunpack.c.l.b16 %v89
  %v358 = vunpack.c.l.b16 %v90
  %v359 = vunpack.c.l.b16 %v91
  %v360 = vunpack.c.l.b16 %v92
  %v361 = vunpack.c.l.b16 %v93
  %v362 = vunpack.c.l.b16 %v94
  %v363 = vunpack.c.l.b16 %v95
  %v364 = vunpack.c.l.b16 %v96
  %v365 = vunpack.c.l.b16 %v97
  %v366 = vunpack.c.l.b16 %v98
  %v367 = vunpack.c.l.b16 %v99
  %v368 = vunpack.c.l.b16 %v100
  %v369 = vunpack.c.l.b16 %v101
  %v370 = vunpack.c.l.b16 %v102
  %v371 = vunpack.c.l.b16 %v103
  %v372 = vunpack.c.l.b16 %v104
  %v373 = vunpack.c.l.b16 %v105
  %v374 = vunpack.c.l.b16 %v106
  %v375 = vunpack.c.l.b16 %v107
  %v376 = vunpack.c.l.b16 %v108
  %v377 = vunpack.c.l.b16 %v109
  %v378 = vunpack.c.l.b16 %v110
  %v379 = vunpack.c.l.b16 %v111
  %v380 = vunpack.c.l.b16 %v112
  %v381 = vunpack.c.l.b16 %v113
  %v382 = vunpack.c.l.b16 %v114
  %v383 = vunpack.c.l.b16 %v115
  %v384 = vunpack.c.l.b16 %v116
  %v385 = vunpack.c.l.b16 %v117
  %v386 = vpack.c.b16 %v307, %v306
  %v387 = vpack.c.b16 %v309, %v308
  %v388 = vpack.c.b16 %v311, %v310
  %v389 = vpack.c.b16 %v313, %v312
  %v390 = vpack.c.b16 %v315, %v314
  %v391 = vpack.c.b16 %v317, %v316
  %v392 = vpack.c.b16 %v319, %v318
  %v393 = vpack.c.b16 %v321, %v320
  %v394 = vpack.c.b16 %v323, %v322
  %v395 = vpack.c.b16 %v325, %v324
  %v396 = vpack.c.b16 %v327, %v326
  %v397 = vpack.c.b16 %v329, %v328
  %v398 = vpack.c.b16 %v331, %v330
  %v399 = vpack.c.b16 %v333, %v332
  %v400 = vpack.c.b16 %v335, %v334
  %v401 = vpack.c.b16 %v337, %v336
  %v402 = vpack.c.b16 %v339, %v338
  %v403 = vpack.c.b16 %v341, %v340
  %v404 = vpack.c.b16 %v343, %v342
  %v405 = vpack.c.b16 %v345, %v344
  %v406 = vpack.c.b16 %v347, %v346
  %v407 = vpack.c.b16 %v349, %v348
  %v408 = vpack.c.b16 %v351, %v350
  %v409 = vpack.c.b16 %v353, %v352
  %v410 = vpack.c.b16 %v355, %v354
  %v411 = vpack.c.b16 %v357, %v356
  %v412 = vpack.c.b16 %v359, %v358
  %v413 = vpack.c.b16 %v361, %v360
  %v414 = vpack.c.b16 %v363, %v362
  %v415 = vpack.c.b16 %v365, %v364
  %v416 = vpack.c.b16 %v367, %v366
  %v417 = vpack.c.b16 %v369, %v368
  %v418 = vpack.c.b16 %v371, %v370
  %v419 = vpack.c.b16 %v373, %v372
  %v420 = vpack.c.b16 %v375, %v374
  %v421 = vpack.c.b16 %v377, %v376
  %v422 = vpack.c.b16 %v379, %v378
  %v423 = vpack.c.b16 %v381, %v380
  %v424 = vpack.c.b16 %v383, %v382
  %v425 = vpack.c.b16 %v385, %v384
  %466 = vmatpush.bf16.msra.mxu0 %v393
  %467 = vmatpush.bf16.msra.mxu0 %v392
  %468 = vmatpush.bf16.msra.mxu0 %v391
  %469 = vmatpush.bf16.msra.mxu0 %v390
  %470 = vmatpush.bf16.msra.mxu0 %v389
  %471 = vmatpush.bf16.msra.mxu0 %v388
  %472 = vmatpush.bf16.msra.mxu0 %v387
  %473 = vmatpush.bf16.msra.mxu0 %v386
  %474 = vmatmul.bf16.gmra.mxu0 %v186
  %v475 = vpop.f32.mrf.mxu0
  %v476 = vadd.f32 %v120, %v475
  %v477 = vpop.f32.mrf.mxu0
  %v478 = vadd.f32 %v120, %v477
  %479 = vmatmul.bf16.gmra.mxu0 %v191
  %v480 = vpop.f32.mrf.mxu0
  %v481 = vadd.f32 %v120, %v480
  %v482 = vpop.f32.mrf.mxu0
  %v483 = vadd.f32 %v120, %v482
  %484 = vmatmul.bf16.gmra.mxu0 %v196
  %v485 = vpop.f32.mrf.mxu0
  %v486 = vadd.f32 %v120, %v485
  %v487 = vpop.f32.mrf.mxu0
  %v488 = vadd.f32 %v120, %v487
  %489 = vmatmul.bf16.gmra.mxu0 %v201
  %v490 = vpop.f32.mrf.mxu0
  %v491 = vadd.f32 %v120, %v490
  %v492 = vpop.f32.mrf.mxu0
  %v493 = vadd.f32 %v120, %v492
  %494 = vdwg.mxu0
  %495 = vmatpush.bf16.msra.mxu0 %v401
  %496 = vmatpush.bf16.msra.mxu0 %v400
  %497 = vmatpush.bf16.msra.mxu0 %v399
  %498 = vmatpush.bf16.msra.mxu0 %v398
  %499 = vmatpush.bf16.msra.mxu0 %v397
  %500 = vmatpush.bf16.msra.mxu0 %v396
  %501 = vmatpush.bf16.msra.mxu0 %v395
  %502 = vmatpush.bf16.msra.mxu0 %v394
  %503 = vmatmul.bf16.gmra.mxu0 %v187
  %v504 = vpop.f32.mrf.mxu0
  %v505 = vadd.f32 %v476, %v504
  %v506 = vpop.f32.mrf.mxu0
  %v507 = vadd.f32 %v478, %v506
  %508 = vmatmul.bf16.gmra.mxu0 %v192
  %v509 = vpop.f32.mrf.mxu0
  %v510 = vadd.f32 %v481, %v509
  %v511 = vpop.f32.mrf.mxu0
  %v512 = vadd.f32 %v483, %v511
  %513 = vmatmul.bf16.gmra.mxu0 %v197
  %v514 = vpop.f32.mrf.mxu0
  %v515 = vadd.f32 %v486, %v514
  %v516 = vpop.f32.mrf.mxu0
  %v517 = vadd.f32 %v488, %v516
  %518 = vmatmul.bf16.gmra.mxu0 %v202
  %v519 = vpop.f32.mrf.mxu0
  %v520 = vadd.f32 %v491, %v519
  %v521 = vpop.f32.mrf.mxu0
  %v522 = vadd.f32 %v493, %v521
  %523 = vdwg.mxu0
  %524 = vmatpush.bf16.msra.mxu0 %v409
  %525 = vmatpush.bf16.msra.mxu0 %v408
  %526 = vmatpush.bf16.msra.mxu0 %v407
  %527 = vmatpush.bf16.msra.mxu0 %v406
  %528 = vmatpush.bf16.msra.mxu0 %v405
  %529 = vmatpush.bf16.msra.mxu0 %v404
  %530 = vmatpush.bf16.msra.mxu0 %v403
  %531 = vmatpush.bf16.msra.mxu0 %v402
  %532 = vmatmul.bf16.gmra.mxu0 %v188
  %v533 = vpop.f32.mrf.mxu0
  %v534 = vadd.f32 %v505, %v533
  %v535 = vpop.f32.mrf.mxu0
  %v536 = vadd.f32 %v507, %v535
  %537 = vmatmul.bf16.gmra.mxu0 %v193
  %v538 = vpop.f32.mrf.mxu0
  %v539 = vadd.f32 %v510, %v538
  %v540 = vpop.f32.mrf.mxu0
  %v541 = vadd.f32 %v512, %v540
  %542 = vmatmul.bf16.gmra.mxu0 %v198
  %v543 = vpop.f32.mrf.mxu0
  %v544 = vadd.f32 %v515, %v543
  %v545 = vpop.f32.mrf.mxu0
  %v546 = vadd.f32 %v517, %v545
  %547 = vmatmul.bf16.gmra.mxu0 %v203
  %v548 = vpop.f32.mrf.mxu0
  %v549 = vadd.f32 %v520, %v548
  %v550 = vpop.f32.mrf.mxu0
  %v551 = vadd.f32 %v522, %v550
  %552 = vdwg.mxu0
  %553 = vmatpush.bf16.msra.mxu0 %v417
  %554 = vmatpush.bf16.msra.mxu0 %v416
  %555 = vmatpush.bf16.msra.mxu0 %v415
  %556 = vmatpush.bf16.msra.mxu0 %v414
  %557 = vmatpush.bf16.msra.mxu0 %v413
  %558 = vmatpush.bf16.msra.mxu0 %v412
  %559 = vmatpush.bf16.msra.mxu0 %v411
  %560 = vmatpush.bf16.msra.mxu0 %v410
  %561 = vmatmul.bf16.gmra.mxu0 %v189
  %v562 = vpop.f32.mrf.mxu0
  %v563 = vadd.f32 %v534, %v562
  %v564 = vpop.f32.mrf.mxu0
  %v565 = vadd.f32 %v536, %v564
  %566 = vmatmul.bf16.gmra.mxu0 %v194
  %v567 = vpop.f32.mrf.mxu0
  %v568 = vadd.f32 %v539, %v567
  %v569 = vpop.f32.mrf.mxu0
  %v570 = vadd.f32 %v541, %v569
  %571 = vmatmul.bf16.gmra.mxu0 %v199
  %v572 = vpop.f32.mrf.mxu0
  %v573 = vadd.f32 %v544, %v572
  %v574 = vpop.f32.mrf.mxu0
  %v575 = vadd.f32 %v546, %v574
  %576 = vmatmul.bf16.gmra.mxu0 %v204
  %v577 = vpop.f32.mrf.mxu0
  %v578 = vadd.f32 %v549, %v577
  %v579 = vpop.f32.mrf.mxu0
  %v580 = vadd.f32 %v551, %v579
  %581 = vdwg.mxu0
  %582 = vmatpush.bf16.msra.mxu0 %v425
  %583 = vmatpush.bf16.msra.mxu0 %v424
  %584 = vmatpush.bf16.msra.mxu0 %v423
  %585 = vmatpush.bf16.msra.mxu0 %v422
  %586 = vmatpush.bf16.msra.mxu0 %v421
  %587 = vmatpush.bf16.msra.mxu0 %v420
  %588 = vmatpush.bf16.msra.mxu0 %v419
  %589 = vmatpush.bf16.msra.mxu0 %v418
  %590 = vmatmul.bf16.gmra.mxu0 %v190
  %v591 = vpop.f32.mrf.mxu0
  %v592 = vadd.f32 %v563, %v591
  %v593 = vpop.f32.mrf.mxu0
  %v594 = vadd.f32 %v565, %v593
  %595 = vmatmul.bf16.gmra.mxu0 %v195
  %v596 = vpop.f32.mrf.mxu0
  %v597 = vadd.f32 %v568, %v596
  %v598 = vpop.f32.mrf.mxu0
  %v599 = vadd.f32 %v570, %v598
  %600 = vmatmul.bf16.gmra.mxu0 %v200
  %v601 = vpop.f32.mrf.mxu0
  %v602 = vadd.f32 %v573, %v601
  %v603 = vpop.f32.mrf.mxu0
  %v604 = vadd.f32 %v575, %v603
  %605 = vmatmul.bf16.gmra.mxu0 %v205
  %v606 = vpop.f32.mrf.mxu0
  %v607 = vadd.f32 %v578, %v606
  %v608 = vpop.f32.mrf.mxu0
  %v609 = vadd.f32 %v580, %v608
  %610 = vdwg.mxu0
  %v611 = vmax.f32 %v592, 0.0
  %v612 = vmax.f32 %v594, 0.0
  %v613 = vmax.f32 %v597, 0.0
  %v614 = vmax.f32 %v599, 0.0
  %v615 = vmax.f32 %v602, 0.0
  %v616 = vmax.f32 %v604, 0.0
  %v617 = vmax.f32 %v607, 0.0
  %v618 = vmax.f32 %v609, 0.0
  %v619 = vpack.c.bf16 %v611, %v611
  %v620 = vpack.c.bf16 %v612, %v612
  %v621 = vpack.c.bf16 %v613, %v613
  %v622 = vpack.c.bf16 %v614, %v614
  %v623 = vpack.c.bf16 %v615, %v615
  %v624 = vpack.c.bf16 %v616, %v616
  %v625 = vpack.c.bf16 %v617, %v617
  %v626 = vpack.c.bf16 %v618, %v618
  %627 = vst [vmem:[%s3] sm:$0xf] %v619
  %628 = vst [vmem:[%s3 + $0x4] sm:$0xf] %v620
  %629 = vst [vmem:[%s3 + $0x8] sm:$0xf] %v621
  %630 = vst [vmem:[%s3 + $0xc] sm:$0xf] %v622
  %631 = vst [vmem:[%s3 + $0x10] sm:$0xf] %v623
  %632 = vst [vmem:[%s3 + $0x14] sm:$0xf] %v624
  %633 = vst [vmem:[%s3 + $0x18] sm:$0xf] %v625
  %634 = vst [vmem:[%s3 + $0x1c] sm:$0xf] %v626
  // Predicated region
  $region14: #{dqn_forward.19} parent=0 // pred_check
    _
  $region15: #{dqn_forward.19} parent=0 // pred_check_branch
    %636 = sbr.rel (0) target = $region17
  $region16: #{dqn_forward.19} parent=0 // pred_region
    _
  $region17: #{dqn_forward.19} parent=0 // pred_fallthru
    _
  // Predicated region
  $region18: #{dqn_forward.19} parent=0 // pred_check
    _
  $region19: #{dqn_forward.19} parent=0 // pred_check_branch
    %638 = sbr.rel (0) target = $region21
  $region20: #{dqn_forward.19} parent=0 // pred_region
    _
  $region21: #{dqn_forward.19} parent=0 // pred_fallthru
    _

// kernel: dqn_forward.21
$region0: #{dqn_forward.21}
  #allocation0 [shape = 'u32[]', space=smem, size = 0x4, offset = 0x4, fixed_abs, tag = 'smem constant byte address 0x4 - core index']
  #allocation1 [shape = 'u32[72,128]{1,0:T(1,128)}', space=vmem, size = 0x9000, scoped, tag = 'internal scratch']
  %s0 = inlined_call_operand.vmem [shape: bf16[4,1024], index: 0, kind: input, shape index: {}]
  %s1 = inlined_call_operand.vmem [shape: bf16[4,512], index: 1, kind: output, shape index: {}]
  %s2 = sld [smem:[#allocation0]]
  $region14: #{dqn_forward.21} parent=0
    _
  %s4 = ssub.s32 1, %s2
  %s5 = scalar_select 0, %s4, %s2
  // Predicated region
  $region2: #{dqn_forward.21} parent=0 // pred_check
    _
  $region3: #{dqn_forward.21} parent=0 // pred_check_branch
    %7 = sbr.rel (0) target = $region5
  $region4: #{dqn_forward.21} parent=0 // pred_region
    _
  $region5: #{dqn_forward.21} parent=0 // pred_fallthru
    _
  %v8 = vld [vmem:[%s0] sm:$0xff]
  %v9 = vld [vmem:[%s0 + $0x8] sm:$0xff]
  %v10 = vunpack.c.l.bf16 %v8
  %v11 = vunpack.c.h.bf16 %v8
  %v12 = vunpack.c.l.bf16 %v9
  %v13 = vunpack.c.h.bf16 %v9
  %v14 = vmax.f32 %v10, %v12
  %v15 = vmax.f32 %v11, %v13
  %18 = vst [vmem:[#allocation1] ss:$2 sm:$0xff] %v14
  %s19 = scalar_lea.vmem [#allocation1], 16
  %20 = vst [vmem:[%s19] ss:$2 sm:$0xff] %v15
  %v21 = vld.sshfl [vmem:[#allocation1] sm:$0xff pattern:$0x75316420]
  %v22 = vld.sshfl [vmem:[#allocation1 + $0x8] sm:$0xff pattern:$0x75316420]
  %v23 = vld.sshfl [vmem:[#allocation1 + $0x10] sm:$0xff pattern:$0x75316420]
  %v24 = vld.sshfl [vmem:[#allocation1 + $0x18] sm:$0xff pattern:$0x75316420]
  %v29 = vpack.c.bf16 %v22, %v21
  %v30 = vpack.c.bf16 %v24, %v23
  %v33 = vrot.slane %v29, 2
  %v34 = vrot.slane %v30, 4
  %v35 = vrot.slane %v30, 6
  %vm36 = vcmask 1041408
  %v39 = vsel %vm36, %v29, %v33
  %vm40 = vcmask 1045508
  %v43 = vsel %vm40, %v34, %v35
  %vm44 = vcmask 1043456
  %v45 = vsel %vm44, %v39, %v43
  %47 = vst [vmem:[%s1] sm:$0xff] %v45
  // Predicated region
  $region6: #{dqn_forward.21} parent=0 // pred_check
    _
  $region7: #{dqn_forward.21} parent=0 // pred_check_branch
    %49 = sbr.rel (0) target = $region9
  $region8: #{dqn_forward.21} parent=0 // pred_region
    _
  $region9: #{dqn_forward.21} parent=0 // pred_fallthru
    _
  // Predicated region
  $region10: #{dqn_forward.21} parent=0 // pred_check
    _
  $region11: #{dqn_forward.21} parent=0 // pred_check_branch
    %51 = sbr.rel (0) target = $region13
  $region12: #{dqn_forward.21} parent=0 // pred_region
    _
  $region13: #{dqn_forward.21} parent=0 // pred_fallthru
    _

// kernel: dqn_forward.23
$region0: #{dqn_forward.23}
  #allocation0 [shape = 'u32[]', space=smem, size = 0x4, offset = 0x4, fixed_abs, tag = 'smem constant byte address 0x4 - core index']
  #allocation1 [shape = 'u32[72,128]{1,0:T(1,128)}', space=vmem, size = 0x9000, scoped, tag = 'internal scratch']
  %s0 = inlined_call_operand.vmem [shape: bf16[2,512], index: 0, kind: input, shape index: {}]
  %s1 = inlined_call_operand.vmem [shape: bf16[2,256], index: 1, kind: output, shape index: {}]
  %s2 = sld [smem:[#allocation0]]
  $region14: #{dqn_forward.23} parent=0
    _
  %s4 = ssub.s32 1, %s2
  %s5 = scalar_select 0, %s4, %s2
  // Predicated region
  $region2: #{dqn_forward.23} parent=0 // pred_check
    _
  $region3: #{dqn_forward.23} parent=0 // pred_check_branch
    %7 = sbr.rel (0) target = $region5
  $region4: #{dqn_forward.23} parent=0 // pred_region
    _
  $region5: #{dqn_forward.23} parent=0 // pred_fallthru
    _
  %v8 = vld [vmem:[%s0] sm:$0xf]
  %v9 = vunpack.c.l.bf16 %v8
  %v11 = vrot.slane %v8, 2
  %v13 = vunpack.c.l.bf16 %v11
  %v14 = vmax.f32 %v9, %v13
  %16 = vst [vmem:[#allocation1] ss:$4 sm:$0xff] %v14
  %v17 = vld.sshfl [vmem:[#allocation1] sm:$0xff pattern:$0x73625140]
  %v18 = vld.sshfl [vmem:[#allocation1 + $0x8] sm:$0xff pattern:$0x73625140]
  %v21 = vpack.c.bf16 %v18, %v17
  %v23 = vrot.slane %v21, 3
  %vm24 = vcmask 1040384
  %v27 = vsel %vm24, %v21, %v23
  %29 = vst [vmem:[%s1] sm:$0x3] %v27
  // Predicated region
  $region6: #{dqn_forward.23} parent=0 // pred_check
    _
  $region7: #{dqn_forward.23} parent=0 // pred_check_branch
    %31 = sbr.rel (0) target = $region9
  $region8: #{dqn_forward.23} parent=0 // pred_region
    _
  $region9: #{dqn_forward.23} parent=0 // pred_fallthru
    _
  // Predicated region
  $region10: #{dqn_forward.23} parent=0 // pred_check
    _
  $region11: #{dqn_forward.23} parent=0 // pred_check_branch
    %33 = sbr.rel (0) target = $region13
  $region12: #{dqn_forward.23} parent=0 // pred_region
    _
  $region13: #{dqn_forward.23} parent=0 // pred_fallthru
    _

// kernel: dqn_forward.24
$region0: #{dqn_forward.24}
  #allocation0 [shape = 'u32[]', space=smem, size = 0x4, offset = 0x4, fixed_abs, tag = 'smem constant byte address 0x4 - core index']
  #allocation1 [shape = 'u32[72,128]{1,0:T(1,128)}', space=vmem, size = 0x9000, scoped, tag = 'internal scratch']
  %s0 = inlined_call_operand.vmem [shape: bf16[1,512], index: 0, kind: input, shape index: {}]
  %s1 = inlined_call_operand.vmem [shape: bf16[1,256], index: 1, kind: output, shape index: {}]
  %s2 = sld [smem:[#allocation0]]
  $region14: #{dqn_forward.24} parent=0
    _
  %s4 = ssub.s32 1, %s2
  %s5 = scalar_select 0, %s4, %s2
  // Predicated region
  $region2: #{dqn_forward.24} parent=0 // pred_check
    _
  $region3: #{dqn_forward.24} parent=0 // pred_check_branch
    %7 = sbr.rel (0) target = $region5
  $region4: #{dqn_forward.24} parent=0 // pred_region
    _
  $region5: #{dqn_forward.24} parent=0 // pred_fallthru
    _
  %v8 = vld [vmem:[%s0] sm:$0xf]
  %v9 = vunpack.c.l.bf16 %v8
  %v11 = vrot.slane %v8, 2
  %v13 = vunpack.c.l.bf16 %v11
  %v14 = vmax.f32 %v9, %v13
  %v16 = vperm.slane %v14, 0
  %v17 = vperm.slane %v14, 2
  %v20 = vpack.c.bf16 %v17, %v16
  %v22 = vrot.slane %v20, 3
  %vm23 = vcmask 1040384
  %v26 = vsel %vm23, %v20, %v22
  %vm28 = vcmask 1040384
  %vm29 = vsmask.f32 256
  %vm30 = vmand %vm28, %vm29
  %vm31 = vcmask 1041409
  %vm32 = vsmask.f32 1280
  %vm33 = vmand %vm31, %vm32
  %vm34 = vmor %vm33, %vm30
  %v35 = vld [vmem:[%s1] sm:$0x3]
  %v36 = vsel %vm34, %v26, %v35
  %37 = vst [vmem:[%s1] sm:$0x3] %v36
  // Predicated region
  $region6: #{dqn_forward.24} parent=0 // pred_check
    _
  $region7: #{dqn_forward.24} parent=0 // pred_check_branch
    %39 = sbr.rel (0) target = $region9
  $region8: #{dqn_forward.24} parent=0 // pred_region
    _
  $region9: #{dqn_forward.24} parent=0 // pred_fallthru
    _
  // Predicated region
  $region10: #{dqn_forward.24} parent=0 // pred_check
    _
  $region11: #{dqn_forward.24} parent=0 // pred_check_branch
    %41 = sbr.rel (0) target = $region13
  $region12: #{dqn_forward.24} parent=0 // pred_region
    _
  $region13: #{dqn_forward.24} parent=0 // pred_fallthru
    _

// kernel: dqn_forward.22
$region0: #{dqn_forward.22}
  #allocation0 [shape = 'u32[]', space=smem, size = 0x4, offset = 0x4, fixed_abs, tag = 'smem constant byte address 0x4 - core index']
  #allocation1 [shape = 'u32[72,128]{1,0:T(1,128)}', space=vmem, size = 0x9000, scoped, tag = 'internal scratch']
  %s0 = inlined_call_operand.vmem [shape: bf16[16,1152], index: 0, kind: input, shape index: {}]
  %s1 = inlined_call_operand.vmem [shape: bf16[1152,256], index: 1, kind: input, shape index: {}]
  %s2 = inlined_call_operand.vmem [shape: f32[1,256], index: 2, kind: input, shape index: {}]
  %s3 = inlined_call_operand.vmem [shape: bf16[16,256], index: 3, kind: output, shape index: {}]
  %s4 = sld [smem:[#allocation0]]
  $region22: #{dqn_forward.22} parent=0
    _
  %s6 = ssub.s32 1, %s4
  %s7 = scalar_select 0, %s6, %s4
  // Predicated region
  $region2: #{dqn_forward.22} parent=0 // pred_check
    _
  $region3: #{dqn_forward.22} parent=0 // pred_check_branch
    %9 = sbr.rel (0) target = $region5
  $region4: #{dqn_forward.22} parent=0 // pred_region
    _
  $region5: #{dqn_forward.22} parent=0 // pred_fallthru
    _
  // Predicated region
  $region6: #{dqn_forward.22} parent=0 // pred_check
    _
  $region7: #{dqn_forward.22} parent=0 // pred_check_branch
    %11 = sbr.rel (0) target = $region9
  $region8: #{dqn_forward.22} parent=0 // pred_region
    _
  $region9: #{dqn_forward.22} parent=0 // pred_fallthru
    _
  // Predicated region
  $region10: #{dqn_forward.22} parent=0 // pred_check
    _
  $region11: #{dqn_forward.22} parent=0 // pred_check_branch
    %13 = sbr.rel (0) target = $region13
  $region12: #{dqn_forward.22} parent=0 // pred_region
    _
  $region13: #{dqn_forward.22} parent=0 // pred_fallthru
    _
  %v14 = vld [vmem:[%s0] sm:$0xff]
  %v15 = vld [vmem:[%s0 + $0x8] sm:$0xff]
  %v16 = vld [vmem:[%s0 + $0x10] sm:$0xff]
  %v17 = vld [vmem:[%s0 + $0x18] sm:$0xff]
  %v18 = vld [vmem:[%s0 + $0x20] sm:$0xf]
  %v19 = vld [vmem:[%s0 + $0x24] sm:$0xff]
  %v20 = vld [vmem:[%s0 + $0x2c] sm:$0xff]
  %v21 = vld [vmem:[%s0 + $0x34] sm:$0xff]
  %v22 = vld [vmem:[%s0 + $0x3c] sm:$0xff]
  %v23 = vld [vmem:[%s0 + $0x44] sm:$0xf]
  %v24 = vld [vmem:[%s1] sm:$0xff]
  %v25 = vld [vmem:[%s1 + $0x8] sm:$0xff]
  %v26 = vld [vmem:[%s1 + $0x10] sm:$0xff]
  %v27 = vld [vmem:[%s1 + $0x18] sm:$0xff]
  %v28 = vld [vmem:[%s1 + $0x20] sm:$0xff]
  %v29 = vld [vmem:[%s1 + $0x28] sm:$0xff]
  %v30 = vld [vmem:[%s1 + $0x30] sm:$0xff]
  %v31 = vld [vmem:[%s1 + $0x38] sm:$0xff]
  %v32 = vld [vmem:[%s1 + $0x40] sm:$0xff]
  %v33 = vld [vmem:[%s1 + $0x48] sm:$0xff]
  %v34 = vld [vmem:[%s1 + $0x50] sm:$0xff]
  %v35 = vld [vmem:[%s1 + $0x58] sm:$0xff]
  %v36 = vld [vmem:[%s1 + $0x60] sm:$0xff]
  %v37 = vld [vmem:[%s1 + $0x68] sm:$0xff]
  %v38 = vld [vmem:[%s1 + $0x70] sm:$0xff]
  %v39 = vld [vmem:[%s1 + $0x78] sm:$0xff]
  %v40 = vld [vmem:[%s1 + $0x80] sm:$0xff]
  %v41 = vld [vmem:[%s1 + $0x88] sm:$0xff]
  %v42 = vld [vmem:[%s1 + $0x90] sm:$0xff]
  %v43 = vld [vmem:[%s1 + $0x98] sm:$0xff]
  %v44 = vld [vmem:[%s1 + $0xa0] sm:$0xff]
  %v45 = vld [vmem:[%s1 + $0xa8] sm:$0xff]
  %v46 = vld [vmem:[%s1 + $0xb0] sm:$0xff]
  %v47 = vld [vmem:[%s1 + $0xb8] sm:$0xff]
  %v48 = vld [vmem:[%s1 + $0xc0] sm:$0xff]
  %v49 = vld [vmem:[%s1 + $0xc8] sm:$0xff]
  %v50 = vld [vmem:[%s1 + $0xd0] sm:$0xff]
  %v51 = vld [vmem:[%s1 + $0xd8] sm:$0xff]
  %v52 = vld [vmem:[%s1 + $0xe0] sm:$0xff]
  %v53 = vld [vmem:[%s1 + $0xe8] sm:$0xff]
  %v54 = vld [vmem:[%s1 + $0xf0] sm:$0xff]
  %v55 = vld [vmem:[%s1 + $0xf8] sm:$0xff]
  %v56 = vld [vmem:[%s1 + $0x100] sm:$0xff]
  %v57 = vld [vmem:[%s1 + $0x108] sm:$0xff]
  %v58 = vld [vmem:[%s1 + $0x110] sm:$0xff]
  %v59 = vld [vmem:[%s1 + $0x118] sm:$0xff]
  %v60 = vld [vmem:[%s1 + $0x120] sm:$0xff]
  %v61 = vld [vmem:[%s1 + $0x128] sm:$0xff]
  %v62 = vld [vmem:[%s1 + $0x130] sm:$0xff]
  %v63 = vld [vmem:[%s1 + $0x138] sm:$0xff]
  %v64 = vld [vmem:[%s1 + $0x140] sm:$0xff]
  %v65 = vld [vmem:[%s1 + $0x148] sm:$0xff]
  %v66 = vld [vmem:[%s1 + $0x150] sm:$0xff]
  %v67 = vld [vmem:[%s1 + $0x158] sm:$0xff]
  %v68 = vld [vmem:[%s1 + $0x160] sm:$0xff]
  %v69 = vld [vmem:[%s1 + $0x168] sm:$0xff]
  %v70 = vld [vmem:[%s1 + $0x170] sm:$0xff]
  %v71 = vld [vmem:[%s1 + $0x178] sm:$0xff]
  %v72 = vld [vmem:[%s1 + $0x180] sm:$0xff]
  %v73 = vld [vmem:[%s1 + $0x188] sm:$0xff]
  %v74 = vld [vmem:[%s1 + $0x190] sm:$0xff]
  %v75 = vld [vmem:[%s1 + $0x198] sm:$0xff]
  %v76 = vld [vmem:[%s1 + $0x1a0] sm:$0xff]
  %v77 = vld [vmem:[%s1 + $0x1a8] sm:$0xff]
  %v78 = vld [vmem:[%s1 + $0x1b0] sm:$0xff]
  %v79 = vld [vmem:[%s1 + $0x1b8] sm:$0xff]
  %v80 = vld [vmem:[%s1 + $0x1c0] sm:$0xff]
  %v81 = vld [vmem:[%s1 + $0x1c8] sm:$0xff]
  %v82 = vld [vmem:[%s1 + $0x1d0] sm:$0xff]
  %v83 = vld [vmem:[%s1 + $0x1d8] sm:$0xff]
  %v84 = vld [vmem:[%s1 + $0x1e0] sm:$0xff]
  %v85 = vld [vmem:[%s1 + $0x1e8] sm:$0xff]
  %v86 = vld [vmem:[%s1 + $0x1f0] sm:$0xff]
  %v87 = vld [vmem:[%s1 + $0x1f8] sm:$0xff]
  %v88 = vld [vmem:[%s1 + $0x200] sm:$0xff]
  %v89 = vld [vmem:[%s1 + $0x208] sm:$0xff]
  %v90 = vld [vmem:[%s1 + $0x210] sm:$0xff]
  %v91 = vld [vmem:[%s1 + $0x218] sm:$0xff]
  %v92 = vld [vmem:[%s1 + $0x220] sm:$0xff]
  %v93 = vld [vmem:[%s1 + $0x228] sm:$0xff]
  %v94 = vld [vmem:[%s1 + $0x230] sm:$0xff]
  %v95 = vld [vmem:[%s1 + $0x238] sm:$0xff]
  %v96 = vld [vmem:[%s1 + $0x240] sm:$0xff]
  %v97 = vld [vmem:[%s1 + $0x248] sm:$0xff]
  %v98 = vld [vmem:[%s1 + $0x250] sm:$0xff]
  %v99 = vld [vmem:[%s1 + $0x258] sm:$0xff]
  %v100 = vld [vmem:[%s1 + $0x260] sm:$0xff]
  %v101 = vld [vmem:[%s1 + $0x268] sm:$0xff]
  %v102 = vld [vmem:[%s1 + $0x270] sm:$0xff]
  %v103 = vld [vmem:[%s1 + $0x278] sm:$0xff]
  %v104 = vld [vmem:[%s1 + $0x280] sm:$0xff]
  %v105 = vld [vmem:[%s1 + $0x288] sm:$0xff]
  %v106 = vld [vmem:[%s1 + $0x290] sm:$0xff]
  %v107 = vld [vmem:[%s1 + $0x298] sm:$0xff]
  %v108 = vld [vmem:[%s1 + $0x2a0] sm:$0xff]
  %v109 = vld [vmem:[%s1 + $0x2a8] sm:$0xff]
  %v110 = vld [vmem:[%s1 + $0x2b0] sm:$0xff]
  %v111 = vld [vmem:[%s1 + $0x2b8] sm:$0xff]
  %v112 = vld [vmem:[%s1 + $0x2c0] sm:$0xff]
  %v113 = vld [vmem:[%s1 + $0x2c8] sm:$0xff]
  %v114 = vld [vmem:[%s1 + $0x2d0] sm:$0xff]
  %v115 = vld [vmem:[%s1 + $0x2d8] sm:$0xff]
  %v116 = vld [vmem:[%s1 + $0x2e0] sm:$0xff]
  %v117 = vld [vmem:[%s1 + $0x2e8] sm:$0xff]
  %v118 = vld [vmem:[%s1 + $0x2f0] sm:$0xff]
  %v119 = vld [vmem:[%s1 + $0x2f8] sm:$0xff]
  %v120 = vld [vmem:[%s1 + $0x300] sm:$0xff]
  %v121 = vld [vmem:[%s1 + $0x308] sm:$0xff]
  %v122 = vld [vmem:[%s1 + $0x310] sm:$0xff]
  %v123 = vld [vmem:[%s1 + $0x318] sm:$0xff]
  %v124 = vld [vmem:[%s1 + $0x320] sm:$0xff]
  %v125 = vld [vmem:[%s1 + $0x328] sm:$0xff]
  %v126 = vld [vmem:[%s1 + $0x330] sm:$0xff]
  %v127 = vld [vmem:[%s1 + $0x338] sm:$0xff]
  %v128 = vld [vmem:[%s1 + $0x340] sm:$0xff]
  %v129 = vld [vmem:[%s1 + $0x348] sm:$0xff]
  %v130 = vld [vmem:[%s1 + $0x350] sm:$0xff]
  %v131 = vld [vmem:[%s1 + $0x358] sm:$0xff]
  %v132 = vld [vmem:[%s1 + $0x360] sm:$0xff]
  %v133 = vld [vmem:[%s1 + $0x368] sm:$0xff]
  %v134 = vld [vmem:[%s1 + $0x370] sm:$0xff]
  %v135 = vld [vmem:[%s1 + $0x378] sm:$0xff]
  %v136 = vld [vmem:[%s1 + $0x380] sm:$0xff]
  %v137 = vld [vmem:[%s1 + $0x388] sm:$0xff]
  %v138 = vld [vmem:[%s1 + $0x390] sm:$0xff]
  %v139 = vld [vmem:[%s1 + $0x398] sm:$0xff]
  %v140 = vld [vmem:[%s1 + $0x3a0] sm:$0xff]
  %v141 = vld [vmem:[%s1 + $0x3a8] sm:$0xff]
  %v142 = vld [vmem:[%s1 + $0x3b0] sm:$0xff]
  %v143 = vld [vmem:[%s1 + $0x3b8] sm:$0xff]
  %v144 = vld [vmem:[%s1 + $0x3c0] sm:$0xff]
  %v145 = vld [vmem:[%s1 + $0x3c8] sm:$0xff]
  %v146 = vld [vmem:[%s1 + $0x3d0] sm:$0xff]
  %v147 = vld [vmem:[%s1 + $0x3d8] sm:$0xff]
  %v148 = vld [vmem:[%s1 + $0x3e0] sm:$0xff]
  %v149 = vld [vmem:[%s1 + $0x3e8] sm:$0xff]
  %v150 = vld [vmem:[%s1 + $0x3f0] sm:$0xff]
  %v151 = vld [vmem:[%s1 + $0x3f8] sm:$0xff]
  %v152 = vld [vmem:[%s1 + $0x400] sm:$0xff]
  %v153 = vld [vmem:[%s1 + $0x408] sm:$0xff]
  %v154 = vld [vmem:[%s1 + $0x410] sm:$0xff]
  %v155 = vld [vmem:[%s1 + $0x418] sm:$0xff]
  %v156 = vld [vmem:[%s1 + $0x420] sm:$0xff]
  %v157 = vld [vmem:[%s1 + $0x428] sm:$0xff]
  %v158 = vld [vmem:[%s1 + $0x430] sm:$0xff]
  %v159 = vld [vmem:[%s1 + $0x438] sm:$0xff]
  %v160 = vld [vmem:[%s1 + $0x440] sm:$0xff]
  %v161 = vld [vmem:[%s1 + $0x448] sm:$0xff]
  %v162 = vld [vmem:[%s1 + $0x450] sm:$0xff]
  %v163 = vld [vmem:[%s1 + $0x458] sm:$0xff]
  %v164 = vld [vmem:[%s1 + $0x460] sm:$0xff]
  %v165 = vld [vmem:[%s1 + $0x468] sm:$0xff]
  %v166 = vld [vmem:[%s1 + $0x470] sm:$0xff]
  %v167 = vld [vmem:[%s1 + $0x478] sm:$0xff]
  %v168 = vld [vmem:[%s2] sm:$0x3]
  %v170 = vperm.slane %v168, 0
  %v171 = vperm.slane %v168, 1
  %v184 = vunpack.c.l.b16 %v14
  %v185 = vunpack.c.h.b16 %v14
  %v186 = vunpack.c.l.b16 %v15
  %v187 = vunpack.c.h.b16 %v15
  %v188 = vunpack.c.l.b16 %v16
  %v189 = vunpack.c.h.b16 %v16
  %v190 = vunpack.c.l.b16 %v17
  %v191 = vunpack.c.h.b16 %v17
  %v192 = vunpack.c.l.b16 %v18
  %v193 = vunpack.c.l.b16 %v19
  %v194 = vunpack.c.h.b16 %v19
  %v195 = vunpack.c.l.b16 %v20
  %v196 = vunpack.c.h.b16 %v20
  %v197 = vunpack.c.l.b16 %v21
  %v198 = vunpack.c.h.b16 %v21
  %v199 = vunpack.c.l.b16 %v22
  %v200 = vunpack.c.h.b16 %v22
  %v201 = vunpack.c.l.b16 %v23
  %v202 = vpack.c.b16 %v193, %v184
  %v203 = vpack.c.b16 %v194, %v185
  %v204 = vpack.c.b16 %v195, %v186
  %v205 = vpack.c.b16 %v196, %v187
  %v206 = vpack.c.b16 %v197, %v188
  %v207 = vpack.c.b16 %v198, %v189
  %v208 = vpack.c.b16 %v199, %v190
  %v209 = vpack.c.b16 %v200, %v191
  %v210 = vpack.c.b16 %v201, %v192
  %v364 = vunpack.c.l.b16 %v24
  %v365 = vunpack.c.h.b16 %v24
  %v366 = vunpack.c.l.b16 %v25
  %v367 = vunpack.c.h.b16 %v25
  %v368 = vunpack.c.l.b16 %v26
  %v369 = vunpack.c.h.b16 %v26
  %v370 = vunpack.c.l.b16 %v27
  %v371 = vunpack.c.h.b16 %v27
  %v372 = vunpack.c.l.b16 %v28
  %v373 = vunpack.c.h.b16 %v28
  %v374 = vunpack.c.l.b16 %v29
  %v375 = vunpack.c.h.b16 %v29
  %v376 = vunpack.c.l.b16 %v30
  %v377 = vunpack.c.h.b16 %v30
  %v378 = vunpack.c.l.b16 %v31
  %v379 = vunpack.c.h.b16 %v31
  %v380 = vunpack.c.l.b16 %v32
  %v381 = vunpack.c.h.b16 %v32
  %v382 = vunpack.c.l.b16 %v33
  %v383 = vunpack.c.h.b16 %v33
  %v384 = vunpack.c.l.b16 %v34
  %v385 = vunpack.c.h.b16 %v34
  %v386 = vunpack.c.l.b16 %v35
  %v387 = vunpack.c.h.b16 %v35
  %v388 = vunpack.c.l.b16 %v36
  %v389 = vunpack.c.h.b16 %v36
  %v390 = vunpack.c.l.b16 %v37
  %v391 = vunpack.c.h.b16 %v37
  %v392 = vunpack.c.l.b16 %v38
  %v393 = vunpack.c.h.b16 %v38
  %v394 = vunpack.c.l.b16 %v39
  %v395 = vunpack.c.h.b16 %v39
  %v396 = vunpack.c.l.b16 %v40
  %v397 = vunpack.c.h.b16 %v40
  %v398 = vunpack.c.l.b16 %v41
  %v399 = vunpack.c.h.b16 %v41
  %v400 = vunpack.c.l.b16 %v42
  %v401 = vunpack.c.h.b16 %v42
  %v402 = vunpack.c.l.b16 %v43
  %v403 = vunpack.c.h.b16 %v43
  %v404 = vunpack.c.l.b16 %v44
  %v405 = vunpack.c.h.b16 %v44
  %v406 = vunpack.c.l.b16 %v45
  %v407 = vunpack.c.h.b16 %v45
  %v408 = vunpack.c.l.b16 %v46
  %v409 = vunpack.c.h.b16 %v46
  %v410 = vunpack.c.l.b16 %v47
  %v411 = vunpack.c.h.b16 %v47
  %v412 = vunpack.c.l.b16 %v48
  %v413 = vunpack.c.h.b16 %v48
  %v414 = vunpack.c.l.b16 %v49
  %v415 = vunpack.c.h.b16 %v49
  %v416 = vunpack.c.l.b16 %v50
  %v417 = vunpack.c.h.b16 %v50
  %v418 = vunpack.c.l.b16 %v51
  %v419 = vunpack.c.h.b16 %v51
  %v420 = vunpack.c.l.b16 %v52
  %v421 = vunpack.c.h.b16 %v52
  %v422 = vunpack.c.l.b16 %v53
  %v423 = vunpack.c.h.b16 %v53
  %v424 = vunpack.c.l.b16 %v54
  %v425 = vunpack.c.h.b16 %v54
  %v426 = vunpack.c.l.b16 %v55
  %v427 = vunpack.c.h.b16 %v55
  %v428 = vunpack.c.l.b16 %v56
  %v429 = vunpack.c.h.b16 %v56
  %v430 = vunpack.c.l.b16 %v57
  %v431 = vunpack.c.h.b16 %v57
  %v432 = vunpack.c.l.b16 %v58
  %v433 = vunpack.c.h.b16 %v58
  %v434 = vunpack.c.l.b16 %v59
  %v435 = vunpack.c.h.b16 %v59
  %v436 = vunpack.c.l.b16 %v60
  %v437 = vunpack.c.h.b16 %v60
  %v438 = vunpack.c.l.b16 %v61
  %v439 = vunpack.c.h.b16 %v61
  %v440 = vunpack.c.l.b16 %v62
  %v441 = vunpack.c.h.b16 %v62
  %v442 = vunpack.c.l.b16 %v63
  %v443 = vunpack.c.h.b16 %v63
  %v444 = vunpack.c.l.b16 %v64
  %v445 = vunpack.c.h.b16 %v64
  %v446 = vunpack.c.l.b16 %v65
  %v447 = vunpack.c.h.b16 %v65
  %v448 = vunpack.c.l.b16 %v66
  %v449 = vunpack.c.h.b16 %v66
  %v450 = vunpack.c.l.b16 %v67
  %v451 = vunpack.c.h.b16 %v67
  %v452 = vunpack.c.l.b16 %v68
  %v453 = vunpack.c.h.b16 %v68
  %v454 = vunpack.c.l.b16 %v69
  %v455 = vunpack.c.h.b16 %v69
  %v456 = vunpack.c.l.b16 %v70
  %v457 = vunpack.c.h.b16 %v70
  %v458 = vunpack.c.l.b16 %v71
  %v459 = vunpack.c.h.b16 %v71
  %v460 = vunpack.c.l.b16 %v72
  %v461 = vunpack.c.h.b16 %v72
  %v462 = vunpack.c.l.b16 %v73
  %v463 = vunpack.c.h.b16 %v73
  %v464 = vunpack.c.l.b16 %v74
  %v465 = vunpack.c.h.b16 %v74
  %v466 = vunpack.c.l.b16 %v75
  %v467 = vunpack.c.h.b16 %v75
  %v468 = vunpack.c.l.b16 %v76
  %v469 = vunpack.c.h.b16 %v76
  %v470 = vunpack.c.l.b16 %v77
  %v471 = vunpack.c.h.b16 %v77
  %v472 = vunpack.c.l.b16 %v78
  %v473 = vunpack.c.h.b16 %v78
  %v474 = vunpack.c.l.b16 %v79
  %v475 = vunpack.c.h.b16 %v79
  %v476 = vunpack.c.l.b16 %v80
  %v477 = vunpack.c.h.b16 %v80
  %v478 = vunpack.c.l.b16 %v81
  %v479 = vunpack.c.h.b16 %v81
  %v480 = vunpack.c.l.b16 %v82
  %v481 = vunpack.c.h.b16 %v82
  %v482 = vunpack.c.l.b16 %v83
  %v483 = vunpack.c.h.b16 %v83
  %v484 = vunpack.c.l.b16 %v84
  %v485 = vunpack.c.h.b16 %v84
  %v486 = vunpack.c.l.b16 %v85
  %v487 = vunpack.c.h.b16 %v85
  %v488 = vunpack.c.l.b16 %v86
  %v489 = vunpack.c.h.b16 %v86
  %v490 = vunpack.c.l.b16 %v87
  %v491 = vunpack.c.h.b16 %v87
  %v492 = vunpack.c.l.b16 %v88
  %v493 = vunpack.c.h.b16 %v88
  %v494 = vunpack.c.l.b16 %v89
  %v495 = vunpack.c.h.b16 %v89
  %v496 = vunpack.c.l.b16 %v90
  %v497 = vunpack.c.h.b16 %v90
  %v498 = vunpack.c.l.b16 %v91
  %v499 = vunpack.c.h.b16 %v91
  %v500 = vunpack.c.l.b16 %v92
  %v501 = vunpack.c.h.b16 %v92
  %v502 = vunpack.c.l.b16 %v93
  %v503 = vunpack.c.h.b16 %v93
  %v504 = vunpack.c.l.b16 %v94
  %v505 = vunpack.c.h.b16 %v94
  %v506 = vunpack.c.l.b16 %v95
  %v507 = vunpack.c.h.b16 %v95
  %v508 = vunpack.c.l.b16 %v96
  %v509 = vunpack.c.h.b16 %v96
  %v510 = vunpack.c.l.b16 %v97
  %v511 = vunpack.c.h.b16 %v97
  %v512 = vunpack.c.l.b16 %v98
  %v513 = vunpack.c.h.b16 %v98
  %v514 = vunpack.c.l.b16 %v99
  %v515 = vunpack.c.h.b16 %v99
  %v516 = vunpack.c.l.b16 %v100
  %v517 = vunpack.c.h.b16 %v100
  %v518 = vunpack.c.l.b16 %v101
  %v519 = vunpack.c.h.b16 %v101
  %v520 = vunpack.c.l.b16 %v102
  %v521 = vunpack.c.h.b16 %v102
  %v522 = vunpack.c.l.b16 %v103
  %v523 = vunpack.c.h.b16 %v103
  %v524 = vunpack.c.l.b16 %v104
  %v525 = vunpack.c.h.b16 %v104
  %v526 = vunpack.c.l.b16 %v105
  %v527 = vunpack.c.h.b16 %v105
  %v528 = vunpack.c.l.b16 %v106
  %v529 = vunpack.c.h.b16 %v106
  %v530 = vunpack.c.l.b16 %v107
  %v531 = vunpack.c.h.b16 %v107
  %v532 = vunpack.c.l.b16 %v108
  %v533 = vunpack.c.h.b16 %v108
  %v534 = vunpack.c.l.b16 %v109
  %v535 = vunpack.c.h.b16 %v109
  %v536 = vunpack.c.l.b16 %v110
  %v537 = vunpack.c.h.b16 %v110
  %v538 = vunpack.c.l.b16 %v111
  %v539 = vunpack.c.h.b16 %v111
  %v540 = vunpack.c.l.b16 %v112
  %v541 = vunpack.c.h.b16 %v112
  %v542 = vunpack.c.l.b16 %v113
  %v543 = vunpack.c.h.b16 %v113
  %v544 = vunpack.c.l.b16 %v114
  %v545 = vunpack.c.h.b16 %v114
  %v546 = vunpack.c.l.b16 %v115
  %v547 = vunpack.c.h.b16 %v115
  %v548 = vunpack.c.l.b16 %v116
  %v549 = vunpack.c.h.b16 %v116
  %v550 = vunpack.c.l.b16 %v117
  %v551 = vunpack.c.h.b16 %v117
  %v552 = vunpack.c.l.b16 %v118
  %v553 = vunpack.c.h.b16 %v118
  %v554 = vunpack.c.l.b16 %v119
  %v555 = vunpack.c.h.b16 %v119
  %v556 = vunpack.c.l.b16 %v120
  %v557 = vunpack.c.h.b16 %v120
  %v558 = vunpack.c.l.b16 %v121
  %v559 = vunpack.c.h.b16 %v121
  %v560 = vunpack.c.l.b16 %v122
  %v561 = vunpack.c.h.b16 %v122
  %v562 = vunpack.c.l.b16 %v123
  %v563 = vunpack.c.h.b16 %v123
  %v564 = vunpack.c.l.b16 %v124
  %v565 = vunpack.c.h.b16 %v124
  %v566 = vunpack.c.l.b16 %v125
  %v567 = vunpack.c.h.b16 %v125
  %v568 = vunpack.c.l.b16 %v126
  %v569 = vunpack.c.h.b16 %v126
  %v570 = vunpack.c.l.b16 %v127
  %v571 = vunpack.c.h.b16 %v127
  %v572 = vunpack.c.l.b16 %v128
  %v573 = vunpack.c.h.b16 %v128
  %v574 = vunpack.c.l.b16 %v129
  %v575 = vunpack.c.h.b16 %v129
  %v576 = vunpack.c.l.b16 %v130
  %v577 = vunpack.c.h.b16 %v130
  %v578 = vunpack.c.l.b16 %v131
  %v579 = vunpack.c.h.b16 %v131
  %v580 = vunpack.c.l.b16 %v132
  %v581 = vunpack.c.h.b16 %v132
  %v582 = vunpack.c.l.b16 %v133
  %v583 = vunpack.c.h.b16 %v133
  %v584 = vunpack.c.l.b16 %v134
  %v585 = vunpack.c.h.b16 %v134
  %v586 = vunpack.c.l.b16 %v135
  %v587 = vunpack.c.h.b16 %v135
  %v588 = vunpack.c.l.b16 %v136
  %v589 = vunpack.c.h.b16 %v136
  %v590 = vunpack.c.l.b16 %v137
  %v591 = vunpack.c.h.b16 %v137
  %v592 = vunpack.c.l.b16 %v138
  %v593 = vunpack.c.h.b16 %v138
  %v594 = vunpack.c.l.b16 %v139
  %v595 = vunpack.c.h.b16 %v139
  %v596 = vunpack.c.l.b16 %v140
  %v597 = vunpack.c.h.b16 %v140
  %v598 = vunpack.c.l.b16 %v141
  %v599 = vunpack.c.h.b16 %v141
  %v600 = vunpack.c.l.b16 %v142
  %v601 = vunpack.c.h.b16 %v142
  %v602 = vunpack.c.l.b16 %v143
  %v603 = vunpack.c.h.b16 %v143
  %v604 = vunpack.c.l.b16 %v144
  %v605 = vunpack.c.h.b16 %v144
  %v606 = vunpack.c.l.b16 %v145
  %v607 = vunpack.c.h.b16 %v145
  %v608 = vunpack.c.l.b16 %v146
  %v609 = vunpack.c.h.b16 %v146
  %v610 = vunpack.c.l.b16 %v147
  %v611 = vunpack.c.h.b16 %v147
  %v612 = vunpack.c.l.b16 %v148
  %v613 = vunpack.c.h.b16 %v148
  %v614 = vunpack.c.l.b16 %v149
  %v615 = vunpack.c.h.b16 %v149
  %v616 = vunpack.c.l.b16 %v150
  %v617 = vunpack.c.h.b16 %v150
  %v618 = vunpack.c.l.b16 %v151
  %v619 = vunpack.c.h.b16 %v151
  %v620 = vunpack.c.l.b16 %v152
  %v621 = vunpack.c.h.b16 %v152
  %v622 = vunpack.c.l.b16 %v153
  %v623 = vunpack.c.h.b16 %v153
  %v624 = vunpack.c.l.b16 %v154
  %v625 = vunpack.c.h.b16 %v154
  %v626 = vunpack.c.l.b16 %v155
  %v627 = vunpack.c.h.b16 %v155
  %v628 = vunpack.c.l.b16 %v156
  %v629 = vunpack.c.h.b16 %v156
  %v630 = vunpack.c.l.b16 %v157
  %v631 = vunpack.c.h.b16 %v157
  %v632 = vunpack.c.l.b16 %v158
  %v633 = vunpack.c.h.b16 %v158
  %v634 = vunpack.c.l.b16 %v159
  %v635 = vunpack.c.h.b16 %v159
  %v636 = vunpack.c.l.b16 %v160
  %v637 = vunpack.c.h.b16 %v160
  %v638 = vunpack.c.l.b16 %v161
  %v639 = vunpack.c.h.b16 %v161
  %v640 = vunpack.c.l.b16 %v162
  %v641 = vunpack.c.h.b16 %v162
  %v642 = vunpack.c.l.b16 %v163
  %v643 = vunpack.c.h.b16 %v163
  %v644 = vunpack.c.l.b16 %v164
  %v645 = vunpack.c.h.b16 %v164
  %v646 = vunpack.c.l.b16 %v165
  %v647 = vunpack.c.h.b16 %v165
  %v648 = vunpack.c.l.b16 %v166
  %v649 = vunpack.c.h.b16 %v166
  %v650 = vunpack.c.l.b16 %v167
  %v651 = vunpack.c.h.b16 %v167
  %v652 = vpack.c.b16 %v366, %v364
  %v653 = vpack.c.b16 %v367, %v365
  %v654 = vpack.c.b16 %v370, %v368
  %v655 = vpack.c.b16 %v371, %v369
  %v656 = vpack.c.b16 %v374, %v372
  %v657 = vpack.c.b16 %v375, %v373
  %v658 = vpack.c.b16 %v378, %v376
  %v659 = vpack.c.b16 %v379, %v377
  %v660 = vpack.c.b16 %v382, %v380
  %v661 = vpack.c.b16 %v383, %v381
  %v662 = vpack.c.b16 %v386, %v384
  %v663 = vpack.c.b16 %v387, %v385
  %v664 = vpack.c.b16 %v390, %v388
  %v665 = vpack.c.b16 %v391, %v389
  %v666 = vpack.c.b16 %v394, %v392
  %v667 = vpack.c.b16 %v395, %v393
  %v668 = vpack.c.b16 %v398, %v396
  %v669 = vpack.c.b16 %v399, %v397
  %v670 = vpack.c.b16 %v402, %v400
  %v671 = vpack.c.b16 %v403, %v401
  %v672 = vpack.c.b16 %v406, %v404
  %v673 = vpack.c.b16 %v407, %v405
  %v674 = vpack.c.b16 %v410, %v408
  %v675 = vpack.c.b16 %v411, %v409
  %v676 = vpack.c.b16 %v414, %v412
  %v677 = vpack.c.b16 %v415, %v413
  %v678 = vpack.c.b16 %v418, %v416
  %v679 = vpack.c.b16 %v419, %v417
  %v680 = vpack.c.b16 %v422, %v420
  %v681 = vpack.c.b16 %v423, %v421
  %v682 = vpack.c.b16 %v426, %v424
  %v683 = vpack.c.b16 %v427, %v425
  %v684 = vpack.c.b16 %v430, %v428
  %v685 = vpack.c.b16 %v431, %v429
  %v686 = vpack.c.b16 %v434, %v432
  %v687 = vpack.c.b16 %v435, %v433
  %v688 = vpack.c.b16 %v438, %v436
  %v689 = vpack.c.b16 %v439, %v437
  %v690 = vpack.c.b16 %v442, %v440
  %v691 = vpack.c.b16 %v443, %v441
  %v692 = vpack.c.b16 %v446, %v444
  %v693 = vpack.c.b16 %v447, %v445
  %v694 = vpack.c.b16 %v450, %v448
  %v695 = vpack.c.b16 %v451, %v449
  %v696 = vpack.c.b16 %v454, %v452
  %v697 = vpack.c.b16 %v455, %v453
  %v698 = vpack.c.b16 %v458, %v456
  %v699 = vpack.c.b16 %v459, %v457
  %v700 = vpack.c.b16 %v462, %v460
  %v701 = vpack.c.b16 %v463, %v461
  %v702 = vpack.c.b16 %v466, %v464
  %v703 = vpack.c.b16 %v467, %v465
  %v704 = vpack.c.b16 %v470, %v468
  %v705 = vpack.c.b16 %v471, %v469
  %v706 = vpack.c.b16 %v474, %v472
  %v707 = vpack.c.b16 %v475, %v473
  %v708 = vpack.c.b16 %v478, %v476
  %v709 = vpack.c.b16 %v479, %v477
  %v710 = vpack.c.b16 %v482, %v480
  %v711 = vpack.c.b16 %v483, %v481
  %v712 = vpack.c.b16 %v486, %v484
  %v713 = vpack.c.b16 %v487, %v485
  %v714 = vpack.c.b16 %v490, %v488
  %v715 = vpack.c.b16 %v491, %v489
  %v716 = vpack.c.b16 %v494, %v492
  %v717 = vpack.c.b16 %v495, %v493
  %v718 = vpack.c.b16 %v498, %v496
  %v719 = vpack.c.b16 %v499, %v497
  %v720 = vpack.c.b16 %v502, %v500
  %v721 = vpack.c.b16 %v503, %v501
  %v722 = vpack.c.b16 %v506, %v504
  %v723 = vpack.c.b16 %v507, %v505
  %v724 = vpack.c.b16 %v510, %v508
  %v725 = vpack.c.b16 %v511, %v509
  %v726 = vpack.c.b16 %v514, %v512
  %v727 = vpack.c.b16 %v515, %v513
  %v728 = vpack.c.b16 %v518, %v516
  %v729 = vpack.c.b16 %v519, %v517
  %v730 = vpack.c.b16 %v522, %v520
  %v731 = vpack.c.b16 %v523, %v521
  %v732 = vpack.c.b16 %v526, %v524
  %v733 = vpack.c.b16 %v527, %v525
  %v734 = vpack.c.b16 %v530, %v528
  %v735 = vpack.c.b16 %v531, %v529
  %v736 = vpack.c.b16 %v534, %v532
  %v737 = vpack.c.b16 %v535, %v533
  %v738 = vpack.c.b16 %v538, %v536
  %v739 = vpack.c.b16 %v539, %v537
  %v740 = vpack.c.b16 %v542, %v540
  %v741 = vpack.c.b16 %v543, %v541
  %v742 = vpack.c.b16 %v546, %v544
  %v743 = vpack.c.b16 %v547, %v545
  %v744 = vpack.c.b16 %v550, %v548
  %v745 = vpack.c.b16 %v551, %v549
  %v746 = vpack.c.b16 %v554, %v552
  %v747 = vpack.c.b16 %v555, %v553
  %v748 = vpack.c.b16 %v558, %v556
  %v749 = vpack.c.b16 %v559, %v557
  %v750 = vpack.c.b16 %v562, %v560
  %v751 = vpack.c.b16 %v563, %v561
  %v752 = vpack.c.b16 %v566, %v564
  %v753 = vpack.c.b16 %v567, %v565
  %v754 = vpack.c.b16 %v570, %v568
  %v755 = vpack.c.b16 %v571, %v569
  %v756 = vpack.c.b16 %v574, %v572
  %v757 = vpack.c.b16 %v575, %v573
  %v758 = vpack.c.b16 %v578, %v576
  %v759 = vpack.c.b16 %v579, %v577
  %v760 = vpack.c.b16 %v582, %v580
  %v761 = vpack.c.b16 %v583, %v581
  %v762 = vpack.c.b16 %v586, %v584
  %v763 = vpack.c.b16 %v587, %v585
  %v764 = vpack.c.b16 %v590, %v588
  %v765 = vpack.c.b16 %v591, %v589
  %v766 = vpack.c.b16 %v594, %v592
  %v767 = vpack.c.b16 %v595, %v593
  %v768 = vpack.c.b16 %v598, %v596
  %v769 = vpack.c.b16 %v599, %v597
  %v770 = vpack.c.b16 %v602, %v600
  %v771 = vpack.c.b16 %v603, %v601
  %v772 = vpack.c.b16 %v606, %v604
  %v773 = vpack.c.b16 %v607, %v605
  %v774 = vpack.c.b16 %v610, %v608
  %v775 = vpack.c.b16 %v611, %v609
  %v776 = vpack.c.b16 %v614, %v612
  %v777 = vpack.c.b16 %v615, %v613
  %v778 = vpack.c.b16 %v618, %v616
  %v779 = vpack.c.b16 %v619, %v617
  %v780 = vpack.c.b16 %v622, %v620
  %v781 = vpack.c.b16 %v623, %v621
  %v782 = vpack.c.b16 %v626, %v624
  %v783 = vpack.c.b16 %v627, %v625
  %v784 = vpack.c.b16 %v630, %v628
  %v785 = vpack.c.b16 %v631, %v629
  %v786 = vpack.c.b16 %v634, %v632
  %v787 = vpack.c.b16 %v635, %v633
  %v788 = vpack.c.b16 %v638, %v636
  %v789 = vpack.c.b16 %v639, %v637
  %v790 = vpack.c.b16 %v642, %v640
  %v791 = vpack.c.b16 %v643, %v641
  %v792 = vpack.c.b16 %v646, %v644
  %v793 = vpack.c.b16 %v647, %v645
  %v794 = vpack.c.b16 %v650, %v648
  %v795 = vpack.c.b16 %v651, %v649
  %940 = vmatpush.bf16.msra.mxu0 %v666
  %941 = vmatpush.bf16.msra.mxu0 %v664
  %942 = vmatpush.bf16.msra.mxu0 %v662
  %943 = vmatpush.bf16.msra.mxu0 %v660
  %944 = vmatpush.bf16.msra.mxu0 %v658
  %945 = vmatpush.bf16.msra.mxu0 %v656
  %946 = vmatpush.bf16.msra.mxu0 %v654
  %947 = vmatpush.bf16.msra.mxu0 %v652
  %948 = vmatmul.bf16.gmra.mxu0 %v202
  %v949 = vpop.f32.mrf.mxu0
  %v950 = vadd.f32 %v170, %v949
  %v951 = vpop.f32.mrf.mxu0
  %v952 = vadd.f32 %v170, %v951
  %953 = vdwg.mxu0
  %954 = vmatpush.bf16.msra.mxu0 %v682
  %955 = vmatpush.bf16.msra.mxu0 %v680
  %956 = vmatpush.bf16.msra.mxu0 %v678
  %957 = vmatpush.bf16.msra.mxu0 %v676
  %958 = vmatpush.bf16.msra.mxu0 %v674
  %959 = vmatpush.bf16.msra.mxu0 %v672
  %960 = vmatpush.bf16.msra.mxu0 %v670
  %961 = vmatpush.bf16.msra.mxu0 %v668
  %962 = vmatmul.bf16.gmra.mxu0 %v203
  %v963 = vpop.f32.mrf.mxu0
  %v964 = vadd.f32 %v950, %v963
  %v965 = vpop.f32.mrf.mxu0
  %v966 = vadd.f32 %v952, %v965
  %967 = vdwg.mxu0
  %968 = vmatpush.bf16.msra.mxu0 %v698
  %969 = vmatpush.bf16.msra.mxu0 %v696
  %970 = vmatpush.bf16.msra.mxu0 %v694
  %971 = vmatpush.bf16.msra.mxu0 %v692
  %972 = vmatpush.bf16.msra.mxu0 %v690
  %973 = vmatpush.bf16.msra.mxu0 %v688
  %974 = vmatpush.bf16.msra.mxu0 %v686
  %975 = vmatpush.bf16.msra.mxu0 %v684
  %976 = vmatmul.bf16.gmra.mxu0 %v204
  %v977 = vpop.f32.mrf.mxu0
  %v978 = vadd.f32 %v964, %v977
  %v979 = vpop.f32.mrf.mxu0
  %v980 = vadd.f32 %v966, %v979
  %981 = vdwg.mxu0
  %982 = vmatpush.bf16.msra.mxu0 %v714
  %983 = vmatpush.bf16.msra.mxu0 %v712
  %984 = vmatpush.bf16.msra.mxu0 %v710
  %985 = vmatpush.bf16.msra.mxu0 %v708
  %986 = vmatpush.bf16.msra.mxu0 %v706
  %987 = vmatpush.bf16.msra.mxu0 %v704
  %988 = vmatpush.bf16.msra.mxu0 %v702
  %989 = vmatpush.bf16.msra.mxu0 %v700
  %990 = vmatmul.bf16.gmra.mxu0 %v205
  %v991 = vpop.f32.mrf.mxu0
  %v992 = vadd.f32 %v978, %v991
  %v993 = vpop.f32.mrf.mxu0
  %v994 = vadd.f32 %v980, %v993
  %995 = vdwg.mxu0
  %996 = vmatpush.bf16.msra.mxu0 %v730
  %997 = vmatpush.bf16.msra.mxu0 %v728
  %998 = vmatpush.bf16.msra.mxu0 %v726
  %999 = vmatpush.bf16.msra.mxu0 %v724
  %1000 = vmatpush.bf16.msra.mxu0 %v722
  %1001 = vmatpush.bf16.msra.mxu0 %v720
  %1002 = vmatpush.bf16.msra.mxu0 %v718
  %1003 = vmatpush.bf16.msra.mxu0 %v716
  %1004 = vmatmul.bf16.gmra.mxu0 %v206
  %v1005 = vpop.f32.mrf.mxu0
  %v1006 = vadd.f32 %v992, %v1005
  %v1007 = vpop.f32.mrf.mxu0
  %v1008 = vadd.f32 %v994, %v1007
  %1009 = vdwg.mxu0
  %1010 = vmatpush.bf16.msra.mxu0 %v746
  %1011 = vmatpush.bf16.msra.mxu0 %v744
  %1012 = vmatpush.bf16.msra.mxu0 %v742
  %1013 = vmatpush.bf16.msra.mxu0 %v740
  %1014 = vmatpush.bf16.msra.mxu0 %v738
  %1015 = vmatpush.bf16.msra.mxu0 %v736
  %1016 = vmatpush.bf16.msra.mxu0 %v734
  %1017 = vmatpush.bf16.msra.mxu0 %v732
  %1018 = vmatmul.bf16.gmra.mxu0 %v207
  %v1019 = vpop.f32.mrf.mxu0
  %v1020 = vadd.f32 %v1006, %v1019
  %v1021 = vpop.f32.mrf.mxu0
  %v1022 = vadd.f32 %v1008, %v1021
  %1023 = vdwg.mxu0
  %1024 = vmatpush.bf16.msra.mxu0 %v762
  %1025 = vmatpush.bf16.msra.mxu0 %v760
  %1026 = vmatpush.bf16.msra.mxu0 %v758
  %1027 = vmatpush.bf16.msra.mxu0 %v756
  %1028 = vmatpush.bf16.msra.mxu0 %v754
  %1029 = vmatpush.bf16.msra.mxu0 %v752
  %1030 = vmatpush.bf16.msra.mxu0 %v750
  %1031 = vmatpush.bf16.msra.mxu0 %v748
  %1032 = vmatmul.bf16.gmra.mxu0 %v208
  %v1033 = vpop.f32.mrf.mxu0
  %v1034 = vadd.f32 %v1020, %v1033
  %v1035 = vpop.f32.mrf.mxu0
  %v1036 = vadd.f32 %v1022, %v1035
  %1037 = vdwg.mxu0
  %1038 = vmatpush.bf16.msra.mxu0 %v778
  %1039 = vmatpush.bf16.msra.mxu0 %v776
  %1040 = vmatpush.bf16.msra.mxu0 %v774
  %1041 = vmatpush.bf16.msra.mxu0 %v772
  %1042 = vmatpush.bf16.msra.mxu0 %v770
  %1043 = vmatpush.bf16.msra.mxu0 %v768
  %1044 = vmatpush.bf16.msra.mxu0 %v766
  %1045 = vmatpush.bf16.msra.mxu0 %v764
  %1046 = vmatmul.bf16.gmra.mxu0 %v209
  %v1047 = vpop.f32.mrf.mxu0
  %v1048 = vadd.f32 %v1034, %v1047
  %v1049 = vpop.f32.mrf.mxu0
  %v1050 = vadd.f32 %v1036, %v1049
  %1051 = vdwg.mxu0
  %1052 = vmatpush.bf16.msra.mxu0 %v794
  %1053 = vmatpush.bf16.msra.mxu0 %v792
  %1054 = vmatpush.bf16.msra.mxu0 %v790
  %1055 = vmatpush.bf16.msra.mxu0 %v788
  %1056 = vmatpush.bf16.msra.mxu0 %v786
  %1057 = vmatpush.bf16.msra.mxu0 %v784
  %1058 = vmatpush.bf16.msra.mxu0 %v782
  %1059 = vmatpush.bf16.msra.mxu0 %v780
  %1060 = vmatmul.bf16.gmra.mxu0 %v210
  %v1061 = vpop.f32.mrf.mxu0
  %v1062 = vadd.f32 %v1048, %v1061
  %v1063 = vpop.f32.mrf.mxu0
  %v1064 = vadd.f32 %v1050, %v1063
  %1065 = vdwg.mxu0
  %1066 = vmatpush.bf16.msra.mxu0 %v667
  %1067 = vmatpush.bf16.msra.mxu0 %v665
  %1068 = vmatpush.bf16.msra.mxu0 %v663
  %1069 = vmatpush.bf16.msra.mxu0 %v661
  %1070 = vmatpush.bf16.msra.mxu0 %v659
  %1071 = vmatpush.bf16.msra.mxu0 %v657
  %1072 = vmatpush.bf16.msra.mxu0 %v655
  %1073 = vmatpush.bf16.msra.mxu0 %v653
  %1074 = vmatmul.bf16.gmra.mxu0 %v202
  %v1075 = vpop.f32.mrf.mxu0
  %v1076 = vadd.f32 %v171, %v1075
  %v1077 = vpop.f32.mrf.mxu0
  %v1078 = vadd.f32 %v171, %v1077
  %1079 = vdwg.mxu0
  %1080 = vmatpush.bf16.msra.mxu0 %v683
  %1081 = vmatpush.bf16.msra.mxu0 %v681
  %1082 = vmatpush.bf16.msra.mxu0 %v679
  %1083 = vmatpush.bf16.msra.mxu0 %v677
  %1084 = vmatpush.bf16.msra.mxu0 %v675
  %1085 = vmatpush.bf16.msra.mxu0 %v673
  %1086 = vmatpush.bf16.msra.mxu0 %v671
  %1087 = vmatpush.bf16.msra.mxu0 %v669
  %1088 = vmatmul.bf16.gmra.mxu0 %v203
  %v1089 = vpop.f32.mrf.mxu0
  %v1090 = vadd.f32 %v1076, %v1089
  %v1091 = vpop.f32.mrf.mxu0
  %v1092 = vadd.f32 %v1078, %v1091
  %1093 = vdwg.mxu0
  %1094 = vmatpush.bf16.msra.mxu0 %v699
  %1095 = vmatpush.bf16.msra.mxu0 %v697
  %1096 = vmatpush.bf16.msra.mxu0 %v695
  %1097 = vmatpush.bf16.msra.mxu0 %v693
  %1098 = vmatpush.bf16.msra.mxu0 %v691
  %1099 = vmatpush.bf16.msra.mxu0 %v689
  %1100 = vmatpush.bf16.msra.mxu0 %v687
  %1101 = vmatpush.bf16.msra.mxu0 %v685
  %1102 = vmatmul.bf16.gmra.mxu0 %v204
  %v1103 = vpop.f32.mrf.mxu0
  %v1104 = vadd.f32 %v1090, %v1103
  %v1105 = vpop.f32.mrf.mxu0
  %v1106 = vadd.f32 %v1092, %v1105
  %1107 = vdwg.mxu0
  %1108 = vmatpush.bf16.msra.mxu0 %v715
  %1109 = vmatpush.bf16.msra.mxu0 %v713
  %1110 = vmatpush.bf16.msra.mxu0 %v711
  %1111 = vmatpush.bf16.msra.mxu0 %v709
  %1112 = vmatpush.bf16.msra.mxu0 %v707
  %1113 = vmatpush.bf16.msra.mxu0 %v705
  %1114 = vmatpush.bf16.msra.mxu0 %v703
  %1115 = vmatpush.bf16.msra.mxu0 %v701
  %1116 = vmatmul.bf16.gmra.mxu0 %v205
  %v1117 = vpop.f32.mrf.mxu0
  %v1118 = vadd.f32 %v1104, %v1117
  %v1119 = vpop.f32.mrf.mxu0
  %v1120 = vadd.f32 %v1106, %v1119
  %1121 = vdwg.mxu0
  %1122 = vmatpush.bf16.msra.mxu0 %v731
  %1123 = vmatpush.bf16.msra.mxu0 %v729
  %1124 = vmatpush.bf16.msra.mxu0 %v727
  %1125 = vmatpush.bf16.msra.mxu0 %v725
  %1126 = vmatpush.bf16.msra.mxu0 %v723
  %1127 = vmatpush.bf16.msra.mxu0 %v721
  %1128 = vmatpush.bf16.msra.mxu0 %v719
  %1129 = vmatpush.bf16.msra.mxu0 %v717
  %1130 = vmatmul.bf16.gmra.mxu0 %v206
  %v1131 = vpop.f32.mrf.mxu0
  %v1132 = vadd.f32 %v1118, %v1131
  %v1133 = vpop.f32.mrf.mxu0
  %v1134 = vadd.f32 %v1120, %v1133
  %1135 = vdwg.mxu0
  %1136 = vmatpush.bf16.msra.mxu0 %v747
  %1137 = vmatpush.bf16.msra.mxu0 %v745
  %1138 = vmatpush.bf16.msra.mxu0 %v743
  %1139 = vmatpush.bf16.msra.mxu0 %v741
  %1140 = vmatpush.bf16.msra.mxu0 %v739
  %1141 = vmatpush.bf16.msra.mxu0 %v737
  %1142 = vmatpush.bf16.msra.mxu0 %v735
  %1143 = vmatpush.bf16.msra.mxu0 %v733
  %1144 = vmatmul.bf16.gmra.mxu0 %v207
  %v1145 = vpop.f32.mrf.mxu0
  %v1146 = vadd.f32 %v1132, %v1145
  %v1147 = vpop.f32.mrf.mxu0
  %v1148 = vadd.f32 %v1134, %v1147
  %1149 = vdwg.mxu0
  %1150 = vmatpush.bf16.msra.mxu0 %v763
  %1151 = vmatpush.bf16.msra.mxu0 %v761
  %1152 = vmatpush.bf16.msra.mxu0 %v759
  %1153 = vmatpush.bf16.msra.mxu0 %v757
  %1154 = vmatpush.bf16.msra.mxu0 %v755
  %1155 = vmatpush.bf16.msra.mxu0 %v753
  %1156 = vmatpush.bf16.msra.mxu0 %v751
  %1157 = vmatpush.bf16.msra.mxu0 %v749
  %1158 = vmatmul.bf16.gmra.mxu0 %v208
  %v1159 = vpop.f32.mrf.mxu0
  %v1160 = vadd.f32 %v1146, %v1159
  %v1161 = vpop.f32.mrf.mxu0
  %v1162 = vadd.f32 %v1148, %v1161
  %1163 = vdwg.mxu0
  %1164 = vmatpush.bf16.msra.mxu0 %v779
  %1165 = vmatpush.bf16.msra.mxu0 %v777
  %1166 = vmatpush.bf16.msra.mxu0 %v775
  %1167 = vmatpush.bf16.msra.mxu0 %v773
  %1168 = vmatpush.bf16.msra.mxu0 %v771
  %1169 = vmatpush.bf16.msra.mxu0 %v769
  %1170 = vmatpush.bf16.msra.mxu0 %v767
  %1171 = vmatpush.bf16.msra.mxu0 %v765
  %1172 = vmatmul.bf16.gmra.mxu0 %v209
  %v1173 = vpop.f32.mrf.mxu0
  %v1174 = vadd.f32 %v1160, %v1173
  %v1175 = vpop.f32.mrf.mxu0
  %v1176 = vadd.f32 %v1162, %v1175
  %1177 = vdwg.mxu0
  %1178 = vmatpush.bf16.msra.mxu0 %v795
  %1179 = vmatpush.bf16.msra.mxu0 %v793
  %1180 = vmatpush.bf16.msra.mxu0 %v791
  %1181 = vmatpush.bf16.msra.mxu0 %v789
  %1182 = vmatpush.bf16.msra.mxu0 %v787
  %1183 = vmatpush.bf16.msra.mxu0 %v785
  %1184 = vmatpush.bf16.msra.mxu0 %v783
  %1185 = vmatpush.bf16.msra.mxu0 %v781
  %1186 = vmatmul.bf16.gmra.mxu0 %v210
  %v1187 = vpop.f32.mrf.mxu0
  %v1188 = vadd.f32 %v1174, %v1187
  %v1189 = vpop.f32.mrf.mxu0
  %v1190 = vadd.f32 %v1176, %v1189
  %1191 = vdwg.mxu0
  %v1192 = vmax.f32 %v1062, 0.0
  %v1193 = vmax.f32 %v1188, 0.0
  %v1194 = vmax.f32 %v1064, 0.0
  %v1195 = vmax.f32 %v1190, 0.0
  %v1196 = vpack.c.bf16 %v1193, %v1192
  %v1197 = vpack.c.bf16 %v1195, %v1194
  %1198 = vst [vmem:[%s3] sm:$0xff] %v1196
  %1199 = vst [vmem:[%s3 + $0x8] sm:$0xff] %v1197
  // Predicated region
  $region14: #{dqn_forward.22} parent=0 // pred_check
    _
  $region15: #{dqn_forward.22} parent=0 // pred_check_branch
    %1201 = sbr.rel (0) target = $region17
  $region16: #{dqn_forward.22} parent=0 // pred_region
    _
  $region17: #{dqn_forward.22} parent=0 // pred_fallthru
    _
  // Predicated region
  $region18: #{dqn_forward.22} parent=0 // pred_check
    _
  $region19: #{dqn_forward.22} parent=0 // pred_check_branch
    %1203 = sbr.rel (0) target = $region21
  $region20: #{dqn_forward.22} parent=0 // pred_region
    _
  $region21: #{dqn_forward.22} parent=0 // pred_fallthru
    _

// kernel: dqn_forward.25
$region0: #{dqn_forward.25}
  #allocation0 [shape = 'u32[]', space=smem, size = 0x4, offset = 0x4, fixed_abs, tag = 'smem constant byte address 0x4 - core index']
  #allocation1 [shape = 'u32[72,128]{1,0:T(1,128)}', space=vmem, size = 0x9000, scoped, tag = 'internal scratch']
  %s0 = inlined_call_operand.vmem [shape: bf16[8,32], index: 0, kind: input, shape index: {}]
  %s1 = inlined_call_operand.vmem [shape: bf16[8,256], index: 1, kind: input, shape index: {}]
  %s2 = inlined_call_operand.vmem [shape: bf16[32,512], index: 2, kind: input, shape index: {}]
  %s3 = inlined_call_operand.vmem [shape: f32[1,512], index: 3, kind: input, shape index: {}]
  %s4 = inlined_call_operand.vmem [shape: bf16[512,256], index: 4, kind: input, shape index: {}]
  %s5 = inlined_call_operand.vmem [shape: f32[1,256], index: 5, kind: input, shape index: {}]
  %s6 = inlined_call_operand.vmem [shape: bf16[256,128], index: 6, kind: input, shape index: {}]
  %s7 = inlined_call_operand.vmem [shape: f32[1,128], index: 7, kind: input, shape index: {}]
  %s8 = inlined_call_operand.vmem [shape: bf16[256,8], index: 8, kind: input, shape index: {}]
  %s9 = inlined_call_operand.vmem [shape: bf16[128,8], index: 9, kind: input, shape index: {}]
  %s10 = inlined_call_operand.vmem [shape: f32[1,8], index: 10, kind: input, shape index: {}]
  %s11 = inlined_call_operand.hbm [shape: f32[1,8], index: 11, kind: output, shape index: {}]
  %s12 = sld [smem:[#allocation0]]
  $region54: #{dqn_forward.25} parent=0
    _
  %s14 = ssub.s32 1, %s12
  %s15 = scalar_select 0, %s14, %s12
  $region1: #{dqn_forward.25} parent=0
    #allocation2 [shape = 'u8[512]{0}', space=vmem, size = 0x400, scoped, tag = 'output window, operand 0, single buffered']
    #allocation3 [shape = 's32[1]{0}', space=sflag, size = 0x4, scoped, tag = 'scoped memory for dqn_forward.25']
    %16 = vsyncpa [#allocation3], 0
    // Predicated region
    $region2: #{dqn_forward.25} parent=1 // pred_check
      _
    $region3: #{dqn_forward.25} parent=1 // pred_check_branch
      %18 = sbr.rel (0) target = $region5
    $region4: #{dqn_forward.25} parent=1 // pred_region
      _
    $region5: #{dqn_forward.25} parent=1 // pred_fallthru
      _
    // Predicated region
    $region6: #{dqn_forward.25} parent=1 // pred_check
      _
    $region7: #{dqn_forward.25} parent=1 // pred_check_branch
      %20 = sbr.rel (0) target = $region9
    $region8: #{dqn_forward.25} parent=1 // pred_region
      _
    $region9: #{dqn_forward.25} parent=1 // pred_fallthru
      _
    // Predicated region
    $region10: #{dqn_forward.25} parent=1 // pred_check
      _
    $region11: #{dqn_forward.25} parent=1 // pred_check_branch
      %22 = sbr.rel (0) target = $region13
    $region12: #{dqn_forward.25} parent=1 // pred_region
      _
    $region13: #{dqn_forward.25} parent=1 // pred_fallthru
      _
    // Predicated region
    $region14: #{dqn_forward.25} parent=1 // pred_check
      _
    $region15: #{dqn_forward.25} parent=1 // pred_check_branch
      %24 = sbr.rel (0) target = $region17
    $region16: #{dqn_forward.25} parent=1 // pred_region
      _
    $region17: #{dqn_forward.25} parent=1 // pred_fallthru
      _
    // Predicated region
    $region18: #{dqn_forward.25} parent=1 // pred_check
      _
    $region19: #{dqn_forward.25} parent=1 // pred_check_branch
      %26 = sbr.rel (0) target = $region21
    $region20: #{dqn_forward.25} parent=1 // pred_region
      _
    $region21: #{dqn_forward.25} parent=1 // pred_fallthru
      _
    // Predicated region
    $region22: #{dqn_forward.25} parent=1 // pred_check
      _
    $region23: #{dqn_forward.25} parent=1 // pred_check_branch
      %28 = sbr.rel (0) target = $region25
    $region24: #{dqn_forward.25} parent=1 // pred_region
      _
    $region25: #{dqn_forward.25} parent=1 // pred_fallthru
      _
    // Predicated region
    $region26: #{dqn_forward.25} parent=1 // pred_check
      _
    $region27: #{dqn_forward.25} parent=1 // pred_check_branch
      %30 = sbr.rel (0) target = $region29
    $region28: #{dqn_forward.25} parent=1 // pred_region
      _
    $region29: #{dqn_forward.25} parent=1 // pred_fallthru
      _
    // Predicated region
    $region30: #{dqn_forward.25} parent=1 // pred_check
      _
    $region31: #{dqn_forward.25} parent=1 // pred_check_branch
      %32 = sbr.rel (0) target = $region33
    $region32: #{dqn_forward.25} parent=1 // pred_region
      _
    $region33: #{dqn_forward.25} parent=1 // pred_fallthru
      _
    // Predicated region
    $region34: #{dqn_forward.25} parent=1 // pred_check
      _
    $region35: #{dqn_forward.25} parent=1 // pred_check_branch
      %34 = sbr.rel (0) target = $region37
    $region36: #{dqn_forward.25} parent=1 // pred_region
      _
    $region37: #{dqn_forward.25} parent=1 // pred_fallthru
      _
    // Predicated region
    $region38: #{dqn_forward.25} parent=1 // pred_check
      _
    $region39: #{dqn_forward.25} parent=1 // pred_check_branch
      %36 = sbr.rel (0) target = $region41
    $region40: #{dqn_forward.25} parent=1 // pred_region
      _
    $region41: #{dqn_forward.25} parent=1 // pred_fallthru
      _
    // Predicated region
    $region42: #{dqn_forward.25} parent=1 // pred_check
      _
    $region43: #{dqn_forward.25} parent=1 // pred_check_branch
      %38 = sbr.rel (0) target = $region45
    $region44: #{dqn_forward.25} parent=1 // pred_region
      _
    $region45: #{dqn_forward.25} parent=1 // pred_fallthru
      _
    %v40 = vld [vmem:[%s0] sm:$0xf]
    %v41 = vld [vmem:[%s2] sm:$0xff]
    %v42 = vld [vmem:[%s2 + $0x8] sm:$0xff]
    %v43 = vld [vmem:[%s2 + $0x10] sm:$0xff]
    %v44 = vld [vmem:[%s2 + $0x18] sm:$0xff]
    %v45 = vld [vmem:[%s2 + $0x20] sm:$0xff]
    %v46 = vld [vmem:[%s2 + $0x28] sm:$0xff]
    %v47 = vld [vmem:[%s2 + $0x30] sm:$0xff]
    %v48 = vld [vmem:[%s2 + $0x38] sm:$0xff]
    %v49 = vld [vmem:[%s3] sm:$0xf]
    %v51 = vperm.slane %v49, 0
    %v52 = vperm.slane %v49, 1
    %v53 = vperm.slane %v49, 2
    %v54 = vperm.slane %v49, 3
    %v67 = vunpack.c.l.b16 %v41
    %v68 = vunpack.c.h.b16 %v41
    %v69 = vunpack.c.l.b16 %v42
    %v70 = vunpack.c.h.b16 %v42
    %v71 = vunpack.c.l.b16 %v43
    %v72 = vunpack.c.h.b16 %v43
    %v73 = vunpack.c.l.b16 %v44
    %v74 = vunpack.c.h.b16 %v44
    %v75 = vunpack.c.l.b16 %v45
    %v76 = vunpack.c.h.b16 %v45
    %v77 = vunpack.c.l.b16 %v46
    %v78 = vunpack.c.h.b16 %v46
    %v79 = vunpack.c.l.b16 %v47
    %v80 = vunpack.c.h.b16 %v47
    %v81 = vunpack.c.l.b16 %v48
    %v82 = vunpack.c.h.b16 %v48
    %v83 = vpack.c.b16 %v71, %v67
    %v84 = vpack.c.b16 %v72, %v68
    %v85 = vpack.c.b16 %v73, %v69
    %v86 = vpack.c.b16 %v74, %v70
    %v87 = vpack.c.b16 %v79, %v75
    %v88 = vpack.c.b16 %v80, %v76
    %v89 = vpack.c.b16 %v81, %v77
    %v90 = vpack.c.b16 %v82, %v78
    %vm99 = vcmask 261120
    %v101 = vsel %vm99, %v40, 0
    %103 = vmatpush.bf16.msra.mxu0 0
    %104 = vmatpush.bf16.msra.mxu0 0
    %105 = vmatpush.bf16.msra.mxu0 0
    %106 = vmatpush.bf16.msra.mxu0 0
    %107 = vmatpush.bf16.msra.mxu0 0
    %108 = vmatpush.bf16.msra.mxu0 0
    %109 = vmatpush.bf16.msra.mxu0 %v87
    %110 = vmatpush.bf16.msra.mxu0 %v83
    %111 = vmatmul.bf16.gmra.mxu0 %v101
    %v112 = vpop.f32.mrf.mxu0
    %v113 = vadd.f32 %v51, %v112
    %v114 = vpop.f32.mrf.mxu0
    %115 = vdwg.mxu0
    %116 = vmatpush.bf16.msra.mxu0 0
    %117 = vmatpush.bf16.msra.mxu0 0
    %118 = vmatpush.bf16.msra.mxu0 0
    %119 = vmatpush.bf16.msra.mxu0 0
    %120 = vmatpush.bf16.msra.mxu0 0
    %121 = vmatpush.bf16.msra.mxu0 0
    %122 = vmatpush.bf16.msra.mxu0 %v88
    %123 = vmatpush.bf16.msra.mxu0 %v84
    %124 = vmatmul.bf16.gmra.mxu0 %v101
    %v125 = vpop.f32.mrf.mxu0
    %v126 = vadd.f32 %v52, %v125
    %v127 = vpop.f32.mrf.mxu0
    %128 = vdwg.mxu0
    %129 = vmatpush.bf16.msra.mxu0 0
    %130 = vmatpush.bf16.msra.mxu0 0
    %131 = vmatpush.bf16.msra.mxu0 0
    %132 = vmatpush.bf16.msra.mxu0 0
    %133 = vmatpush.bf16.msra.mxu0 0
    %134 = vmatpush.bf16.msra.mxu0 0
    %135 = vmatpush.bf16.msra.mxu0 %v89
    %136 = vmatpush.bf16.msra.mxu0 %v85
    %137 = vmatmul.bf16.gmra.mxu0 %v101
    %v138 = vpop.f32.mrf.mxu0
    %v139 = vadd.f32 %v53, %v138
    %v140 = vpop.f32.mrf.mxu0
    %141 = vdwg.mxu0
    %142 = vmatpush.bf16.msra.mxu0 0
    %143 = vmatpush.bf16.msra.mxu0 0
    %144 = vmatpush.bf16.msra.mxu0 0
    %145 = vmatpush.bf16.msra.mxu0 0
    %146 = vmatpush.bf16.msra.mxu0 0
    %147 = vmatpush.bf16.msra.mxu0 0
    %148 = vmatpush.bf16.msra.mxu0 %v90
    %149 = vmatpush.bf16.msra.mxu0 %v86
    %150 = vmatmul.bf16.gmra.mxu0 %v101
    %v151 = vpop.f32.mrf.mxu0
    %v152 = vadd.f32 %v54, %v151
    %v153 = vpop.f32.mrf.mxu0
    %154 = vdwg.mxu0
    %v155 = vmax.f32 %v113, 0.0
    %v156 = vmax.f32 %v126, 0.0
    %v157 = vmax.f32 %v139, 0.0
    %v158 = vmax.f32 %v152, 0.0
    %v159 = vpack.c.bf16 %v155, %v155
    %v160 = vpack.c.bf16 %v156, %v156
    %v161 = vpack.c.bf16 %v157, %v157
    %v162 = vpack.c.bf16 %v158, %v158
    %v163 = vld [vmem:[%s4] sm:$0xff]
    %v164 = vld [vmem:[%s4 + $0x8] sm:$0xff]
    %v165 = vld [vmem:[%s4 + $0x10] sm:$0xff]
    %v166 = vld [vmem:[%s4 + $0x18] sm:$0xff]
    %v167 = vld [vmem:[%s4 + $0x20] sm:$0xff]
    %v168 = vld [vmem:[%s4 + $0x28] sm:$0xff]
    %v169 = vld [vmem:[%s4 + $0x30] sm:$0xff]
    %v170 = vld [vmem:[%s4 + $0x38] sm:$0xff]
    %v171 = vld [vmem:[%s4 + $0x40] sm:$0xff]
    %v172 = vld [vmem:[%s4 + $0x48] sm:$0xff]
    %v173 = vld [vmem:[%s4 + $0x50] sm:$0xff]
    %v174 = vld [vmem:[%s4 + $0x58] sm:$0xff]
    %v175 = vld [vmem:[%s4 + $0x60] sm:$0xff]
    %v176 = vld [vmem:[%s4 + $0x68] sm:$0xff]
    %v177 = vld [vmem:[%s4 + $0x70] sm:$0xff]
    %v178 = vld [vmem:[%s4 + $0x78] sm:$0xff]
    %v179 = vld [vmem:[%s4 + $0x80] sm:$0xff]
    %v180 = vld [vmem:[%s4 + $0x88] sm:$0xff]
    %v181 = vld [vmem:[%s4 + $0x90] sm:$0xff]
    %v182 = vld [vmem:[%s4 + $0x98] sm:$0xff]
    %v183 = vld [vmem:[%s4 + $0xa0] sm:$0xff]
    %v184 = vld [vmem:[%s4 + $0xa8] sm:$0xff]
    %v185 = vld [vmem:[%s4 + $0xb0] sm:$0xff]
    %v186 = vld [vmem:[%s4 + $0xb8] sm:$0xff]
    %v187 = vld [vmem:[%s4 + $0xc0] sm:$0xff]
    %v188 = vld [vmem:[%s4 + $0xc8] sm:$0xff]
    %v189 = vld [vmem:[%s4 + $0xd0] sm:$0xff]
    %v190 = vld [vmem:[%s4 + $0xd8] sm:$0xff]
    %v191 = vld [vmem:[%s4 + $0xe0] sm:$0xff]
    %v192 = vld [vmem:[%s4 + $0xe8] sm:$0xff]
    %v193 = vld [vmem:[%s4 + $0xf0] sm:$0xff]
    %v194 = vld [vmem:[%s4 + $0xf8] sm:$0xff]
    %v195 = vld [vmem:[%s4 + $0x100] sm:$0xff]
    %v196 = vld [vmem:[%s4 + $0x108] sm:$0xff]
    %v197 = vld [vmem:[%s4 + $0x110] sm:$0xff]
    %v198 = vld [vmem:[%s4 + $0x118] sm:$0xff]
    %v199 = vld [vmem:[%s4 + $0x120] sm:$0xff]
    %v200 = vld [vmem:[%s4 + $0x128] sm:$0xff]
    %v201 = vld [vmem:[%s4 + $0x130] sm:$0xff]
    %v202 = vld [vmem:[%s4 + $0x138] sm:$0xff]
    %v203 = vld [vmem:[%s4 + $0x140] sm:$0xff]
    %v204 = vld [vmem:[%s4 + $0x148] sm:$0xff]
    %v205 = vld [vmem:[%s4 + $0x150] sm:$0xff]
    %v206 = vld [vmem:[%s4 + $0x158] sm:$0xff]
    %v207 = vld [vmem:[%s4 + $0x160] sm:$0xff]
    %v208 = vld [vmem:[%s4 + $0x168] sm:$0xff]
    %v209 = vld [vmem:[%s4 + $0x170] sm:$0xff]
    %v210 = vld [vmem:[%s4 + $0x178] sm:$0xff]
    %v211 = vld [vmem:[%s4 + $0x180] sm:$0xff]
    %v212 = vld [vmem:[%s4 + $0x188] sm:$0xff]
    %v213 = vld [vmem:[%s4 + $0x190] sm:$0xff]
    %v214 = vld [vmem:[%s4 + $0x198] sm:$0xff]
    %v215 = vld [vmem:[%s4 + $0x1a0] sm:$0xff]
    %v216 = vld [vmem:[%s4 + $0x1a8] sm:$0xff]
    %v217 = vld [vmem:[%s4 + $0x1b0] sm:$0xff]
    %v218 = vld [vmem:[%s4 + $0x1b8] sm:$0xff]
    %v219 = vld [vmem:[%s4 + $0x1c0] sm:$0xff]
    %v220 = vld [vmem:[%s4 + $0x1c8] sm:$0xff]
    %v221 = vld [vmem:[%s4 + $0x1d0] sm:$0xff]
    %v222 = vld [vmem:[%s4 + $0x1d8] sm:$0xff]
    %v223 = vld [vmem:[%s4 + $0x1e0] sm:$0xff]
    %v224 = vld [vmem:[%s4 + $0x1e8] sm:$0xff]
    %v225 = vld [vmem:[%s4 + $0x1f0] sm:$0xff]
    %v226 = vld [vmem:[%s4 + $0x1f8] sm:$0xff]
    %v227 = vld [vmem:[%s5] sm:$0x3]
    %v229 = vperm.slane %v227, 0
    %v230 = vperm.slane %v227, 1
    %v297 = vunpack.c.l.b16 %v163
    %v298 = vunpack.c.h.b16 %v163
    %v299 = vunpack.c.l.b16 %v164
    %v300 = vunpack.c.h.b16 %v164
    %v301 = vunpack.c.l.b16 %v165
    %v302 = vunpack.c.h.b16 %v165
    %v303 = vunpack.c.l.b16 %v166
    %v304 = vunpack.c.h.b16 %v166
    %v305 = vunpack.c.l.b16 %v167
    %v306 = vunpack.c.h.b16 %v167
    %v307 = vunpack.c.l.b16 %v168
    %v308 = vunpack.c.h.b16 %v168
    %v309 = vunpack.c.l.b16 %v169
    %v310 = vunpack.c.h.b16 %v169
    %v311 = vunpack.c.l.b16 %v170
    %v312 = vunpack.c.h.b16 %v170
    %v313 = vunpack.c.l.b16 %v171
    %v314 = vunpack.c.h.b16 %v171
    %v315 = vunpack.c.l.b16 %v172
    %v316 = vunpack.c.h.b16 %v172
    %v317 = vunpack.c.l.b16 %v173
    %v318 = vunpack.c.h.b16 %v173
    %v319 = vunpack.c.l.b16 %v174
    %v320 = vunpack.c.h.b16 %v174
    %v321 = vunpack.c.l.b16 %v175
    %v322 = vunpack.c.h.b16 %v175
    %v323 = vunpack.c.l.b16 %v176
    %v324 = vunpack.c.h.b16 %v176
    %v325 = vunpack.c.l.b16 %v177
    %v326 = vunpack.c.h.b16 %v177
    %v327 = vunpack.c.l.b16 %v178
    %v328 = vunpack.c.h.b16 %v178
    %v329 = vunpack.c.l.b16 %v179
    %v330 = vunpack.c.h.b16 %v179
    %v331 = vunpack.c.l.b16 %v180
    %v332 = vunpack.c.h.b16 %v180
    %v333 = vunpack.c.l.b16 %v181
    %v334 = vunpack.c.h.b16 %v181
    %v335 = vunpack.c.l.b16 %v182
    %v336 = vunpack.c.h.b16 %v182
    %v337 = vunpack.c.l.b16 %v183
    %v338 = vunpack.c.h.b16 %v183
    %v339 = vunpack.c.l.b16 %v184
    %v340 = vunpack.c.h.b16 %v184
    %v341 = vunpack.c.l.b16 %v185
    %v342 = vunpack.c.h.b16 %v185
    %v343 = vunpack.c.l.b16 %v186
    %v344 = vunpack.c.h.b16 %v186
    %v345 = vunpack.c.l.b16 %v187
    %v346 = vunpack.c.h.b16 %v187
    %v347 = vunpack.c.l.b16 %v188
    %v348 = vunpack.c.h.b16 %v188
    %v349 = vunpack.c.l.b16 %v189
    %v350 = vunpack.c.h.b16 %v189
    %v351 = vunpack.c.l.b16 %v190
    %v352 = vunpack.c.h.b16 %v190
    %v353 = vunpack.c.l.b16 %v191
    %v354 = vunpack.c.h.b16 %v191
    %v355 = vunpack.c.l.b16 %v192
    %v356 = vunpack.c.h.b16 %v192
    %v357 = vunpack.c.l.b16 %v193
    %v358 = vunpack.c.h.b16 %v193
    %v359 = vunpack.c.l.b16 %v194
    %v360 = vunpack.c.h.b16 %v194
    %v361 = vunpack.c.l.b16 %v195
    %v362 = vunpack.c.h.b16 %v195
    %v363 = vunpack.c.l.b16 %v196
    %v364 = vunpack.c.h.b16 %v196
    %v365 = vunpack.c.l.b16 %v197
    %v366 = vunpack.c.h.b16 %v197
    %v367 = vunpack.c.l.b16 %v198
    %v368 = vunpack.c.h.b16 %v198
    %v369 = vunpack.c.l.b16 %v199
    %v370 = vunpack.c.h.b16 %v199
    %v371 = vunpack.c.l.b16 %v200
    %v372 = vunpack.c.h.b16 %v200
    %v373 = vunpack.c.l.b16 %v201
    %v374 = vunpack.c.h.b16 %v201
    %v375 = vunpack.c.l.b16 %v202
    %v376 = vunpack.c.h.b16 %v202
    %v377 = vunpack.c.l.b16 %v203
    %v378 = vunpack.c.h.b16 %v203
    %v379 = vunpack.c.l.b16 %v204
    %v380 = vunpack.c.h.b16 %v204
    %v381 = vunpack.c.l.b16 %v205
    %v382 = vunpack.c.h.b16 %v205
    %v383 = vunpack.c.l.b16 %v206
    %v384 = vunpack.c.h.b16 %v206
    %v385 = vunpack.c.l.b16 %v207
    %v386 = vunpack.c.h.b16 %v207
    %v387 = vunpack.c.l.b16 %v208
    %v388 = vunpack.c.h.b16 %v208
    %v389 = vunpack.c.l.b16 %v209
    %v390 = vunpack.c.h.b16 %v209
    %v391 = vunpack.c.l.b16 %v210
    %v392 = vunpack.c.h.b16 %v210
    %v393 = vunpack.c.l.b16 %v211
    %v394 = vunpack.c.h.b16 %v211
    %v395 = vunpack.c.l.b16 %v212
    %v396 = vunpack.c.h.b16 %v212
    %v397 = vunpack.c.l.b16 %v213
    %v398 = vunpack.c.h.b16 %v213
    %v399 = vunpack.c.l.b16 %v214
    %v400 = vunpack.c.h.b16 %v214
    %v401 = vunpack.c.l.b16 %v215
    %v402 = vunpack.c.h.b16 %v215
    %v403 = vunpack.c.l.b16 %v216
    %v404 = vunpack.c.h.b16 %v216
    %v405 = vunpack.c.l.b16 %v217
    %v406 = vunpack.c.h.b16 %v217
    %v407 = vunpack.c.l.b16 %v218
    %v408 = vunpack.c.h.b16 %v218
    %v409 = vunpack.c.l.b16 %v219
    %v410 = vunpack.c.h.b16 %v219
    %v411 = vunpack.c.l.b16 %v220
    %v412 = vunpack.c.h.b16 %v220
    %v413 = vunpack.c.l.b16 %v221
    %v414 = vunpack.c.h.b16 %v221
    %v415 = vunpack.c.l.b16 %v222
    %v416 = vunpack.c.h.b16 %v222
    %v417 = vunpack.c.l.b16 %v223
    %v418 = vunpack.c.h.b16 %v223
    %v419 = vunpack.c.l.b16 %v224
    %v420 = vunpack.c.h.b16 %v224
    %v421 = vunpack.c.l.b16 %v225
    %v422 = vunpack.c.h.b16 %v225
    %v423 = vunpack.c.l.b16 %v226
    %v424 = vunpack.c.h.b16 %v226
    %v425 = vpack.c.b16 %v299, %v297
    %v426 = vpack.c.b16 %v300, %v298
    %v427 = vpack.c.b16 %v303, %v301
    %v428 = vpack.c.b16 %v304, %v302
    %v429 = vpack.c.b16 %v307, %v305
    %v430 = vpack.c.b16 %v308, %v306
    %v431 = vpack.c.b16 %v311, %v309
    %v432 = vpack.c.b16 %v312, %v310
    %v433 = vpack.c.b16 %v315, %v313
    %v434 = vpack.c.b16 %v316, %v314
    %v435 = vpack.c.b16 %v319, %v317
    %v436 = vpack.c.b16 %v320, %v318
    %v437 = vpack.c.b16 %v323, %v321
    %v438 = vpack.c.b16 %v324, %v322
    %v439 = vpack.c.b16 %v327, %v325
    %v440 = vpack.c.b16 %v328, %v326
    %v441 = vpack.c.b16 %v331, %v329
    %v442 = vpack.c.b16 %v332, %v330
    %v443 = vpack.c.b16 %v335, %v333
    %v444 = vpack.c.b16 %v336, %v334
    %v445 = vpack.c.b16 %v339, %v337
    %v446 = vpack.c.b16 %v340, %v338
    %v447 = vpack.c.b16 %v343, %v341
    %v448 = vpack.c.b16 %v344, %v342
    %v449 = vpack.c.b16 %v347, %v345
    %v450 = vpack.c.b16 %v348, %v346
    %v451 = vpack.c.b16 %v351, %v349
    %v452 = vpack.c.b16 %v352, %v350
    %v453 = vpack.c.b16 %v355, %v353
    %v454 = vpack.c.b16 %v356, %v354
    %v455 = vpack.c.b16 %v359, %v357
    %v456 = vpack.c.b16 %v360, %v358
    %v457 = vpack.c.b16 %v363, %v361
    %v458 = vpack.c.b16 %v364, %v362
    %v459 = vpack.c.b16 %v367, %v365
    %v460 = vpack.c.b16 %v368, %v366
    %v461 = vpack.c.b16 %v371, %v369
    %v462 = vpack.c.b16 %v372, %v370
    %v463 = vpack.c.b16 %v375, %v373
    %v464 = vpack.c.b16 %v376, %v374
    %v465 = vpack.c.b16 %v379, %v377
    %v466 = vpack.c.b16 %v380, %v378
    %v467 = vpack.c.b16 %v383, %v381
    %v468 = vpack.c.b16 %v384, %v382
    %v469 = vpack.c.b16 %v387, %v385
    %v470 = vpack.c.b16 %v388, %v386
    %v471 = vpack.c.b16 %v391, %v389
    %v472 = vpack.c.b16 %v392, %v390
    %v473 = vpack.c.b16 %v395, %v393
    %v474 = vpack.c.b16 %v396, %v394
    %v475 = vpack.c.b16 %v399, %v397
    %v476 = vpack.c.b16 %v400, %v398
    %v477 = vpack.c.b16 %v403, %v401
    %v478 = vpack.c.b16 %v404, %v402
    %v479 = vpack.c.b16 %v407, %v405
    %v480 = vpack.c.b16 %v408, %v406
    %v481 = vpack.c.b16 %v411, %v409
    %v482 = vpack.c.b16 %v412, %v410
    %v483 = vpack.c.b16 %v415, %v413
    %v484 = vpack.c.b16 %v416, %v414
    %v485 = vpack.c.b16 %v419, %v417
    %v486 = vpack.c.b16 %v420, %v418
    %v487 = vpack.c.b16 %v423, %v421
    %v488 = vpack.c.b16 %v424, %v422
    %553 = vmatpush.bf16.msra.mxu0 %v439
    %554 = vmatpush.bf16.msra.mxu0 %v437
    %555 = vmatpush.bf16.msra.mxu0 %v435
    %556 = vmatpush.bf16.msra.mxu0 %v433
    %557 = vmatpush.bf16.msra.mxu0 %v431
    %558 = vmatpush.bf16.msra.mxu0 %v429
    %559 = vmatpush.bf16.msra.mxu0 %v427
    %560 = vmatpush.bf16.msra.mxu0 %v425
    %561 = vmatmul.bf16.gmra.mxu0 %v159
    %v562 = vpop.f32.mrf.mxu0
    %v563 = vadd.f32 %v229, %v562
    %v564 = vpop.f32.mrf.mxu0
    %565 = vdwg.mxu0
    %566 = vmatpush.bf16.msra.mxu0 %v455
    %567 = vmatpush.bf16.msra.mxu0 %v453
    %568 = vmatpush.bf16.msra.mxu0 %v451
    %569 = vmatpush.bf16.msra.mxu0 %v449
    %570 = vmatpush.bf16.msra.mxu0 %v447
    %571 = vmatpush.bf16.msra.mxu0 %v445
    %572 = vmatpush.bf16.msra.mxu0 %v443
    %573 = vmatpush.bf16.msra.mxu0 %v441
    %574 = vmatmul.bf16.gmra.mxu0 %v160
    %v575 = vpop.f32.mrf.mxu0
    %v576 = vadd.f32 %v563, %v575
    %v577 = vpop.f32.mrf.mxu0
    %578 = vdwg.mxu0
    %579 = vmatpush.bf16.msra.mxu0 %v471
    %580 = vmatpush.bf16.msra.mxu0 %v469
    %581 = vmatpush.bf16.msra.mxu0 %v467
    %582 = vmatpush.bf16.msra.mxu0 %v465
    %583 = vmatpush.bf16.msra.mxu0 %v463
    %584 = vmatpush.bf16.msra.mxu0 %v461
    %585 = vmatpush.bf16.msra.mxu0 %v459
    %586 = vmatpush.bf16.msra.mxu0 %v457
    %587 = vmatmul.bf16.gmra.mxu0 %v161
    %v588 = vpop.f32.mrf.mxu0
    %v589 = vadd.f32 %v576, %v588
    %v590 = vpop.f32.mrf.mxu0
    %591 = vdwg.mxu0
    %592 = vmatpush.bf16.msra.mxu0 %v487
    %593 = vmatpush.bf16.msra.mxu0 %v485
    %594 = vmatpush.bf16.msra.mxu0 %v483
    %595 = vmatpush.bf16.msra.mxu0 %v481
    %596 = vmatpush.bf16.msra.mxu0 %v479
    %597 = vmatpush.bf16.msra.mxu0 %v477
    %598 = vmatpush.bf16.msra.mxu0 %v475
    %599 = vmatpush.bf16.msra.mxu0 %v473
    %600 = vmatmul.bf16.gmra.mxu0 %v162
    %v601 = vpop.f32.mrf.mxu0
    %v602 = vadd.f32 %v589, %v601
    %v603 = vpop.f32.mrf.mxu0
    %604 = vdwg.mxu0
    %605 = vmatpush.bf16.msra.mxu0 %v440
    %606 = vmatpush.bf16.msra.mxu0 %v438
    %607 = vmatpush.bf16.msra.mxu0 %v436
    %608 = vmatpush.bf16.msra.mxu0 %v434
    %609 = vmatpush.bf16.msra.mxu0 %v432
    %610 = vmatpush.bf16.msra.mxu0 %v430
    %611 = vmatpush.bf16.msra.mxu0 %v428
    %612 = vmatpush.bf16.msra.mxu0 %v426
    %613 = vmatmul.bf16.gmra.mxu0 %v159
    %v614 = vpop.f32.mrf.mxu0
    %v615 = vadd.f32 %v230, %v614
    %v616 = vpop.f32.mrf.mxu0
    %617 = vdwg.mxu0
    %618 = vmatpush.bf16.msra.mxu0 %v456
    %619 = vmatpush.bf16.msra.mxu0 %v454
    %620 = vmatpush.bf16.msra.mxu0 %v452
    %621 = vmatpush.bf16.msra.mxu0 %v450
    %622 = vmatpush.bf16.msra.mxu0 %v448
    %623 = vmatpush.bf16.msra.mxu0 %v446
    %624 = vmatpush.bf16.msra.mxu0 %v444
    %625 = vmatpush.bf16.msra.mxu0 %v442
    %626 = vmatmul.bf16.gmra.mxu0 %v160
    %v627 = vpop.f32.mrf.mxu0
    %v628 = vadd.f32 %v615, %v627
    %v629 = vpop.f32.mrf.mxu0
    %630 = vdwg.mxu0
    %631 = vmatpush.bf16.msra.mxu0 %v472
    %632 = vmatpush.bf16.msra.mxu0 %v470
    %633 = vmatpush.bf16.msra.mxu0 %v468
    %634 = vmatpush.bf16.msra.mxu0 %v466
    %635 = vmatpush.bf16.msra.mxu0 %v464
    %636 = vmatpush.bf16.msra.mxu0 %v462
    %637 = vmatpush.bf16.msra.mxu0 %v460
    %638 = vmatpush.bf16.msra.mxu0 %v458
    %639 = vmatmul.bf16.gmra.mxu0 %v161
    %v640 = vpop.f32.mrf.mxu0
    %v641 = vadd.f32 %v628, %v640
    %v642 = vpop.f32.mrf.mxu0
    %643 = vdwg.mxu0
    %644 = vmatpush.bf16.msra.mxu0 %v488
    %645 = vmatpush.bf16.msra.mxu0 %v486
    %646 = vmatpush.bf16.msra.mxu0 %v484
    %647 = vmatpush.bf16.msra.mxu0 %v482
    %648 = vmatpush.bf16.msra.mxu0 %v480
    %649 = vmatpush.bf16.msra.mxu0 %v478
    %650 = vmatpush.bf16.msra.mxu0 %v476
    %651 = vmatpush.bf16.msra.mxu0 %v474
    %652 = vmatmul.bf16.gmra.mxu0 %v162
    %v653 = vpop.f32.mrf.mxu0
    %v654 = vadd.f32 %v641, %v653
    %v655 = vpop.f32.mrf.mxu0
    %656 = vdwg.mxu0
    %v657 = vmax.f32 %v602, 0.0
    %v658 = vmax.f32 %v654, 0.0
    %v659 = vpack.c.bf16 %v657, %v657
    %v660 = vpack.c.bf16 %v658, %v658
    %v661 = vld [vmem:[%s6] sm:$0xf]
    %v662 = vld [vmem:[%s6 + $0x4] sm:$0xf]
    %v663 = vld [vmem:[%s6 + $0x8] sm:$0xf]
    %v664 = vld [vmem:[%s6 + $0xc] sm:$0xf]
    %v665 = vld [vmem:[%s6 + $0x10] sm:$0xf]
    %v666 = vld [vmem:[%s6 + $0x14] sm:$0xf]
    %v667 = vld [vmem:[%s6 + $0x18] sm:$0xf]
    %v668 = vld [vmem:[%s6 + $0x1c] sm:$0xf]
    %v669 = vld [vmem:[%s6 + $0x20] sm:$0xf]
    %v670 = vld [vmem:[%s6 + $0x24] sm:$0xf]
    %v671 = vld [vmem:[%s6 + $0x28] sm:$0xf]
    %v672 = vld [vmem:[%s6 + $0x2c] sm:$0xf]
    %v673 = vld [vmem:[%s6 + $0x30] sm:$0xf]
    %v674 = vld [vmem:[%s6 + $0x34] sm:$0xf]
    %v675 = vld [vmem:[%s6 + $0x38] sm:$0xf]
    %v676 = vld [vmem:[%s6 + $0x3c] sm:$0xf]
    %v677 = vld [vmem:[%s6 + $0x40] sm:$0xf]
    %v678 = vld [vmem:[%s6 + $0x44] sm:$0xf]
    %v679 = vld [vmem:[%s6 + $0x48] sm:$0xf]
    %v680 = vld [vmem:[%s6 + $0x4c] sm:$0xf]
    %v681 = vld [vmem:[%s6 + $0x50] sm:$0xf]
    %v682 = vld [vmem:[%s6 + $0x54] sm:$0xf]
    %v683 = vld [vmem:[%s6 + $0x58] sm:$0xf]
    %v684 = vld [vmem:[%s6 + $0x5c] sm:$0xf]
    %v685 = vld [vmem:[%s6 + $0x60] sm:$0xf]
    %v686 = vld [vmem:[%s6 + $0x64] sm:$0xf]
    %v687 = vld [vmem:[%s6 + $0x68] sm:$0xf]
    %v688 = vld [vmem:[%s6 + $0x6c] sm:$0xf]
    %v689 = vld [vmem:[%s6 + $0x70] sm:$0xf]
    %v690 = vld [vmem:[%s6 + $0x74] sm:$0xf]
    %v691 = vld [vmem:[%s6 + $0x78] sm:$0xf]
    %v692 = vld [vmem:[%s6 + $0x7c] sm:$0xf]
    %v693 = vld [vmem:[%s7] sm:$0x1]
    %v695 = vperm.slane %v693, 0
    %v729 = vunpack.c.l.b16 %v661
    %v730 = vunpack.c.l.b16 %v662
    %v731 = vunpack.c.l.b16 %v663
    %v732 = vunpack.c.l.b16 %v664
    %v733 = vunpack.c.l.b16 %v665
    %v734 = vunpack.c.l.b16 %v666
    %v735 = vunpack.c.l.b16 %v667
    %v736 = vunpack.c.l.b16 %v668
    %v737 = vunpack.c.l.b16 %v669
    %v738 = vunpack.c.l.b16 %v670
    %v739 = vunpack.c.l.b16 %v671
    %v740 = vunpack.c.l.b16 %v672
    %v741 = vunpack.c.l.b16 %v673
    %v742 = vunpack.c.l.b16 %v674
    %v743 = vunpack.c.l.b16 %v675
    %v744 = vunpack.c.l.b16 %v676
    %v745 = vunpack.c.l.b16 %v677
    %v746 = vunpack.c.l.b16 %v678
    %v747 = vunpack.c.l.b16 %v679
    %v748 = vunpack.c.l.b16 %v680
    %v749 = vunpack.c.l.b16 %v681
    %v750 = vunpack.c.l.b16 %v682
    %v751 = vunpack.c.l.b16 %v683
    %v752 = vunpack.c.l.b16 %v684
    %v753 = vunpack.c.l.b16 %v685
    %v754 = vunpack.c.l.b16 %v686
    %v755 = vunpack.c.l.b16 %v687
    %v756 = vunpack.c.l.b16 %v688
    %v757 = vunpack.c.l.b16 %v689
    %v758 = vunpack.c.l.b16 %v690
    %v759 = vunpack.c.l.b16 %v691
    %v760 = vunpack.c.l.b16 %v692
    %v761 = vpack.c.b16 %v730, %v729
    %v762 = vpack.c.b16 %v732, %v731
    %v763 = vpack.c.b16 %v734, %v733
    %v764 = vpack.c.b16 %v736, %v735
    %v765 = vpack.c.b16 %v738, %v737
    %v766 = vpack.c.b16 %v740, %v739
    %v767 = vpack.c.b16 %v742, %v741
    %v768 = vpack.c.b16 %v744, %v743
    %v769 = vpack.c.b16 %v746, %v745
    %v770 = vpack.c.b16 %v748, %v747
    %v771 = vpack.c.b16 %v750, %v749
    %v772 = vpack.c.b16 %v752, %v751
    %v773 = vpack.c.b16 %v754, %v753
    %v774 = vpack.c.b16 %v756, %v755
    %v775 = vpack.c.b16 %v758, %v757
    %v776 = vpack.c.b16 %v760, %v759
    %793 = vmatpush.bf16.msra.mxu0 %v768
    %794 = vmatpush.bf16.msra.mxu0 %v767
    %795 = vmatpush.bf16.msra.mxu0 %v766
    %796 = vmatpush.bf16.msra.mxu0 %v765
    %797 = vmatpush.bf16.msra.mxu0 %v764
    %798 = vmatpush.bf16.msra.mxu0 %v763
    %799 = vmatpush.bf16.msra.mxu0 %v762
    %800 = vmatpush.bf16.msra.mxu0 %v761
    %801 = vmatmul.bf16.gmra.mxu0 %v659
    %v802 = vpop.f32.mrf.mxu0
    %v803 = vadd.f32 %v695, %v802
    %v804 = vpop.f32.mrf.mxu0
    %805 = vdwg.mxu0
    %806 = vmatpush.bf16.msra.mxu0 %v776
    %807 = vmatpush.bf16.msra.mxu0 %v775
    %808 = vmatpush.bf16.msra.mxu0 %v774
    %809 = vmatpush.bf16.msra.mxu0 %v773
    %810 = vmatpush.bf16.msra.mxu0 %v772
    %811 = vmatpush.bf16.msra.mxu0 %v771
    %812 = vmatpush.bf16.msra.mxu0 %v770
    %813 = vmatpush.bf16.msra.mxu0 %v769
    %814 = vmatmul.bf16.gmra.mxu0 %v660
    %v815 = vpop.f32.mrf.mxu0
    %v816 = vadd.f32 %v803, %v815
    %v817 = vpop.f32.mrf.mxu0
    %818 = vdwg.mxu0
    %v819 = vmax.f32 %v816, 0.0
    %v820 = vpack.c.bf16 %v819, %v819
    %v821 = vld [vmem:[%s1] sm:$0xff]
    %v822 = vld [vmem:[%s8] sm:$0xf]
    %v823 = vld [vmem:[%s8 + $0x4] sm:$0xf]
    %v824 = vld [vmem:[%s8 + $0x8] sm:$0xf]
    %v825 = vld [vmem:[%s8 + $0xc] sm:$0xf]
    %v826 = vld [vmem:[%s8 + $0x10] sm:$0xf]
    %v827 = vld [vmem:[%s8 + $0x14] sm:$0xf]
    %v828 = vld [vmem:[%s8 + $0x18] sm:$0xf]
    %v829 = vld [vmem:[%s8 + $0x1c] sm:$0xf]
    %v830 = vld [vmem:[%s8 + $0x20] sm:$0xf]
    %v831 = vld [vmem:[%s8 + $0x24] sm:$0xf]
    %v832 = vld [vmem:[%s8 + $0x28] sm:$0xf]
    %v833 = vld [vmem:[%s8 + $0x2c] sm:$0xf]
    %v834 = vld [vmem:[%s8 + $0x30] sm:$0xf]
    %v835 = vld [vmem:[%s8 + $0x34] sm:$0xf]
    %v836 = vld [vmem:[%s8 + $0x38] sm:$0xf]
    %v837 = vld [vmem:[%s8 + $0x3c] sm:$0xf]
    %v838 = vld [vmem:[%s8 + $0x40] sm:$0xf]
    %v839 = vld [vmem:[%s8 + $0x44] sm:$0xf]
    %v840 = vld [vmem:[%s8 + $0x48] sm:$0xf]
    %v841 = vld [vmem:[%s8 + $0x4c] sm:$0xf]
    %v842 = vld [vmem:[%s8 + $0x50] sm:$0xf]
    %v843 = vld [vmem:[%s8 + $0x54] sm:$0xf]
    %v844 = vld [vmem:[%s8 + $0x58] sm:$0xf]
    %v845 = vld [vmem:[%s8 + $0x5c] sm:$0xf]
    %v846 = vld [vmem:[%s8 + $0x60] sm:$0xf]
    %v847 = vld [vmem:[%s8 + $0x64] sm:$0xf]
    %v848 = vld [vmem:[%s8 + $0x68] sm:$0xf]
    %v849 = vld [vmem:[%s8 + $0x6c] sm:$0xf]
    %v850 = vld [vmem:[%s8 + $0x70] sm:$0xf]
    %v851 = vld [vmem:[%s8 + $0x74] sm:$0xf]
    %v852 = vld [vmem:[%s8 + $0x78] sm:$0xf]
    %v853 = vld [vmem:[%s8 + $0x7c] sm:$0xf]
    %v854 = vld [vmem:[%s10] sm:$0x1]
    %v856 = vperm.slane %v854, 0
    %v859 = vunpack.c.l.b16 %v821
    %v860 = vunpack.c.h.b16 %v821
    %v861 = vpack.c.b16 %v859, %v859
    %v862 = vpack.c.b16 %v860, %v860
    %v897 = vunpack.c.l.b16 %v822
    %v898 = vunpack.c.l.b16 %v823
    %v899 = vunpack.c.l.b16 %v824
    %v900 = vunpack.c.l.b16 %v825
    %v901 = vunpack.c.l.b16 %v826
    %v902 = vunpack.c.l.b16 %v827
    %v903 = vunpack.c.l.b16 %v828
    %v904 = vunpack.c.l.b16 %v829
    %v905 = vunpack.c.l.b16 %v830
    %v906 = vunpack.c.l.b16 %v831
    %v907 = vunpack.c.l.b16 %v832
    %v908 = vunpack.c.l.b16 %v833
    %v909 = vunpack.c.l.b16 %v834
    %v910 = vunpack.c.l.b16 %v835
    %v911 = vunpack.c.l.b16 %v836
    %v912 = vunpack.c.l.b16 %v837
    %v913 = vunpack.c.l.b16 %v838
    %v914 = vunpack.c.l.b16 %v839
    %v915 = vunpack.c.l.b16 %v840
    %v916 = vunpack.c.l.b16 %v841
    %v917 = vunpack.c.l.b16 %v842
    %v918 = vunpack.c.l.b16 %v843
    %v919 = vunpack.c.l.b16 %v844
    %v920 = vunpack.c.l.b16 %v845
    %v921 = vunpack.c.l.b16 %v846
    %v922 = vunpack.c.l.b16 %v847
    %v923 = vunpack.c.l.b16 %v848
    %v924 = vunpack.c.l.b16 %v849
    %v925 = vunpack.c.l.b16 %v850
    %v926 = vunpack.c.l.b16 %v851
    %v927 = vunpack.c.l.b16 %v852
    %v928 = vunpack.c.l.b16 %v853
    %v929 = vpack.c.b16 %v898, %v897
    %v930 = vpack.c.b16 %v900, %v899
    %v931 = vpack.c.b16 %v902, %v901
    %v932 = vpack.c.b16 %v904, %v903
    %v933 = vpack.c.b16 %v906, %v905
    %v934 = vpack.c.b16 %v908, %v907
    %v935 = vpack.c.b16 %v910, %v909
    %v936 = vpack.c.b16 %v912, %v911
    %v937 = vpack.c.b16 %v914, %v913
    %v938 = vpack.c.b16 %v916, %v915
    %v939 = vpack.c.b16 %v918, %v917
    %v940 = vpack.c.b16 %v920, %v919
    %v941 = vpack.c.b16 %v922, %v921
    %v942 = vpack.c.b16 %v924, %v923
    %v943 = vpack.c.b16 %v926, %v925
    %v944 = vpack.c.b16 %v928, %v927
    %961 = vmatpush.bf16.msra.mxu0 %v936
    %962 = vmatpush.bf16.msra.mxu0 %v935
    %963 = vmatpush.bf16.msra.mxu0 %v934
    %964 = vmatpush.bf16.msra.mxu0 %v933
    %965 = vmatpush.bf16.msra.mxu0 %v932
    %966 = vmatpush.bf16.msra.mxu0 %v931
    %967 = vmatpush.bf16.msra.mxu0 %v930
    %968 = vmatpush.bf16.msra.mxu0 %v929
    %969 = vmatmul.bf16.gmra.mxu0 %v861
    %v970 = vpop.f32.mrf.mxu0
    %v971 = vadd.f32 %v856, %v970
    %v972 = vpop.f32.mrf.mxu0
    %973 = vdwg.mxu0
    %974 = vmatpush.bf16.msra.mxu0 %v944
    %975 = vmatpush.bf16.msra.mxu0 %v943
    %976 = vmatpush.bf16.msra.mxu0 %v942
    %977 = vmatpush.bf16.msra.mxu0 %v941
    %978 = vmatpush.bf16.msra.mxu0 %v940
    %979 = vmatpush.bf16.msra.mxu0 %v939
    %980 = vmatpush.bf16.msra.mxu0 %v938
    %981 = vmatpush.bf16.msra.mxu0 %v937
    %982 = vmatmul.bf16.gmra.mxu0 %v862
    %v983 = vpop.f32.mrf.mxu0
    %v984 = vadd.f32 %v971, %v983
    %v985 = vpop.f32.mrf.mxu0
    %986 = vdwg.mxu0
    %v987 = vld [vmem:[%s9] sm:$0xf]
    %v988 = vld [vmem:[%s9 + $0x4] sm:$0xf]
    %v989 = vld [vmem:[%s9 + $0x8] sm:$0xf]
    %v990 = vld [vmem:[%s9 + $0xc] sm:$0xf]
    %v991 = vld [vmem:[%s9 + $0x10] sm:$0xf]
    %v992 = vld [vmem:[%s9 + $0x14] sm:$0xf]
    %v993 = vld [vmem:[%s9 + $0x18] sm:$0xf]
    %v994 = vld [vmem:[%s9 + $0x1c] sm:$0xf]
    %v995 = vld [vmem:[%s9 + $0x20] sm:$0xf]
    %v996 = vld [vmem:[%s9 + $0x24] sm:$0xf]
    %v997 = vld [vmem:[%s9 + $0x28] sm:$0xf]
    %v998 = vld [vmem:[%s9 + $0x2c] sm:$0xf]
    %v999 = vld [vmem:[%s9 + $0x30] sm:$0xf]
    %v1000 = vld [vmem:[%s9 + $0x34] sm:$0xf]
    %v1001 = vld [vmem:[%s9 + $0x38] sm:$0xf]
    %v1002 = vld [vmem:[%s9 + $0x3c] sm:$0xf]
    %v1019 = vunpack.c.l.b16 %v987
    %v1020 = vunpack.c.l.b16 %v988
    %v1021 = vunpack.c.l.b16 %v989
    %v1022 = vunpack.c.l.b16 %v990
    %v1023 = vunpack.c.l.b16 %v991
    %v1024 = vunpack.c.l.b16 %v992
    %v1025 = vunpack.c.l.b16 %v993
    %v1026 = vunpack.c.l.b16 %v994
    %v1027 = vunpack.c.l.b16 %v995
    %v1028 = vunpack.c.l.b16 %v996
    %v1029 = vunpack.c.l.b16 %v997
    %v1030 = vunpack.c.l.b16 %v998
    %v1031 = vunpack.c.l.b16 %v999
    %v1032 = vunpack.c.l.b16 %v1000
    %v1033 = vunpack.c.l.b16 %v1001
    %v1034 = vunpack.c.l.b16 %v1002
    %v1035 = vpack.c.b16 %v1020, %v1019
    %v1036 = vpack.c.b16 %v1022, %v1021
    %v1037 = vpack.c.b16 %v1024, %v1023
    %v1038 = vpack.c.b16 %v1026, %v1025
    %v1039 = vpack.c.b16 %v1028, %v1027
    %v1040 = vpack.c.b16 %v1030, %v1029
    %v1041 = vpack.c.b16 %v1032, %v1031
    %v1042 = vpack.c.b16 %v1034, %v1033
    %1051 = vmatpush.bf16.msra.mxu0 %v1042
    %1052 = vmatpush.bf16.msra.mxu0 %v1041
    %1053 = vmatpush.bf16.msra.mxu0 %v1040
    %1054 = vmatpush.bf16.msra.mxu0 %v1039
    %1055 = vmatpush.bf16.msra.mxu0 %v1038
    %1056 = vmatpush.bf16.msra.mxu0 %v1037
    %1057 = vmatpush.bf16.msra.mxu0 %v1036
    %1058 = vmatpush.bf16.msra.mxu0 %v1035
    %1059 = vmatmul.bf16.gmra.mxu0 %v820
    %v1060 = vpop.f32.mrf.mxu0
    %v1061 = vadd.f32 0.0, %v1060
    %v1062 = vpop.f32.mrf.mxu0
    %1063 = vdwg.mxu0
    %v1064 = vperm.slane %v1061, 0
    %v1065 = vadd.f32 %v984, %v1064
    %vm1066 = vcmask 57344
    %1067 = vst.msk [vmem:[#allocation2] sm:$0x1] %vm1066, %v1065
    // Predicated region
    $region46: #{dqn_forward.25} parent=1 // pred_check
      _
    $region47: #{dqn_forward.25} parent=1 // pred_check_branch
      %1069 = sbr.rel (0) target = $region49
    $region48: #{dqn_forward.25} parent=1 // pred_region
      %1071 = vsyncadd [#allocation3], 0
      %s1073 = sshll.u32 [#allocation2], 4
      %s1074 = int_to_ptr.vmem [resolvable:$true] %s1073
      %s1075 = sshll.u32 %s11, 4
      %s1076 = int_to_ptr.hbm [resolvable:$true] %s1075
      %1078 = dma.vmem_to_hbm [thread:$0]  %s1074, 16, %s1076, [#allocation3]
    $region49: #{dqn_forward.25} parent=1 // pred_fallthru
      _
    // Predicated region
    $region50: #{dqn_forward.25} parent=1 // pred_check
      _
    $region51: #{dqn_forward.25} parent=1 // pred_check_branch
      %1080 = sbr.rel (0) target = $region53
    $region52: #{dqn_forward.25} parent=1 // pred_region
      %1082 = dma.done [#allocation3], 16
    $region53: #{dqn_forward.25} parent=1 // pred_fallthru
      _
    %1083 = vsyncpa [#allocation3], 1

</llo_original>
